<compile_context>
chip_gen: v7x
topology: tpu7x:2x2x1
jax: 0.10.0
libtpu: 0.0.40
codegen_flags: <defaults>
</compile_context>

<pallas_src>
import functools
import math

import jax
import jax.numpy as jnp
from jax.experimental import pallas as pl
from jax.experimental.pallas import tpu as pltpu


_PAD_COORD = 1.0e6   # padded points live "at infinity" -> Gaussian weight == 0


# ----------------------------------------------------------------------------
# Fused (prologue ChannelConvs -> MultiGaussSpatialConv -> epilogue convs)
# ----------------------------------------------------------------------------
def _fused_spatial_kernel(scale, squarings, r2s, weight_list, pro_acts,
                          epi_acts, mxu_dtype, xq_ref, ysrc_ref, f_ref, *rest):
    n_pro, n_epi = len(pro_acts), len(epi_acts)
    pro_refs = rest[:2 * n_pro]
    epi_refs = rest[2 * n_pro:2 * (n_pro + n_epi)]
    o_ref = rest[2 * (n_pro + n_epi)]
    acc = rest[2 * (n_pro + n_epi) + 1]   # (n_sig, C_mid+1, TN) f32 scratch
                                          # rows 0..C_mid-1 = numerator,
                                          # row  C_mid      = denominator.

    m_idx = pl.program_id(2)
    last_m = pl.num_programs(2) - 1

    def mm(a, b):
        # MXU matmul; optionally bf16 inputs (f32 accumulation) on v5e/v6e/v7x.
        if mxu_dtype is not None:
            a = a.astype(mxu_dtype)
            b = b.astype(mxu_dtype)
        return jnp.dot(a, b, preferred_element_type=jnp.float32)

    @pl.when(m_idx == 0)
    def _():
        acc[...] = jnp.zeros_like(acc)

    # --- prologue ChannelConvs on the source tile (per-point Linear+LeakyReLU)
    # TODO(synk): for very large N/TN this per-(n,m)-tile recompute should be
    #             hoisted into a one-shot per-point pass; negligible here.
    f = f_ref[0].astype(jnp.float32)                        # (C_in, TM)
    for p, act in enumerate(pro_acts):
        w = pro_refs[2 * p][...].astype(jnp.float32)        # (Cout, Cin)
        b = pro_refs[2 * p + 1][...].astype(jnp.float32)    # (Cout, 1)
        if w.shape[1] == 1:
            f = w * f + b          # Cin==1: keep tiny conv off the MXU (VPU)
        else:
            f = mm(w, f) + b
        if act:
            f = jnp.where(f > 0, f, 0.1 * f)                # LeakyReLU(0.1)
    # Denominator rides the same MXU pass as the numerator (ones row appended;
    # C_mid <= 64 rows leave the MXU heavily under-filled so the row is free).
    f_aug = jnp.concatenate(
        [f, jnp.ones((1, f.shape[1]), jnp.float32)], axis=0)  # (C_mid+1, TM)

    # --- pairwise squared distances, coords pre-scaled for the LARGEST sigma -
    xq = xq_ref[0].astype(jnp.float32) * scale              # (3, TN)
    ys = ysrc_ref[0].astype(jnp.float32) * scale            # (TM, 3)
    diff = ys[:, 0:1] - xq[0:1, :]
    d2s = diff * diff                                       # (TM, TN)
    for d in (1, 2):
        diff = ys[:, d:d + 1] - xq[d:d + 1, :]
        d2s = d2s + diff * diff

    # --- per-sigma accumulation: one exp (largest sigma), the rest by exact
    #     repeated squaring (EUP work cut ~3x; squarings are cheap VPU muls) --
    if squarings is not None:
        order = sorted(range(len(squarings)), key=lambda i: squarings[i])
        kT = jnp.exp(-d2s)                                  # (TM, TN), f32 EUP
        done = 0
        for si in order:
            for _ in range(squarings[si] - done):
                kT = kT * kT
            done = squarings[si]
            acc[si] += mm(f_aug, kT)                        # (C_mid+1, TN)
    else:   # generic fallback when sigma ratios are not powers of two
        for si, r2 in enumerate(r2s):
            kT = jnp.exp(d2s * (-r2))
            acc[si] += mm(f_aug, kT)

    # --- finalize: normalize per sigma, weight-sum, epilogue convs, store ----
    @pl.when(m_idx == last_m)
    def _():
        c_mid = acc.shape[1] - 1
        out = jnp.zeros((c_mid, acc.shape[2]), jnp.float32)
        for si, wgt in enumerate(weight_list):
            nd = acc[si]                                    # (C_mid+1, TN)
            den = jnp.maximum(nd[c_mid:, :], 1e-20)         # guard padded cols
            inv = pl.reciprocal(den, approx=True)
            inv = inv * (2.0 - den * inv)                   # one Newton step
            out = out + wgt * (nd[:c_mid, :] * inv)
        for p, act in enumerate(epi_acts):                  # epilogue convs
            w = epi_refs[2 * p][...].astype(jnp.float32)
            b = epi_refs[2 * p + 1][...].astype(jnp.float32)
            out = mm(w, out) + b
            if act:
                out = jnp.where(out > 0, out, 0.1 * out)
        o_ref[0] = out.astype(o_ref.dtype)


def _pick_tile(dim, candidates):
    for c in candidates:
        if dim >= c and dim % c == 0:
            return c
    # Only reachable for small dims / direct calls with unpadded sizes; the
    # forward pass below always pads N (== M) to a multiple of 128.
    return dim


def fused_spatial_block(pc_q_t, pc_src, f_src, pro, epi, sigmas, weight_list,
                        mxu_dtype=jnp.bfloat16, out_dtype=None):
    """One fused block:  prologue convs -> multi-sigma spatial conv -> epilogue.

    pc_q_t : (B, 3, N) query points, channels-first (N on lanes)
    pc_src : (B, M, 3) source points, points-major
    f_src  : (B, C_in, M) source features, channels-first
    pro/epi: list of (w (Cout,Cin), b (Cout,1), apply_act) per-point Linear.
    """
    B, _, N = pc_q_t.shape
    _, M, _ = pc_src.shape
    C_in = f_src.shape[1]
    C_mid = C_in
    for w, _, _ in pro:
        C_mid = w.shape[0]
    C_out = C_mid
    for w, _, _ in epi:
        C_out = w.shape[0]
    out_dtype = out_dtype if out_dtype is not None else f_src.dtype

    # Large lane-dense TN amortizes per-step grid overhead and cuts the
    # re-streamed source HBM traffic (read N/TN times).  Caps (TN<=1024,
    # TM<=512 -> <=512K elem temporaries) keep live VMEM well under v7x 64MiB.
    TN = _pick_tile(N, (1024, 512, 256, 128))
    TM = _pick_tile(M, (512, 256, 128))
    grid = (B, N // TN, M // TM)
    n_sig = len(sigmas)

    sig_max = max(float(s) for s in sigmas)
    scale = math.sqrt(0.5) / sig_max
    r2s = tuple((sig_max / float(s)) ** 2 for s in sigmas)
    squarings = []
    for r2 in r2s:
        k = int(round(math.log2(r2))) if r2 > 0 else -1
        if k >= 0 and abs(r2 - 2.0 ** k) <= 1e-6 * 2.0 ** k:
            squarings.append(k)       # kT(sigma) = kT(sigma_max) ** (2**k)
        else:
            squarings = None
            break
    squarings = tuple(squarings) if squarings is not None else None

    in_specs = [
        pl.BlockSpec((1, 3, TN), lambda b, n, m: (b, 0, n)),     # query xyz
        pl.BlockSpec((1, TM, 3), lambda b, n, m: (b, m, 0)),     # source xyz
        pl.BlockSpec((1, C_in, TM), lambda b, n, m: (b, 0, m)),  # source feats
    ]
    wb_args = []
    for w, bvec, _ in list(pro) + list(epi):
        in_specs.append(pl.BlockSpec(w.shape, lambda b, n, m: (0, 0)))
        in_specs.append(pl.BlockSpec(bvec.shape, lambda b, n, m: (0, 0)))
        wb_args += [w, bvec]

    kernel = functools.partial(
        _fused_spatial_kernel,
        float(scale),
        squarings,
        r2s,
        tuple(float(x) for x in weight_list),
        tuple(bool(a) for _, _, a in pro),
        tuple(bool(a) for _, _, a in epi),
        mxu_dtype)

    return pl.pallas_call(
        kernel,
        out_shape=jax.ShapeDtypeStruct((B, C_out, N), out_dtype),
        grid=grid,
        in_specs=in_specs,
        out_specs=pl.BlockSpec((1, C_out, TN), lambda b, n, m: (b, 0, n)),
        scratch_shapes=[pltpu.VMEM((n_sig, C_mid + 1, TN), jnp.float32)],
        compiler_params=pltpu.CompilerParams(
            dimension_semantics=("parallel", "parallel", "arbitrary"),
            vmem_limit_bytes=40 * 1024 * 1024),
    )(pc_q_t, pc_src, f_src, *wb_args)


# ----------------------------------------------------------------------------
# Parameter init (deterministic, mimics torch.nn.Linear default init);
# weights stored channels-first: w (Cout, Cin), b (Cout, 1).
# ----------------------------------------------------------------------------
def _linear_params(key, cin, cout):
    kw, kb = jax.random.split(key)
    bound = 1.0 / math.sqrt(cin)
    w = jax.random.uniform(kw, (cout, cin), jnp.float32, -bound, bound)
    b = jax.random.uniform(kb, (cout, 1), jnp.float32, -bound, bound)
    return w, b


def init_geo_simple_feature_net(key, input_channel=1):
    names_dims = [
        ("cc0_0", input_channel, 8), ("cc0_1", 8, 16), ("cc0_2", 16, 16),
        ("cc1_0", 16, 32), ("cc1_1", 32, 32), ("cc1_2", 32, 32),
        ("cc2_0", 32, 64), ("cc2_1", 64, 64), ("cc2_2", 64, 64),
        ("refine", 64, 32),
    ]
    keys = jax.random.split(key, len(names_dims))
    return {name: _linear_params(k, cin, cout)
            for k, (name, cin, cout) in zip(keys, names_dims)}


# ----------------------------------------------------------------------------
# Forward pass (mirrors GeoSimpleFeatureNet.forward, normalize=False default)
# ----------------------------------------------------------------------------
def geo_simple_feature_net_forward(params, pc1, feature1,
                                   initial_radius=0.02, normalize=False,
                                   mxu_dtype=jnp.bfloat16,
                                   act_dtype=jnp.bfloat16):
    sw = (0.33, 0.33, 0.33)
    r0, r1, r2 = initial_radius, initial_radius * 4, initial_radius * 16
    sig0 = tuple(r0 * s for s in (5, 10, 20))
    sig1 = tuple(r1 * s for s in (5, 10, 20))
    sig2 = tuple(r2 * s for s in (5, 10, 20))

    # Pad point count to a multiple of 128 (lane-dense stores, legal tiles).
    # Padded points sit at _PAD_COORD so exp(-d2/2s^2) underflows to exactly 0:
    # they contribute nothing to real queries' numerators / denominators.
    B, N, _ = pc1.shape
    Np = max(128, ((N + 127) // 128) * 128)
    pad = Np - N
    if pad:
        pc_p = jnp.pad(pc1, ((0, 0), (0, pad), (0, 0)),
                       constant_values=_PAD_COORD)
        f_p = jnp.pad(feature1, ((0, 0), (0, pad), (0, 0)))
    else:
        pc_p, f_p = pc1, feature1

    pc_q_t = jnp.transpose(pc_p, (0, 2, 1))         # (B, 3, Np)
    pc_src = pc_p                                   # (B, Np, 3)
    f = jnp.transpose(f_p, (0, 2, 1))               # (B, C_in, Np)

    P = params
    blk = functools.partial(fused_spatial_block, pc_q_t, pc_src,
                            weight_list=sw, mxu_dtype=mxu_dtype)
    # spatial_conv0    (prologue cc0_0, cc0_1)
    f = blk(f, pro=[P["cc0_0"] + (True,), P["cc0_1"] + (True,)], epi=[],
            sigmas=sig0, out_dtype=act_dtype)
    # spatial_conv1_0  (prologue cc0_2)
    f = blk(f, pro=[P["cc0_2"] + (True,)], epi=[], sigmas=sig1,
            out_dtype=act_dtype)
    # spatial_conv1_1  (prologue cc1_0, cc1_1)
    f = blk(f, pro=[P["cc1_0"] + (True,), P["cc1_1"] + (True,)], epi=[],
            sigmas=sig1, out_dtype=act_dtype)
    # spatial_conv2_0  (prologue cc1_2)
    f = blk(f, pro=[P["cc1_2"] + (True,)], epi=[], sigmas=sig2,
            out_dtype=act_dtype)
    # spatial_conv2_1  (prologue cc2_0, cc2_1; epilogue cc2_2 + refine)
    f = blk(f, pro=[P["cc2_0"] + (True,), P["cc2_1"] + (True,)],
            epi=[P["cc2_2"] + (True,), P["refine"] + (False,)],
            sigmas=sig2, out_dtype=jnp.float32)

    out = jnp.transpose(f, (0, 2, 1))[:, :N, :]     # (B, N, 32)

    # TODO(synk): normalize=True branch skipped — the torch code's
    # (fea - fea.mean(2)) / (fea.std(2)+1e-8) is shape-ambiguous without
    # keepdim; module default is normalize=False.
    del normalize
    return out


# ----------------------------------------------------------------------------
# Pure-JAX reference (channels-last, f32) for correctness checks
# ----------------------------------------------------------------------------
def _reference_forward(params, pc1, feature1, initial_radius=0.02):
    hi = jax.lax.Precision.HIGHEST
    sw = (0.33, 0.33, 0.33)
    r0, r1, r2 = initial_radius, initial_radius * 4, initial_radius * 16
    sig0 = tuple(r0 * s for s in (5, 10, 20))
    sig1 = tuple(r1 * s for s in (5, 10, 20))
    sig2 = tuple(r2 * s for s in (5, 10, 20))

    def cconv(f, p, act=True):
        w, b = p
        y = jnp.einsum("bnc,oc->bno", f, w, precision=hi) + b[:, 0]
        return jnp.where(y > 0, y, 0.1 * y) if act else y

    def sconv(x, y, f, sigmas):
        d2 = jnp.sum((x[:, :, None, :] - y[:, None, :, :]) ** 2, axis=-1)
        out = jnp.zeros((f.shape[0], x.shape[1], f.shape[2]), jnp.float32)
        for s, wgt in zip(sigmas, sw):
            k = jnp.exp(-d2 / (2.0 * s * s))
            num = jnp.einsum("bnm,bmc->bnc", k, f, precision=hi)
            out = out + wgt * (num / jnp.sum(k, axis=-1, keepdims=True))
        return out

    P = params
    f = cconv(cconv(feature1, P["cc0_0"]), P["cc0_1"])
    f = sconv(pc1, pc1, f, sig0)
    f = cconv(f, P["cc0_2"])
    f = sconv(pc1, pc1, f, sig1)
    f = cconv(cconv(f, P["cc1_0"]), P["cc1_1"])
    f = sconv(pc1, pc1, f, sig1)
    f = cconv(f, P["cc1_2"])
    f = sconv(pc1, pc1, f, sig2)
    f = cconv(cconv(f, P["cc2_0"]), P["cc2_1"])
    f = sconv(pc1, pc1, f, sig2)
    f = cconv(f, P["cc2_2"])
    f = cconv(f, P["refine"], act=False)
    return f


# ----------------------------------------------------------------------------
if __name__ == "__main__":
    key = jax.random.PRNGKey(0)
    k_params, k_pc, k_fea = jax.random.split(key, 3)

    # Small, non-multiple-of-128 point count: exercises the padding path and
    # multi-step M accumulation (padded to 384 -> grid (B, 3, 3) per block).
    B, N, input_channel = 2, 300, 1
    pc1 = jax.random.uniform(k_pc, (B, N, 3), jnp.float32) * 0.1
    feature1 = jax.random.normal(k_fea, (B, N, input_channel), jnp.float32)

    params = init_geo_simple_feature_net(k_params, input_channel=input_channel)

    ref = _reference_forward(params, pc1, feature1, initial_radius=0.02)

    # f32 path: strict correctness check of the kernel math.
    fwd_f32 = jax.jit(functools.partial(
        geo_simple_feature_net_forward, initial_radius=0.02,
        mxu_dtype=None, act_dtype=jnp.float32))
    out_f32 = jax.block_until_ready(fwd_f32(params, pc1, feature1))
    assert out_f32.shape == (B, N, 32), out_f32.shape
    assert bool(jnp.all(jnp.isfinite(out_f32)))
    assert bool(jnp.allclose(out_f32, ref, atol=1e-2, rtol=1e-2)), (
        float(jnp.max(jnp.abs(out_f32 - ref))))

    # Default fast path: bf16 MXU inputs + bf16 inter-block activations
    # (looser sanity tolerance; strict numerics covered by the f32 run above).
    fwd_fast = jax.jit(functools.partial(
        geo_simple_feature_net_forward, initial_radius=0.02))
    out_fast = jax.block_until_ready(fwd_fast(params, pc1, feature1))
    assert out_fast.shape == (B, N, 32), out_fast.shape
    assert bool(jnp.all(jnp.isfinite(out_fast)))
    assert bool(jnp.allclose(out_fast, ref, atol=1e-1, rtol=1e-1)), (
        float(jnp.max(jnp.abs(out_fast - ref))))

    print("KERNEL_OK")
</pallas_src>

<mosaic_0001>
module attributes {stable_mosaic.version = 11 : i64} {
  func.func @_fused_spatial_kernel(%arg0: i32, %arg1: i32, %arg2: i32, %arg3: memref<1x3x128xf32, #tpu.memory_space<vmem>>, %arg4: memref<1x128x3xf32, #tpu.memory_space<vmem>>, %arg5: memref<1x16x128xf32, #tpu.memory_space<vmem>>, %arg6: memref<16x16xf32, #tpu.memory_space<vmem>>, %arg7: memref<16x1xf32, #tpu.memory_space<vmem>>, %arg8: memref<1x16x128xf32, #tpu.memory_space<vmem>>, %arg9: memref<3x17x128xf32, #tpu.memory_space<vmem>>) attributes {dimension_semantics = [#tpu.dimension_semantics<parallel>, #tpu.dimension_semantics<parallel>, #tpu.dimension_semantics<arbitrary>], iteration_bounds = array<i64: 2, 3, 3>, scalar_prefetch = 0 : i64, scratch_operands = 1 : i64, tpu.core_type = #tpu.core_type<tc>, window_params = [{transform_indices = @transform_0, window_bounds = array<i64: 1, 3, 128>}, {transform_indices = @transform_1, window_bounds = array<i64: 1, 128, 3>}, {transform_indices = @transform_2, window_bounds = array<i64: 1, 16, 128>}, {pipeline_mode = #tpu.pipeline_mode<synchronous>, transform_indices = @transform_3, window_bounds = array<i64: 16, 16>}, {pipeline_mode = #tpu.pipeline_mode<synchronous>, transform_indices = @transform_4, window_bounds = array<i64: 16, 1>}, {transform_indices = @transform_5, window_bounds = array<i64: 1, 16, 128>}]} {
    %c0_i32 = arith.constant 0 : i32
    %0 = arith.cmpi eq, %arg2, %c0_i32 : i32
    %1 = arith.extui %0 : i1 to i32
    %c0_i32_0 = arith.constant 0 : i32
    %2 = arith.cmpi ne, %1, %c0_i32_0 : i32
    scf.if %2 {
      %cst_39 = arith.constant 0.000000e+00 : f32
      %76 = vector.broadcast %cst_39 : f32 to vector<3x17x128xf32>
      %c0_40 = arith.constant 0 : index
      %c0_41 = arith.constant 0 : index
      %c0_42 = arith.constant 0 : index
      %77 = vector.load %arg9[%c0_40, %c0_41, %c0_42] : memref<3x17x128xf32, #tpu.memory_space<vmem>>, vector<3x17x128xf32>
      tpu.vector_store %arg9[%c0_40, %c0_41, %c0_42], %76 {strides = array<i32>} : memref<3x17x128xf32, #tpu.memory_space<vmem>>, vector<3x17x128xf32>,
    } else {
    }
    %c0 = arith.constant 0 : index
    %c0_1 = arith.constant 0 : index
    %c0_2 = arith.constant 0 : index
    %3 = vector.load %arg5[%c0, %c0_1, %c0_2] : memref<1x16x128xf32, #tpu.memory_space<vmem>>, vector<1x16x128xf32>
    %4 = vector.shape_cast %3 : vector<1x16x128xf32> to vector<16x128xf32>
    %c0_3 = arith.constant 0 : index
    %c0_4 = arith.constant 0 : index
    %5 = vector.load %arg6[%c0_3, %c0_4] : memref<16x16xf32, #tpu.memory_space<vmem>>, vector<16x16xf32>
    %c0_5 = arith.constant 0 : index
    %c0_6 = arith.constant 0 : index
    %6 = vector.load %arg7[%c0_5, %c0_6] : memref<16x1xf32, #tpu.memory_space<vmem>>, vector<16x1xf32>
    %cst = arith.constant dense<0.000000e+00> : vector<16x128xf32>
    %7 = tpu.matmul %5, %4, %cst {dimension_numbers = #tpu.dot_dimension_numbers<[1], [0], [0], [1], [0, 0, 1, 1], [], []>} : vector<16x16xf32>, vector<16x128xf32>, vector<16x128xf32> -> vector<16x128xf32>
    %8 = vector.broadcast %6 : vector<16x1xf32> to vector<16x128xf32>
    %9 = arith.addf %7, %8 : vector<16x128xf32>
    %cst_7 = arith.constant 0.000000e+00 : f32
    %10 = vector.broadcast %cst_7 : f32 to vector<16x128xf32>
    %11 = arith.cmpf ogt, %9, %10 : vector<16x128xf32>
    %cst_8 = arith.constant 1.000000e-01 : f32
    %12 = vector.broadcast %cst_8 : f32 to vector<16x128xf32>
    %13 = arith.mulf %12, %9 : vector<16x128xf32>
    %14 = arith.select %11, %9, %13 : vector<16x128xi1>, vector<16x128xf32>
    %cst_9 = arith.constant 1.000000e+00 : f32
    %15 = vector.broadcast %cst_9 : f32 to vector<1x128xf32>
    %16 = tpu.concatenate %14, %15 in 0 : vector<16x128xf32>, vector<1x128xf32> -> vector<17x128xf32>
    %c0_10 = arith.constant 0 : index
    %c0_11 = arith.constant 0 : index
    %c0_12 = arith.constant 0 : index
    %17 = vector.load %arg3[%c0_10, %c0_11, %c0_12] : memref<1x3x128xf32, #tpu.memory_space<vmem>>, vector<1x3x128xf32>
    %18 = vector.shape_cast %17 : vector<1x3x128xf32> to vector<3x128xf32>
    %cst_13 = arith.constant 0.441941738 : f32
    %19 = vector.broadcast %cst_13 : f32 to vector<3x128xf32>
    %20 = arith.mulf %18, %19 : vector<3x128xf32>
    %c0_14 = arith.constant 0 : index
    %c0_15 = arith.constant 0 : index
    %c0_16 = arith.constant 0 : index
    %21 = vector.load %arg4[%c0_14, %c0_15, %c0_16] : memref<1x128x3xf32, #tpu.memory_space<vmem>>, vector<1x128x3xf32>
    %22 = vector.shape_cast %21 : vector<1x128x3xf32> to vector<128x3xf32>
    %cst_17 = arith.constant 0.441941738 : f32
    %23 = vector.broadcast %cst_17 : f32 to vector<128x3xf32>
    %24 = arith.mulf %22, %23 : vector<128x3xf32>
    %25 = vector.extract_strided_slice %24 {offsets = [0, 0], sizes = [128, 1], strides = [1, 1]} : vector<128x3xf32> to vector<128x1xf32>
    %26 = vector.extract_strided_slice %20 {offsets = [0, 0], sizes = [1, 128], strides = [1, 1]} : vector<3x128xf32> to vector<1x128xf32>
    %27 = vector.broadcast %25 : vector<128x1xf32> to vector<128x128xf32>
    %28 = vector.broadcast %26 : vector<1x128xf32> to vector<128x128xf32>
    %29 = arith.subf %27, %28 : vector<128x128xf32>
    %30 = arith.mulf %29, %29 : vector<128x128xf32>
    %31 = vector.extract_strided_slice %24 {offsets = [0, 1], sizes = [128, 1], strides = [1, 1]} : vector<128x3xf32> to vector<128x1xf32>
    %32 = vector.extract_strided_slice %20 {offsets = [1, 0], sizes = [1, 128], strides = [1, 1]} : vector<3x128xf32> to vector<1x128xf32>
    %33 = vector.broadcast %31 : vector<128x1xf32> to vector<128x128xf32>
    %34 = vector.broadcast %32 : vector<1x128xf32> to vector<128x128xf32>
    %35 = arith.subf %33, %34 : vector<128x128xf32>
    %36 = arith.mulf %35, %35 : vector<128x128xf32>
    %37 = arith.addf %30, %36 : vector<128x128xf32>
    %38 = vector.extract_strided_slice %24 {offsets = [0, 2], sizes = [128, 1], strides = [1, 1]} : vector<128x3xf32> to vector<128x1xf32>
    %39 = vector.extract_strided_slice %20 {offsets = [2, 0], sizes = [1, 128], strides = [1, 1]} : vector<3x128xf32> to vector<1x128xf32>
    %40 = vector.broadcast %38 : vector<128x1xf32> to vector<128x128xf32>
    %41 = vector.broadcast %39 : vector<1x128xf32> to vector<128x128xf32>
    %42 = arith.subf %40, %41 : vector<128x128xf32>
    %43 = arith.mulf %42, %42 : vector<128x128xf32>
    %44 = arith.addf %37, %43 : vector<128x128xf32>
    %cst_18 = arith.constant 0.000000e+00 : f32
    %45 = vector.broadcast %cst_18 : f32 to vector<128x128xf32>
    %46 = arith.subf %45, %44 : vector<128x128xf32>
    %47 = math.exp %46 : vector<128x128xf32>
    %c2 = arith.constant 2 : index
    %c0_19 = arith.constant 0 : index
    %c0_20 = arith.constant 0 : index
    %48 = vector.load %arg9[%c2, %c0_19, %c0_20] : memref<3x17x128xf32, #tpu.memory_space<vmem>>, vector<1x17x128xf32>
    %49 = vector.shape_cast %48 : vector<1x17x128xf32> to vector<17x128xf32>
    %cst_21 = arith.constant dense<0.000000e+00> : vector<17x128xf32>
    %50 = tpu.matmul %16, %47, %cst_21 {dimension_numbers = #tpu.dot_dimension_numbers<[1], [0], [0], [1], [0, 0, 1, 1], [], []>} : vector<17x128xf32>, vector<128x128xf32>, vector<17x128xf32> -> vector<17x128xf32>
    %51 = arith.addf %49, %50 : vector<17x128xf32>
    %c2_22 = arith.constant 2 : index
    %c0_23 = arith.constant 0 : index
    %c0_24 = arith.constant 0 : index
    %52 = vector.load %arg9[%c2_22, %c0_23, %c0_24] : memref<3x17x128xf32, #tpu.memory_space<vmem>>, vector<1x17x128xf32>
    %53 = vector.shape_cast %52 : vector<1x17x128xf32> to vector<17x128xf32>
    %54 = vector.shape_cast %51 : vector<17x128xf32> to vector<1x17x128xf32>
    tpu.vector_store %arg9[%c2_22, %c0_23, %c0_24], %54 {strides = array<i32>} : memref<3x17x128xf32, #tpu.memory_space<vmem>>, vector<1x17x128xf32>,
    %55 = arith.mulf %47, %47 : vector<128x128xf32>
    %56 = arith.mulf %55, %55 : vector<128x128xf32>
    %c1 = arith.constant 1 : index
    %c0_25 = arith.constant 0 : index
    %c0_26 = arith.constant 0 : index
    %57 = vector.load %arg9[%c1, %c0_25, %c0_26] : memref<3x17x128xf32, #tpu.memory_space<vmem>>, vector<1x17x128xf32>
    %58 = vector.shape_cast %57 : vector<1x17x128xf32> to vector<17x128xf32>
    %cst_27 = arith.constant dense<0.000000e+00> : vector<17x128xf32>
    %59 = tpu.matmul %16, %56, %cst_27 {dimension_numbers = #tpu.dot_dimension_numbers<[1], [0], [0], [1], [0, 0, 1, 1], [], []>} : vector<17x128xf32>, vector<128x128xf32>, vector<17x128xf32> -> vector<17x128xf32>
    %60 = arith.addf %58, %59 : vector<17x128xf32>
    %c1_28 = arith.constant 1 : index
    %c0_29 = arith.constant 0 : index
    %c0_30 = arith.constant 0 : index
    %61 = vector.load %arg9[%c1_28, %c0_29, %c0_30] : memref<3x17x128xf32, #tpu.memory_space<vmem>>, vector<1x17x128xf32>
    %62 = vector.shape_cast %61 : vector<1x17x128xf32> to vector<17x128xf32>
    %63 = vector.shape_cast %60 : vector<17x128xf32> to vector<1x17x128xf32>
    tpu.vector_store %arg9[%c1_28, %c0_29, %c0_30], %63 {strides = array<i32>} : memref<3x17x128xf32, #tpu.memory_space<vmem>>, vector<1x17x128xf32>,
    %64 = arith.mulf %56, %56 : vector<128x128xf32>
    %65 = arith.mulf %64, %64 : vector<128x128xf32>
    %c0_31 = arith.constant 0 : index
    %c0_32 = arith.constant 0 : index
    %c0_33 = arith.constant 0 : index
    %66 = vector.load %arg9[%c0_31, %c0_32, %c0_33] : memref<3x17x128xf32, #tpu.memory_space<vmem>>, vector<1x17x128xf32>
    %67 = vector.shape_cast %66 : vector<1x17x128xf32> to vector<17x128xf32>
    %cst_34 = arith.constant dense<0.000000e+00> : vector<17x128xf32>
    %68 = tpu.matmul %16, %65, %cst_34 {dimension_numbers = #tpu.dot_dimension_numbers<[1], [0], [0], [1], [0, 0, 1, 1], [], []>} : vector<17x128xf32>, vector<128x128xf32>, vector<17x128xf32> -> vector<17x128xf32>
    %69 = arith.addf %67, %68 : vector<17x128xf32>
    %c0_35 = arith.constant 0 : index
    %c0_36 = arith.constant 0 : index
    %c0_37 = arith.constant 0 : index
    %70 = vector.load %arg9[%c0_35, %c0_36, %c0_37] : memref<3x17x128xf32, #tpu.memory_space<vmem>>, vector<1x17x128xf32>
    %71 = vector.shape_cast %70 : vector<1x17x128xf32> to vector<17x128xf32>
    %72 = vector.shape_cast %69 : vector<17x128xf32> to vector<1x17x128xf32>
    tpu.vector_store %arg9[%c0_35, %c0_36, %c0_37], %72 {strides = array<i32>} : memref<3x17x128xf32, #tpu.memory_space<vmem>>, vector<1x17x128xf32>,
    %c2_i32 = arith.constant 2 : i32
    %73 = arith.cmpi eq, %arg2, %c2_i32 : i32
    %74 = arith.extui %73 : i1 to i32
    %c0_i32_38 = arith.constant 0 : i32
    %75 = arith.cmpi ne, %74, %c0_i32_38 : i32
    scf.if %75 {
      %cst_39 = arith.constant 0.000000e+00 : f32
      %76 = vector.broadcast %cst_39 : f32 to vector<16x128xf32>
      %c0_40 = arith.constant 0 : index
      %c0_41 = arith.constant 0 : index
      %c0_42 = arith.constant 0 : index
      %77 = vector.load %arg9[%c0_40, %c0_41, %c0_42] : memref<3x17x128xf32, #tpu.memory_space<vmem>>, vector<1x17x128xf32>
      %78 = vector.shape_cast %77 : vector<1x17x128xf32> to vector<17x128xf32>
      %79 = vector.extract_strided_slice %78 {offsets = [16, 0], sizes = [1, 128], strides = [1, 1]} : vector<17x128xf32> to vector<1x128xf32>
      %cst_43 = arith.constant 9.99999968E-21 : f32
      %80 = vector.broadcast %cst_43 : f32 to vector<1x128xf32>
      %81 = arith.maximumf %79, %80 : vector<1x128xf32>
      %82 = tpu.reciprocal %81 {approx = true} : vector<1x128xf32> -> vector<1x128xf32>
      %83 = arith.mulf %81, %82 : vector<1x128xf32>
      %cst_44 = arith.constant 2.000000e+00 : f32
      %84 = vector.broadcast %cst_44 : f32 to vector<1x128xf32>
      %85 = arith.subf %84, %83 : vector<1x128xf32>
      %86 = arith.mulf %82, %85 : vector<1x128xf32>
      %87 = vector.extract_strided_slice %78 {offsets = [0, 0], sizes = [16, 128], strides = [1, 1]} : vector<17x128xf32> to vector<16x128xf32>
      %88 = vector.broadcast %86 : vector<1x128xf32> to vector<16x128xf32>
      %89 = arith.mulf %87, %88 : vector<16x128xf32>
      %cst_45 = arith.constant 3.300000e-01 : f32
      %90 = vector.broadcast %cst_45 : f32 to vector<16x128xf32>
      %91 = arith.mulf %90, %89 : vector<16x128xf32>
      %92 = arith.addf %76, %91 : vector<16x128xf32>
      %c1_46 = arith.constant 1 : index
      %c0_47 = arith.constant 0 : index
      %c0_48 = arith.constant 0 : index
      %93 = vector.load %arg9[%c1_46, %c0_47, %c0_48] : memref<3x17x128xf32, #tpu.memory_space<vmem>>, vector<1x17x128xf32>
      %94 = vector.shape_cast %93 : vector<1x17x128xf32> to vector<17x128xf32>
      %95 = vector.extract_strided_slice %94 {offsets = [16, 0], sizes = [1, 128], strides = [1, 1]} : vector<17x128xf32> to vector<1x128xf32>
      %cst_49 = arith.constant 9.99999968E-21 : f32
      %96 = vector.broadcast %cst_49 : f32 to vector<1x128xf32>
      %97 = arith.maximumf %95, %96 : vector<1x128xf32>
      %98 = tpu.reciprocal %97 {approx = true} : vector<1x128xf32> -> vector<1x128xf32>
      %99 = arith.mulf %97, %98 : vector<1x128xf32>
      %cst_50 = arith.constant 2.000000e+00 : f32
      %100 = vector.broadcast %cst_50 : f32 to vector<1x128xf32>
      %101 = arith.subf %100, %99 : vector<1x128xf32>
      %102 = arith.mulf %98, %101 : vector<1x128xf32>
      %103 = vector.extract_strided_slice %94 {offsets = [0, 0], sizes = [16, 128], strides = [1, 1]} : vector<17x128xf32> to vector<16x128xf32>
      %104 = vector.broadcast %102 : vector<1x128xf32> to vector<16x128xf32>
      %105 = arith.mulf %103, %104 : vector<16x128xf32>
      %cst_51 = arith.constant 3.300000e-01 : f32
      %106 = vector.broadcast %cst_51 : f32 to vector<16x128xf32>
      %107 = arith.mulf %106, %105 : vector<16x128xf32>
      %108 = arith.addf %92, %107 : vector<16x128xf32>
      %c2_52 = arith.constant 2 : index
      %c0_53 = arith.constant 0 : index
      %c0_54 = arith.constant 0 : index
      %109 = vector.load %arg9[%c2_52, %c0_53, %c0_54] : memref<3x17x128xf32, #tpu.memory_space<vmem>>, vector<1x17x128xf32>
      %110 = vector.shape_cast %109 : vector<1x17x128xf32> to vector<17x128xf32>
      %111 = vector.extract_strided_slice %110 {offsets = [16, 0], sizes = [1, 128], strides = [1, 1]} : vector<17x128xf32> to vector<1x128xf32>
      %cst_55 = arith.constant 9.99999968E-21 : f32
      %112 = vector.broadcast %cst_55 : f32 to vector<1x128xf32>
      %113 = arith.maximumf %111, %112 : vector<1x128xf32>
      %114 = tpu.reciprocal %113 {approx = true} : vector<1x128xf32> -> vector<1x128xf32>
      %115 = arith.mulf %113, %114 : vector<1x128xf32>
      %cst_56 = arith.constant 2.000000e+00 : f32
      %116 = vector.broadcast %cst_56 : f32 to vector<1x128xf32>
      %117 = arith.subf %116, %115 : vector<1x128xf32>
      %118 = arith.mulf %114, %117 : vector<1x128xf32>
      %119 = vector.extract_strided_slice %110 {offsets = [0, 0], sizes = [16, 128], strides = [1, 1]} : vector<17x128xf32> to vector<16x128xf32>
      %120 = vector.broadcast %118 : vector<1x128xf32> to vector<16x128xf32>
      %121 = arith.mulf %119, %120 : vector<16x128xf32>
      %cst_57 = arith.constant 3.300000e-01 : f32
      %122 = vector.broadcast %cst_57 : f32 to vector<16x128xf32>
      %123 = arith.mulf %122, %121 : vector<16x128xf32>
      %124 = arith.addf %108, %123 : vector<16x128xf32>
      %c0_58 = arith.constant 0 : index
      %c0_59 = arith.constant 0 : index
      %c0_60 = arith.constant 0 : index
      %125 = vector.load %arg8[%c0_58, %c0_59, %c0_60] : memref<1x16x128xf32, #tpu.memory_space<vmem>>, vector<1x16x128xf32>
      %126 = vector.shape_cast %125 : vector<1x16x128xf32> to vector<16x128xf32>
      %127 = vector.shape_cast %124 : vector<16x128xf32> to vector<1x16x128xf32>
      tpu.vector_store %arg8[%c0_58, %c0_59, %c0_60], %127 {strides = array<i32>} : memref<1x16x128xf32, #tpu.memory_space<vmem>>, vector<1x16x128xf32>,
    } else {
    }
    return
  }
  func.func @transform_0(%arg0: i32, %arg1: i32, %arg2: i32) -> (i32, i32, i32) {
    %c0_i32 = arith.constant 0 : i32
    %c0_i32_0 = arith.constant 0 : i32
    return %arg0, %c0_i32, %arg1 : i32, i32, i32
  }
  func.func @transform_1(%arg0: i32, %arg1: i32, %arg2: i32) -> (i32, i32, i32) {
    %c0_i32 = arith.constant 0 : i32
    %c0_i32_0 = arith.constant 0 : i32
    return %arg0, %arg2, %c0_i32 : i32, i32, i32
  }
  func.func @transform_2(%arg0: i32, %arg1: i32, %arg2: i32) -> (i32, i32, i32) {
    %c0_i32 = arith.constant 0 : i32
    %c0_i32_0 = arith.constant 0 : i32
    return %arg0, %c0_i32, %arg2 : i32, i32, i32
  }
  func.func @transform_3(%arg0: i32, %arg1: i32, %arg2: i32) -> (i32, i32) {
    %c0_i32 = arith.constant 0 : i32
    %c0_i32_0 = arith.constant 0 : i32
    %c0_i32_1 = arith.constant 0 : i32
    return %c0_i32, %c0_i32_0 : i32, i32
  }
  func.func @transform_4(%arg0: i32, %arg1: i32, %arg2: i32) -> (i32, i32) {
    %c0_i32 = arith.constant 0 : i32
    %c0_i32_0 = arith.constant 0 : i32
    %c0_i32_1 = arith.constant 0 : i32
    return %c0_i32, %c0_i32_0 : i32, i32
  }
  func.func @transform_5(%arg0: i32, %arg1: i32, %arg2: i32) -> (i32, i32, i32) {
    %c0_i32 = arith.constant 0 : i32
    %c0_i32_0 = arith.constant 0 : i32
    return %arg0, %c0_i32, %arg1 : i32, i32, i32
  }
}

module attributes {stable_mosaic.version = 11 : i64} {
  func.func @_fused_spatial_kernel(%arg0: i32, %arg1: i32, %arg2: i32, %arg3: memref<1x3x128xf32, #tpu.memory_space<vmem>>, %arg4: memref<1x128x3xf32, #tpu.memory_space<vmem>>, %arg5: memref<1x1x128xf32, #tpu.memory_space<vmem>>, %arg6: memref<8x1xf32, #tpu.memory_space<vmem>>, %arg7: memref<8x1xf32, #tpu.memory_space<vmem>>, %arg8: memref<16x8xf32, #tpu.memory_space<vmem>>, %arg9: memref<16x1xf32, #tpu.memory_space<vmem>>, %arg10: memref<1x16x128xf32, #tpu.memory_space<vmem>>, %arg11: memref<3x17x128xf32, #tpu.memory_space<vmem>>) attributes {dimension_semantics = [#tpu.dimension_semantics<parallel>, #tpu.dimension_semantics<parallel>, #tpu.dimension_semantics<arbitrary>], iteration_bounds = array<i64: 2, 3, 3>, scalar_prefetch = 0 : i64, scratch_operands = 1 : i64, tpu.core_type = #tpu.core_type<tc>, window_params = [{transform_indices = @transform_0, window_bounds = array<i64: 1, 3, 128>}, {transform_indices = @transform_1, window_bounds = array<i64: 1, 128, 3>}, {transform_indices = @transform_2, window_bounds = array<i64: 1, 1, 128>}, {pipeline_mode = #tpu.pipeline_mode<synchronous>, transform_indices = @transform_3, window_bounds = array<i64: 8, 1>}, {pipeline_mode = #tpu.pipeline_mode<synchronous>, transform_indices = @transform_4, window_bounds = array<i64: 8, 1>}, {pipeline_mode = #tpu.pipeline_mode<synchronous>, transform_indices = @transform_5, window_bounds = array<i64: 16, 8>}, {pipeline_mode = #tpu.pipeline_mode<synchronous>, transform_indices = @transform_6, window_bounds = array<i64: 16, 1>}, {transform_indices = @transform_7, window_bounds = array<i64: 1, 16, 128>}]} {
    %c0_i32 = arith.constant 0 : i32
    %0 = arith.cmpi eq, %arg2, %c0_i32 : i32
    %1 = arith.extui %0 : i1 to i32
    %c0_i32_0 = arith.constant 0 : i32
    %2 = arith.cmpi ne, %1, %c0_i32_0 : i32
    scf.if %2 {
      %cst_45 = arith.constant 0.000000e+00 : f32
      %88 = vector.broadcast %cst_45 : f32 to vector<3x17x128xf32>
      %c0_46 = arith.constant 0 : index
      %c0_47 = arith.constant 0 : index
      %c0_48 = arith.constant 0 : index
      %89 = vector.load %arg11[%c0_46, %c0_47, %c0_48] : memref<3x17x128xf32, #tpu.memory_space<vmem>>, vector<3x17x128xf32>
      tpu.vector_store %arg11[%c0_46, %c0_47, %c0_48], %88 {strides = array<i32>} : memref<3x17x128xf32, #tpu.memory_space<vmem>>, vector<3x17x128xf32>,
    } else {
    }
    %c0 = arith.constant 0 : index
    %c0_1 = arith.constant 0 : index
    %c0_2 = arith.constant 0 : index
    %3 = vector.load %arg5[%c0, %c0_1, %c0_2] : memref<1x1x128xf32, #tpu.memory_space<vmem>>, vector<1x1x128xf32>
    %4 = vector.shape_cast %3 : vector<1x1x128xf32> to vector<1x128xf32>
    %c0_3 = arith.constant 0 : index
    %c0_4 = arith.constant 0 : index
    %5 = vector.load %arg6[%c0_3, %c0_4] : memref<8x1xf32, #tpu.memory_space<vmem>>, vector<8x1xf32>
    %c0_5 = arith.constant 0 : index
    %c0_6 = arith.constant 0 : index
    %6 = vector.load %arg7[%c0_5, %c0_6] : memref<8x1xf32, #tpu.memory_space<vmem>>, vector<8x1xf32>
    %7 = vector.broadcast %5 : vector<8x1xf32> to vector<8x128xf32>
    %8 = vector.broadcast %4 : vector<1x128xf32> to vector<8x128xf32>
    %9 = arith.mulf %7, %8 : vector<8x128xf32>
    %10 = vector.broadcast %6 : vector<8x1xf32> to vector<8x128xf32>
    %11 = arith.addf %9, %10 : vector<8x128xf32>
    %cst = arith.constant 0.000000e+00 : f32
    %12 = vector.broadcast %cst : f32 to vector<8x128xf32>
    %13 = arith.cmpf ogt, %11, %12 : vector<8x128xf32>
    %cst_7 = arith.constant 1.000000e-01 : f32
    %14 = vector.broadcast %cst_7 : f32 to vector<8x128xf32>
    %15 = arith.mulf %14, %11 : vector<8x128xf32>
    %16 = arith.select %13, %11, %15 : vector<8x128xi1>, vector<8x128xf32>
    %c0_8 = arith.constant 0 : index
    %c0_9 = arith.constant 0 : index
    %17 = vector.load %arg8[%c0_8, %c0_9] : memref<16x8xf32, #tpu.memory_space<vmem>>, vector<16x8xf32>
    %c0_10 = arith.constant 0 : index
    %c0_11 = arith.constant 0 : index
    %18 = vector.load %arg9[%c0_10, %c0_11] : memref<16x1xf32, #tpu.memory_space<vmem>>, vector<16x1xf32>
    %cst_12 = arith.constant dense<0.000000e+00> : vector<16x128xf32>
    %19 = tpu.matmul %17, %16, %cst_12 {dimension_numbers = #tpu.dot_dimension_numbers<[1], [0], [0], [1], [0, 0, 1, 1], [], []>} : vector<16x8xf32>, vector<8x128xf32>, vector<16x128xf32> -> vector<16x128xf32>
    %20 = vector.broadcast %18 : vector<16x1xf32> to vector<16x128xf32>
    %21 = arith.addf %19, %20 : vector<16x128xf32>
    %cst_13 = arith.constant 0.000000e+00 : f32
    %22 = vector.broadcast %cst_13 : f32 to vector<16x128xf32>
    %23 = arith.cmpf ogt, %21, %22 : vector<16x128xf32>
    %cst_14 = arith.constant 1.000000e-01 : f32
    %24 = vector.broadcast %cst_14 : f32 to vector<16x128xf32>
    %25 = arith.mulf %24, %21 : vector<16x128xf32>
    %26 = arith.select %23, %21, %25 : vector<16x128xi1>, vector<16x128xf32>
    %cst_15 = arith.constant 1.000000e+00 : f32
    %27 = vector.broadcast %cst_15 : f32 to vector<1x128xf32>
    %28 = tpu.concatenate %26, %27 in 0 : vector<16x128xf32>, vector<1x128xf32> -> vector<17x128xf32>
    %c0_16 = arith.constant 0 : index
    %c0_17 = arith.constant 0 : index
    %c0_18 = arith.constant 0 : index
    %29 = vector.load %arg3[%c0_16, %c0_17, %c0_18] : memref<1x3x128xf32, #tpu.memory_space<vmem>>, vector<1x3x128xf32>
    %30 = vector.shape_cast %29 : vector<1x3x128xf32> to vector<3x128xf32>
    %cst_19 = arith.constant 1.76776695 : f32
    %31 = vector.broadcast %cst_19 : f32 to vector<3x128xf32>
    %32 = arith.mulf %30, %31 : vector<3x128xf32>
    %c0_20 = arith.constant 0 : index
    %c0_21 = arith.constant 0 : index
    %c0_22 = arith.constant 0 : index
    %33 = vector.load %arg4[%c0_20, %c0_21, %c0_22] : memref<1x128x3xf32, #tpu.memory_space<vmem>>, vector<1x128x3xf32>
    %34 = vector.shape_cast %33 : vector<1x128x3xf32> to vector<128x3xf32>
    %cst_23 = arith.constant 1.76776695 : f32
    %35 = vector.broadcast %cst_23 : f32 to vector<128x3xf32>
    %36 = arith.mulf %34, %35 : vector<128x3xf32>
    %37 = vector.extract_strided_slice %36 {offsets = [0, 0], sizes = [128, 1], strides = [1, 1]} : vector<128x3xf32> to vector<128x1xf32>
    %38 = vector.extract_strided_slice %32 {offsets = [0, 0], sizes = [1, 128], strides = [1, 1]} : vector<3x128xf32> to vector<1x128xf32>
    %39 = vector.broadcast %37 : vector<128x1xf32> to vector<128x128xf32>
    %40 = vector.broadcast %38 : vector<1x128xf32> to vector<128x128xf32>
    %41 = arith.subf %39, %40 : vector<128x128xf32>
    %42 = arith.mulf %41, %41 : vector<128x128xf32>
    %43 = vector.extract_strided_slice %36 {offsets = [0, 1], sizes = [128, 1], strides = [1, 1]} : vector<128x3xf32> to vector<128x1xf32>
    %44 = vector.extract_strided_slice %32 {offsets = [1, 0], sizes = [1, 128], strides = [1, 1]} : vector<3x128xf32> to vector<1x128xf32>
    %45 = vector.broadcast %43 : vector<128x1xf32> to vector<128x128xf32>
    %46 = vector.broadcast %44 : vector<1x128xf32> to vector<128x128xf32>
    %47 = arith.subf %45, %46 : vector<128x128xf32>
    %48 = arith.mulf %47, %47 : vector<128x128xf32>
    %49 = arith.addf %42, %48 : vector<128x128xf32>
    %50 = vector.extract_strided_slice %36 {offsets = [0, 2], sizes = [128, 1], strides = [1, 1]} : vector<128x3xf32> to vector<128x1xf32>
    %51 = vector.extract_strided_slice %32 {offsets = [2, 0], sizes = [1, 128], strides = [1, 1]} : vector<3x128xf32> to vector<1x128xf32>
    %52 = vector.broadcast %50 : vector<128x1xf32> to vector<128x128xf32>
    %53 = vector.broadcast %51 : vector<1x128xf32> to vector<128x128xf32>
    %54 = arith.subf %52, %53 : vector<128x128xf32>
    %55 = arith.mulf %54, %54 : vector<128x128xf32>
    %56 = arith.addf %49, %55 : vector<128x128xf32>
    %cst_24 = arith.constant 0.000000e+00 : f32
    %57 = vector.broadcast %cst_24 : f32 to vector<128x128xf32>
    %58 = arith.subf %57, %56 : vector<128x128xf32>
    %59 = math.exp %58 : vector<128x128xf32>
    %c2 = arith.constant 2 : index
    %c0_25 = arith.constant 0 : index
    %c0_26 = arith.constant 0 : index
    %60 = vector.load %arg11[%c2, %c0_25, %c0_26] : memref<3x17x128xf32, #tpu.memory_space<vmem>>, vector<1x17x128xf32>
    %61 = vector.shape_cast %60 : vector<1x17x128xf32> to vector<17x128xf32>
    %cst_27 = arith.constant dense<0.000000e+00> : vector<17x128xf32>
    %62 = tpu.matmul %28, %59, %cst_27 {dimension_numbers = #tpu.dot_dimension_numbers<[1], [0], [0], [1], [0, 0, 1, 1], [], []>} : vector<17x128xf32>, vector<128x128xf32>, vector<17x128xf32> -> vector<17x128xf32>
    %63 = arith.addf %61, %62 : vector<17x128xf32>
    %c2_28 = arith.constant 2 : index
    %c0_29 = arith.constant 0 : index
    %c0_30 = arith.constant 0 : index
    %64 = vector.load %arg11[%c2_28, %c0_29, %c0_30] : memref<3x17x128xf32, #tpu.memory_space<vmem>>, vector<1x17x128xf32>
    %65 = vector.shape_cast %64 : vector<1x17x128xf32> to vector<17x128xf32>
    %66 = vector.shape_cast %63 : vector<17x128xf32> to vector<1x17x128xf32>
    tpu.vector_store %arg11[%c2_28, %c0_29, %c0_30], %66 {strides = array<i32>} : memref<3x17x128xf32, #tpu.memory_space<vmem>>, vector<1x17x128xf32>,
    %67 = arith.mulf %59, %59 : vector<128x128xf32>
    %68 = arith.mulf %67, %67 : vector<128x128xf32>
    %c1 = arith.constant 1 : index
    %c0_31 = arith.constant 0 : index
    %c0_32 = arith.constant 0 : index
    %69 = vector.load %arg11[%c1, %c0_31, %c0_32] : memref<3x17x128xf32, #tpu.memory_space<vmem>>, vector<1x17x128xf32>
    %70 = vector.shape_cast %69 : vector<1x17x128xf32> to vector<17x128xf32>
    %cst_33 = arith.constant dense<0.000000e+00> : vector<17x128xf32>
    %71 = tpu.matmul %28, %68, %cst_33 {dimension_numbers = #tpu.dot_dimension_numbers<[1], [0], [0], [1], [0, 0, 1, 1], [], []>} : vector<17x128xf32>, vector<128x128xf32>, vector<17x128xf32> -> vector<17x128xf32>
    %72 = arith.addf %70, %71 : vector<17x128xf32>
    %c1_34 = arith.constant 1 : index
    %c0_35 = arith.constant 0 : index
    %c0_36 = arith.constant 0 : index
    %73 = vector.load %arg11[%c1_34, %c0_35, %c0_36] : memref<3x17x128xf32, #tpu.memory_space<vmem>>, vector<1x17x128xf32>
    %74 = vector.shape_cast %73 : vector<1x17x128xf32> to vector<17x128xf32>
    %75 = vector.shape_cast %72 : vector<17x128xf32> to vector<1x17x128xf32>
    tpu.vector_store %arg11[%c1_34, %c0_35, %c0_36], %75 {strides = array<i32>} : memref<3x17x128xf32, #tpu.memory_space<vmem>>, vector<1x17x128xf32>,
    %76 = arith.mulf %68, %68 : vector<128x128xf32>
    %77 = arith.mulf %76, %76 : vector<128x128xf32>
    %c0_37 = arith.constant 0 : index
    %c0_38 = arith.constant 0 : index
    %c0_39 = arith.constant 0 : index
    %78 = vector.load %arg11[%c0_37, %c0_38, %c0_39] : memref<3x17x128xf32, #tpu.memory_space<vmem>>, vector<1x17x128xf32>
    %79 = vector.shape_cast %78 : vector<1x17x128xf32> to vector<17x128xf32>
    %cst_40 = arith.constant dense<0.000000e+00> : vector<17x128xf32>
    %80 = tpu.matmul %28, %77, %cst_40 {dimension_numbers = #tpu.dot_dimension_numbers<[1], [0], [0], [1], [0, 0, 1, 1], [], []>} : vector<17x128xf32>, vector<128x128xf32>, vector<17x128xf32> -> vector<17x128xf32>
    %81 = arith.addf %79, %80 : vector<17x128xf32>
    %c0_41 = arith.constant 0 : index
    %c0_42 = arith.constant 0 : index
    %c0_43 = arith.constant 0 : index
    %82 = vector.load %arg11[%c0_41, %c0_42, %c0_43] : memref<3x17x128xf32, #tpu.memory_space<vmem>>, vector<1x17x128xf32>
    %83 = vector.shape_cast %82 : vector<1x17x128xf32> to vector<17x128xf32>
    %84 = vector.shape_cast %81 : vector<17x128xf32> to vector<1x17x128xf32>
    tpu.vector_store %arg11[%c0_41, %c0_42, %c0_43], %84 {strides = array<i32>} : memref<3x17x128xf32, #tpu.memory_space<vmem>>, vector<1x17x128xf32>,
    %c2_i32 = arith.constant 2 : i32
    %85 = arith.cmpi eq, %arg2, %c2_i32 : i32
    %86 = arith.extui %85 : i1 to i32
    %c0_i32_44 = arith.constant 0 : i32
    %87 = arith.cmpi ne, %86, %c0_i32_44 : i32
    scf.if %87 {
      %cst_45 = arith.constant 0.000000e+00 : f32
      %88 = vector.broadcast %cst_45 : f32 to vector<16x128xf32>
      %c0_46 = arith.constant 0 : index
      %c0_47 = arith.constant 0 : index
      %c0_48 = arith.constant 0 : index
      %89 = vector.load %arg11[%c0_46, %c0_47, %c0_48] : memref<3x17x128xf32, #tpu.memory_space<vmem>>, vector<1x17x128xf32>
      %90 = vector.shape_cast %89 : vector<1x17x128xf32> to vector<17x128xf32>
      %91 = vector.extract_strided_slice %90 {offsets = [16, 0], sizes = [1, 128], strides = [1, 1]} : vector<17x128xf32> to vector<1x128xf32>
      %cst_49 = arith.constant 9.99999968E-21 : f32
      %92 = vector.broadcast %cst_49 : f32 to vector<1x128xf32>
      %93 = arith.maximumf %91, %92 : vector<1x128xf32>
      %94 = tpu.reciprocal %93 {approx = true} : vector<1x128xf32> -> vector<1x128xf32>
      %95 = arith.mulf %93, %94 : vector<1x128xf32>
      %cst_50 = arith.constant 2.000000e+00 : f32
      %96 = vector.broadcast %cst_50 : f32 to vector<1x128xf32>
      %97 = arith.subf %96, %95 : vector<1x128xf32>
      %98 = arith.mulf %94, %97 : vector<1x128xf32>
      %99 = vector.extract_strided_slice %90 {offsets = [0, 0], sizes = [16, 128], strides = [1, 1]} : vector<17x128xf32> to vector<16x128xf32>
      %100 = vector.broadcast %98 : vector<1x128xf32> to vector<16x128xf32>
      %101 = arith.mulf %99, %100 : vector<16x128xf32>
      %cst_51 = arith.constant 3.300000e-01 : f32
      %102 = vector.broadcast %cst_51 : f32 to vector<16x128xf32>
      %103 = arith.mulf %102, %101 : vector<16x128xf32>
      %104 = arith.addf %88, %103 : vector<16x128xf32>
      %c1_52 = arith.constant 1 : index
      %c0_53 = arith.constant 0 : index
      %c0_54 = arith.constant 0 : index
      %105 = vector.load %arg11[%c1_52, %c0_53, %c0_54] : memref<3x17x128xf32, #tpu.memory_space<vmem>>, vector<1x17x128xf32>
      %106 = vector.shape_cast %105 : vector<1x17x128xf32> to vector<17x128xf32>
      %107 = vector.extract_strided_slice %106 {offsets = [16, 0], sizes = [1, 128], strides = [1, 1]} : vector<17x128xf32> to vector<1x128xf32>
      %cst_55 = arith.constant 9.99999968E-21 : f32
      %108 = vector.broadcast %cst_55 : f32 to vector<1x128xf32>
      %109 = arith.maximumf %107, %108 : vector<1x128xf32>
      %110 = tpu.reciprocal %109 {approx = true} : vector<1x128xf32> -> vector<1x128xf32>
      %111 = arith.mulf %109, %110 : vector<1x128xf32>
      %cst_56 = arith.constant 2.000000e+00 : f32
      %112 = vector.broadcast %cst_56 : f32 to vector<1x128xf32>
      %113 = arith.subf %112, %111 : vector<1x128xf32>
      %114 = arith.mulf %110, %113 : vector<1x128xf32>
      %115 = vector.extract_strided_slice %106 {offsets = [0, 0], sizes = [16, 128], strides = [1, 1]} : vector<17x128xf32> to vector<16x128xf32>
      %116 = vector.broadcast %114 : vector<1x128xf32> to vector<16x128xf32>
      %117 = arith.mulf %115, %116 : vector<16x128xf32>
      %cst_57 = arith.constant 3.300000e-01 : f32
      %118 = vector.broadcast %cst_57 : f32 to vector<16x128xf32>
      %119 = arith.mulf %118, %117 : vector<16x128xf32>
      %120 = arith.addf %104, %119 : vector<16x128xf32>
      %c2_58 = arith.constant 2 : index
      %c0_59 = arith.constant 0 : index
      %c0_60 = arith.constant 0 : index
      %121 = vector.load %arg11[%c2_58, %c0_59, %c0_60] : memref<3x17x128xf32, #tpu.memory_space<vmem>>, vector<1x17x128xf32>
      %122 = vector.shape_cast %121 : vector<1x17x128xf32> to vector<17x128xf32>
      %123 = vector.extract_strided_slice %122 {offsets = [16, 0], sizes = [1, 128], strides = [1, 1]} : vector<17x128xf32> to vector<1x128xf32>
      %cst_61 = arith.constant 9.99999968E-21 : f32
      %124 = vector.broadcast %cst_61 : f32 to vector<1x128xf32>
      %125 = arith.maximumf %123, %124 : vector<1x128xf32>
      %126 = tpu.reciprocal %125 {approx = true} : vector<1x128xf32> -> vector<1x128xf32>
      %127 = arith.mulf %125, %126 : vector<1x128xf32>
      %cst_62 = arith.constant 2.000000e+00 : f32
      %128 = vector.broadcast %cst_62 : f32 to vector<1x128xf32>
      %129 = arith.subf %128, %127 : vector<1x128xf32>
      %130 = arith.mulf %126, %129 : vector<1x128xf32>
      %131 = vector.extract_strided_slice %122 {offsets = [0, 0], sizes = [16, 128], strides = [1, 1]} : vector<17x128xf32> to vector<16x128xf32>
      %132 = vector.broadcast %130 : vector<1x128xf32> to vector<16x128xf32>
      %133 = arith.mulf %131, %132 : vector<16x128xf32>
      %cst_63 = arith.constant 3.300000e-01 : f32
      %134 = vector.broadcast %cst_63 : f32 to vector<16x128xf32>
      %135 = arith.mulf %134, %133 : vector<16x128xf32>
      %136 = arith.addf %120, %135 : vector<16x128xf32>
      %c0_64 = arith.constant 0 : index
      %c0_65 = arith.constant 0 : index
      %c0_66 = arith.constant 0 : index
      %137 = vector.load %arg10[%c0_64, %c0_65, %c0_66] : memref<1x16x128xf32, #tpu.memory_space<vmem>>, vector<1x16x128xf32>
      %138 = vector.shape_cast %137 : vector<1x16x128xf32> to vector<16x128xf32>
      %139 = vector.shape_cast %136 : vector<16x128xf32> to vector<1x16x128xf32>
      tpu.vector_store %arg10[%c0_64, %c0_65, %c0_66], %139 {strides = array<i32>} : memref<1x16x128xf32, #tpu.memory_space<vmem>>, vector<1x16x128xf32>,
    } else {
    }
    return
  }
  func.func @transform_0(%arg0: i32, %arg1: i32, %arg2: i32) -> (i32, i32, i32) {
    %c0_i32 = arith.constant 0 : i32
    %c0_i32_0 = arith.constant 0 : i32
    return %arg0, %c0_i32, %arg1 : i32, i32, i32
  }
  func.func @transform_1(%arg0: i32, %arg1: i32, %arg2: i32) -> (i32, i32, i32) {
    %c0_i32 = arith.constant 0 : i32
    %c0_i32_0 = arith.constant 0 : i32
    return %arg0, %arg2, %c0_i32 : i32, i32, i32
  }
  func.func @transform_2(%arg0: i32, %arg1: i32, %arg2: i32) -> (i32, i32, i32) {
    %c0_i32 = arith.constant 0 : i32
    %c0_i32_0 = arith.constant 0 : i32
    return %arg0, %c0_i32, %arg2 : i32, i32, i32
  }
  func.func @transform_3(%arg0: i32, %arg1: i32, %arg2: i32) -> (i32, i32) {
    %c0_i32 = arith.constant 0 : i32
    %c0_i32_0 = arith.constant 0 : i32
    %c0_i32_1 = arith.constant 0 : i32
    return %c0_i32, %c0_i32_0 : i32, i32
  }
  func.func @transform_4(%arg0: i32, %arg1: i32, %arg2: i32) -> (i32, i32) {
    %c0_i32 = arith.constant 0 : i32
    %c0_i32_0 = arith.constant 0 : i32
    %c0_i32_1 = arith.constant 0 : i32
    return %c0_i32, %c0_i32_0 : i32, i32
  }
  func.func @transform_5(%arg0: i32, %arg1: i32, %arg2: i32) -> (i32, i32) {
    %c0_i32 = arith.constant 0 : i32
    %c0_i32_0 = arith.constant 0 : i32
    %c0_i32_1 = arith.constant 0 : i32
    return %c0_i32, %c0_i32_0 : i32, i32
  }
  func.func @transform_6(%arg0: i32, %arg1: i32, %arg2: i32) -> (i32, i32) {
    %c0_i32 = arith.constant 0 : i32
    %c0_i32_0 = arith.constant 0 : i32
    %c0_i32_1 = arith.constant 0 : i32
    return %c0_i32, %c0_i32_0 : i32, i32
  }
  func.func @transform_7(%arg0: i32, %arg1: i32, %arg2: i32) -> (i32, i32, i32) {
    %c0_i32 = arith.constant 0 : i32
    %c0_i32_0 = arith.constant 0 : i32
    return %arg0, %c0_i32, %arg1 : i32, i32, i32
  }
}

module attributes {stable_mosaic.version = 11 : i64} {
  func.func @_fused_spatial_kernel(%arg0: i32, %arg1: i32, %arg2: i32, %arg3: memref<1x3x128xf32, #tpu.memory_space<vmem>>, %arg4: memref<1x128x3xf32, #tpu.memory_space<vmem>>, %arg5: memref<1x16x128xf32, #tpu.memory_space<vmem>>, %arg6: memref<32x16xf32, #tpu.memory_space<vmem>>, %arg7: memref<32x1xf32, #tpu.memory_space<vmem>>, %arg8: memref<32x32xf32, #tpu.memory_space<vmem>>, %arg9: memref<32x1xf32, #tpu.memory_space<vmem>>, %arg10: memref<1x32x128xf32, #tpu.memory_space<vmem>>, %arg11: memref<3x33x128xf32, #tpu.memory_space<vmem>>) attributes {dimension_semantics = [#tpu.dimension_semantics<parallel>, #tpu.dimension_semantics<parallel>, #tpu.dimension_semantics<arbitrary>], iteration_bounds = array<i64: 2, 3, 3>, scalar_prefetch = 0 : i64, scratch_operands = 1 : i64, tpu.core_type = #tpu.core_type<tc>, window_params = [{transform_indices = @transform_0, window_bounds = array<i64: 1, 3, 128>}, {transform_indices = @transform_1, window_bounds = array<i64: 1, 128, 3>}, {transform_indices = @transform_2, window_bounds = array<i64: 1, 16, 128>}, {pipeline_mode = #tpu.pipeline_mode<synchronous>, transform_indices = @transform_3, window_bounds = array<i64: 32, 16>}, {pipeline_mode = #tpu.pipeline_mode<synchronous>, transform_indices = @transform_4, window_bounds = array<i64: 32, 1>}, {pipeline_mode = #tpu.pipeline_mode<synchronous>, transform_indices = @transform_5, window_bounds = array<i64: 32, 32>}, {pipeline_mode = #tpu.pipeline_mode<synchronous>, transform_indices = @transform_6, window_bounds = array<i64: 32, 1>}, {transform_indices = @transform_7, window_bounds = array<i64: 1, 32, 128>}]} {
    %c0_i32 = arith.constant 0 : i32
    %0 = arith.cmpi eq, %arg2, %c0_i32 : i32
    %1 = arith.extui %0 : i1 to i32
    %c0_i32_0 = arith.constant 0 : i32
    %2 = arith.cmpi ne, %1, %c0_i32_0 : i32
    scf.if %2 {
      %cst_46 = arith.constant 0.000000e+00 : f32
      %86 = vector.broadcast %cst_46 : f32 to vector<3x33x128xf32>
      %c0_47 = arith.constant 0 : index
      %c0_48 = arith.constant 0 : index
      %c0_49 = arith.constant 0 : index
      %87 = vector.load %arg11[%c0_47, %c0_48, %c0_49] : memref<3x33x128xf32, #tpu.memory_space<vmem>>, vector<3x33x128xf32>
      tpu.vector_store %arg11[%c0_47, %c0_48, %c0_49], %86 {strides = array<i32>} : memref<3x33x128xf32, #tpu.memory_space<vmem>>, vector<3x33x128xf32>,
    } else {
    }
    %c0 = arith.constant 0 : index
    %c0_1 = arith.constant 0 : index
    %c0_2 = arith.constant 0 : index
    %3 = vector.load %arg5[%c0, %c0_1, %c0_2] : memref<1x16x128xf32, #tpu.memory_space<vmem>>, vector<1x16x128xf32>
    %4 = vector.shape_cast %3 : vector<1x16x128xf32> to vector<16x128xf32>
    %c0_3 = arith.constant 0 : index
    %c0_4 = arith.constant 0 : index
    %5 = vector.load %arg6[%c0_3, %c0_4] : memref<32x16xf32, #tpu.memory_space<vmem>>, vector<32x16xf32>
    %c0_5 = arith.constant 0 : index
    %c0_6 = arith.constant 0 : index
    %6 = vector.load %arg7[%c0_5, %c0_6] : memref<32x1xf32, #tpu.memory_space<vmem>>, vector<32x1xf32>
    %cst = arith.constant dense<0.000000e+00> : vector<32x128xf32>
    %7 = tpu.matmul %5, %4, %cst {dimension_numbers = #tpu.dot_dimension_numbers<[1], [0], [0], [1], [0, 0, 1, 1], [], []>} : vector<32x16xf32>, vector<16x128xf32>, vector<32x128xf32> -> vector<32x128xf32>
    %8 = vector.broadcast %6 : vector<32x1xf32> to vector<32x128xf32>
    %9 = arith.addf %7, %8 : vector<32x128xf32>
    %cst_7 = arith.constant 0.000000e+00 : f32
    %10 = vector.broadcast %cst_7 : f32 to vector<32x128xf32>
    %11 = arith.cmpf ogt, %9, %10 : vector<32x128xf32>
    %cst_8 = arith.constant 1.000000e-01 : f32
    %12 = vector.broadcast %cst_8 : f32 to vector<32x128xf32>
    %13 = arith.mulf %12, %9 : vector<32x128xf32>
    %14 = arith.select %11, %9, %13 : vector<32x128xi1>, vector<32x128xf32>
    %c0_9 = arith.constant 0 : index
    %c0_10 = arith.constant 0 : index
    %15 = vector.load %arg8[%c0_9, %c0_10] : memref<32x32xf32, #tpu.memory_space<vmem>>, vector<32x32xf32>
    %c0_11 = arith.constant 0 : index
    %c0_12 = arith.constant 0 : index
    %16 = vector.load %arg9[%c0_11, %c0_12] : memref<32x1xf32, #tpu.memory_space<vmem>>, vector<32x1xf32>
    %cst_13 = arith.constant dense<0.000000e+00> : vector<32x128xf32>
    %17 = tpu.matmul %15, %14, %cst_13 {dimension_numbers = #tpu.dot_dimension_numbers<[1], [0], [0], [1], [0, 0, 1, 1], [], []>} : vector<32x32xf32>, vector<32x128xf32>, vector<32x128xf32> -> vector<32x128xf32>
    %18 = vector.broadcast %16 : vector<32x1xf32> to vector<32x128xf32>
    %19 = arith.addf %17, %18 : vector<32x128xf32>
    %cst_14 = arith.constant 0.000000e+00 : f32
    %20 = vector.broadcast %cst_14 : f32 to vector<32x128xf32>
    %21 = arith.cmpf ogt, %19, %20 : vector<32x128xf32>
    %cst_15 = arith.constant 1.000000e-01 : f32
    %22 = vector.broadcast %cst_15 : f32 to vector<32x128xf32>
    %23 = arith.mulf %22, %19 : vector<32x128xf32>
    %24 = arith.select %21, %19, %23 : vector<32x128xi1>, vector<32x128xf32>
    %cst_16 = arith.constant 1.000000e+00 : f32
    %25 = vector.broadcast %cst_16 : f32 to vector<1x128xf32>
    %26 = tpu.concatenate %24, %25 in 0 : vector<32x128xf32>, vector<1x128xf32> -> vector<33x128xf32>
    %c0_17 = arith.constant 0 : index
    %c0_18 = arith.constant 0 : index
    %c0_19 = arith.constant 0 : index
    %27 = vector.load %arg3[%c0_17, %c0_18, %c0_19] : memref<1x3x128xf32, #tpu.memory_space<vmem>>, vector<1x3x128xf32>
    %28 = vector.shape_cast %27 : vector<1x3x128xf32> to vector<3x128xf32>
    %cst_20 = arith.constant 0.441941738 : f32
    %29 = vector.broadcast %cst_20 : f32 to vector<3x128xf32>
    %30 = arith.mulf %28, %29 : vector<3x128xf32>
    %c0_21 = arith.constant 0 : index
    %c0_22 = arith.constant 0 : index
    %c0_23 = arith.constant 0 : index
    %31 = vector.load %arg4[%c0_21, %c0_22, %c0_23] : memref<1x128x3xf32, #tpu.memory_space<vmem>>, vector<1x128x3xf32>
    %32 = vector.shape_cast %31 : vector<1x128x3xf32> to vector<128x3xf32>
    %cst_24 = arith.constant 0.441941738 : f32
    %33 = vector.broadcast %cst_24 : f32 to vector<128x3xf32>
    %34 = arith.mulf %32, %33 : vector<128x3xf32>
    %35 = vector.extract_strided_slice %34 {offsets = [0, 0], sizes = [128, 1], strides = [1, 1]} : vector<128x3xf32> to vector<128x1xf32>
    %36 = vector.extract_strided_slice %30 {offsets = [0, 0], sizes = [1, 128], strides = [1, 1]} : vector<3x128xf32> to vector<1x128xf32>
    %37 = vector.broadcast %35 : vector<128x1xf32> to vector<128x128xf32>
    %38 = vector.broadcast %36 : vector<1x128xf32> to vector<128x128xf32>
    %39 = arith.subf %37, %38 : vector<128x128xf32>
    %40 = arith.mulf %39, %39 : vector<128x128xf32>
    %41 = vector.extract_strided_slice %34 {offsets = [0, 1], sizes = [128, 1], strides = [1, 1]} : vector<128x3xf32> to vector<128x1xf32>
    %42 = vector.extract_strided_slice %30 {offsets = [1, 0], sizes = [1, 128], strides = [1, 1]} : vector<3x128xf32> to vector<1x128xf32>
    %43 = vector.broadcast %41 : vector<128x1xf32> to vector<128x128xf32>
    %44 = vector.broadcast %42 : vector<1x128xf32> to vector<128x128xf32>
    %45 = arith.subf %43, %44 : vector<128x128xf32>
    %46 = arith.mulf %45, %45 : vector<128x128xf32>
    %47 = arith.addf %40, %46 : vector<128x128xf32>
    %48 = vector.extract_strided_slice %34 {offsets = [0, 2], sizes = [128, 1], strides = [1, 1]} : vector<128x3xf32> to vector<128x1xf32>
    %49 = vector.extract_strided_slice %30 {offsets = [2, 0], sizes = [1, 128], strides = [1, 1]} : vector<3x128xf32> to vector<1x128xf32>
    %50 = vector.broadcast %48 : vector<128x1xf32> to vector<128x128xf32>
    %51 = vector.broadcast %49 : vector<1x128xf32> to vector<128x128xf32>
    %52 = arith.subf %50, %51 : vector<128x128xf32>
    %53 = arith.mulf %52, %52 : vector<128x128xf32>
    %54 = arith.addf %47, %53 : vector<128x128xf32>
    %cst_25 = arith.constant 0.000000e+00 : f32
    %55 = vector.broadcast %cst_25 : f32 to vector<128x128xf32>
    %56 = arith.subf %55, %54 : vector<128x128xf32>
    %57 = math.exp %56 : vector<128x128xf32>
    %c2 = arith.constant 2 : index
    %c0_26 = arith.constant 0 : index
    %c0_27 = arith.constant 0 : index
    %58 = vector.load %arg11[%c2, %c0_26, %c0_27] : memref<3x33x128xf32, #tpu.memory_space<vmem>>, vector<1x33x128xf32>
    %59 = vector.shape_cast %58 : vector<1x33x128xf32> to vector<33x128xf32>
    %cst_28 = arith.constant dense<0.000000e+00> : vector<33x128xf32>
    %60 = tpu.matmul %26, %57, %cst_28 {dimension_numbers = #tpu.dot_dimension_numbers<[1], [0], [0], [1], [0, 0, 1, 1], [], []>} : vector<33x128xf32>, vector<128x128xf32>, vector<33x128xf32> -> vector<33x128xf32>
    %61 = arith.addf %59, %60 : vector<33x128xf32>
    %c2_29 = arith.constant 2 : index
    %c0_30 = arith.constant 0 : index
    %c0_31 = arith.constant 0 : index
    %62 = vector.load %arg11[%c2_29, %c0_30, %c0_31] : memref<3x33x128xf32, #tpu.memory_space<vmem>>, vector<1x33x128xf32>
    %63 = vector.shape_cast %62 : vector<1x33x128xf32> to vector<33x128xf32>
    %64 = vector.shape_cast %61 : vector<33x128xf32> to vector<1x33x128xf32>
    tpu.vector_store %arg11[%c2_29, %c0_30, %c0_31], %64 {strides = array<i32>} : memref<3x33x128xf32, #tpu.memory_space<vmem>>, vector<1x33x128xf32>,
    %65 = arith.mulf %57, %57 : vector<128x128xf32>
    %66 = arith.mulf %65, %65 : vector<128x128xf32>
    %c1 = arith.constant 1 : index
    %c0_32 = arith.constant 0 : index
    %c0_33 = arith.constant 0 : index
    %67 = vector.load %arg11[%c1, %c0_32, %c0_33] : memref<3x33x128xf32, #tpu.memory_space<vmem>>, vector<1x33x128xf32>
    %68 = vector.shape_cast %67 : vector<1x33x128xf32> to vector<33x128xf32>
    %cst_34 = arith.constant dense<0.000000e+00> : vector<33x128xf32>
    %69 = tpu.matmul %26, %66, %cst_34 {dimension_numbers = #tpu.dot_dimension_numbers<[1], [0], [0], [1], [0, 0, 1, 1], [], []>} : vector<33x128xf32>, vector<128x128xf32>, vector<33x128xf32> -> vector<33x128xf32>
    %70 = arith.addf %68, %69 : vector<33x128xf32>
    %c1_35 = arith.constant 1 : index
    %c0_36 = arith.constant 0 : index
    %c0_37 = arith.constant 0 : index
    %71 = vector.load %arg11[%c1_35, %c0_36, %c0_37] : memref<3x33x128xf32, #tpu.memory_space<vmem>>, vector<1x33x128xf32>
    %72 = vector.shape_cast %71 : vector<1x33x128xf32> to vector<33x128xf32>
    %73 = vector.shape_cast %70 : vector<33x128xf32> to vector<1x33x128xf32>
    tpu.vector_store %arg11[%c1_35, %c0_36, %c0_37], %73 {strides = array<i32>} : memref<3x33x128xf32, #tpu.memory_space<vmem>>, vector<1x33x128xf32>,
    %74 = arith.mulf %66, %66 : vector<128x128xf32>
    %75 = arith.mulf %74, %74 : vector<128x128xf32>
    %c0_38 = arith.constant 0 : index
    %c0_39 = arith.constant 0 : index
    %c0_40 = arith.constant 0 : index
    %76 = vector.load %arg11[%c0_38, %c0_39, %c0_40] : memref<3x33x128xf32, #tpu.memory_space<vmem>>, vector<1x33x128xf32>
    %77 = vector.shape_cast %76 : vector<1x33x128xf32> to vector<33x128xf32>
    %cst_41 = arith.constant dense<0.000000e+00> : vector<33x128xf32>
    %78 = tpu.matmul %26, %75, %cst_41 {dimension_numbers = #tpu.dot_dimension_numbers<[1], [0], [0], [1], [0, 0, 1, 1], [], []>} : vector<33x128xf32>, vector<128x128xf32>, vector<33x128xf32> -> vector<33x128xf32>
    %79 = arith.addf %77, %78 : vector<33x128xf32>
    %c0_42 = arith.constant 0 : index
    %c0_43 = arith.constant 0 : index
    %c0_44 = arith.constant 0 : index
    %80 = vector.load %arg11[%c0_42, %c0_43, %c0_44] : memref<3x33x128xf32, #tpu.memory_space<vmem>>, vector<1x33x128xf32>
    %81 = vector.shape_cast %80 : vector<1x33x128xf32> to vector<33x128xf32>
    %82 = vector.shape_cast %79 : vector<33x128xf32> to vector<1x33x128xf32>
    tpu.vector_store %arg11[%c0_42, %c0_43, %c0_44], %82 {strides = array<i32>} : memref<3x33x128xf32, #tpu.memory_space<vmem>>, vector<1x33x128xf32>,
    %c2_i32 = arith.constant 2 : i32
    %83 = arith.cmpi eq, %arg2, %c2_i32 : i32
    %84 = arith.extui %83 : i1 to i32
    %c0_i32_45 = arith.constant 0 : i32
    %85 = arith.cmpi ne, %84, %c0_i32_45 : i32
    scf.if %85 {
      %cst_46 = arith.constant 0.000000e+00 : f32
      %86 = vector.broadcast %cst_46 : f32 to vector<32x128xf32>
      %c0_47 = arith.constant 0 : index
      %c0_48 = arith.constant 0 : index
      %c0_49 = arith.constant 0 : index
      %87 = vector.load %arg11[%c0_47, %c0_48, %c0_49] : memref<3x33x128xf32, #tpu.memory_space<vmem>>, vector<1x33x128xf32>
      %88 = vector.shape_cast %87 : vector<1x33x128xf32> to vector<33x128xf32>
      %89 = vector.extract_strided_slice %88 {offsets = [32, 0], sizes = [1, 128], strides = [1, 1]} : vector<33x128xf32> to vector<1x128xf32>
      %cst_50 = arith.constant 9.99999968E-21 : f32
      %90 = vector.broadcast %cst_50 : f32 to vector<1x128xf32>
      %91 = arith.maximumf %89, %90 : vector<1x128xf32>
      %92 = tpu.reciprocal %91 {approx = true} : vector<1x128xf32> -> vector<1x128xf32>
      %93 = arith.mulf %91, %92 : vector<1x128xf32>
      %cst_51 = arith.constant 2.000000e+00 : f32
      %94 = vector.broadcast %cst_51 : f32 to vector<1x128xf32>
      %95 = arith.subf %94, %93 : vector<1x128xf32>
      %96 = arith.mulf %92, %95 : vector<1x128xf32>
      %97 = vector.extract_strided_slice %88 {offsets = [0, 0], sizes = [32, 128], strides = [1, 1]} : vector<33x128xf32> to vector<32x128xf32>
      %98 = vector.broadcast %96 : vector<1x128xf32> to vector<32x128xf32>
      %99 = arith.mulf %97, %98 : vector<32x128xf32>
      %cst_52 = arith.constant 3.300000e-01 : f32
      %100 = vector.broadcast %cst_52 : f32 to vector<32x128xf32>
      %101 = arith.mulf %100, %99 : vector<32x128xf32>
      %102 = arith.addf %86, %101 : vector<32x128xf32>
      %c1_53 = arith.constant 1 : index
      %c0_54 = arith.constant 0 : index
      %c0_55 = arith.constant 0 : index
      %103 = vector.load %arg11[%c1_53, %c0_54, %c0_55] : memref<3x33x128xf32, #tpu.memory_space<vmem>>, vector<1x33x128xf32>
      %104 = vector.shape_cast %103 : vector<1x33x128xf32> to vector<33x128xf32>
      %105 = vector.extract_strided_slice %104 {offsets = [32, 0], sizes = [1, 128], strides = [1, 1]} : vector<33x128xf32> to vector<1x128xf32>
      %cst_56 = arith.constant 9.99999968E-21 : f32
      %106 = vector.broadcast %cst_56 : f32 to vector<1x128xf32>
      %107 = arith.maximumf %105, %106 : vector<1x128xf32>
      %108 = tpu.reciprocal %107 {approx = true} : vector<1x128xf32> -> vector<1x128xf32>
      %109 = arith.mulf %107, %108 : vector<1x128xf32>
      %cst_57 = arith.constant 2.000000e+00 : f32
      %110 = vector.broadcast %cst_57 : f32 to vector<1x128xf32>
      %111 = arith.subf %110, %109 : vector<1x128xf32>
      %112 = arith.mulf %108, %111 : vector<1x128xf32>
      %113 = vector.extract_strided_slice %104 {offsets = [0, 0], sizes = [32, 128], strides = [1, 1]} : vector<33x128xf32> to vector<32x128xf32>
      %114 = vector.broadcast %112 : vector<1x128xf32> to vector<32x128xf32>
      %115 = arith.mulf %113, %114 : vector<32x128xf32>
      %cst_58 = arith.constant 3.300000e-01 : f32
      %116 = vector.broadcast %cst_58 : f32 to vector<32x128xf32>
      %117 = arith.mulf %116, %115 : vector<32x128xf32>
      %118 = arith.addf %102, %117 : vector<32x128xf32>
      %c2_59 = arith.constant 2 : index
      %c0_60 = arith.constant 0 : index
      %c0_61 = arith.constant 0 : index
      %119 = vector.load %arg11[%c2_59, %c0_60, %c0_61] : memref<3x33x128xf32, #tpu.memory_space<vmem>>, vector<1x33x128xf32>
      %120 = vector.shape_cast %119 : vector<1x33x128xf32> to vector<33x128xf32>
      %121 = vector.extract_strided_slice %120 {offsets = [32, 0], sizes = [1, 128], strides = [1, 1]} : vector<33x128xf32> to vector<1x128xf32>
      %cst_62 = arith.constant 9.99999968E-21 : f32
      %122 = vector.broadcast %cst_62 : f32 to vector<1x128xf32>
      %123 = arith.maximumf %121, %122 : vector<1x128xf32>
      %124 = tpu.reciprocal %123 {approx = true} : vector<1x128xf32> -> vector<1x128xf32>
      %125 = arith.mulf %123, %124 : vector<1x128xf32>
      %cst_63 = arith.constant 2.000000e+00 : f32
      %126 = vector.broadcast %cst_63 : f32 to vector<1x128xf32>
      %127 = arith.subf %126, %125 : vector<1x128xf32>
      %128 = arith.mulf %124, %127 : vector<1x128xf32>
      %129 = vector.extract_strided_slice %120 {offsets = [0, 0], sizes = [32, 128], strides = [1, 1]} : vector<33x128xf32> to vector<32x128xf32>
      %130 = vector.broadcast %128 : vector<1x128xf32> to vector<32x128xf32>
      %131 = arith.mulf %129, %130 : vector<32x128xf32>
      %cst_64 = arith.constant 3.300000e-01 : f32
      %132 = vector.broadcast %cst_64 : f32 to vector<32x128xf32>
      %133 = arith.mulf %132, %131 : vector<32x128xf32>
      %134 = arith.addf %118, %133 : vector<32x128xf32>
      %c0_65 = arith.constant 0 : index
      %c0_66 = arith.constant 0 : index
      %c0_67 = arith.constant 0 : index
      %135 = vector.load %arg10[%c0_65, %c0_66, %c0_67] : memref<1x32x128xf32, #tpu.memory_space<vmem>>, vector<1x32x128xf32>
      %136 = vector.shape_cast %135 : vector<1x32x128xf32> to vector<32x128xf32>
      %137 = vector.shape_cast %134 : vector<32x128xf32> to vector<1x32x128xf32>
      tpu.vector_store %arg10[%c0_65, %c0_66, %c0_67], %137 {strides = array<i32>} : memref<1x32x128xf32, #tpu.memory_space<vmem>>, vector<1x32x128xf32>,
    } else {
    }
    return
  }
  func.func @transform_0(%arg0: i32, %arg1: i32, %arg2: i32) -> (i32, i32, i32) {
    %c0_i32 = arith.constant 0 : i32
    %c0_i32_0 = arith.constant 0 : i32
    return %arg0, %c0_i32, %arg1 : i32, i32, i32
  }
  func.func @transform_1(%arg0: i32, %arg1: i32, %arg2: i32) -> (i32, i32, i32) {
    %c0_i32 = arith.constant 0 : i32
    %c0_i32_0 = arith.constant 0 : i32
    return %arg0, %arg2, %c0_i32 : i32, i32, i32
  }
  func.func @transform_2(%arg0: i32, %arg1: i32, %arg2: i32) -> (i32, i32, i32) {
    %c0_i32 = arith.constant 0 : i32
    %c0_i32_0 = arith.constant 0 : i32
    return %arg0, %c0_i32, %arg2 : i32, i32, i32
  }
  func.func @transform_3(%arg0: i32, %arg1: i32, %arg2: i32) -> (i32, i32) {
    %c0_i32 = arith.constant 0 : i32
    %c0_i32_0 = arith.constant 0 : i32
    %c0_i32_1 = arith.constant 0 : i32
    return %c0_i32, %c0_i32_0 : i32, i32
  }
  func.func @transform_4(%arg0: i32, %arg1: i32, %arg2: i32) -> (i32, i32) {
    %c0_i32 = arith.constant 0 : i32
    %c0_i32_0 = arith.constant 0 : i32
    %c0_i32_1 = arith.constant 0 : i32
    return %c0_i32, %c0_i32_0 : i32, i32
  }
  func.func @transform_5(%arg0: i32, %arg1: i32, %arg2: i32) -> (i32, i32) {
    %c0_i32 = arith.constant 0 : i32
    %c0_i32_0 = arith.constant 0 : i32
    %c0_i32_1 = arith.constant 0 : i32
    return %c0_i32, %c0_i32_0 : i32, i32
  }
  func.func @transform_6(%arg0: i32, %arg1: i32, %arg2: i32) -> (i32, i32) {
    %c0_i32 = arith.constant 0 : i32
    %c0_i32_0 = arith.constant 0 : i32
    %c0_i32_1 = arith.constant 0 : i32
    return %c0_i32, %c0_i32_0 : i32, i32
  }
  func.func @transform_7(%arg0: i32, %arg1: i32, %arg2: i32) -> (i32, i32, i32) {
    %c0_i32 = arith.constant 0 : i32
    %c0_i32_0 = arith.constant 0 : i32
    return %arg0, %c0_i32, %arg1 : i32, i32, i32
  }
}

module attributes {stable_mosaic.version = 11 : i64} {
  func.func @_fused_spatial_kernel(%arg0: i32, %arg1: i32, %arg2: i32, %arg3: memref<1x3x128xf32, #tpu.memory_space<vmem>>, %arg4: memref<1x128x3xf32, #tpu.memory_space<vmem>>, %arg5: memref<1x32x128xf32, #tpu.memory_space<vmem>>, %arg6: memref<32x32xf32, #tpu.memory_space<vmem>>, %arg7: memref<32x1xf32, #tpu.memory_space<vmem>>, %arg8: memref<1x32x128xf32, #tpu.memory_space<vmem>>, %arg9: memref<3x33x128xf32, #tpu.memory_space<vmem>>) attributes {dimension_semantics = [#tpu.dimension_semantics<parallel>, #tpu.dimension_semantics<parallel>, #tpu.dimension_semantics<arbitrary>], iteration_bounds = array<i64: 2, 3, 3>, scalar_prefetch = 0 : i64, scratch_operands = 1 : i64, tpu.core_type = #tpu.core_type<tc>, window_params = [{transform_indices = @transform_0, window_bounds = array<i64: 1, 3, 128>}, {transform_indices = @transform_1, window_bounds = array<i64: 1, 128, 3>}, {transform_indices = @transform_2, window_bounds = array<i64: 1, 32, 128>}, {pipeline_mode = #tpu.pipeline_mode<synchronous>, transform_indices = @transform_3, window_bounds = array<i64: 32, 32>}, {pipeline_mode = #tpu.pipeline_mode<synchronous>, transform_indices = @transform_4, window_bounds = array<i64: 32, 1>}, {transform_indices = @transform_5, window_bounds = array<i64: 1, 32, 128>}]} {
    %c0_i32 = arith.constant 0 : i32
    %0 = arith.cmpi eq, %arg2, %c0_i32 : i32
    %1 = arith.extui %0 : i1 to i32
    %c0_i32_0 = arith.constant 0 : i32
    %2 = arith.cmpi ne, %1, %c0_i32_0 : i32
    scf.if %2 {
      %cst_39 = arith.constant 0.000000e+00 : f32
      %76 = vector.broadcast %cst_39 : f32 to vector<3x33x128xf32>
      %c0_40 = arith.constant 0 : index
      %c0_41 = arith.constant 0 : index
      %c0_42 = arith.constant 0 : index
      %77 = vector.load %arg9[%c0_40, %c0_41, %c0_42] : memref<3x33x128xf32, #tpu.memory_space<vmem>>, vector<3x33x128xf32>
      tpu.vector_store %arg9[%c0_40, %c0_41, %c0_42], %76 {strides = array<i32>} : memref<3x33x128xf32, #tpu.memory_space<vmem>>, vector<3x33x128xf32>,
    } else {
    }
    %c0 = arith.constant 0 : index
    %c0_1 = arith.constant 0 : index
    %c0_2 = arith.constant 0 : index
    %3 = vector.load %arg5[%c0, %c0_1, %c0_2] : memref<1x32x128xf32, #tpu.memory_space<vmem>>, vector<1x32x128xf32>
    %4 = vector.shape_cast %3 : vector<1x32x128xf32> to vector<32x128xf32>
    %c0_3 = arith.constant 0 : index
    %c0_4 = arith.constant 0 : index
    %5 = vector.load %arg6[%c0_3, %c0_4] : memref<32x32xf32, #tpu.memory_space<vmem>>, vector<32x32xf32>
    %c0_5 = arith.constant 0 : index
    %c0_6 = arith.constant 0 : index
    %6 = vector.load %arg7[%c0_5, %c0_6] : memref<32x1xf32, #tpu.memory_space<vmem>>, vector<32x1xf32>
    %cst = arith.constant dense<0.000000e+00> : vector<32x128xf32>
    %7 = tpu.matmul %5, %4, %cst {dimension_numbers = #tpu.dot_dimension_numbers<[1], [0], [0], [1], [0, 0, 1, 1], [], []>} : vector<32x32xf32>, vector<32x128xf32>, vector<32x128xf32> -> vector<32x128xf32>
    %8 = vector.broadcast %6 : vector<32x1xf32> to vector<32x128xf32>
    %9 = arith.addf %7, %8 : vector<32x128xf32>
    %cst_7 = arith.constant 0.000000e+00 : f32
    %10 = vector.broadcast %cst_7 : f32 to vector<32x128xf32>
    %11 = arith.cmpf ogt, %9, %10 : vector<32x128xf32>
    %cst_8 = arith.constant 1.000000e-01 : f32
    %12 = vector.broadcast %cst_8 : f32 to vector<32x128xf32>
    %13 = arith.mulf %12, %9 : vector<32x128xf32>
    %14 = arith.select %11, %9, %13 : vector<32x128xi1>, vector<32x128xf32>
    %cst_9 = arith.constant 1.000000e+00 : f32
    %15 = vector.broadcast %cst_9 : f32 to vector<1x128xf32>
    %16 = tpu.concatenate %14, %15 in 0 : vector<32x128xf32>, vector<1x128xf32> -> vector<33x128xf32>
    %c0_10 = arith.constant 0 : index
    %c0_11 = arith.constant 0 : index
    %c0_12 = arith.constant 0 : index
    %17 = vector.load %arg3[%c0_10, %c0_11, %c0_12] : memref<1x3x128xf32, #tpu.memory_space<vmem>>, vector<1x3x128xf32>
    %18 = vector.shape_cast %17 : vector<1x3x128xf32> to vector<3x128xf32>
    %cst_13 = arith.constant 0.110485435 : f32
    %19 = vector.broadcast %cst_13 : f32 to vector<3x128xf32>
    %20 = arith.mulf %18, %19 : vector<3x128xf32>
    %c0_14 = arith.constant 0 : index
    %c0_15 = arith.constant 0 : index
    %c0_16 = arith.constant 0 : index
    %21 = vector.load %arg4[%c0_14, %c0_15, %c0_16] : memref<1x128x3xf32, #tpu.memory_space<vmem>>, vector<1x128x3xf32>
    %22 = vector.shape_cast %21 : vector<1x128x3xf32> to vector<128x3xf32>
    %cst_17 = arith.constant 0.110485435 : f32
    %23 = vector.broadcast %cst_17 : f32 to vector<128x3xf32>
    %24 = arith.mulf %22, %23 : vector<128x3xf32>
    %25 = vector.extract_strided_slice %24 {offsets = [0, 0], sizes = [128, 1], strides = [1, 1]} : vector<128x3xf32> to vector<128x1xf32>
    %26 = vector.extract_strided_slice %20 {offsets = [0, 0], sizes = [1, 128], strides = [1, 1]} : vector<3x128xf32> to vector<1x128xf32>
    %27 = vector.broadcast %25 : vector<128x1xf32> to vector<128x128xf32>
    %28 = vector.broadcast %26 : vector<1x128xf32> to vector<128x128xf32>
    %29 = arith.subf %27, %28 : vector<128x128xf32>
    %30 = arith.mulf %29, %29 : vector<128x128xf32>
    %31 = vector.extract_strided_slice %24 {offsets = [0, 1], sizes = [128, 1], strides = [1, 1]} : vector<128x3xf32> to vector<128x1xf32>
    %32 = vector.extract_strided_slice %20 {offsets = [1, 0], sizes = [1, 128], strides = [1, 1]} : vector<3x128xf32> to vector<1x128xf32>
    %33 = vector.broadcast %31 : vector<128x1xf32> to vector<128x128xf32>
    %34 = vector.broadcast %32 : vector<1x128xf32> to vector<128x128xf32>
    %35 = arith.subf %33, %34 : vector<128x128xf32>
    %36 = arith.mulf %35, %35 : vector<128x128xf32>
    %37 = arith.addf %30, %36 : vector<128x128xf32>
    %38 = vector.extract_strided_slice %24 {offsets = [0, 2], sizes = [128, 1], strides = [1, 1]} : vector<128x3xf32> to vector<128x1xf32>
    %39 = vector.extract_strided_slice %20 {offsets = [2, 0], sizes = [1, 128], strides = [1, 1]} : vector<3x128xf32> to vector<1x128xf32>
    %40 = vector.broadcast %38 : vector<128x1xf32> to vector<128x128xf32>
    %41 = vector.broadcast %39 : vector<1x128xf32> to vector<128x128xf32>
    %42 = arith.subf %40, %41 : vector<128x128xf32>
    %43 = arith.mulf %42, %42 : vector<128x128xf32>
    %44 = arith.addf %37, %43 : vector<128x128xf32>
    %cst_18 = arith.constant 0.000000e+00 : f32
    %45 = vector.broadcast %cst_18 : f32 to vector<128x128xf32>
    %46 = arith.subf %45, %44 : vector<128x128xf32>
    %47 = math.exp %46 : vector<128x128xf32>
    %c2 = arith.constant 2 : index
    %c0_19 = arith.constant 0 : index
    %c0_20 = arith.constant 0 : index
    %48 = vector.load %arg9[%c2, %c0_19, %c0_20] : memref<3x33x128xf32, #tpu.memory_space<vmem>>, vector<1x33x128xf32>
    %49 = vector.shape_cast %48 : vector<1x33x128xf32> to vector<33x128xf32>
    %cst_21 = arith.constant dense<0.000000e+00> : vector<33x128xf32>
    %50 = tpu.matmul %16, %47, %cst_21 {dimension_numbers = #tpu.dot_dimension_numbers<[1], [0], [0], [1], [0, 0, 1, 1], [], []>} : vector<33x128xf32>, vector<128x128xf32>, vector<33x128xf32> -> vector<33x128xf32>
    %51 = arith.addf %49, %50 : vector<33x128xf32>
    %c2_22 = arith.constant 2 : index
    %c0_23 = arith.constant 0 : index
    %c0_24 = arith.constant 0 : index
    %52 = vector.load %arg9[%c2_22, %c0_23, %c0_24] : memref<3x33x128xf32, #tpu.memory_space<vmem>>, vector<1x33x128xf32>
    %53 = vector.shape_cast %52 : vector<1x33x128xf32> to vector<33x128xf32>
    %54 = vector.shape_cast %51 : vector<33x128xf32> to vector<1x33x128xf32>
    tpu.vector_store %arg9[%c2_22, %c0_23, %c0_24], %54 {strides = array<i32>} : memref<3x33x128xf32, #tpu.memory_space<vmem>>, vector<1x33x128xf32>,
    %55 = arith.mulf %47, %47 : vector<128x128xf32>
    %56 = arith.mulf %55, %55 : vector<128x128xf32>
    %c1 = arith.constant 1 : index
    %c0_25 = arith.constant 0 : index
    %c0_26 = arith.constant 0 : index
    %57 = vector.load %arg9[%c1, %c0_25, %c0_26] : memref<3x33x128xf32, #tpu.memory_space<vmem>>, vector<1x33x128xf32>
    %58 = vector.shape_cast %57 : vector<1x33x128xf32> to vector<33x128xf32>
    %cst_27 = arith.constant dense<0.000000e+00> : vector<33x128xf32>
    %59 = tpu.matmul %16, %56, %cst_27 {dimension_numbers = #tpu.dot_dimension_numbers<[1], [0], [0], [1], [0, 0, 1, 1], [], []>} : vector<33x128xf32>, vector<128x128xf32>, vector<33x128xf32> -> vector<33x128xf32>
    %60 = arith.addf %58, %59 : vector<33x128xf32>
    %c1_28 = arith.constant 1 : index
    %c0_29 = arith.constant 0 : index
    %c0_30 = arith.constant 0 : index
    %61 = vector.load %arg9[%c1_28, %c0_29, %c0_30] : memref<3x33x128xf32, #tpu.memory_space<vmem>>, vector<1x33x128xf32>
    %62 = vector.shape_cast %61 : vector<1x33x128xf32> to vector<33x128xf32>
    %63 = vector.shape_cast %60 : vector<33x128xf32> to vector<1x33x128xf32>
    tpu.vector_store %arg9[%c1_28, %c0_29, %c0_30], %63 {strides = array<i32>} : memref<3x33x128xf32, #tpu.memory_space<vmem>>, vector<1x33x128xf32>,
    %64 = arith.mulf %56, %56 : vector<128x128xf32>
    %65 = arith.mulf %64, %64 : vector<128x128xf32>
    %c0_31 = arith.constant 0 : index
    %c0_32 = arith.constant 0 : index
    %c0_33 = arith.constant 0 : index
    %66 = vector.load %arg9[%c0_31, %c0_32, %c0_33] : memref<3x33x128xf32, #tpu.memory_space<vmem>>, vector<1x33x128xf32>
    %67 = vector.shape_cast %66 : vector<1x33x128xf32> to vector<33x128xf32>
    %cst_34 = arith.constant dense<0.000000e+00> : vector<33x128xf32>
    %68 = tpu.matmul %16, %65, %cst_34 {dimension_numbers = #tpu.dot_dimension_numbers<[1], [0], [0], [1], [0, 0, 1, 1], [], []>} : vector<33x128xf32>, vector<128x128xf32>, vector<33x128xf32> -> vector<33x128xf32>
    %69 = arith.addf %67, %68 : vector<33x128xf32>
    %c0_35 = arith.constant 0 : index
    %c0_36 = arith.constant 0 : index
    %c0_37 = arith.constant 0 : index
    %70 = vector.load %arg9[%c0_35, %c0_36, %c0_37] : memref<3x33x128xf32, #tpu.memory_space<vmem>>, vector<1x33x128xf32>
    %71 = vector.shape_cast %70 : vector<1x33x128xf32> to vector<33x128xf32>
    %72 = vector.shape_cast %69 : vector<33x128xf32> to vector<1x33x128xf32>
    tpu.vector_store %arg9[%c0_35, %c0_36, %c0_37], %72 {strides = array<i32>} : memref<3x33x128xf32, #tpu.memory_space<vmem>>, vector<1x33x128xf32>,
    %c2_i32 = arith.constant 2 : i32
    %73 = arith.cmpi eq, %arg2, %c2_i32 : i32
    %74 = arith.extui %73 : i1 to i32
    %c0_i32_38 = arith.constant 0 : i32
    %75 = arith.cmpi ne, %74, %c0_i32_38 : i32
    scf.if %75 {
      %cst_39 = arith.constant 0.000000e+00 : f32
      %76 = vector.broadcast %cst_39 : f32 to vector<32x128xf32>
      %c0_40 = arith.constant 0 : index
      %c0_41 = arith.constant 0 : index
      %c0_42 = arith.constant 0 : index
      %77 = vector.load %arg9[%c0_40, %c0_41, %c0_42] : memref<3x33x128xf32, #tpu.memory_space<vmem>>, vector<1x33x128xf32>
      %78 = vector.shape_cast %77 : vector<1x33x128xf32> to vector<33x128xf32>
      %79 = vector.extract_strided_slice %78 {offsets = [32, 0], sizes = [1, 128], strides = [1, 1]} : vector<33x128xf32> to vector<1x128xf32>
      %cst_43 = arith.constant 9.99999968E-21 : f32
      %80 = vector.broadcast %cst_43 : f32 to vector<1x128xf32>
      %81 = arith.maximumf %79, %80 : vector<1x128xf32>
      %82 = tpu.reciprocal %81 {approx = true} : vector<1x128xf32> -> vector<1x128xf32>
      %83 = arith.mulf %81, %82 : vector<1x128xf32>
      %cst_44 = arith.constant 2.000000e+00 : f32
      %84 = vector.broadcast %cst_44 : f32 to vector<1x128xf32>
      %85 = arith.subf %84, %83 : vector<1x128xf32>
      %86 = arith.mulf %82, %85 : vector<1x128xf32>
      %87 = vector.extract_strided_slice %78 {offsets = [0, 0], sizes = [32, 128], strides = [1, 1]} : vector<33x128xf32> to vector<32x128xf32>
      %88 = vector.broadcast %86 : vector<1x128xf32> to vector<32x128xf32>
      %89 = arith.mulf %87, %88 : vector<32x128xf32>
      %cst_45 = arith.constant 3.300000e-01 : f32
      %90 = vector.broadcast %cst_45 : f32 to vector<32x128xf32>
      %91 = arith.mulf %90, %89 : vector<32x128xf32>
      %92 = arith.addf %76, %91 : vector<32x128xf32>
      %c1_46 = arith.constant 1 : index
      %c0_47 = arith.constant 0 : index
      %c0_48 = arith.constant 0 : index
      %93 = vector.load %arg9[%c1_46, %c0_47, %c0_48] : memref<3x33x128xf32, #tpu.memory_space<vmem>>, vector<1x33x128xf32>
      %94 = vector.shape_cast %93 : vector<1x33x128xf32> to vector<33x128xf32>
      %95 = vector.extract_strided_slice %94 {offsets = [32, 0], sizes = [1, 128], strides = [1, 1]} : vector<33x128xf32> to vector<1x128xf32>
      %cst_49 = arith.constant 9.99999968E-21 : f32
      %96 = vector.broadcast %cst_49 : f32 to vector<1x128xf32>
      %97 = arith.maximumf %95, %96 : vector<1x128xf32>
      %98 = tpu.reciprocal %97 {approx = true} : vector<1x128xf32> -> vector<1x128xf32>
      %99 = arith.mulf %97, %98 : vector<1x128xf32>
      %cst_50 = arith.constant 2.000000e+00 : f32
      %100 = vector.broadcast %cst_50 : f32 to vector<1x128xf32>
      %101 = arith.subf %100, %99 : vector<1x128xf32>
      %102 = arith.mulf %98, %101 : vector<1x128xf32>
      %103 = vector.extract_strided_slice %94 {offsets = [0, 0], sizes = [32, 128], strides = [1, 1]} : vector<33x128xf32> to vector<32x128xf32>
      %104 = vector.broadcast %102 : vector<1x128xf32> to vector<32x128xf32>
      %105 = arith.mulf %103, %104 : vector<32x128xf32>
      %cst_51 = arith.constant 3.300000e-01 : f32
      %106 = vector.broadcast %cst_51 : f32 to vector<32x128xf32>
      %107 = arith.mulf %106, %105 : vector<32x128xf32>
      %108 = arith.addf %92, %107 : vector<32x128xf32>
      %c2_52 = arith.constant 2 : index
      %c0_53 = arith.constant 0 : index
      %c0_54 = arith.constant 0 : index
      %109 = vector.load %arg9[%c2_52, %c0_53, %c0_54] : memref<3x33x128xf32, #tpu.memory_space<vmem>>, vector<1x33x128xf32>
      %110 = vector.shape_cast %109 : vector<1x33x128xf32> to vector<33x128xf32>
      %111 = vector.extract_strided_slice %110 {offsets = [32, 0], sizes = [1, 128], strides = [1, 1]} : vector<33x128xf32> to vector<1x128xf32>
      %cst_55 = arith.constant 9.99999968E-21 : f32
      %112 = vector.broadcast %cst_55 : f32 to vector<1x128xf32>
      %113 = arith.maximumf %111, %112 : vector<1x128xf32>
      %114 = tpu.reciprocal %113 {approx = true} : vector<1x128xf32> -> vector<1x128xf32>
      %115 = arith.mulf %113, %114 : vector<1x128xf32>
      %cst_56 = arith.constant 2.000000e+00 : f32
      %116 = vector.broadcast %cst_56 : f32 to vector<1x128xf32>
      %117 = arith.subf %116, %115 : vector<1x128xf32>
      %118 = arith.mulf %114, %117 : vector<1x128xf32>
      %119 = vector.extract_strided_slice %110 {offsets = [0, 0], sizes = [32, 128], strides = [1, 1]} : vector<33x128xf32> to vector<32x128xf32>
      %120 = vector.broadcast %118 : vector<1x128xf32> to vector<32x128xf32>
      %121 = arith.mulf %119, %120 : vector<32x128xf32>
      %cst_57 = arith.constant 3.300000e-01 : f32
      %122 = vector.broadcast %cst_57 : f32 to vector<32x128xf32>
      %123 = arith.mulf %122, %121 : vector<32x128xf32>
      %124 = arith.addf %108, %123 : vector<32x128xf32>
      %c0_58 = arith.constant 0 : index
      %c0_59 = arith.constant 0 : index
      %c0_60 = arith.constant 0 : index
      %125 = vector.load %arg8[%c0_58, %c0_59, %c0_60] : memref<1x32x128xf32, #tpu.memory_space<vmem>>, vector<1x32x128xf32>
      %126 = vector.shape_cast %125 : vector<1x32x128xf32> to vector<32x128xf32>
      %127 = vector.shape_cast %124 : vector<32x128xf32> to vector<1x32x128xf32>
      tpu.vector_store %arg8[%c0_58, %c0_59, %c0_60], %127 {strides = array<i32>} : memref<1x32x128xf32, #tpu.memory_space<vmem>>, vector<1x32x128xf32>,
    } else {
    }
    return
  }
  func.func @transform_0(%arg0: i32, %arg1: i32, %arg2: i32) -> (i32, i32, i32) {
    %c0_i32 = arith.constant 0 : i32
    %c0_i32_0 = arith.constant 0 : i32
    return %arg0, %c0_i32, %arg1 : i32, i32, i32
  }
  func.func @transform_1(%arg0: i32, %arg1: i32, %arg2: i32) -> (i32, i32, i32) {
    %c0_i32 = arith.constant 0 : i32
    %c0_i32_0 = arith.constant 0 : i32
    return %arg0, %arg2, %c0_i32 : i32, i32, i32
  }
  func.func @transform_2(%arg0: i32, %arg1: i32, %arg2: i32) -> (i32, i32, i32) {
    %c0_i32 = arith.constant 0 : i32
    %c0_i32_0 = arith.constant 0 : i32
    return %arg0, %c0_i32, %arg2 : i32, i32, i32
  }
  func.func @transform_3(%arg0: i32, %arg1: i32, %arg2: i32) -> (i32, i32) {
    %c0_i32 = arith.constant 0 : i32
    %c0_i32_0 = arith.constant 0 : i32
    %c0_i32_1 = arith.constant 0 : i32
    return %c0_i32, %c0_i32_0 : i32, i32
  }
  func.func @transform_4(%arg0: i32, %arg1: i32, %arg2: i32) -> (i32, i32) {
    %c0_i32 = arith.constant 0 : i32
    %c0_i32_0 = arith.constant 0 : i32
    %c0_i32_1 = arith.constant 0 : i32
    return %c0_i32, %c0_i32_0 : i32, i32
  }
  func.func @transform_5(%arg0: i32, %arg1: i32, %arg2: i32) -> (i32, i32, i32) {
    %c0_i32 = arith.constant 0 : i32
    %c0_i32_0 = arith.constant 0 : i32
    return %arg0, %c0_i32, %arg1 : i32, i32, i32
  }
}

module attributes {stable_mosaic.version = 11 : i64} {
  func.func @_fused_spatial_kernel(%arg0: i32, %arg1: i32, %arg2: i32, %arg3: memref<1x3x128xf32, #tpu.memory_space<vmem>>, %arg4: memref<1x128x3xf32, #tpu.memory_space<vmem>>, %arg5: memref<1x32x128xf32, #tpu.memory_space<vmem>>, %arg6: memref<64x32xf32, #tpu.memory_space<vmem>>, %arg7: memref<64x1xf32, #tpu.memory_space<vmem>>, %arg8: memref<64x64xf32, #tpu.memory_space<vmem>>, %arg9: memref<64x1xf32, #tpu.memory_space<vmem>>, %arg10: memref<64x64xf32, #tpu.memory_space<vmem>>, %arg11: memref<64x1xf32, #tpu.memory_space<vmem>>, %arg12: memref<32x64xf32, #tpu.memory_space<vmem>>, %arg13: memref<32x1xf32, #tpu.memory_space<vmem>>, %arg14: memref<1x32x128xf32, #tpu.memory_space<vmem>>, %arg15: memref<3x65x128xf32, #tpu.memory_space<vmem>>) attributes {dimension_semantics = [#tpu.dimension_semantics<parallel>, #tpu.dimension_semantics<parallel>, #tpu.dimension_semantics<arbitrary>], iteration_bounds = array<i64: 2, 3, 3>, scalar_prefetch = 0 : i64, scratch_operands = 1 : i64, tpu.core_type = #tpu.core_type<tc>, window_params = [{transform_indices = @transform_0, window_bounds = array<i64: 1, 3, 128>}, {transform_indices = @transform_1, window_bounds = array<i64: 1, 128, 3>}, {transform_indices = @transform_2, window_bounds = array<i64: 1, 32, 128>}, {pipeline_mode = #tpu.pipeline_mode<synchronous>, transform_indices = @transform_3, window_bounds = array<i64: 64, 32>}, {pipeline_mode = #tpu.pipeline_mode<synchronous>, transform_indices = @transform_4, window_bounds = array<i64: 64, 1>}, {pipeline_mode = #tpu.pipeline_mode<synchronous>, transform_indices = @transform_5, window_bounds = array<i64: 64, 64>}, {pipeline_mode = #tpu.pipeline_mode<synchronous>, transform_indices = @transform_6, window_bounds = array<i64: 64, 1>}, {pipeline_mode = #tpu.pipeline_mode<synchronous>, transform_indices = @transform_7, window_bounds = array<i64: 64, 64>}, {pipeline_mode = #tpu.pipeline_mode<synchronous>, transform_indices = @transform_8, window_bounds = array<i64: 64, 1>}, {pipeline_mode = #tpu.pipeline_mode<synchronous>, transform_indices = @transform_9, window_bounds = array<i64: 32, 64>}, {pipeline_mode = #tpu.pipeline_mode<synchronous>, transform_indices = @transform_10, window_bounds = array<i64: 32, 1>}, {transform_indices = @transform_11, window_bounds = array<i64: 1, 32, 128>}]} {
    %c0_i32 = arith.constant 0 : i32
    %0 = arith.cmpi eq, %arg2, %c0_i32 : i32
    %1 = arith.extui %0 : i1 to i32
    %c0_i32_0 = arith.constant 0 : i32
    %2 = arith.cmpi ne, %1, %c0_i32_0 : i32
    scf.if %2 {
      %cst_46 = arith.constant 0.000000e+00 : f32
      %86 = vector.broadcast %cst_46 : f32 to vector<3x65x128xf32>
      %c0_47 = arith.constant 0 : index
      %c0_48 = arith.constant 0 : index
      %c0_49 = arith.constant 0 : index
      %87 = vector.load %arg15[%c0_47, %c0_48, %c0_49] : memref<3x65x128xf32, #tpu.memory_space<vmem>>, vector<3x65x128xf32>
      tpu.vector_store %arg15[%c0_47, %c0_48, %c0_49], %86 {strides = array<i32>} : memref<3x65x128xf32, #tpu.memory_space<vmem>>, vector<3x65x128xf32>,
    } else {
    }
    %c0 = arith.constant 0 : index
    %c0_1 = arith.constant 0 : index
    %c0_2 = arith.constant 0 : index
    %3 = vector.load %arg5[%c0, %c0_1, %c0_2] : memref<1x32x128xf32, #tpu.memory_space<vmem>>, vector<1x32x128xf32>
    %4 = vector.shape_cast %3 : vector<1x32x128xf32> to vector<32x128xf32>
    %c0_3 = arith.constant 0 : index
    %c0_4 = arith.constant 0 : index
    %5 = vector.load %arg6[%c0_3, %c0_4] : memref<64x32xf32, #tpu.memory_space<vmem>>, vector<64x32xf32>
    %c0_5 = arith.constant 0 : index
    %c0_6 = arith.constant 0 : index
    %6 = vector.load %arg7[%c0_5, %c0_6] : memref<64x1xf32, #tpu.memory_space<vmem>>, vector<64x1xf32>
    %cst = arith.constant dense<0.000000e+00> : vector<64x128xf32>
    %7 = tpu.matmul %5, %4, %cst {dimension_numbers = #tpu.dot_dimension_numbers<[1], [0], [0], [1], [0, 0, 1, 1], [], []>} : vector<64x32xf32>, vector<32x128xf32>, vector<64x128xf32> -> vector<64x128xf32>
    %8 = vector.broadcast %6 : vector<64x1xf32> to vector<64x128xf32>
    %9 = arith.addf %7, %8 : vector<64x128xf32>
    %cst_7 = arith.constant 0.000000e+00 : f32
    %10 = vector.broadcast %cst_7 : f32 to vector<64x128xf32>
    %11 = arith.cmpf ogt, %9, %10 : vector<64x128xf32>
    %cst_8 = arith.constant 1.000000e-01 : f32
    %12 = vector.broadcast %cst_8 : f32 to vector<64x128xf32>
    %13 = arith.mulf %12, %9 : vector<64x128xf32>
    %14 = arith.select %11, %9, %13 : vector<64x128xi1>, vector<64x128xf32>
    %c0_9 = arith.constant 0 : index
    %c0_10 = arith.constant 0 : index
    %15 = vector.load %arg8[%c0_9, %c0_10] : memref<64x64xf32, #tpu.memory_space<vmem>>, vector<64x64xf32>
    %c0_11 = arith.constant 0 : index
    %c0_12 = arith.constant 0 : index
    %16 = vector.load %arg9[%c0_11, %c0_12] : memref<64x1xf32, #tpu.memory_space<vmem>>, vector<64x1xf32>
    %cst_13 = arith.constant dense<0.000000e+00> : vector<64x128xf32>
    %17 = tpu.matmul %15, %14, %cst_13 {dimension_numbers = #tpu.dot_dimension_numbers<[1], [0], [0], [1], [0, 0, 1, 1], [], []>} : vector<64x64xf32>, vector<64x128xf32>, vector<64x128xf32> -> vector<64x128xf32>
    %18 = vector.broadcast %16 : vector<64x1xf32> to vector<64x128xf32>
    %19 = arith.addf %17, %18 : vector<64x128xf32>
    %cst_14 = arith.constant 0.000000e+00 : f32
    %20 = vector.broadcast %cst_14 : f32 to vector<64x128xf32>
    %21 = arith.cmpf ogt, %19, %20 : vector<64x128xf32>
    %cst_15 = arith.constant 1.000000e-01 : f32
    %22 = vector.broadcast %cst_15 : f32 to vector<64x128xf32>
    %23 = arith.mulf %22, %19 : vector<64x128xf32>
    %24 = arith.select %21, %19, %23 : vector<64x128xi1>, vector<64x128xf32>
    %cst_16 = arith.constant 1.000000e+00 : f32
    %25 = vector.broadcast %cst_16 : f32 to vector<1x128xf32>
    %26 = tpu.concatenate %24, %25 in 0 : vector<64x128xf32>, vector<1x128xf32> -> vector<65x128xf32>
    %c0_17 = arith.constant 0 : index
    %c0_18 = arith.constant 0 : index
    %c0_19 = arith.constant 0 : index
    %27 = vector.load %arg3[%c0_17, %c0_18, %c0_19] : memref<1x3x128xf32, #tpu.memory_space<vmem>>, vector<1x3x128xf32>
    %28 = vector.shape_cast %27 : vector<1x3x128xf32> to vector<3x128xf32>
    %cst_20 = arith.constant 0.110485435 : f32
    %29 = vector.broadcast %cst_20 : f32 to vector<3x128xf32>
    %30 = arith.mulf %28, %29 : vector<3x128xf32>
    %c0_21 = arith.constant 0 : index
    %c0_22 = arith.constant 0 : index
    %c0_23 = arith.constant 0 : index
    %31 = vector.load %arg4[%c0_21, %c0_22, %c0_23] : memref<1x128x3xf32, #tpu.memory_space<vmem>>, vector<1x128x3xf32>
    %32 = vector.shape_cast %31 : vector<1x128x3xf32> to vector<128x3xf32>
    %cst_24 = arith.constant 0.110485435 : f32
    %33 = vector.broadcast %cst_24 : f32 to vector<128x3xf32>
    %34 = arith.mulf %32, %33 : vector<128x3xf32>
    %35 = vector.extract_strided_slice %34 {offsets = [0, 0], sizes = [128, 1], strides = [1, 1]} : vector<128x3xf32> to vector<128x1xf32>
    %36 = vector.extract_strided_slice %30 {offsets = [0, 0], sizes = [1, 128], strides = [1, 1]} : vector<3x128xf32> to vector<1x128xf32>
    %37 = vector.broadcast %35 : vector<128x1xf32> to vector<128x128xf32>
    %38 = vector.broadcast %36 : vector<1x128xf32> to vector<128x128xf32>
    %39 = arith.subf %37, %38 : vector<128x128xf32>
    %40 = arith.mulf %39, %39 : vector<128x128xf32>
    %41 = vector.extract_strided_slice %34 {offsets = [0, 1], sizes = [128, 1], strides = [1, 1]} : vector<128x3xf32> to vector<128x1xf32>
    %42 = vector.extract_strided_slice %30 {offsets = [1, 0], sizes = [1, 128], strides = [1, 1]} : vector<3x128xf32> to vector<1x128xf32>
    %43 = vector.broadcast %41 : vector<128x1xf32> to vector<128x128xf32>
    %44 = vector.broadcast %42 : vector<1x128xf32> to vector<128x128xf32>
    %45 = arith.subf %43, %44 : vector<128x128xf32>
    %46 = arith.mulf %45, %45 : vector<128x128xf32>
    %47 = arith.addf %40, %46 : vector<128x128xf32>
    %48 = vector.extract_strided_slice %34 {offsets = [0, 2], sizes = [128, 1], strides = [1, 1]} : vector<128x3xf32> to vector<128x1xf32>
    %49 = vector.extract_strided_slice %30 {offsets = [2, 0], sizes = [1, 128], strides = [1, 1]} : vector<3x128xf32> to vector<1x128xf32>
    %50 = vector.broadcast %48 : vector<128x1xf32> to vector<128x128xf32>
    %51 = vector.broadcast %49 : vector<1x128xf32> to vector<128x128xf32>
    %52 = arith.subf %50, %51 : vector<128x128xf32>
    %53 = arith.mulf %52, %52 : vector<128x128xf32>
    %54 = arith.addf %47, %53 : vector<128x128xf32>
    %cst_25 = arith.constant 0.000000e+00 : f32
    %55 = vector.broadcast %cst_25 : f32 to vector<128x128xf32>
    %56 = arith.subf %55, %54 : vector<128x128xf32>
    %57 = math.exp %56 : vector<128x128xf32>
    %c2 = arith.constant 2 : index
    %c0_26 = arith.constant 0 : index
    %c0_27 = arith.constant 0 : index
    %58 = vector.load %arg15[%c2, %c0_26, %c0_27] : memref<3x65x128xf32, #tpu.memory_space<vmem>>, vector<1x65x128xf32>
    %59 = vector.shape_cast %58 : vector<1x65x128xf32> to vector<65x128xf32>
    %cst_28 = arith.constant dense<0.000000e+00> : vector<65x128xf32>
    %60 = tpu.matmul %26, %57, %cst_28 {dimension_numbers = #tpu.dot_dimension_numbers<[1], [0], [0], [1], [0, 0, 1, 1], [], []>} : vector<65x128xf32>, vector<128x128xf32>, vector<65x128xf32> -> vector<65x128xf32>
    %61 = arith.addf %59, %60 : vector<65x128xf32>
    %c2_29 = arith.constant 2 : index
    %c0_30 = arith.constant 0 : index
    %c0_31 = arith.constant 0 : index
    %62 = vector.load %arg15[%c2_29, %c0_30, %c0_31] : memref<3x65x128xf32, #tpu.memory_space<vmem>>, vector<1x65x128xf32>
    %63 = vector.shape_cast %62 : vector<1x65x128xf32> to vector<65x128xf32>
    %64 = vector.shape_cast %61 : vector<65x128xf32> to vector<1x65x128xf32>
    tpu.vector_store %arg15[%c2_29, %c0_30, %c0_31], %64 {strides = array<i32>} : memref<3x65x128xf32, #tpu.memory_space<vmem>>, vector<1x65x128xf32>,
    %65 = arith.mulf %57, %57 : vector<128x128xf32>
    %66 = arith.mulf %65, %65 : vector<128x128xf32>
    %c1 = arith.constant 1 : index
    %c0_32 = arith.constant 0 : index
    %c0_33 = arith.constant 0 : index
    %67 = vector.load %arg15[%c1, %c0_32, %c0_33] : memref<3x65x128xf32, #tpu.memory_space<vmem>>, vector<1x65x128xf32>
    %68 = vector.shape_cast %67 : vector<1x65x128xf32> to vector<65x128xf32>
    %cst_34 = arith.constant dense<0.000000e+00> : vector<65x128xf32>
    %69 = tpu.matmul %26, %66, %cst_34 {dimension_numbers = #tpu.dot_dimension_numbers<[1], [0], [0], [1], [0, 0, 1, 1], [], []>} : vector<65x128xf32>, vector<128x128xf32>, vector<65x128xf32> -> vector<65x128xf32>
    %70 = arith.addf %68, %69 : vector<65x128xf32>
    %c1_35 = arith.constant 1 : index
    %c0_36 = arith.constant 0 : index
    %c0_37 = arith.constant 0 : index
    %71 = vector.load %arg15[%c1_35, %c0_36, %c0_37] : memref<3x65x128xf32, #tpu.memory_space<vmem>>, vector<1x65x128xf32>
    %72 = vector.shape_cast %71 : vector<1x65x128xf32> to vector<65x128xf32>
    %73 = vector.shape_cast %70 : vector<65x128xf32> to vector<1x65x128xf32>
    tpu.vector_store %arg15[%c1_35, %c0_36, %c0_37], %73 {strides = array<i32>} : memref<3x65x128xf32, #tpu.memory_space<vmem>>, vector<1x65x128xf32>,
    %74 = arith.mulf %66, %66 : vector<128x128xf32>
    %75 = arith.mulf %74, %74 : vector<128x128xf32>
    %c0_38 = arith.constant 0 : index
    %c0_39 = arith.constant 0 : index
    %c0_40 = arith.constant 0 : index
    %76 = vector.load %arg15[%c0_38, %c0_39, %c0_40] : memref<3x65x128xf32, #tpu.memory_space<vmem>>, vector<1x65x128xf32>
    %77 = vector.shape_cast %76 : vector<1x65x128xf32> to vector<65x128xf32>
    %cst_41 = arith.constant dense<0.000000e+00> : vector<65x128xf32>
    %78 = tpu.matmul %26, %75, %cst_41 {dimension_numbers = #tpu.dot_dimension_numbers<[1], [0], [0], [1], [0, 0, 1, 1], [], []>} : vector<65x128xf32>, vector<128x128xf32>, vector<65x128xf32> -> vector<65x128xf32>
    %79 = arith.addf %77, %78 : vector<65x128xf32>
    %c0_42 = arith.constant 0 : index
    %c0_43 = arith.constant 0 : index
    %c0_44 = arith.constant 0 : index
    %80 = vector.load %arg15[%c0_42, %c0_43, %c0_44] : memref<3x65x128xf32, #tpu.memory_space<vmem>>, vector<1x65x128xf32>
    %81 = vector.shape_cast %80 : vector<1x65x128xf32> to vector<65x128xf32>
    %82 = vector.shape_cast %79 : vector<65x128xf32> to vector<1x65x128xf32>
    tpu.vector_store %arg15[%c0_42, %c0_43, %c0_44], %82 {strides = array<i32>} : memref<3x65x128xf32, #tpu.memory_space<vmem>>, vector<1x65x128xf32>,
    %c2_i32 = arith.constant 2 : i32
    %83 = arith.cmpi eq, %arg2, %c2_i32 : i32
    %84 = arith.extui %83 : i1 to i32
    %c0_i32_45 = arith.constant 0 : i32
    %85 = arith.cmpi ne, %84, %c0_i32_45 : i32
    scf.if %85 {
      %cst_46 = arith.constant 0.000000e+00 : f32
      %86 = vector.broadcast %cst_46 : f32 to vector<64x128xf32>
      %c0_47 = arith.constant 0 : index
      %c0_48 = arith.constant 0 : index
      %c0_49 = arith.constant 0 : index
      %87 = vector.load %arg15[%c0_47, %c0_48, %c0_49] : memref<3x65x128xf32, #tpu.memory_space<vmem>>, vector<1x65x128xf32>
      %88 = vector.shape_cast %87 : vector<1x65x128xf32> to vector<65x128xf32>
      %89 = vector.extract_strided_slice %88 {offsets = [64, 0], sizes = [1, 128], strides = [1, 1]} : vector<65x128xf32> to vector<1x128xf32>
      %cst_50 = arith.constant 9.99999968E-21 : f32
      %90 = vector.broadcast %cst_50 : f32 to vector<1x128xf32>
      %91 = arith.maximumf %89, %90 : vector<1x128xf32>
      %92 = tpu.reciprocal %91 {approx = true} : vector<1x128xf32> -> vector<1x128xf32>
      %93 = arith.mulf %91, %92 : vector<1x128xf32>
      %cst_51 = arith.constant 2.000000e+00 : f32
      %94 = vector.broadcast %cst_51 : f32 to vector<1x128xf32>
      %95 = arith.subf %94, %93 : vector<1x128xf32>
      %96 = arith.mulf %92, %95 : vector<1x128xf32>
      %97 = vector.extract_strided_slice %88 {offsets = [0, 0], sizes = [64, 128], strides = [1, 1]} : vector<65x128xf32> to vector<64x128xf32>
      %98 = vector.broadcast %96 : vector<1x128xf32> to vector<64x128xf32>
      %99 = arith.mulf %97, %98 : vector<64x128xf32>
      %cst_52 = arith.constant 3.300000e-01 : f32
      %100 = vector.broadcast %cst_52 : f32 to vector<64x128xf32>
      %101 = arith.mulf %100, %99 : vector<64x128xf32>
      %102 = arith.addf %86, %101 : vector<64x128xf32>
      %c1_53 = arith.constant 1 : index
      %c0_54 = arith.constant 0 : index
      %c0_55 = arith.constant 0 : index
      %103 = vector.load %arg15[%c1_53, %c0_54, %c0_55] : memref<3x65x128xf32, #tpu.memory_space<vmem>>, vector<1x65x128xf32>
      %104 = vector.shape_cast %103 : vector<1x65x128xf32> to vector<65x128xf32>
      %105 = vector.extract_strided_slice %104 {offsets = [64, 0], sizes = [1, 128], strides = [1, 1]} : vector<65x128xf32> to vector<1x128xf32>
      %cst_56 = arith.constant 9.99999968E-21 : f32
      %106 = vector.broadcast %cst_56 : f32 to vector<1x128xf32>
      %107 = arith.maximumf %105, %106 : vector<1x128xf32>
      %108 = tpu.reciprocal %107 {approx = true} : vector<1x128xf32> -> vector<1x128xf32>
      %109 = arith.mulf %107, %108 : vector<1x128xf32>
      %cst_57 = arith.constant 2.000000e+00 : f32
      %110 = vector.broadcast %cst_57 : f32 to vector<1x128xf32>
      %111 = arith.subf %110, %109 : vector<1x128xf32>
      %112 = arith.mulf %108, %111 : vector<1x128xf32>
      %113 = vector.extract_strided_slice %104 {offsets = [0, 0], sizes = [64, 128], strides = [1, 1]} : vector<65x128xf32> to vector<64x128xf32>
      %114 = vector.broadcast %112 : vector<1x128xf32> to vector<64x128xf32>
      %115 = arith.mulf %113, %114 : vector<64x128xf32>
      %cst_58 = arith.constant 3.300000e-01 : f32
      %116 = vector.broadcast %cst_58 : f32 to vector<64x128xf32>
      %117 = arith.mulf %116, %115 : vector<64x128xf32>
      %118 = arith.addf %102, %117 : vector<64x128xf32>
      %c2_59 = arith.constant 2 : index
      %c0_60 = arith.constant 0 : index
      %c0_61 = arith.constant 0 : index
      %119 = vector.load %arg15[%c2_59, %c0_60, %c0_61] : memref<3x65x128xf32, #tpu.memory_space<vmem>>, vector<1x65x128xf32>
      %120 = vector.shape_cast %119 : vector<1x65x128xf32> to vector<65x128xf32>
      %121 = vector.extract_strided_slice %120 {offsets = [64, 0], sizes = [1, 128], strides = [1, 1]} : vector<65x128xf32> to vector<1x128xf32>
      %cst_62 = arith.constant 9.99999968E-21 : f32
      %122 = vector.broadcast %cst_62 : f32 to vector<1x128xf32>
      %123 = arith.maximumf %121, %122 : vector<1x128xf32>
      %124 = tpu.reciprocal %123 {approx = true} : vector<1x128xf32> -> vector<1x128xf32>
      %125 = arith.mulf %123, %124 : vector<1x128xf32>
      %cst_63 = arith.constant 2.000000e+00 : f32
      %126 = vector.broadcast %cst_63 : f32 to vector<1x128xf32>
      %127 = arith.subf %126, %125 : vector<1x128xf32>
      %128 = arith.mulf %124, %127 : vector<1x128xf32>
      %129 = vector.extract_strided_slice %120 {offsets = [0, 0], sizes = [64, 128], strides = [1, 1]} : vector<65x128xf32> to vector<64x128xf32>
      %130 = vector.broadcast %128 : vector<1x128xf32> to vector<64x128xf32>
      %131 = arith.mulf %129, %130 : vector<64x128xf32>
      %cst_64 = arith.constant 3.300000e-01 : f32
      %132 = vector.broadcast %cst_64 : f32 to vector<64x128xf32>
      %133 = arith.mulf %132, %131 : vector<64x128xf32>
      %134 = arith.addf %118, %133 : vector<64x128xf32>
      %c0_65 = arith.constant 0 : index
      %c0_66 = arith.constant 0 : index
      %135 = vector.load %arg10[%c0_65, %c0_66] : memref<64x64xf32, #tpu.memory_space<vmem>>, vector<64x64xf32>
      %c0_67 = arith.constant 0 : index
      %c0_68 = arith.constant 0 : index
      %136 = vector.load %arg11[%c0_67, %c0_68] : memref<64x1xf32, #tpu.memory_space<vmem>>, vector<64x1xf32>
      %cst_69 = arith.constant dense<0.000000e+00> : vector<64x128xf32>
      %137 = tpu.matmul %135, %134, %cst_69 {dimension_numbers = #tpu.dot_dimension_numbers<[1], [0], [0], [1], [0, 0, 1, 1], [], []>} : vector<64x64xf32>, vector<64x128xf32>, vector<64x128xf32> -> vector<64x128xf32>
      %138 = vector.broadcast %136 : vector<64x1xf32> to vector<64x128xf32>
      %139 = arith.addf %137, %138 : vector<64x128xf32>
      %cst_70 = arith.constant 0.000000e+00 : f32
      %140 = vector.broadcast %cst_70 : f32 to vector<64x128xf32>
      %141 = arith.cmpf ogt, %139, %140 : vector<64x128xf32>
      %cst_71 = arith.constant 1.000000e-01 : f32
      %142 = vector.broadcast %cst_71 : f32 to vector<64x128xf32>
      %143 = arith.mulf %142, %139 : vector<64x128xf32>
      %144 = arith.select %141, %139, %143 : vector<64x128xi1>, vector<64x128xf32>
      %c0_72 = arith.constant 0 : index
      %c0_73 = arith.constant 0 : index
      %145 = vector.load %arg12[%c0_72, %c0_73] : memref<32x64xf32, #tpu.memory_space<vmem>>, vector<32x64xf32>
      %c0_74 = arith.constant 0 : index
      %c0_75 = arith.constant 0 : index
      %146 = vector.load %arg13[%c0_74, %c0_75] : memref<32x1xf32, #tpu.memory_space<vmem>>, vector<32x1xf32>
      %cst_76 = arith.constant dense<0.000000e+00> : vector<32x128xf32>
      %147 = tpu.matmul %145, %144, %cst_76 {dimension_numbers = #tpu.dot_dimension_numbers<[1], [0], [0], [1], [0, 0, 1, 1], [], []>} : vector<32x64xf32>, vector<64x128xf32>, vector<32x128xf32> -> vector<32x128xf32>
      %148 = vector.broadcast %146 : vector<32x1xf32> to vector<32x128xf32>
      %149 = arith.addf %147, %148 : vector<32x128xf32>
      %c0_77 = arith.constant 0 : index
      %c0_78 = arith.constant 0 : index
      %c0_79 = arith.constant 0 : index
      %150 = vector.load %arg14[%c0_77, %c0_78, %c0_79] : memref<1x32x128xf32, #tpu.memory_space<vmem>>, vector<1x32x128xf32>
      %151 = vector.shape_cast %150 : vector<1x32x128xf32> to vector<32x128xf32>
      %152 = vector.shape_cast %149 : vector<32x128xf32> to vector<1x32x128xf32>
      tpu.vector_store %arg14[%c0_77, %c0_78, %c0_79], %152 {strides = array<i32>} : memref<1x32x128xf32, #tpu.memory_space<vmem>>, vector<1x32x128xf32>,
    } else {
    }
    return
  }
  func.func @transform_0(%arg0: i32, %arg1: i32, %arg2: i32) -> (i32, i32, i32) {
    %c0_i32 = arith.constant 0 : i32
    %c0_i32_0 = arith.constant 0 : i32
    return %arg0, %c0_i32, %arg1 : i32, i32, i32
  }
  func.func @transform_1(%arg0: i32, %arg1: i32, %arg2: i32) -> (i32, i32, i32) {
    %c0_i32 = arith.constant 0 : i32
    %c0_i32_0 = arith.constant 0 : i32
    return %arg0, %arg2, %c0_i32 : i32, i32, i32
  }
  func.func @transform_2(%arg0: i32, %arg1: i32, %arg2: i32) -> (i32, i32, i32) {
    %c0_i32 = arith.constant 0 : i32
    %c0_i32_0 = arith.constant 0 : i32
    return %arg0, %c0_i32, %arg2 : i32, i32, i32
  }
  func.func @transform_3(%arg0: i32, %arg1: i32, %arg2: i32) -> (i32, i32) {
    %c0_i32 = arith.constant 0 : i32
    %c0_i32_0 = arith.constant 0 : i32
    %c0_i32_1 = arith.constant 0 : i32
    return %c0_i32, %c0_i32_0 : i32, i32
  }
  func.func @transform_4(%arg0: i32, %arg1: i32, %arg2: i32) -> (i32, i32) {
    %c0_i32 = arith.constant 0 : i32
    %c0_i32_0 = arith.constant 0 : i32
    %c0_i32_1 = arith.constant 0 : i32
    return %c0_i32, %c0_i32_0 : i32, i32
  }
  func.func @transform_5(%arg0: i32, %arg1: i32, %arg2: i32) -> (i32, i32) {
    %c0_i32 = arith.constant 0 : i32
    %c0_i32_0 = arith.constant 0 : i32
    %c0_i32_1 = arith.constant 0 : i32
    return %c0_i32, %c0_i32_0 : i32, i32
  }
  func.func @transform_6(%arg0: i32, %arg1: i32, %arg2: i32) -> (i32, i32) {
    %c0_i32 = arith.constant 0 : i32
    %c0_i32_0 = arith.constant 0 : i32
    %c0_i32_1 = arith.constant 0 : i32
    return %c0_i32, %c0_i32_0 : i32, i32
  }
  func.func @transform_7(%arg0: i32, %arg1: i32, %arg2: i32) -> (i32, i32) {
    %c0_i32 = arith.constant 0 : i32
    %c0_i32_0 = arith.constant 0 : i32
    %c0_i32_1 = arith.constant 0 : i32
    return %c0_i32, %c0_i32_0 : i32, i32
  }
  func.func @transform_8(%arg0: i32, %arg1: i32, %arg2: i32) -> (i32, i32) {
    %c0_i32 = arith.constant 0 : i32
    %c0_i32_0 = arith.constant 0 : i32
    %c0_i32_1 = arith.constant 0 : i32
    return %c0_i32, %c0_i32_0 : i32, i32
  }
  func.func @transform_9(%arg0: i32, %arg1: i32, %arg2: i32) -> (i32, i32) {
    %c0_i32 = arith.constant 0 : i32
    %c0_i32_0 = arith.constant 0 : i32
    %c0_i32_1 = arith.constant 0 : i32
    return %c0_i32, %c0_i32_0 : i32, i32
  }
  func.func @transform_10(%arg0: i32, %arg1: i32, %arg2: i32) -> (i32, i32) {
    %c0_i32 = arith.constant 0 : i32
    %c0_i32_0 = arith.constant 0 : i32
    %c0_i32_1 = arith.constant 0 : i32
    return %c0_i32, %c0_i32_0 : i32, i32
  }
  func.func @transform_11(%arg0: i32, %arg1: i32, %arg2: i32) -> (i32, i32, i32) {
    %c0_i32 = arith.constant 0 : i32
    %c0_i32_0 = arith.constant 0 : i32
    return %arg0, %c0_i32, %arg1 : i32, i32, i32
  }
}

</mosaic_0001>

<llo_original>
// kernel: geo_simple_feature_net_forward.8
$region0: #{geo_simple_feature_net_forward.8}
  #allocation0 [shape = 'u32[]', space=smem, size = 0x4, offset = 0x4, fixed_abs, tag = 'smem constant byte address 0x4 - core index']
  #allocation1 [shape = 'u32[144,128]{1,0:T(1,128)}', space=vmem, size = 0x12000, scoped, tag = 'internal scratch']
  #allocation2 [shape = 'f32[3,33,128]{2,1,0:T(8,128)}', space=vmem, size = 0xf000, scoped, tag = 'scratch operand']
  %s0 = inlined_call_operand.vmem [shape: f32[2,3,384], index: 0, kind: input, shape index: {}]
  %s1 = inlined_call_operand.vmem [shape: f32[2,384,3], index: 1, kind: input, shape index: {}]
  %s2 = inlined_call_operand.vmem [shape: f32[2,32,384], index: 2, kind: input, shape index: {}]
  %s3 = inlined_call_operand.vmem [shape: f32[32,32], index: 3, kind: input, shape index: {}]
  %s4 = inlined_call_operand.vmem [shape: f32[32,1], index: 4, kind: input, shape index: {}]
  %s5 = inlined_call_operand.vmem [shape: f32[2,32,384], index: 5, kind: output, shape index: {}]
  %s6 = sld [smem:[#allocation0]]
  $region133: #{geo_simple_feature_net_forward.8} parent=0
    _
  %s8 = ssub.s32 1, %s6
  %s9 = scalar_select 0, %s8, %s6
  $region1: #{geo_simple_feature_net_forward.8} parent=0
    #allocation3 [shape = 'u8[32768]{0}', space=vmem, size = 0x8000, scoped, tag = 'input window, operand 2']
    #allocation4 [shape = 'u8[32768]{0}', space=vmem, size = 0x8000, scoped, tag = 'output window, operand 0']
    loop: start=0, step=1, limit=20
    $region2: #{geo_simple_feature_net_forward.8} parent=1 // loop_pre_header
      _
    $region3: #{geo_simple_feature_net_forward.8} parent=1 // loop_header
      %s11 = sphi 0, %s15
      %p12 = scmp.ge.s32.totalorder %s11, 20
      %s18 = sphi 0, %s37
      %s19 = sphi 0, %s33
      %s20 = sphi 0, %s29
      %s21 = sphi 0, %s18
      %s22 = sphi 0, %s19
      %s23 = sphi 0, %s20
      %s24 = sphi 0, %s21
      %s25 = sphi 0, %s22
      %s26 = sphi 0, %s23
      %s42 = sphi 0, %s44
      %s45 = sphi 0, %s42
      %s46 = sphi 0, %s45
      %s62 = sphi 0, %s46
      %s70 = sphi 0, %s72
      %s73 = sphi 0, %s70
      %s74 = sphi 0, %s73
      %s90 = sphi 0, %s74
      %s98 = sphi 0, %s100
      %s101 = sphi 0, %s98
      %s102 = sphi 0, %s101
      %s118 = sphi 0, %s102
      %s122 = sphi 0, %s122
      %s124 = sphi 0, %s122
      %s125 = sphi 0, %s124
      %s139 = sphi 0, %s125
      %s143 = sphi 0, %s143
      %s145 = sphi 0, %s143
      %s146 = sphi 0, %s145
      %s160 = sphi 0, %s146
      %s168 = sphi 0, %s170
      %s171 = sphi 0, %s168
      %s172 = sphi 0, %s171
      %s188 = sphi 0, %s172
    $region4: #{geo_simple_feature_net_forward.8} parent=1 // loop_header_branch
      %14 = sbr.rel (%p12) target = $region8
    $region5: #{geo_simple_feature_net_forward.8} parent=1 // loop_body
      %s16 = ssub.s32 %s11, 1
      %s17 = ssub.s32 %s11, 2
      %s27 = sadd.s32 1, %s20
      %p28 = scmp.ge.s32.totalorder %s27, 3
      %s29 = scalar_select %p28, 0, %s27
      %s30 = sadd.s32 1, %s19
      %s31 = scalar_select %p28, %s30, %s19
      %p32 = scmp.ge.s32.totalorder %s31, 3
      %s33 = scalar_select %p32, 0, %s31
      %s34 = sadd.s32 1, %s18
      %s35 = scalar_select %p32, %s34, %s18
      %p36 = scmp.ge.s32.totalorder %s35, 2
      %s37 = scalar_select %p36, 0, %s35
      %s38 = ssub.s32 %s18, %s37
      %s39 = ssub.s32 %s19, %s33
      %s40 = sor.u32 %s38, %s39
      %p41 = scmp.eq.s32.totalorder %s40, 0
      %s43 = sadd.s32 %s42, 1
      %s44 = scalar_select %p41, %s42, %s43
      %p47 = pneg %p41
      %p48 = scmp.eq.s32.totalorder %s11, 17
      %p49 = por %p47, %p48
      %p50 = scmp.ne.s32.totalorder %s42, %s45
      %p51 = scmp.eq.s32.totalorder %s11, 0
      %p52 = por %p50, %p51
      %p53 = scmp.ne.s32.totalorder %s42, %s45
      %p54 = scmp.eq.s32.totalorder %s16, 17
      %p55 = por %p53, %p54
      %p56 = scmp.ne.s32.totalorder %s45, %s46
      %p57 = scmp.eq.s32.totalorder %s16, 0
      %p58 = por %p56, %p57
      %p59 = scmp.ne.s32.totalorder %s45, %s46
      %p60 = scmp.eq.s32.totalorder %s17, 17
      %p61 = por %p59, %p60
      %p63 = scmp.ne.s32.totalorder %s46, %s62
      %p64 = scmp.eq.s32.totalorder %s17, 0
      %p65 = por %p63, %p64
      %s66 = ssub.s32 %s18, %s37
      %s67 = ssub.s32 %s20, %s29
      %s68 = sor.u32 %s66, %s67
      %p69 = scmp.eq.s32.totalorder %s68, 0
      %s71 = sadd.s32 %s70, 1
      %s72 = scalar_select %p69, %s70, %s71
      %p75 = pneg %p69
      %p76 = scmp.eq.s32.totalorder %s11, 17
      %p77 = por %p75, %p76
      %p78 = scmp.ne.s32.totalorder %s70, %s73
      %p79 = scmp.eq.s32.totalorder %s11, 0
      %p80 = por %p78, %p79
      %p81 = scmp.ne.s32.totalorder %s70, %s73
      %p82 = scmp.eq.s32.totalorder %s16, 17
      %p83 = por %p81, %p82
      %p84 = scmp.ne.s32.totalorder %s73, %s74
      %p85 = scmp.eq.s32.totalorder %s16, 0
      %p86 = por %p84, %p85
      %p87 = scmp.ne.s32.totalorder %s73, %s74
      %p88 = scmp.eq.s32.totalorder %s17, 17
      %p89 = por %p87, %p88
      %p91 = scmp.ne.s32.totalorder %s74, %s90
      %p92 = scmp.eq.s32.totalorder %s17, 0
      %p93 = por %p91, %p92
      %s94 = ssub.s32 %s18, %s37
      %s95 = ssub.s32 %s20, %s29
      %s96 = sor.u32 %s94, %s95
      %p97 = scmp.eq.s32.totalorder %s96, 0
      %s99 = sadd.s32 %s98, 1
      %s100 = scalar_select %p97, %s98, %s99
      %p103 = pneg %p97
      %p104 = scmp.eq.s32.totalorder %s11, 17
      %p105 = por %p103, %p104
      %p106 = scmp.ne.s32.totalorder %s98, %s101
      %p107 = scmp.eq.s32.totalorder %s11, 0
      %p108 = por %p106, %p107
      %p109 = scmp.ne.s32.totalorder %s98, %s101
      %p110 = scmp.eq.s32.totalorder %s16, 17
      %p111 = por %p109, %p110
      %p112 = scmp.ne.s32.totalorder %s101, %s102
      %p113 = scmp.eq.s32.totalorder %s16, 0
      %p114 = por %p112, %p113
      %p115 = scmp.ne.s32.totalorder %s101, %s102
      %p116 = scmp.eq.s32.totalorder %s17, 17
      %p117 = por %p115, %p116
      %p119 = scmp.ne.s32.totalorder %s102, %s118
      %p120 = scmp.eq.s32.totalorder %s17, 0
      %p121 = por %p119, %p120
      %s123 = sadd.s32 %s122, 1
      %p126 = scmp.eq.s32.totalorder %s11, 17
      %p127 = scmp.ne.s32.totalorder %s122, %s124
      %p128 = scmp.eq.s32.totalorder %s11, 0
      %p129 = por %p127, %p128
      %p130 = scmp.ne.s32.totalorder %s122, %s124
      %p131 = scmp.eq.s32.totalorder %s16, 17
      %p132 = por %p130, %p131
      %p133 = scmp.ne.s32.totalorder %s124, %s125
      %p134 = scmp.eq.s32.totalorder %s16, 0
      %p135 = por %p133, %p134
      %p136 = scmp.ne.s32.totalorder %s124, %s125
      %p137 = scmp.eq.s32.totalorder %s17, 17
      %p138 = por %p136, %p137
      %p140 = scmp.ne.s32.totalorder %s125, %s139
      %p141 = scmp.eq.s32.totalorder %s17, 0
      %p142 = por %p140, %p141
      %s144 = sadd.s32 %s143, 1
      %p147 = scmp.eq.s32.totalorder %s11, 17
      %p148 = scmp.ne.s32.totalorder %s143, %s145
      %p149 = scmp.eq.s32.totalorder %s11, 0
      %p150 = por %p148, %p149
      %p151 = scmp.ne.s32.totalorder %s143, %s145
      %p152 = scmp.eq.s32.totalorder %s16, 17
      %p153 = por %p151, %p152
      %p154 = scmp.ne.s32.totalorder %s145, %s146
      %p155 = scmp.eq.s32.totalorder %s16, 0
      %p156 = por %p154, %p155
      %p157 = scmp.ne.s32.totalorder %s145, %s146
      %p158 = scmp.eq.s32.totalorder %s17, 17
      %p159 = por %p157, %p158
      %p161 = scmp.ne.s32.totalorder %s146, %s160
      %p162 = scmp.eq.s32.totalorder %s17, 0
      %p163 = por %p161, %p162
      %s164 = ssub.s32 %s18, %s37
      %s165 = ssub.s32 %s19, %s33
      %s166 = sor.u32 %s164, %s165
      %p167 = scmp.eq.s32.totalorder %s166, 0
      %s169 = sadd.s32 %s168, 1
      %s170 = scalar_select %p167, %s168, %s169
      %p173 = pneg %p167
      %p174 = scmp.eq.s32.totalorder %s11, 17
      %p175 = por %p173, %p174
      %p176 = scmp.ne.s32.totalorder %s168, %s171
      %p177 = scmp.eq.s32.totalorder %s11, 0
      %p178 = por %p176, %p177
      %p179 = scmp.ne.s32.totalorder %s168, %s171
      %p180 = scmp.eq.s32.totalorder %s16, 17
      %p181 = por %p179, %p180
      %p182 = scmp.ne.s32.totalorder %s171, %s172
      %p183 = scmp.eq.s32.totalorder %s16, 0
      %p184 = por %p182, %p183
      %p185 = scmp.ne.s32.totalorder %s171, %s172
      %p186 = scmp.eq.s32.totalorder %s17, 17
      %p187 = por %p185, %p186
      %p189 = scmp.ne.s32.totalorder %s172, %s188
      %p190 = scmp.eq.s32.totalorder %s17, 0
      %p191 = por %p189, %p190
      %p192 = scmp.le.s32.totalorder 1, %s11
      %p193 = scmp.lt.s32.totalorder %s11, 19
      %p194 = pnand %p192, %p193
      %p195 = pneg %p194
      // Predicated region
      $region9: #{geo_simple_feature_net_forward.8} parent=5 // pred_check
        _
      $region10: #{geo_simple_feature_net_forward.8} parent=5 // pred_check_branch
        %197 = sbr.rel (%p194) target = $region12
      $region11: #{geo_simple_feature_net_forward.8} parent=5 // pred_region
        %s198 = ssub.s32 %s11, 1
        // Predicated region
        $region13: #{geo_simple_feature_net_forward.8} parent=11 // pred_check
          %p199 = pneg %p135
        $region14: #{geo_simple_feature_net_forward.8} parent=11 // pred_check_branch
          %201 = sbr.rel (%p199) target = $region16
        $region15: #{geo_simple_feature_net_forward.8} parent=11 // pred_region
          _
        $region16: #{geo_simple_feature_net_forward.8} parent=11 // pred_fallthru
          _
        // Predicated region
        $region17: #{geo_simple_feature_net_forward.8} parent=11 // pred_check
          %p202 = pneg %p156
        $region18: #{geo_simple_feature_net_forward.8} parent=11 // pred_check_branch
          %204 = sbr.rel (%p202) target = $region20
        $region19: #{geo_simple_feature_net_forward.8} parent=11 // pred_region
          _
        $region20: #{geo_simple_feature_net_forward.8} parent=11 // pred_fallthru
          _
      $region12: #{geo_simple_feature_net_forward.8} parent=5 // pred_fallthru
        _
      %p205 = scmp.lt.s32.totalorder %s11, 18
      // Predicated region
      $region21: #{geo_simple_feature_net_forward.8} parent=5 // pred_check
        %p206 = pneg %p205
      $region22: #{geo_simple_feature_net_forward.8} parent=5 // pred_check_branch
        %208 = sbr.rel (%p206) target = $region24
      $region23: #{geo_simple_feature_net_forward.8} parent=5 // pred_region
        // Predicated region
        $region25: #{geo_simple_feature_net_forward.8} parent=23 // pred_check
          %p209 = pneg %p52
        $region26: #{geo_simple_feature_net_forward.8} parent=23 // pred_check_branch
          %211 = sbr.rel (%p209) target = $region28
        $region27: #{geo_simple_feature_net_forward.8} parent=23 // pred_region
          %p212 = scmp.lt.s32.totalorder %s18, 1
          %s213 = scalar_select %p212, %s18, 1
          %p214 = scmp.lt.s32.totalorder %s19, 2
          %s215 = scalar_select %p214, %s19, 2
          %s216 = smul.addr %s213, 3
          %s217 = sadd.s32 %s215, %s216
          %s218 = smul.addr %s217, 4
          %s219 = scalar_lea.vmem %s0, %s218
        $region28: #{geo_simple_feature_net_forward.8} parent=23 // pred_fallthru
          _
        // Predicated region
        $region29: #{geo_simple_feature_net_forward.8} parent=23 // pred_check
          %p220 = pneg %p80
        $region30: #{geo_simple_feature_net_forward.8} parent=23 // pred_check_branch
          %222 = sbr.rel (%p220) target = $region32
        $region31: #{geo_simple_feature_net_forward.8} parent=23 // pred_region
          %s223 = smul.u32 16, %s20
          %p224 = scmp.lt.s32.totalorder %s18, 1
          %s225 = scalar_select %p224, %s18, 1
          %p226 = scmp.lt.s32.totalorder %s223, 47
          %s227 = scalar_select %p226, %s223, 47
          %s228 = smul.addr %s225, 48
          %s229 = sadd.s32 %s227, %s228
          %s230 = smul.addr %s229, 8
          %s231 = scalar_lea.vmem %s1, %s230
          %s232 = smul.u32 16, %s20
        $region32: #{geo_simple_feature_net_forward.8} parent=23 // pred_fallthru
          _
        // Predicated region
        $region33: #{geo_simple_feature_net_forward.8} parent=23 // pred_check
          %p233 = pneg %p108
        $region34: #{geo_simple_feature_net_forward.8} parent=23 // pred_check_branch
          %235 = sbr.rel (%p233) target = $region36
        $region35: #{geo_simple_feature_net_forward.8} parent=23 // pred_region
          %s236 = sand.u32 %s98, 1
          %s237 = sand.u32 %s98, 1
          %s238 = smul.addr %s237, 32
          %s239 = scalar_lea.vmem [#allocation3], %s238
          %s240 = smul.addr %s18, 12
          %s241 = sadd.s32 %s20, %s240
          %s242 = smul.addr %s241, 8
          %s243 = scalar_lea.vmem %s2, %s242
          // Predicated region
          $region37: #{geo_simple_feature_net_forward.8} parent=35 // pred_check
            _
          $region38: #{geo_simple_feature_net_forward.8} parent=35 // pred_check_branch
            %245 = sbr.rel (0) target = $region40
          $region39: #{geo_simple_feature_net_forward.8} parent=35 // pred_region
            // Predicated region
            $region41: #{geo_simple_feature_net_forward.8} parent=39 // pred_check
              _
            $region42: #{geo_simple_feature_net_forward.8} parent=39 // pred_check_branch
              %247 = sbr.rel (0) target = $region44
            $region43: #{geo_simple_feature_net_forward.8} parent=39 // pred_region
              // Predicated region
              $region56: #{geo_simple_feature_net_forward.8} parent=43 // pred_check
                _
              $region57: #{geo_simple_feature_net_forward.8} parent=43 // pred_check_branch
                %268 = sbr.rel (0) target = $region59
              $region58: #{geo_simple_feature_net_forward.8} parent=43 // pred_region
                loop: start=0, step=1, limit=1
                $region60: #{geo_simple_feature_net_forward.8} parent=58 // loop_pre_header
                  _
                $region61: #{geo_simple_feature_net_forward.8} parent=58 // loop_header
                  %s270 = sphi 0, %s274
                  %p271 = scmp.ge.s32.totalorder %s270, 1
                  %s275 = sphi %s243, %s243
                  %s276 = sphi %s239, %s239
                $region62: #{geo_simple_feature_net_forward.8} parent=58 // loop_header_branch
                  %273 = sbr.rel (%p271) target = $region66
                $region63: #{geo_simple_feature_net_forward.8} parent=58 // loop_body
                  %v277 = vld [vmem:[%s275] sm:$0xff]
                  %278 = vst [vmem:[%s276] sm:$0xff] %v277
                  %v279 = vld [vmem:[%s275 + $0x18] sm:$0xff]
                  %280 = vst [vmem:[%s276 + $0x8] sm:$0xff] %v279
                  %v281 = vld [vmem:[%s275 + $0x30] sm:$0xff]
                  %282 = vst [vmem:[%s276 + $0x10] sm:$0xff] %v281
                  %v283 = vld [vmem:[%s275 + $0x48] sm:$0xff]
                  %284 = vst [vmem:[%s276 + $0x18] sm:$0xff] %v283
                $region64: #{geo_simple_feature_net_forward.8} parent=58 // loop_footer
                  %s274 = sadd.s32 1, %s270
                $region65: #{geo_simple_feature_net_forward.8} parent=58 // loop_footer_branch
                  %269 = sbr.rel target = $region61
                $region66: #{geo_simple_feature_net_forward.8} parent=58 // loop_exit
                  _
              $region59: #{geo_simple_feature_net_forward.8} parent=43 // pred_fallthru
                _
              // Predicated region
              $region67: #{geo_simple_feature_net_forward.8} parent=43 // pred_check
                _
              $region68: #{geo_simple_feature_net_forward.8} parent=43 // pred_check_branch
                %286 = sbr.rel target = $region70
              $region69: #{geo_simple_feature_net_forward.8} parent=43 // pred_region
                _
              $region70: #{geo_simple_feature_net_forward.8} parent=43 // pred_fallthru
                _
            $region44: #{geo_simple_feature_net_forward.8} parent=39 // pred_fallthru
              _
            // Predicated region
            $region45: #{geo_simple_feature_net_forward.8} parent=39 // pred_check
              _
            $region46: #{geo_simple_feature_net_forward.8} parent=39 // pred_check_branch
              %249 = sbr.rel target = $region48
            $region47: #{geo_simple_feature_net_forward.8} parent=39 // pred_region
              loop: start=0, step=1, limit=1
              $region49: #{geo_simple_feature_net_forward.8} parent=47 // loop_pre_header
                _
              $region50: #{geo_simple_feature_net_forward.8} parent=47 // loop_header
                %s252 = sphi 0, %s256
                %p253 = scmp.ge.s32.totalorder %s252, 1
                %s257 = sphi %s243, %s243
                %s258 = sphi %s239, %s239
              $region51: #{geo_simple_feature_net_forward.8} parent=47 // loop_header_branch
                %255 = sbr.rel (%p253) target = $region55
              $region52: #{geo_simple_feature_net_forward.8} parent=47 // loop_body
                %v259 = vld [vmem:[%s257] sm:$0xff]
                %260 = vst [vmem:[%s258] sm:$0xff] %v259
                %v261 = vld [vmem:[%s257 + $0x18] sm:$0xff]
                %262 = vst [vmem:[%s258 + $0x8] sm:$0xff] %v261
                %v263 = vld [vmem:[%s257 + $0x30] sm:$0xff]
                %264 = vst [vmem:[%s258 + $0x10] sm:$0xff] %v263
                %v265 = vld [vmem:[%s257 + $0x48] sm:$0xff]
                %266 = vst [vmem:[%s258 + $0x18] sm:$0xff] %v265
              $region53: #{geo_simple_feature_net_forward.8} parent=47 // loop_footer
                %s256 = sadd.s32 1, %s252
              $region54: #{geo_simple_feature_net_forward.8} parent=47 // loop_footer_branch
                %251 = sbr.rel target = $region50
              $region55: #{geo_simple_feature_net_forward.8} parent=47 // loop_exit
                _
            $region48: #{geo_simple_feature_net_forward.8} parent=39 // pred_fallthru
              _
          $region40: #{geo_simple_feature_net_forward.8} parent=35 // pred_fallthru
            _
          %287 = vnop
        $region36: #{geo_simple_feature_net_forward.8} parent=23 // pred_fallthru
          _
      $region24: #{geo_simple_feature_net_forward.8} parent=5 // pred_fallthru
        _
      %p288 = scmp.le.s32.totalorder 1, %s11
      %p289 = scmp.lt.s32.totalorder %s11, 19
      %p290 = pnand %p288, %p289
      %p291 = pneg %p290
      // Predicated region
      $region71: #{geo_simple_feature_net_forward.8} parent=5 // pred_check
        _
      $region72: #{geo_simple_feature_net_forward.8} parent=5 // pred_check_branch
        %293 = sbr.rel (%p290) target = $region74
      $region73: #{geo_simple_feature_net_forward.8} parent=5 // pred_region
        %s294 = ssub.s32 %s11, 1
        %s295 = sand.u32 %s101, 1
        %s296 = sand.u32 %s101, 1
        %s297 = smul.addr %s296, 32
        %s298 = scalar_lea.vmem [#allocation3], %s297
        // Predicated region
        $region75: #{geo_simple_feature_net_forward.8} parent=73 // pred_check
          %p299 = pneg %p114
        $region76: #{geo_simple_feature_net_forward.8} parent=73 // pred_check_branch
          %301 = sbr.rel (%p299) target = $region78
        $region77: #{geo_simple_feature_net_forward.8} parent=73 // pred_region
          _
        $region78: #{geo_simple_feature_net_forward.8} parent=73 // pred_fallthru
          _
        %p302 = scmp.lt.s32.totalorder %s21, 1
        %s303 = scalar_select %p302, %s21, 1
        %p304 = scmp.lt.s32.totalorder %s22, 2
        %s305 = scalar_select %p304, %s22, 2
        %s306 = smul.addr %s303, 3
        %s307 = sadd.s32 %s305, %s306
        %s308 = smul.addr %s307, 4
        %s309 = scalar_lea.vmem %s0, %s308
        %p310 = pneg %p58
        %p311 = pneg %p55
        %s312 = smul.u32 16, %s23
        %p313 = scmp.lt.s32.totalorder %s21, 1
        %s314 = scalar_select %p313, %s21, 1
        %p315 = scmp.lt.s32.totalorder %s312, 47
        %s316 = scalar_select %p315, %s312, 47
        %s317 = smul.addr %s314, 48
        %s318 = sadd.s32 %s316, %s317
        %s319 = smul.addr %s318, 8
        %s320 = scalar_lea.vmem %s1, %s319
        %p321 = pneg %p86
        %p322 = pneg %p83
        %s323 = sand.u32 %s101, 1
        %s324 = sand.u32 %s101, 1
        %s325 = smul.addr %s324, 32
        %s326 = scalar_lea.vmem [#allocation3], %s325
        %p327 = pneg %p114
        %p328 = pneg %p111
        %p329 = pneg %p135
        %p330 = pneg %p132
        %p331 = pneg %p156
        %p332 = pneg %p153
        %p333 = pneg %p184
        %p334 = pneg %p181
        %s335 = sand.u32 %s171, 1
        %s336 = sand.u32 %s171, 1
        %s337 = smul.addr %s336, 32
        %s338 = scalar_lea.vmem [#allocation4], %s337
        %p339 = scmp.lt.s32.totalorder %s21, 1
        %s340 = scalar_select %p339, %s21, 1
        %p341 = scmp.lt.s32.totalorder %s22, 2
        %s342 = scalar_select %p341, %s22, 2
        %s343 = smul.addr %s340, 3
        %s344 = sadd.s32 %s342, %s343
        %s345 = smul.addr %s344, 4
        %s346 = scalar_lea.vmem %s0, %s345
        %s347 = smul.u32 16, %s23
        %p348 = scmp.lt.s32.totalorder %s21, 1
        %s349 = scalar_select %p348, %s21, 1
        %p350 = scmp.lt.s32.totalorder %s347, 47
        %s351 = scalar_select %p350, %s347, 47
        %s352 = smul.addr %s349, 48
        %s353 = sadd.s32 %s351, %s352
        %s354 = smul.addr %s353, 8
        %s355 = scalar_lea.vmem %s1, %s354
        %s356 = smul.u32 16, %s23
        %p357 = scmp.eq.s32.totalorder %s23, 0
        // Predicated region
        $region79: #{geo_simple_feature_net_forward.8} parent=73 // pred_check
          %p358 = pneg %p357
        $region80: #{geo_simple_feature_net_forward.8} parent=73 // pred_check_branch
          %360 = sbr.rel (%p358) target = $region82
        $region81: #{geo_simple_feature_net_forward.8} parent=73 // pred_region
          %361 = vst [vmem:[#allocation2] sm:$0xff] 0.0
          %362 = vst [vmem:[#allocation2 + $0x8] sm:$0xff] 0.0
          %363 = vst [vmem:[#allocation2 + $0x10] sm:$0xff] 0.0
          %364 = vst [vmem:[#allocation2 + $0x18] sm:$0xff] 0.0
          %365 = vst [vmem:[#allocation2 + $0x20] sm:$0x1] 0.0
          %366 = vst [vmem:[#allocation2 + $0x28] sm:$0xff] 0.0
          %367 = vst [vmem:[#allocation2 + $0x30] sm:$0xff] 0.0
          %368 = vst [vmem:[#allocation2 + $0x38] sm:$0xff] 0.0
          %369 = vst [vmem:[#allocation2 + $0x40] sm:$0xff] 0.0
          %370 = vst [vmem:[#allocation2 + $0x48] sm:$0x1] 0.0
          %371 = vst [vmem:[#allocation2 + $0x50] sm:$0xff] 0.0
          %372 = vst [vmem:[#allocation2 + $0x58] sm:$0xff] 0.0
          %373 = vst [vmem:[#allocation2 + $0x60] sm:$0xff] 0.0
          %374 = vst [vmem:[#allocation2 + $0x68] sm:$0xff] 0.0
          %375 = vst [vmem:[#allocation2 + $0x70] sm:$0x1] 0.0
        $region82: #{geo_simple_feature_net_forward.8} parent=73 // pred_fallthru
          _
        %v376 = vld [vmem:[%s298] sm:$0xff]
        %v377 = vld [vmem:[%s298 + $0x8] sm:$0xff]
        %v378 = vld [vmem:[%s298 + $0x10] sm:$0xff]
        %v379 = vld [vmem:[%s298 + $0x18] sm:$0xff]
        %v380 = vld [vmem:[%s3] sm:$0xff]
        %v381 = vld [vmem:[%s3 + $0x8] sm:$0xff]
        %v382 = vld [vmem:[%s3 + $0x10] sm:$0xff]
        %v383 = vld [vmem:[%s3 + $0x18] sm:$0xff]
        %v384 = vld [vmem:[%s4] sm:$0xff]
        %v385 = vld [vmem:[%s4 + $0x8] sm:$0xff]
        %v386 = vld [vmem:[%s4 + $0x10] sm:$0xff]
        %v387 = vld [vmem:[%s4 + $0x18] sm:$0xff]
        %389 = vset.pattern.permute.xlu0 0
        %390 = vperm.xlu0 %389, %v384
        %v391 = vpop.permute.xlu0 %390
        %394 = vset.pattern.permute.xlu0 0
        %395 = vperm.xlu0 %394, %v385
        %v396 = vpop.permute.xlu0 %395
        %399 = vset.pattern.permute.xlu0 0
        %400 = vperm.xlu0 %399, %v386
        %v401 = vpop.permute.xlu0 %400
        %404 = vset.pattern.permute.xlu0 0
        %405 = vperm.xlu0 %404, %v387
        %v406 = vpop.permute.xlu0 %405
        %vm408 = vcmask 261120
        %v410 = vsel %vm408, %v380, 0
        %v413 = vsel %vm408, %v381, 0
        %v416 = vsel %vm408, %v382, 0
        %v419 = vsel %vm408, %v383, 0
        %421 = vmatprep.subr.mxu0 0.0
        %422 = vmatpush1.msra.mxu0 %v376
        %423 = vmatprep.subr.mxu0 0.0
        %424 = vmatpush1.msra.mxu0 %v377
        %425 = vmatprep.subr.mxu0 0.0
        %426 = vmatpush1.msra.mxu0 %v378
        %427 = vmatprep.subr.mxu0 0.0
        %428 = vmatpush1.msra.mxu0 %v379
        %429 = vmatprep.subr.mxu0 0.0
        %430 = vmatpush1.msra.mxu0 0.0
        %431 = vmatprep.subr.mxu0 0.0
        %432 = vmatpush1.msra.mxu0 0.0
        %433 = vmatprep.subr.mxu0 0.0
        %434 = vmatpush1.msra.mxu0 0.0
        %435 = vmatprep.subr.mxu0 0.0
        %436 = vmatpush1.msra.mxu0 0.0
        %437 = vmatprep.subr.mxu0 0.0
        %438 = vmatpush1.msra.mxu0 0.0
        %439 = vmatprep.subr.mxu0 0.0
        %440 = vmatpush1.msra.mxu0 0.0
        %441 = vmatprep.subr.mxu0 0.0
        %442 = vmatpush1.msra.mxu0 0.0
        %443 = vmatprep.subr.mxu0 0.0
        %444 = vmatpush1.msra.mxu0 0.0
        %445 = vmatprep.subr.mxu0 0.0
        %446 = vmatpush1.msra.mxu0 0.0
        %447 = vmatprep.subr.mxu0 0.0
        %448 = vmatpush1.msra.mxu0 0.0
        %449 = vmatprep.subr.mxu0 0.0
        %450 = vmatpush1.msra.mxu0 0.0
        %451 = vmatprep.subr.mxu0 0.0
        %452 = vmatpush1.msra.mxu0 0.0
        %453 = vmatprep.subr.mxu0 0.0
        %454 = vmatpush1.msra.mxu0 0.0
        %455 = vmatprep.subr.mxu0 0.0
        %456 = vmatpush1.msra.mxu0 0.0
        %457 = vmatprep.subr.mxu0 0.0
        %458 = vmatpush1.msra.mxu0 0.0
        %459 = vmatprep.subr.mxu0 0.0
        %460 = vmatpush1.msra.mxu0 0.0
        %461 = vmatprep.subr.mxu0 0.0
        %462 = vmatpush1.msra.mxu0 0.0
        %463 = vmatprep.subr.mxu0 0.0
        %464 = vmatpush1.msra.mxu0 0.0
        %465 = vmatprep.subr.mxu0 0.0
        %466 = vmatpush1.msra.mxu0 0.0
        %467 = vmatprep.subr.mxu0 0.0
        %468 = vmatpush1.msra.mxu0 0.0
        %469 = vmatprep.subr.mxu0 0.0
        %470 = vmatpush1.msra.mxu0 0.0
        %471 = vmatprep.subr.mxu0 0.0
        %472 = vmatpush1.msra.mxu0 0.0
        %473 = vmatprep.subr.mxu0 0.0
        %474 = vmatpush1.msra.mxu0 0.0
        %475 = vmatprep.subr.mxu0 0.0
        %476 = vmatpush1.msra.mxu0 0.0
        %477 = vmatprep.subr.mxu0 0.0
        %478 = vmatpush1.msra.mxu0 0.0
        %479 = vmatprep.subr.mxu0 0.0
        %480 = vmatpush1.msra.mxu0 0.0
        %481 = vmatprep.subr.mxu0 0.0
        %482 = vmatpush1.msra.mxu0 0.0
        %483 = vmatprep.subr.mxu0 0.0
        %484 = vmatpush1.msra.mxu0 0.0
        %485 = vmatprep.mubr.f32.mxu0 0.0
        %486 = vmatmul.mubr.f32.gmra.mrb[0].mxu0 %v410
        %v487 = vpop.f32.mrb[0].mxu0
        %v488 = vadd.f32 %v391, %v487
        %v489 = vpop.f32.mrb[0].mxu0
        %490 = vmatprep.mubr.f32.mxu0 0.0
        %491 = vmatmul.mubr.f32.gmra.mrb[0].mxu0 %v413
        %v492 = vpop.f32.mrb[0].mxu0
        %v493 = vadd.f32 %v396, %v492
        %v494 = vpop.f32.mrb[0].mxu0
        %495 = vmatprep.mubr.f32.mxu0 0.0
        %496 = vmatmul.mubr.f32.gmra.mrb[0].mxu0 %v416
        %v497 = vpop.f32.mrb[0].mxu0
        %v498 = vadd.f32 %v401, %v497
        %v499 = vpop.f32.mrb[0].mxu0
        %500 = vmatprep.mubr.f32.mxu0 0.0
        %501 = vmatmul.mubr.f32.gmra.mrb[0].mxu0 %v419
        %v502 = vpop.f32.mrb[0].mxu0
        %v503 = vadd.f32 %v406, %v502
        %v504 = vpop.f32.mrb[0].mxu0
        %505 = vdwg.mxu0
        %vm506 = vcmp.gt.f32.partialorder %v488, 0.0
        %vm507 = vcmp.gt.f32.partialorder %v493, 0.0
        %vm508 = vcmp.gt.f32.partialorder %v498, 0.0
        %vm509 = vcmp.gt.f32.partialorder %v503, 0.0
        %v510 = vmul.f32 %v488, 0.1
        %v511 = vmul.f32 %v493, 0.1
        %v512 = vmul.f32 %v498, 0.1
        %v513 = vmul.f32 %v503, 0.1
        %v514 = vsel %vm506, %v488, %v510
        %v515 = vsel %vm507, %v493, %v511
        %v516 = vsel %vm508, %v498, %v512
        %v517 = vsel %vm509, %v503, %v513
        %v518 = vld [vmem:[%s346] sm:$0x7]
        %v519 = vmul.f32 %v518, 0.110485435
        %v520 = vld [vmem:[%s355] sm:$0xff]
        %v521 = vld [vmem:[%s355 + $0x8] sm:$0xff]
        %v522 = vld [vmem:[%s355 + $0x10] sm:$0xff]
        %v523 = vld [vmem:[%s355 + $0x18] sm:$0xff]
        %v524 = vld [vmem:[%s355 + $0x20] sm:$0xff]
        %v525 = vld [vmem:[%s355 + $0x28] sm:$0xff]
        %v526 = vld [vmem:[%s355 + $0x30] sm:$0xff]
        %v527 = vld [vmem:[%s355 + $0x38] sm:$0xff]
        %v528 = vld [vmem:[%s355 + $0x40] sm:$0xff]
        %v529 = vld [vmem:[%s355 + $0x48] sm:$0xff]
        %v530 = vld [vmem:[%s355 + $0x50] sm:$0xff]
        %v531 = vld [vmem:[%s355 + $0x58] sm:$0xff]
        %v532 = vld [vmem:[%s355 + $0x60] sm:$0xff]
        %v533 = vld [vmem:[%s355 + $0x68] sm:$0xff]
        %v534 = vld [vmem:[%s355 + $0x70] sm:$0xff]
        %v535 = vld [vmem:[%s355 + $0x78] sm:$0xff]
        %v536 = vmul.f32 %v520, 0.110485435
        %v537 = vmul.f32 %v521, 0.110485435
        %v538 = vmul.f32 %v522, 0.110485435
        %v539 = vmul.f32 %v523, 0.110485435
        %v540 = vmul.f32 %v524, 0.110485435
        %v541 = vmul.f32 %v525, 0.110485435
        %v542 = vmul.f32 %v526, 0.110485435
        %v543 = vmul.f32 %v527, 0.110485435
        %v544 = vmul.f32 %v528, 0.110485435
        %v545 = vmul.f32 %v529, 0.110485435
        %v546 = vmul.f32 %v530, 0.110485435
        %v547 = vmul.f32 %v531, 0.110485435
        %v548 = vmul.f32 %v532, 0.110485435
        %v549 = vmul.f32 %v533, 0.110485435
        %v550 = vmul.f32 %v534, 0.110485435
        %v551 = vmul.f32 %v535, 0.110485435
        %553 = vset.pattern.permute.xlu0 0
        %554 = vperm.xlu0 %553, %v536
        %v555 = vpop.permute.xlu0 %554
        %558 = vset.pattern.permute.xlu0 0
        %559 = vperm.xlu0 %558, %v537
        %v560 = vpop.permute.xlu0 %559
        %563 = vset.pattern.permute.xlu0 0
        %564 = vperm.xlu0 %563, %v538
        %v565 = vpop.permute.xlu0 %564
        %568 = vset.pattern.permute.xlu0 0
        %569 = vperm.xlu0 %568, %v539
        %v570 = vpop.permute.xlu0 %569
        %573 = vset.pattern.permute.xlu0 0
        %574 = vperm.xlu0 %573, %v540
        %v575 = vpop.permute.xlu0 %574
        %578 = vset.pattern.permute.xlu0 0
        %579 = vperm.xlu0 %578, %v541
        %v580 = vpop.permute.xlu0 %579
        %583 = vset.pattern.permute.xlu0 0
        %584 = vperm.xlu0 %583, %v542
        %v585 = vpop.permute.xlu0 %584
        %588 = vset.pattern.permute.xlu0 0
        %589 = vperm.xlu0 %588, %v543
        %v590 = vpop.permute.xlu0 %589
        %593 = vset.pattern.permute.xlu0 0
        %594 = vperm.xlu0 %593, %v544
        %v595 = vpop.permute.xlu0 %594
        %598 = vset.pattern.permute.xlu0 0
        %599 = vperm.xlu0 %598, %v545
        %v600 = vpop.permute.xlu0 %599
        %603 = vset.pattern.permute.xlu0 0
        %604 = vperm.xlu0 %603, %v546
        %v605 = vpop.permute.xlu0 %604
        %608 = vset.pattern.permute.xlu0 0
        %609 = vperm.xlu0 %608, %v547
        %v610 = vpop.permute.xlu0 %609
        %613 = vset.pattern.permute.xlu0 0
        %614 = vperm.xlu0 %613, %v548
        %v615 = vpop.permute.xlu0 %614
        %618 = vset.pattern.permute.xlu0 0
        %619 = vperm.xlu0 %618, %v549
        %v620 = vpop.permute.xlu0 %619
        %623 = vset.pattern.permute.xlu0 0
        %624 = vperm.xlu0 %623, %v550
        %v625 = vpop.permute.xlu0 %624
        %628 = vset.pattern.permute.xlu0 0
        %629 = vperm.xlu0 %628, %v551
        %v630 = vpop.permute.xlu0 %629
        %v632 = vlaneseq
        %v633 = vshrl.u32 %v632, 7
        %v634 = vsub.s32 0, %v633
        %v635 = vrot.slane %v519, %v634
        %v636 = vsub.f32 %v555, %v635
        %v637 = vsub.f32 %v560, %v635
        %v638 = vsub.f32 %v565, %v635
        %v639 = vsub.f32 %v570, %v635
        %v640 = vsub.f32 %v575, %v635
        %v641 = vsub.f32 %v580, %v635
        %v642 = vsub.f32 %v585, %v635
        %v643 = vsub.f32 %v590, %v635
        %v644 = vsub.f32 %v595, %v635
        %v645 = vsub.f32 %v600, %v635
        %v646 = vsub.f32 %v605, %v635
        %v647 = vsub.f32 %v610, %v635
        %v648 = vsub.f32 %v615, %v635
        %v649 = vsub.f32 %v620, %v635
        %v650 = vsub.f32 %v625, %v635
        %v651 = vsub.f32 %v630, %v635
        %v652 = vmul.f32 %v636, %v636
        %v653 = vmul.f32 %v637, %v637
        %v654 = vmul.f32 %v638, %v638
        %v655 = vmul.f32 %v639, %v639
        %v656 = vmul.f32 %v640, %v640
        %v657 = vmul.f32 %v641, %v641
        %v658 = vmul.f32 %v642, %v642
        %v659 = vmul.f32 %v643, %v643
        %v660 = vmul.f32 %v644, %v644
        %v661 = vmul.f32 %v645, %v645
        %v662 = vmul.f32 %v646, %v646
        %v663 = vmul.f32 %v647, %v647
        %v664 = vmul.f32 %v648, %v648
        %v665 = vmul.f32 %v649, %v649
        %v666 = vmul.f32 %v650, %v650
        %v667 = vmul.f32 %v651, %v651
        %668 = vset.pattern.permute.xlu0 1
        %669 = vperm.xlu0 %668, %v536
        %v670 = vpop.permute.xlu0 %669
        %672 = vset.pattern.permute.xlu0 1
        %673 = vperm.xlu0 %672, %v537
        %v674 = vpop.permute.xlu0 %673
        %676 = vset.pattern.permute.xlu0 1
        %677 = vperm.xlu0 %676, %v538
        %v678 = vpop.permute.xlu0 %677
        %680 = vset.pattern.permute.xlu0 1
        %681 = vperm.xlu0 %680, %v539
        %v682 = vpop.permute.xlu0 %681
        %684 = vset.pattern.permute.xlu0 1
        %685 = vperm.xlu0 %684, %v540
        %v686 = vpop.permute.xlu0 %685
        %688 = vset.pattern.permute.xlu0 1
        %689 = vperm.xlu0 %688, %v541
        %v690 = vpop.permute.xlu0 %689
        %692 = vset.pattern.permute.xlu0 1
        %693 = vperm.xlu0 %692, %v542
        %v694 = vpop.permute.xlu0 %693
        %696 = vset.pattern.permute.xlu0 1
        %697 = vperm.xlu0 %696, %v543
        %v698 = vpop.permute.xlu0 %697
        %700 = vset.pattern.permute.xlu0 1
        %701 = vperm.xlu0 %700, %v544
        %v702 = vpop.permute.xlu0 %701
        %704 = vset.pattern.permute.xlu0 1
        %705 = vperm.xlu0 %704, %v545
        %v706 = vpop.permute.xlu0 %705
        %708 = vset.pattern.permute.xlu0 1
        %709 = vperm.xlu0 %708, %v546
        %v710 = vpop.permute.xlu0 %709
        %712 = vset.pattern.permute.xlu0 1
        %713 = vperm.xlu0 %712, %v547
        %v714 = vpop.permute.xlu0 %713
        %716 = vset.pattern.permute.xlu0 1
        %717 = vperm.xlu0 %716, %v548
        %v718 = vpop.permute.xlu0 %717
        %720 = vset.pattern.permute.xlu0 1
        %721 = vperm.xlu0 %720, %v549
        %v722 = vpop.permute.xlu0 %721
        %724 = vset.pattern.permute.xlu0 1
        %725 = vperm.xlu0 %724, %v550
        %v726 = vpop.permute.xlu0 %725
        %728 = vset.pattern.permute.xlu0 1
        %729 = vperm.xlu0 %728, %v551
        %v730 = vpop.permute.xlu0 %729
        %v732 = vlaneseq
        %v733 = vshrl.u32 %v732, 7
        %v734 = vsub.s32 1, %v733
        %v735 = vrot.slane %v519, %v734
        %v736 = vsub.f32 %v670, %v735
        %v737 = vsub.f32 %v674, %v735
        %v738 = vsub.f32 %v678, %v735
        %v739 = vsub.f32 %v682, %v735
        %v740 = vsub.f32 %v686, %v735
        %v741 = vsub.f32 %v690, %v735
        %v742 = vsub.f32 %v694, %v735
        %v743 = vsub.f32 %v698, %v735
        %v744 = vsub.f32 %v702, %v735
        %v745 = vsub.f32 %v706, %v735
        %v746 = vsub.f32 %v710, %v735
        %v747 = vsub.f32 %v714, %v735
        %v748 = vsub.f32 %v718, %v735
        %v749 = vsub.f32 %v722, %v735
        %v750 = vsub.f32 %v726, %v735
        %v751 = vsub.f32 %v730, %v735
        %v752 = vmul.f32 %v736, %v736
        %v753 = vmul.f32 %v737, %v737
        %v754 = vmul.f32 %v738, %v738
        %v755 = vmul.f32 %v739, %v739
        %v756 = vmul.f32 %v740, %v740
        %v757 = vmul.f32 %v741, %v741
        %v758 = vmul.f32 %v742, %v742
        %v759 = vmul.f32 %v743, %v743
        %v760 = vmul.f32 %v744, %v744
        %v761 = vmul.f32 %v745, %v745
        %v762 = vmul.f32 %v746, %v746
        %v763 = vmul.f32 %v747, %v747
        %v764 = vmul.f32 %v748, %v748
        %v765 = vmul.f32 %v749, %v749
        %v766 = vmul.f32 %v750, %v750
        %v767 = vmul.f32 %v751, %v751
        %v768 = vadd.f32 %v652, %v752
        %v769 = vadd.f32 %v653, %v753
        %v770 = vadd.f32 %v654, %v754
        %v771 = vadd.f32 %v655, %v755
        %v772 = vadd.f32 %v656, %v756
        %v773 = vadd.f32 %v657, %v757
        %v774 = vadd.f32 %v658, %v758
        %v775 = vadd.f32 %v659, %v759
        %v776 = vadd.f32 %v660, %v760
        %v777 = vadd.f32 %v661, %v761
        %v778 = vadd.f32 %v662, %v762
        %v779 = vadd.f32 %v663, %v763
        %v780 = vadd.f32 %v664, %v764
        %v781 = vadd.f32 %v665, %v765
        %v782 = vadd.f32 %v666, %v766
        %v783 = vadd.f32 %v667, %v767
        %784 = vset.pattern.permute.xlu0 2
        %785 = vperm.xlu0 %784, %v536
        %v786 = vpop.permute.xlu0 %785
        %788 = vset.pattern.permute.xlu0 2
        %789 = vperm.xlu0 %788, %v537
        %v790 = vpop.permute.xlu0 %789
        %792 = vset.pattern.permute.xlu0 2
        %793 = vperm.xlu0 %792, %v538
        %v794 = vpop.permute.xlu0 %793
        %796 = vset.pattern.permute.xlu0 2
        %797 = vperm.xlu0 %796, %v539
        %v798 = vpop.permute.xlu0 %797
        %800 = vset.pattern.permute.xlu0 2
        %801 = vperm.xlu0 %800, %v540
        %v802 = vpop.permute.xlu0 %801
        %804 = vset.pattern.permute.xlu0 2
        %805 = vperm.xlu0 %804, %v541
        %v806 = vpop.permute.xlu0 %805
        %808 = vset.pattern.permute.xlu0 2
        %809 = vperm.xlu0 %808, %v542
        %v810 = vpop.permute.xlu0 %809
        %812 = vset.pattern.permute.xlu0 2
        %813 = vperm.xlu0 %812, %v543
        %v814 = vpop.permute.xlu0 %813
        %816 = vset.pattern.permute.xlu0 2
        %817 = vperm.xlu0 %816, %v544
        %v818 = vpop.permute.xlu0 %817
        %820 = vset.pattern.permute.xlu0 2
        %821 = vperm.xlu0 %820, %v545
        %v822 = vpop.permute.xlu0 %821
        %824 = vset.pattern.permute.xlu0 2
        %825 = vperm.xlu0 %824, %v546
        %v826 = vpop.permute.xlu0 %825
        %828 = vset.pattern.permute.xlu0 2
        %829 = vperm.xlu0 %828, %v547
        %v830 = vpop.permute.xlu0 %829
        %832 = vset.pattern.permute.xlu0 2
        %833 = vperm.xlu0 %832, %v548
        %v834 = vpop.permute.xlu0 %833
        %836 = vset.pattern.permute.xlu0 2
        %837 = vperm.xlu0 %836, %v549
        %v838 = vpop.permute.xlu0 %837
        %840 = vset.pattern.permute.xlu0 2
        %841 = vperm.xlu0 %840, %v550
        %v842 = vpop.permute.xlu0 %841
        %844 = vset.pattern.permute.xlu0 2
        %845 = vperm.xlu0 %844, %v551
        %v846 = vpop.permute.xlu0 %845
        %v848 = vlaneseq
        %v849 = vshrl.u32 %v848, 7
        %v850 = vsub.s32 2, %v849
        %v851 = vrot.slane %v519, %v850
        %v852 = vsub.f32 %v786, %v851
        %v853 = vsub.f32 %v790, %v851
        %v854 = vsub.f32 %v794, %v851
        %v855 = vsub.f32 %v798, %v851
        %v856 = vsub.f32 %v802, %v851
        %v857 = vsub.f32 %v806, %v851
        %v858 = vsub.f32 %v810, %v851
        %v859 = vsub.f32 %v814, %v851
        %v860 = vsub.f32 %v818, %v851
        %v861 = vsub.f32 %v822, %v851
        %v862 = vsub.f32 %v826, %v851
        %v863 = vsub.f32 %v830, %v851
        %v864 = vsub.f32 %v834, %v851
        %v865 = vsub.f32 %v838, %v851
        %v866 = vsub.f32 %v842, %v851
        %v867 = vsub.f32 %v846, %v851
        %v868 = vmul.f32 %v852, %v852
        %v869 = vmul.f32 %v853, %v853
        %v870 = vmul.f32 %v854, %v854
        %v871 = vmul.f32 %v855, %v855
        %v872 = vmul.f32 %v856, %v856
        %v873 = vmul.f32 %v857, %v857
        %v874 = vmul.f32 %v858, %v858
        %v875 = vmul.f32 %v859, %v859
        %v876 = vmul.f32 %v860, %v860
        %v877 = vmul.f32 %v861, %v861
        %v878 = vmul.f32 %v862, %v862
        %v879 = vmul.f32 %v863, %v863
        %v880 = vmul.f32 %v864, %v864
        %v881 = vmul.f32 %v865, %v865
        %v882 = vmul.f32 %v866, %v866
        %v883 = vmul.f32 %v867, %v867
        %v884 = vadd.f32 %v768, %v868
        %v885 = vadd.f32 %v769, %v869
        %v886 = vadd.f32 %v770, %v870
        %v887 = vadd.f32 %v771, %v871
        %v888 = vadd.f32 %v772, %v872
        %v889 = vadd.f32 %v773, %v873
        %v890 = vadd.f32 %v774, %v874
        %v891 = vadd.f32 %v775, %v875
        %v892 = vadd.f32 %v776, %v876
        %v893 = vadd.f32 %v777, %v877
        %v894 = vadd.f32 %v778, %v878
        %v895 = vadd.f32 %v779, %v879
        %v896 = vadd.f32 %v780, %v880
        %v897 = vadd.f32 %v781, %v881
        %v898 = vadd.f32 %v782, %v882
        %v899 = vadd.f32 %v783, %v883
        %v900 = vsub.f32 0.0, %v884
        %v901 = vsub.f32 0.0, %v885
        %v902 = vsub.f32 0.0, %v886
        %v903 = vsub.f32 0.0, %v887
        %v904 = vsub.f32 0.0, %v888
        %v905 = vsub.f32 0.0, %v889
        %v906 = vsub.f32 0.0, %v890
        %v907 = vsub.f32 0.0, %v891
        %v908 = vsub.f32 0.0, %v892
        %v909 = vsub.f32 0.0, %v893
        %v910 = vsub.f32 0.0, %v894
        %v911 = vsub.f32 0.0, %v895
        %v912 = vsub.f32 0.0, %v896
        %v913 = vsub.f32 0.0, %v897
        %v914 = vsub.f32 0.0, %v898
        %v915 = vsub.f32 0.0, %v899
        %v916 = vmul.f32 %v900, 1.442695
        %v917 = vpow.pop %v916
        %v918 = vmul.f32 %v901, 1.442695
        %v919 = vpow.pop %v918
        %v920 = vmul.f32 %v902, 1.442695
        %v921 = vpow.pop %v920
        %v922 = vmul.f32 %v903, 1.442695
        %v923 = vpow.pop %v922
        %v924 = vmul.f32 %v904, 1.442695
        %v925 = vpow.pop %v924
        %v926 = vmul.f32 %v905, 1.442695
        %v927 = vpow.pop %v926
        %v928 = vmul.f32 %v906, 1.442695
        %v929 = vpow.pop %v928
        %v930 = vmul.f32 %v907, 1.442695
        %v931 = vpow.pop %v930
        %v932 = vmul.f32 %v908, 1.442695
        %v933 = vpow.pop %v932
        %v934 = vmul.f32 %v909, 1.442695
        %v935 = vpow.pop %v934
        %v936 = vmul.f32 %v910, 1.442695
        %v937 = vpow.pop %v936
        %v938 = vmul.f32 %v911, 1.442695
        %v939 = vpow.pop %v938
        %v940 = vmul.f32 %v912, 1.442695
        %v941 = vpow.pop %v940
        %v942 = vmul.f32 %v913, 1.442695
        %v943 = vpow.pop %v942
        %v944 = vmul.f32 %v914, 1.442695
        %v945 = vpow.pop %v944
        %v946 = vmul.f32 %v915, 1.442695
        %v947 = vpow.pop %v946
        %s948 = scalar_lea.vmem [#allocation2], 80
        %v949 = vld [vmem:[%s948] sm:$0xff]
        %v950 = vld [vmem:[%s948 + $0x8] sm:$0xff]
        %v951 = vld [vmem:[%s948 + $0x10] sm:$0xff]
        %v952 = vld [vmem:[%s948 + $0x18] sm:$0xff]
        %v953 = vld [vmem:[%s948 + $0x20] sm:$0x1]
        %954 = vmatprep.subr.mxu0 0.0
        %955 = vmatpush1.msra.mxu0 %v917
        %956 = vmatprep.subr.mxu0 0.0
        %957 = vmatpush1.msra.mxu0 %v919
        %958 = vmatprep.subr.mxu0 0.0
        %959 = vmatpush1.msra.mxu0 %v921
        %960 = vmatprep.subr.mxu0 0.0
        %961 = vmatpush1.msra.mxu0 %v923
        %962 = vmatprep.subr.mxu0 0.0
        %963 = vmatpush1.msra.mxu0 %v925
        %964 = vmatprep.subr.mxu0 0.0
        %965 = vmatpush1.msra.mxu0 %v927
        %966 = vmatprep.subr.mxu0 0.0
        %967 = vmatpush1.msra.mxu0 %v929
        %968 = vmatprep.subr.mxu0 0.0
        %969 = vmatpush1.msra.mxu0 %v931
        %970 = vmatprep.subr.mxu0 0.0
        %971 = vmatpush1.msra.mxu0 %v933
        %972 = vmatprep.subr.mxu0 0.0
        %973 = vmatpush1.msra.mxu0 %v935
        %974 = vmatprep.subr.mxu0 0.0
        %975 = vmatpush1.msra.mxu0 %v937
        %976 = vmatprep.subr.mxu0 0.0
        %977 = vmatpush1.msra.mxu0 %v939
        %978 = vmatprep.subr.mxu0 0.0
        %979 = vmatpush1.msra.mxu0 %v941
        %980 = vmatprep.subr.mxu0 0.0
        %981 = vmatpush1.msra.mxu0 %v943
        %982 = vmatprep.subr.mxu0 0.0
        %983 = vmatpush1.msra.mxu0 %v945
        %984 = vmatprep.subr.mxu0 0.0
        %985 = vmatpush1.msra.mxu0 %v947
        %986 = vmatprep.subr.mxu0 0.0
        %987 = vmatpush1.msra.mxu0 0.0
        %988 = vmatprep.subr.mxu0 0.0
        %989 = vmatpush1.msra.mxu0 0.0
        %990 = vmatprep.subr.mxu0 0.0
        %991 = vmatpush1.msra.mxu0 0.0
        %992 = vmatprep.subr.mxu0 0.0
        %993 = vmatpush1.msra.mxu0 0.0
        %994 = vmatprep.subr.mxu0 0.0
        %995 = vmatpush1.msra.mxu0 0.0
        %996 = vmatprep.subr.mxu0 0.0
        %997 = vmatpush1.msra.mxu0 0.0
        %998 = vmatprep.subr.mxu0 0.0
        %999 = vmatpush1.msra.mxu0 0.0
        %1000 = vmatprep.subr.mxu0 0.0
        %1001 = vmatpush1.msra.mxu0 0.0
        %1002 = vmatprep.subr.mxu0 0.0
        %1003 = vmatpush1.msra.mxu0 0.0
        %1004 = vmatprep.subr.mxu0 0.0
        %1005 = vmatpush1.msra.mxu0 0.0
        %1006 = vmatprep.subr.mxu0 0.0
        %1007 = vmatpush1.msra.mxu0 0.0
        %1008 = vmatprep.subr.mxu0 0.0
        %1009 = vmatpush1.msra.mxu0 0.0
        %1010 = vmatprep.subr.mxu0 0.0
        %1011 = vmatpush1.msra.mxu0 0.0
        %1012 = vmatprep.subr.mxu0 0.0
        %1013 = vmatpush1.msra.mxu0 0.0
        %1014 = vmatprep.subr.mxu0 0.0
        %1015 = vmatpush1.msra.mxu0 0.0
        %1016 = vmatprep.subr.mxu0 0.0
        %1017 = vmatpush1.msra.mxu0 0.0
        %1018 = vmatprep.mubr.f32.mxu0 0.0
        %1019 = vmatmul.mubr.f32.gmra.mrb[0].mxu0 %v514
        %v1020 = vpop.f32.mrb[0].mxu0
        %v1021 = vadd.f32 0.0, %v1020
        %v1022 = vpop.f32.mrb[0].mxu0
        %1023 = vmatprep.mubr.f32.mxu0 0.0
        %1024 = vmatmul.mubr.f32.gmra.mrb[0].mxu0 %v515
        %v1025 = vpop.f32.mrb[0].mxu0
        %v1026 = vadd.f32 0.0, %v1025
        %v1027 = vpop.f32.mrb[0].mxu0
        %1028 = vmatprep.mubr.f32.mxu0 0.0
        %1029 = vmatmul.mubr.f32.gmra.mrb[0].mxu0 %v516
        %v1030 = vpop.f32.mrb[0].mxu0
        %v1031 = vadd.f32 0.0, %v1030
        %v1032 = vpop.f32.mrb[0].mxu0
        %1033 = vmatprep.mubr.f32.mxu0 0.0
        %1034 = vmatmul.mubr.f32.gmra.mrb[0].mxu0 %v517
        %v1035 = vpop.f32.mrb[0].mxu0
        %v1036 = vadd.f32 0.0, %v1035
        %v1037 = vpop.f32.mrb[0].mxu0
        %1038 = vmatprep.mubr.f32.mxu0 0.0
        %1039 = vmatmul.mubr.f32.gmra.mrb[0].mxu0 1.0
        %v1040 = vpop.f32.mrb[0].mxu0
        %v1041 = vadd.f32 0.0, %v1040
        %v1042 = vpop.f32.mrb[0].mxu0
        %1043 = vdwg.mxu0
        %v1044 = vadd.f32 %v949, %v1021
        %v1045 = vadd.f32 %v950, %v1026
        %v1046 = vadd.f32 %v951, %v1031
        %v1047 = vadd.f32 %v952, %v1036
        %v1048 = vadd.f32 %v953, %v1041
        %1049 = vst [vmem:[%s948] sm:$0xff] %v1044
        %1050 = vst [vmem:[%s948 + $0x8] sm:$0xff] %v1045
        %1051 = vst [vmem:[%s948 + $0x10] sm:$0xff] %v1046
        %1052 = vst [vmem:[%s948 + $0x18] sm:$0xff] %v1047
        %1053 = vst [vmem:[%s948 + $0x20] sm:$0x1] %v1048
        %v1054 = vmul.f32 %v917, %v917
        %v1055 = vmul.f32 %v919, %v919
        %v1056 = vmul.f32 %v921, %v921
        %v1057 = vmul.f32 %v923, %v923
        %v1058 = vmul.f32 %v925, %v925
        %v1059 = vmul.f32 %v927, %v927
        %v1060 = vmul.f32 %v929, %v929
        %v1061 = vmul.f32 %v931, %v931
        %v1062 = vmul.f32 %v933, %v933
        %v1063 = vmul.f32 %v935, %v935
        %v1064 = vmul.f32 %v937, %v937
        %v1065 = vmul.f32 %v939, %v939
        %v1066 = vmul.f32 %v941, %v941
        %v1067 = vmul.f32 %v943, %v943
        %v1068 = vmul.f32 %v945, %v945
        %v1069 = vmul.f32 %v947, %v947
        %v1070 = vmul.f32 %v1054, %v1054
        %v1071 = vmul.f32 %v1055, %v1055
        %v1072 = vmul.f32 %v1056, %v1056
        %v1073 = vmul.f32 %v1057, %v1057
        %v1074 = vmul.f32 %v1058, %v1058
        %v1075 = vmul.f32 %v1059, %v1059
        %v1076 = vmul.f32 %v1060, %v1060
        %v1077 = vmul.f32 %v1061, %v1061
        %v1078 = vmul.f32 %v1062, %v1062
        %v1079 = vmul.f32 %v1063, %v1063
        %v1080 = vmul.f32 %v1064, %v1064
        %v1081 = vmul.f32 %v1065, %v1065
        %v1082 = vmul.f32 %v1066, %v1066
        %v1083 = vmul.f32 %v1067, %v1067
        %v1084 = vmul.f32 %v1068, %v1068
        %v1085 = vmul.f32 %v1069, %v1069
        %s1086 = scalar_lea.vmem [#allocation2], 40
        %v1087 = vld [vmem:[%s1086] sm:$0xff]
        %v1088 = vld [vmem:[%s1086 + $0x8] sm:$0xff]
        %v1089 = vld [vmem:[%s1086 + $0x10] sm:$0xff]
        %v1090 = vld [vmem:[%s1086 + $0x18] sm:$0xff]
        %v1091 = vld [vmem:[%s1086 + $0x20] sm:$0x1]
        %1092 = vmatprep.subr.mxu0 0.0
        %1093 = vmatpush1.msra.mxu0 %v1070
        %1094 = vmatprep.subr.mxu0 0.0
        %1095 = vmatpush1.msra.mxu0 %v1071
        %1096 = vmatprep.subr.mxu0 0.0
        %1097 = vmatpush1.msra.mxu0 %v1072
        %1098 = vmatprep.subr.mxu0 0.0
        %1099 = vmatpush1.msra.mxu0 %v1073
        %1100 = vmatprep.subr.mxu0 0.0
        %1101 = vmatpush1.msra.mxu0 %v1074
        %1102 = vmatprep.subr.mxu0 0.0
        %1103 = vmatpush1.msra.mxu0 %v1075
        %1104 = vmatprep.subr.mxu0 0.0
        %1105 = vmatpush1.msra.mxu0 %v1076
        %1106 = vmatprep.subr.mxu0 0.0
        %1107 = vmatpush1.msra.mxu0 %v1077
        %1108 = vmatprep.subr.mxu0 0.0
        %1109 = vmatpush1.msra.mxu0 %v1078
        %1110 = vmatprep.subr.mxu0 0.0
        %1111 = vmatpush1.msra.mxu0 %v1079
        %1112 = vmatprep.subr.mxu0 0.0
        %1113 = vmatpush1.msra.mxu0 %v1080
        %1114 = vmatprep.subr.mxu0 0.0
        %1115 = vmatpush1.msra.mxu0 %v1081
        %1116 = vmatprep.subr.mxu0 0.0
        %1117 = vmatpush1.msra.mxu0 %v1082
        %1118 = vmatprep.subr.mxu0 0.0
        %1119 = vmatpush1.msra.mxu0 %v1083
        %1120 = vmatprep.subr.mxu0 0.0
        %1121 = vmatpush1.msra.mxu0 %v1084
        %1122 = vmatprep.subr.mxu0 0.0
        %1123 = vmatpush1.msra.mxu0 %v1085
        %1124 = vmatprep.subr.mxu0 0.0
        %1125 = vmatpush1.msra.mxu0 0.0
        %1126 = vmatprep.subr.mxu0 0.0
        %1127 = vmatpush1.msra.mxu0 0.0
        %1128 = vmatprep.subr.mxu0 0.0
        %1129 = vmatpush1.msra.mxu0 0.0
        %1130 = vmatprep.subr.mxu0 0.0
        %1131 = vmatpush1.msra.mxu0 0.0
        %1132 = vmatprep.subr.mxu0 0.0
        %1133 = vmatpush1.msra.mxu0 0.0
        %1134 = vmatprep.subr.mxu0 0.0
        %1135 = vmatpush1.msra.mxu0 0.0
        %1136 = vmatprep.subr.mxu0 0.0
        %1137 = vmatpush1.msra.mxu0 0.0
        %1138 = vmatprep.subr.mxu0 0.0
        %1139 = vmatpush1.msra.mxu0 0.0
        %1140 = vmatprep.subr.mxu0 0.0
        %1141 = vmatpush1.msra.mxu0 0.0
        %1142 = vmatprep.subr.mxu0 0.0
        %1143 = vmatpush1.msra.mxu0 0.0
        %1144 = vmatprep.subr.mxu0 0.0
        %1145 = vmatpush1.msra.mxu0 0.0
        %1146 = vmatprep.subr.mxu0 0.0
        %1147 = vmatpush1.msra.mxu0 0.0
        %1148 = vmatprep.subr.mxu0 0.0
        %1149 = vmatpush1.msra.mxu0 0.0
        %1150 = vmatprep.subr.mxu0 0.0
        %1151 = vmatpush1.msra.mxu0 0.0
        %1152 = vmatprep.subr.mxu0 0.0
        %1153 = vmatpush1.msra.mxu0 0.0
        %1154 = vmatprep.subr.mxu0 0.0
        %1155 = vmatpush1.msra.mxu0 0.0
        %1156 = vmatprep.mubr.f32.mxu0 0.0
        %1157 = vmatmul.mubr.f32.gmra.mrb[0].mxu0 %v514
        %v1158 = vpop.f32.mrb[0].mxu0
        %v1159 = vadd.f32 0.0, %v1158
        %v1160 = vpop.f32.mrb[0].mxu0
        %1161 = vmatprep.mubr.f32.mxu0 0.0
        %1162 = vmatmul.mubr.f32.gmra.mrb[0].mxu0 %v515
        %v1163 = vpop.f32.mrb[0].mxu0
        %v1164 = vadd.f32 0.0, %v1163
        %v1165 = vpop.f32.mrb[0].mxu0
        %1166 = vmatprep.mubr.f32.mxu0 0.0
        %1167 = vmatmul.mubr.f32.gmra.mrb[0].mxu0 %v516
        %v1168 = vpop.f32.mrb[0].mxu0
        %v1169 = vadd.f32 0.0, %v1168
        %v1170 = vpop.f32.mrb[0].mxu0
        %1171 = vmatprep.mubr.f32.mxu0 0.0
        %1172 = vmatmul.mubr.f32.gmra.mrb[0].mxu0 %v517
        %v1173 = vpop.f32.mrb[0].mxu0
        %v1174 = vadd.f32 0.0, %v1173
        %v1175 = vpop.f32.mrb[0].mxu0
        %1176 = vmatprep.mubr.f32.mxu0 0.0
        %1177 = vmatmul.mubr.f32.gmra.mrb[0].mxu0 1.0
        %v1178 = vpop.f32.mrb[0].mxu0
        %v1179 = vadd.f32 0.0, %v1178
        %v1180 = vpop.f32.mrb[0].mxu0
        %1181 = vdwg.mxu0
        %v1182 = vadd.f32 %v1087, %v1159
        %v1183 = vadd.f32 %v1088, %v1164
        %v1184 = vadd.f32 %v1089, %v1169
        %v1185 = vadd.f32 %v1090, %v1174
        %v1186 = vadd.f32 %v1091, %v1179
        %1187 = vst [vmem:[%s1086] sm:$0xff] %v1182
        %1188 = vst [vmem:[%s1086 + $0x8] sm:$0xff] %v1183
        %1189 = vst [vmem:[%s1086 + $0x10] sm:$0xff] %v1184
        %1190 = vst [vmem:[%s1086 + $0x18] sm:$0xff] %v1185
        %1191 = vst [vmem:[%s1086 + $0x20] sm:$0x1] %v1186
        %v1192 = vmul.f32 %v1070, %v1070
        %v1193 = vmul.f32 %v1071, %v1071
        %v1194 = vmul.f32 %v1072, %v1072
        %v1195 = vmul.f32 %v1073, %v1073
        %v1196 = vmul.f32 %v1074, %v1074
        %v1197 = vmul.f32 %v1075, %v1075
        %v1198 = vmul.f32 %v1076, %v1076
        %v1199 = vmul.f32 %v1077, %v1077
        %v1200 = vmul.f32 %v1078, %v1078
        %v1201 = vmul.f32 %v1079, %v1079
        %v1202 = vmul.f32 %v1080, %v1080
        %v1203 = vmul.f32 %v1081, %v1081
        %v1204 = vmul.f32 %v1082, %v1082
        %v1205 = vmul.f32 %v1083, %v1083
        %v1206 = vmul.f32 %v1084, %v1084
        %v1207 = vmul.f32 %v1085, %v1085
        %v1208 = vmul.f32 %v1192, %v1192
        %v1209 = vmul.f32 %v1193, %v1193
        %v1210 = vmul.f32 %v1194, %v1194
        %v1211 = vmul.f32 %v1195, %v1195
        %v1212 = vmul.f32 %v1196, %v1196
        %v1213 = vmul.f32 %v1197, %v1197
        %v1214 = vmul.f32 %v1198, %v1198
        %v1215 = vmul.f32 %v1199, %v1199
        %v1216 = vmul.f32 %v1200, %v1200
        %v1217 = vmul.f32 %v1201, %v1201
        %v1218 = vmul.f32 %v1202, %v1202
        %v1219 = vmul.f32 %v1203, %v1203
        %v1220 = vmul.f32 %v1204, %v1204
        %v1221 = vmul.f32 %v1205, %v1205
        %v1222 = vmul.f32 %v1206, %v1206
        %v1223 = vmul.f32 %v1207, %v1207
        %v1224 = vld [vmem:[#allocation2] sm:$0xff]
        %v1225 = vld [vmem:[#allocation2 + $0x8] sm:$0xff]
        %v1226 = vld [vmem:[#allocation2 + $0x10] sm:$0xff]
        %v1227 = vld [vmem:[#allocation2 + $0x18] sm:$0xff]
        %v1228 = vld [vmem:[#allocation2 + $0x20] sm:$0x1]
        %1229 = vmatprep.subr.mxu0 0.0
        %1230 = vmatpush1.msra.mxu0 %v1208
        %1231 = vmatprep.subr.mxu0 0.0
        %1232 = vmatpush1.msra.mxu0 %v1209
        %1233 = vmatprep.subr.mxu0 0.0
        %1234 = vmatpush1.msra.mxu0 %v1210
        %1235 = vmatprep.subr.mxu0 0.0
        %1236 = vmatpush1.msra.mxu0 %v1211
        %1237 = vmatprep.subr.mxu0 0.0
        %1238 = vmatpush1.msra.mxu0 %v1212
        %1239 = vmatprep.subr.mxu0 0.0
        %1240 = vmatpush1.msra.mxu0 %v1213
        %1241 = vmatprep.subr.mxu0 0.0
        %1242 = vmatpush1.msra.mxu0 %v1214
        %1243 = vmatprep.subr.mxu0 0.0
        %1244 = vmatpush1.msra.mxu0 %v1215
        %1245 = vmatprep.subr.mxu0 0.0
        %1246 = vmatpush1.msra.mxu0 %v1216
        %1247 = vmatprep.subr.mxu0 0.0
        %1248 = vmatpush1.msra.mxu0 %v1217
        %1249 = vmatprep.subr.mxu0 0.0
        %1250 = vmatpush1.msra.mxu0 %v1218
        %1251 = vmatprep.subr.mxu0 0.0
        %1252 = vmatpush1.msra.mxu0 %v1219
        %1253 = vmatprep.subr.mxu0 0.0
        %1254 = vmatpush1.msra.mxu0 %v1220
        %1255 = vmatprep.subr.mxu0 0.0
        %1256 = vmatpush1.msra.mxu0 %v1221
        %1257 = vmatprep.subr.mxu0 0.0
        %1258 = vmatpush1.msra.mxu0 %v1222
        %1259 = vmatprep.subr.mxu0 0.0
        %1260 = vmatpush1.msra.mxu0 %v1223
        %1261 = vmatprep.subr.mxu0 0.0
        %1262 = vmatpush1.msra.mxu0 0.0
        %1263 = vmatprep.subr.mxu0 0.0
        %1264 = vmatpush1.msra.mxu0 0.0
        %1265 = vmatprep.subr.mxu0 0.0
        %1266 = vmatpush1.msra.mxu0 0.0
        %1267 = vmatprep.subr.mxu0 0.0
        %1268 = vmatpush1.msra.mxu0 0.0
        %1269 = vmatprep.subr.mxu0 0.0
        %1270 = vmatpush1.msra.mxu0 0.0
        %1271 = vmatprep.subr.mxu0 0.0
        %1272 = vmatpush1.msra.mxu0 0.0
        %1273 = vmatprep.subr.mxu0 0.0
        %1274 = vmatpush1.msra.mxu0 0.0
        %1275 = vmatprep.subr.mxu0 0.0
        %1276 = vmatpush1.msra.mxu0 0.0
        %1277 = vmatprep.subr.mxu0 0.0
        %1278 = vmatpush1.msra.mxu0 0.0
        %1279 = vmatprep.subr.mxu0 0.0
        %1280 = vmatpush1.msra.mxu0 0.0
        %1281 = vmatprep.subr.mxu0 0.0
        %1282 = vmatpush1.msra.mxu0 0.0
        %1283 = vmatprep.subr.mxu0 0.0
        %1284 = vmatpush1.msra.mxu0 0.0
        %1285 = vmatprep.subr.mxu0 0.0
        %1286 = vmatpush1.msra.mxu0 0.0
        %1287 = vmatprep.subr.mxu0 0.0
        %1288 = vmatpush1.msra.mxu0 0.0
        %1289 = vmatprep.subr.mxu0 0.0
        %1290 = vmatpush1.msra.mxu0 0.0
        %1291 = vmatprep.subr.mxu0 0.0
        %1292 = vmatpush1.msra.mxu0 0.0
        %1293 = vmatprep.mubr.f32.mxu0 0.0
        %1294 = vmatmul.mubr.f32.gmra.mrb[0].mxu0 %v514
        %v1295 = vpop.f32.mrb[0].mxu0
        %v1296 = vadd.f32 0.0, %v1295
        %v1297 = vpop.f32.mrb[0].mxu0
        %1298 = vmatprep.mubr.f32.mxu0 0.0
        %1299 = vmatmul.mubr.f32.gmra.mrb[0].mxu0 %v515
        %v1300 = vpop.f32.mrb[0].mxu0
        %v1301 = vadd.f32 0.0, %v1300
        %v1302 = vpop.f32.mrb[0].mxu0
        %1303 = vmatprep.mubr.f32.mxu0 0.0
        %1304 = vmatmul.mubr.f32.gmra.mrb[0].mxu0 %v516
        %v1305 = vpop.f32.mrb[0].mxu0
        %v1306 = vadd.f32 0.0, %v1305
        %v1307 = vpop.f32.mrb[0].mxu0
        %1308 = vmatprep.mubr.f32.mxu0 0.0
        %1309 = vmatmul.mubr.f32.gmra.mrb[0].mxu0 %v517
        %v1310 = vpop.f32.mrb[0].mxu0
        %v1311 = vadd.f32 0.0, %v1310
        %v1312 = vpop.f32.mrb[0].mxu0
        %1313 = vmatprep.mubr.f32.mxu0 0.0
        %1314 = vmatmul.mubr.f32.gmra.mrb[0].mxu0 1.0
        %v1315 = vpop.f32.mrb[0].mxu0
        %v1316 = vadd.f32 0.0, %v1315
        %v1317 = vpop.f32.mrb[0].mxu0
        %1318 = vdwg.mxu0
        %v1319 = vadd.f32 %v1224, %v1296
        %v1320 = vadd.f32 %v1225, %v1301
        %v1321 = vadd.f32 %v1226, %v1306
        %v1322 = vadd.f32 %v1227, %v1311
        %v1323 = vadd.f32 %v1228, %v1316
        %1324 = vst [vmem:[#allocation2] sm:$0xff] %v1319
        %1325 = vst [vmem:[#allocation2 + $0x8] sm:$0xff] %v1320
        %1326 = vst [vmem:[#allocation2 + $0x10] sm:$0xff] %v1321
        %1327 = vst [vmem:[#allocation2 + $0x18] sm:$0xff] %v1322
        %1328 = vst [vmem:[#allocation2 + $0x20] sm:$0x1] %v1323
        %p1329 = scmp.eq.s32.totalorder %s23, 2
        // Predicated region
        $region83: #{geo_simple_feature_net_forward.8} parent=73 // pred_check
          %p1330 = pneg %p1329
        $region84: #{geo_simple_feature_net_forward.8} parent=73 // pred_check_branch
          %1332 = sbr.rel (%p1330) target = $region86
        $region85: #{geo_simple_feature_net_forward.8} parent=73 // pred_region
          %v1333 = vld [vmem:[#allocation2] sm:$0xff]
          %v1334 = vld [vmem:[#allocation2 + $0x8] sm:$0xff]
          %v1335 = vld [vmem:[#allocation2 + $0x10] sm:$0xff]
          %v1336 = vld [vmem:[#allocation2 + $0x18] sm:$0xff]
          %v1337 = vld [vmem:[#allocation2 + $0x20] sm:$0x1]
          %v1338 = vmax.f32 %v1337, 1e-20
          %v1339 = vrcp.pop %v1338
          %v1340 = vmul.f32 %v1338, %v1339
          %v1341 = vsub.f32 2.0, %v1340
          %v1342 = vmul.f32 %v1339, %v1341
          %v1343 = vlaneseq
          %v1344 = vshrl.u32 %v1343, 7
          %v1345 = vsub.s32 0, %v1344
          %v1346 = vrot.slane %v1342, %v1345
          %v1347 = vmul.f32 %v1333, %v1346
          %v1348 = vmul.f32 %v1334, %v1346
          %v1349 = vmul.f32 %v1335, %v1346
          %v1350 = vmul.f32 %v1336, %v1346
          %v1351 = vmul.f32 %v1347, 0.33
          %v1352 = vmul.f32 %v1348, 0.33
          %v1353 = vmul.f32 %v1349, 0.33
          %v1354 = vmul.f32 %v1350, 0.33
          %v1355 = vadd.f32 %v1351, 0.0
          %v1356 = vadd.f32 %v1352, 0.0
          %v1357 = vadd.f32 %v1353, 0.0
          %v1358 = vadd.f32 %v1354, 0.0
          %v1359 = vld [vmem:[%s1086] sm:$0xff]
          %v1360 = vld [vmem:[%s1086 + $0x8] sm:$0xff]
          %v1361 = vld [vmem:[%s1086 + $0x10] sm:$0xff]
          %v1362 = vld [vmem:[%s1086 + $0x18] sm:$0xff]
          %v1363 = vld [vmem:[%s1086 + $0x20] sm:$0x1]
          %v1364 = vmax.f32 %v1363, 1e-20
          %v1365 = vrcp.pop %v1364
          %v1366 = vmul.f32 %v1364, %v1365
          %v1367 = vsub.f32 2.0, %v1366
          %v1368 = vmul.f32 %v1365, %v1367
          %v1369 = vlaneseq
          %v1370 = vshrl.u32 %v1369, 7
          %v1371 = vsub.s32 0, %v1370
          %v1372 = vrot.slane %v1368, %v1371
          %v1373 = vmul.f32 %v1359, %v1372
          %v1374 = vmul.f32 %v1360, %v1372
          %v1375 = vmul.f32 %v1361, %v1372
          %v1376 = vmul.f32 %v1362, %v1372
          %v1377 = vmul.f32 %v1373, 0.33
          %v1378 = vmul.f32 %v1374, 0.33
          %v1379 = vmul.f32 %v1375, 0.33
          %v1380 = vmul.f32 %v1376, 0.33
          %v1381 = vadd.f32 %v1355, %v1377
          %v1382 = vadd.f32 %v1356, %v1378
          %v1383 = vadd.f32 %v1357, %v1379
          %v1384 = vadd.f32 %v1358, %v1380
          %v1385 = vld [vmem:[%s948] sm:$0xff]
          %v1386 = vld [vmem:[%s948 + $0x8] sm:$0xff]
          %v1387 = vld [vmem:[%s948 + $0x10] sm:$0xff]
          %v1388 = vld [vmem:[%s948 + $0x18] sm:$0xff]
          %v1389 = vld [vmem:[%s948 + $0x20] sm:$0x1]
          %v1390 = vmax.f32 %v1389, 1e-20
          %v1391 = vrcp.pop %v1390
          %v1392 = vmul.f32 %v1390, %v1391
          %v1393 = vsub.f32 2.0, %v1392
          %v1394 = vmul.f32 %v1391, %v1393
          %v1395 = vlaneseq
          %v1396 = vshrl.u32 %v1395, 7
          %v1397 = vsub.s32 0, %v1396
          %v1398 = vrot.slane %v1394, %v1397
          %v1399 = vmul.f32 %v1385, %v1398
          %v1400 = vmul.f32 %v1386, %v1398
          %v1401 = vmul.f32 %v1387, %v1398
          %v1402 = vmul.f32 %v1388, %v1398
          %v1403 = vmul.f32 %v1399, 0.33
          %v1404 = vmul.f32 %v1400, 0.33
          %v1405 = vmul.f32 %v1401, 0.33
          %v1406 = vmul.f32 %v1402, 0.33
          %v1407 = vadd.f32 %v1381, %v1403
          %v1408 = vadd.f32 %v1382, %v1404
          %v1409 = vadd.f32 %v1383, %v1405
          %v1410 = vadd.f32 %v1384, %v1406
          %1411 = vst [vmem:[%s338] sm:$0xff] %v1407
          %1412 = vst [vmem:[%s338 + $0x8] sm:$0xff] %v1408
          %1413 = vst [vmem:[%s338 + $0x10] sm:$0xff] %v1409
          %1414 = vst [vmem:[%s338 + $0x18] sm:$0xff] %v1410
        $region86: #{geo_simple_feature_net_forward.8} parent=73 // pred_fallthru
          _
        %s1415 = sand.u32 %s171, 1
        %s1416 = sand.u32 %s171, 1
        %s1417 = smul.addr %s1416, 32
        %s1418 = scalar_lea.vmem [#allocation4], %s1417
        // Predicated region
        $region87: #{geo_simple_feature_net_forward.8} parent=73 // pred_check
          %p1419 = pneg %p181
        $region88: #{geo_simple_feature_net_forward.8} parent=73 // pred_check_branch
          %1421 = sbr.rel (%p1419) target = $region90
        $region89: #{geo_simple_feature_net_forward.8} parent=73 // pred_region
          %s1422 = smul.addr %s21, 12
          %s1423 = sadd.s32 %s22, %s1422
          %s1424 = smul.addr %s1423, 8
          %s1425 = scalar_lea.vmem %s5, %s1424
          // Predicated region
          $region91: #{geo_simple_feature_net_forward.8} parent=89 // pred_check
            _
          $region92: #{geo_simple_feature_net_forward.8} parent=89 // pred_check_branch
            %1427 = sbr.rel (0) target = $region94
          $region93: #{geo_simple_feature_net_forward.8} parent=89 // pred_region
            // Predicated region
            $region95: #{geo_simple_feature_net_forward.8} parent=93 // pred_check
              _
            $region96: #{geo_simple_feature_net_forward.8} parent=93 // pred_check_branch
              %1429 = sbr.rel (0) target = $region98
            $region97: #{geo_simple_feature_net_forward.8} parent=93 // pred_region
              // Predicated region
              $region110: #{geo_simple_feature_net_forward.8} parent=97 // pred_check
                _
              $region111: #{geo_simple_feature_net_forward.8} parent=97 // pred_check_branch
                %1450 = sbr.rel (0) target = $region113
              $region112: #{geo_simple_feature_net_forward.8} parent=97 // pred_region
                loop: start=0, step=1, limit=1
                $region114: #{geo_simple_feature_net_forward.8} parent=112 // loop_pre_header
                  _
                $region115: #{geo_simple_feature_net_forward.8} parent=112 // loop_header
                  %s1452 = sphi 0, %s1456
                  %p1453 = scmp.ge.s32.totalorder %s1452, 1
                  %s1457 = sphi %s1418, %s1418
                  %s1458 = sphi %s1425, %s1425
                $region116: #{geo_simple_feature_net_forward.8} parent=112 // loop_header_branch
                  %1455 = sbr.rel (%p1453) target = $region120
                $region117: #{geo_simple_feature_net_forward.8} parent=112 // loop_body
                  %v1459 = vld [vmem:[%s1457] sm:$0xff]
                  %1460 = vst [vmem:[%s1458] sm:$0xff] %v1459
                  %v1461 = vld [vmem:[%s1457 + $0x8] sm:$0xff]
                  %1462 = vst [vmem:[%s1458 + $0x18] sm:$0xff] %v1461
                  %v1463 = vld [vmem:[%s1457 + $0x10] sm:$0xff]
                  %1464 = vst [vmem:[%s1458 + $0x30] sm:$0xff] %v1463
                  %v1465 = vld [vmem:[%s1457 + $0x18] sm:$0xff]
                  %1466 = vst [vmem:[%s1458 + $0x48] sm:$0xff] %v1465
                $region118: #{geo_simple_feature_net_forward.8} parent=112 // loop_footer
                  %s1456 = sadd.s32 1, %s1452
                $region119: #{geo_simple_feature_net_forward.8} parent=112 // loop_footer_branch
                  %1451 = sbr.rel target = $region115
                $region120: #{geo_simple_feature_net_forward.8} parent=112 // loop_exit
                  _
              $region113: #{geo_simple_feature_net_forward.8} parent=97 // pred_fallthru
                _
              // Predicated region
              $region121: #{geo_simple_feature_net_forward.8} parent=97 // pred_check
                _
              $region122: #{geo_simple_feature_net_forward.8} parent=97 // pred_check_branch
                %1468 = sbr.rel target = $region124
              $region123: #{geo_simple_feature_net_forward.8} parent=97 // pred_region
                _
              $region124: #{geo_simple_feature_net_forward.8} parent=97 // pred_fallthru
                _
            $region98: #{geo_simple_feature_net_forward.8} parent=93 // pred_fallthru
              _
            // Predicated region
            $region99: #{geo_simple_feature_net_forward.8} parent=93 // pred_check
              _
            $region100: #{geo_simple_feature_net_forward.8} parent=93 // pred_check_branch
              %1431 = sbr.rel target = $region102
            $region101: #{geo_simple_feature_net_forward.8} parent=93 // pred_region
              loop: start=0, step=1, limit=1
              $region103: #{geo_simple_feature_net_forward.8} parent=101 // loop_pre_header
                _
              $region104: #{geo_simple_feature_net_forward.8} parent=101 // loop_header
                %s1434 = sphi 0, %s1438
                %p1435 = scmp.ge.s32.totalorder %s1434, 1
                %s1439 = sphi %s1418, %s1418
                %s1440 = sphi %s1425, %s1425
              $region105: #{geo_simple_feature_net_forward.8} parent=101 // loop_header_branch
                %1437 = sbr.rel (%p1435) target = $region109
              $region106: #{geo_simple_feature_net_forward.8} parent=101 // loop_body
                %v1441 = vld [vmem:[%s1439] sm:$0xff]
                %1442 = vst [vmem:[%s1440] sm:$0xff] %v1441
                %v1443 = vld [vmem:[%s1439 + $0x8] sm:$0xff]
                %1444 = vst [vmem:[%s1440 + $0x18] sm:$0xff] %v1443
                %v1445 = vld [vmem:[%s1439 + $0x10] sm:$0xff]
                %1446 = vst [vmem:[%s1440 + $0x30] sm:$0xff] %v1445
                %v1447 = vld [vmem:[%s1439 + $0x18] sm:$0xff]
                %1448 = vst [vmem:[%s1440 + $0x48] sm:$0xff] %v1447
              $region107: #{geo_simple_feature_net_forward.8} parent=101 // loop_footer
                %s1438 = sadd.s32 1, %s1434
              $region108: #{geo_simple_feature_net_forward.8} parent=101 // loop_footer_branch
                %1433 = sbr.rel target = $region104
              $region109: #{geo_simple_feature_net_forward.8} parent=101 // loop_exit
                _
            $region102: #{geo_simple_feature_net_forward.8} parent=93 // pred_fallthru
              _
          $region94: #{geo_simple_feature_net_forward.8} parent=89 // pred_fallthru
            _
          %1469 = vnop
        $region90: #{geo_simple_feature_net_forward.8} parent=73 // pred_fallthru
          _
      $region74: #{geo_simple_feature_net_forward.8} parent=5 // pred_fallthru
        _
      %p1470 = scmp.le.s32.totalorder 2, %s11
      // Predicated region
      $region125: #{geo_simple_feature_net_forward.8} parent=5 // pred_check
        %p1471 = pneg %p1470
      $region126: #{geo_simple_feature_net_forward.8} parent=5 // pred_check_branch
        %1473 = sbr.rel (%p1471) target = $region128
      $region127: #{geo_simple_feature_net_forward.8} parent=5 // pred_region
        %s1474 = ssub.s32 %s11, 2
        // Predicated region
        $region129: #{geo_simple_feature_net_forward.8} parent=127 // pred_check
          %p1475 = pneg %p187
        $region130: #{geo_simple_feature_net_forward.8} parent=127 // pred_check_branch
          %1477 = sbr.rel (%p1475) target = $region132
        $region131: #{geo_simple_feature_net_forward.8} parent=127 // pred_region
          %s1478 = sand.u32 %s172, 1
          %s1479 = sand.u32 %s172, 1
          %s1480 = smul.addr %s1479, 32
          %s1481 = scalar_lea.vmem [#allocation4], %s1480
        $region132: #{geo_simple_feature_net_forward.8} parent=127 // pred_fallthru
          _
      $region128: #{geo_simple_feature_net_forward.8} parent=5 // pred_fallthru
        _
    $region6: #{geo_simple_feature_net_forward.8} parent=1 // loop_footer
      %s15 = sadd.s32 1, %s11
    $region7: #{geo_simple_feature_net_forward.8} parent=1 // loop_footer_branch
      %10 = sbr.rel target = $region3
    $region8: #{geo_simple_feature_net_forward.8} parent=1 // loop_exit
      _

// kernel: geo_simple_feature_net_forward.7
$region0: #{geo_simple_feature_net_forward.7}
  #allocation0 [shape = 'u32[]', space=smem, size = 0x4, offset = 0x4, fixed_abs, tag = 'smem constant byte address 0x4 - core index']
  #allocation1 [shape = 'u32[144,128]{1,0:T(1,128)}', space=vmem, size = 0x12000, scoped, tag = 'internal scratch']
  #allocation2 [shape = 'f32[3,33,128]{2,1,0:T(8,128)}', space=vmem, size = 0xf000, scoped, tag = 'scratch operand']
  %s0 = inlined_call_operand.vmem [shape: f32[2,3,384], index: 0, kind: input, shape index: {}]
  %s1 = inlined_call_operand.vmem [shape: f32[2,384,3], index: 1, kind: input, shape index: {}]
  %s2 = inlined_call_operand.vmem [shape: f32[2,16,384], index: 2, kind: input, shape index: {}]
  %s3 = inlined_call_operand.vmem [shape: f32[32,16], index: 3, kind: input, shape index: {}]
  %s4 = inlined_call_operand.vmem [shape: f32[32,1], index: 4, kind: input, shape index: {}]
  %s5 = inlined_call_operand.vmem [shape: f32[32,32], index: 5, kind: input, shape index: {}]
  %s6 = inlined_call_operand.vmem [shape: f32[32,1], index: 6, kind: input, shape index: {}]
  %s7 = inlined_call_operand.vmem [shape: f32[2,32,384], index: 7, kind: output, shape index: {}]
  %s8 = sld [smem:[#allocation0]]
  $region141: #{geo_simple_feature_net_forward.7} parent=0
    _
  %s10 = ssub.s32 1, %s8
  %s11 = scalar_select 0, %s10, %s8
  $region1: #{geo_simple_feature_net_forward.7} parent=0
    #allocation3 [shape = 'u8[16384]{0}', space=vmem, size = 0x4000, scoped, tag = 'input window, operand 2']
    #allocation4 [shape = 'u8[32768]{0}', space=vmem, size = 0x8000, scoped, tag = 'output window, operand 0']
    loop: start=0, step=1, limit=20
    $region2: #{geo_simple_feature_net_forward.7} parent=1 // loop_pre_header
      _
    $region3: #{geo_simple_feature_net_forward.7} parent=1 // loop_header
      %s13 = sphi 0, %s17
      %p14 = scmp.ge.s32.totalorder %s13, 20
      %s20 = sphi 0, %s39
      %s21 = sphi 0, %s35
      %s22 = sphi 0, %s31
      %s23 = sphi 0, %s20
      %s24 = sphi 0, %s21
      %s25 = sphi 0, %s22
      %s26 = sphi 0, %s23
      %s27 = sphi 0, %s24
      %s28 = sphi 0, %s25
      %s44 = sphi 0, %s46
      %s47 = sphi 0, %s44
      %s48 = sphi 0, %s47
      %s64 = sphi 0, %s48
      %s72 = sphi 0, %s74
      %s75 = sphi 0, %s72
      %s76 = sphi 0, %s75
      %s92 = sphi 0, %s76
      %s100 = sphi 0, %s102
      %s103 = sphi 0, %s100
      %s104 = sphi 0, %s103
      %s120 = sphi 0, %s104
      %s124 = sphi 0, %s124
      %s126 = sphi 0, %s124
      %s127 = sphi 0, %s126
      %s141 = sphi 0, %s127
      %s145 = sphi 0, %s145
      %s147 = sphi 0, %s145
      %s148 = sphi 0, %s147
      %s162 = sphi 0, %s148
      %s166 = sphi 0, %s166
      %s168 = sphi 0, %s166
      %s169 = sphi 0, %s168
      %s183 = sphi 0, %s169
      %s187 = sphi 0, %s187
      %s189 = sphi 0, %s187
      %s190 = sphi 0, %s189
      %s204 = sphi 0, %s190
      %s212 = sphi 0, %s214
      %s215 = sphi 0, %s212
      %s216 = sphi 0, %s215
      %s232 = sphi 0, %s216
    $region4: #{geo_simple_feature_net_forward.7} parent=1 // loop_header_branch
      %16 = sbr.rel (%p14) target = $region8
    $region5: #{geo_simple_feature_net_forward.7} parent=1 // loop_body
      %s18 = ssub.s32 %s13, 1
      %s19 = ssub.s32 %s13, 2
      %s29 = sadd.s32 1, %s22
      %p30 = scmp.ge.s32.totalorder %s29, 3
      %s31 = scalar_select %p30, 0, %s29
      %s32 = sadd.s32 1, %s21
      %s33 = scalar_select %p30, %s32, %s21
      %p34 = scmp.ge.s32.totalorder %s33, 3
      %s35 = scalar_select %p34, 0, %s33
      %s36 = sadd.s32 1, %s20
      %s37 = scalar_select %p34, %s36, %s20
      %p38 = scmp.ge.s32.totalorder %s37, 2
      %s39 = scalar_select %p38, 0, %s37
      %s40 = ssub.s32 %s20, %s39
      %s41 = ssub.s32 %s21, %s35
      %s42 = sor.u32 %s40, %s41
      %p43 = scmp.eq.s32.totalorder %s42, 0
      %s45 = sadd.s32 %s44, 1
      %s46 = scalar_select %p43, %s44, %s45
      %p49 = pneg %p43
      %p50 = scmp.eq.s32.totalorder %s13, 17
      %p51 = por %p49, %p50
      %p52 = scmp.ne.s32.totalorder %s44, %s47
      %p53 = scmp.eq.s32.totalorder %s13, 0
      %p54 = por %p52, %p53
      %p55 = scmp.ne.s32.totalorder %s44, %s47
      %p56 = scmp.eq.s32.totalorder %s18, 17
      %p57 = por %p55, %p56
      %p58 = scmp.ne.s32.totalorder %s47, %s48
      %p59 = scmp.eq.s32.totalorder %s18, 0
      %p60 = por %p58, %p59
      %p61 = scmp.ne.s32.totalorder %s47, %s48
      %p62 = scmp.eq.s32.totalorder %s19, 17
      %p63 = por %p61, %p62
      %p65 = scmp.ne.s32.totalorder %s48, %s64
      %p66 = scmp.eq.s32.totalorder %s19, 0
      %p67 = por %p65, %p66
      %s68 = ssub.s32 %s20, %s39
      %s69 = ssub.s32 %s22, %s31
      %s70 = sor.u32 %s68, %s69
      %p71 = scmp.eq.s32.totalorder %s70, 0
      %s73 = sadd.s32 %s72, 1
      %s74 = scalar_select %p71, %s72, %s73
      %p77 = pneg %p71
      %p78 = scmp.eq.s32.totalorder %s13, 17
      %p79 = por %p77, %p78
      %p80 = scmp.ne.s32.totalorder %s72, %s75
      %p81 = scmp.eq.s32.totalorder %s13, 0
      %p82 = por %p80, %p81
      %p83 = scmp.ne.s32.totalorder %s72, %s75
      %p84 = scmp.eq.s32.totalorder %s18, 17
      %p85 = por %p83, %p84
      %p86 = scmp.ne.s32.totalorder %s75, %s76
      %p87 = scmp.eq.s32.totalorder %s18, 0
      %p88 = por %p86, %p87
      %p89 = scmp.ne.s32.totalorder %s75, %s76
      %p90 = scmp.eq.s32.totalorder %s19, 17
      %p91 = por %p89, %p90
      %p93 = scmp.ne.s32.totalorder %s76, %s92
      %p94 = scmp.eq.s32.totalorder %s19, 0
      %p95 = por %p93, %p94
      %s96 = ssub.s32 %s20, %s39
      %s97 = ssub.s32 %s22, %s31
      %s98 = sor.u32 %s96, %s97
      %p99 = scmp.eq.s32.totalorder %s98, 0
      %s101 = sadd.s32 %s100, 1
      %s102 = scalar_select %p99, %s100, %s101
      %p105 = pneg %p99
      %p106 = scmp.eq.s32.totalorder %s13, 17
      %p107 = por %p105, %p106
      %p108 = scmp.ne.s32.totalorder %s100, %s103
      %p109 = scmp.eq.s32.totalorder %s13, 0
      %p110 = por %p108, %p109
      %p111 = scmp.ne.s32.totalorder %s100, %s103
      %p112 = scmp.eq.s32.totalorder %s18, 17
      %p113 = por %p111, %p112
      %p114 = scmp.ne.s32.totalorder %s103, %s104
      %p115 = scmp.eq.s32.totalorder %s18, 0
      %p116 = por %p114, %p115
      %p117 = scmp.ne.s32.totalorder %s103, %s104
      %p118 = scmp.eq.s32.totalorder %s19, 17
      %p119 = por %p117, %p118
      %p121 = scmp.ne.s32.totalorder %s104, %s120
      %p122 = scmp.eq.s32.totalorder %s19, 0
      %p123 = por %p121, %p122
      %s125 = sadd.s32 %s124, 1
      %p128 = scmp.eq.s32.totalorder %s13, 17
      %p129 = scmp.ne.s32.totalorder %s124, %s126
      %p130 = scmp.eq.s32.totalorder %s13, 0
      %p131 = por %p129, %p130
      %p132 = scmp.ne.s32.totalorder %s124, %s126
      %p133 = scmp.eq.s32.totalorder %s18, 17
      %p134 = por %p132, %p133
      %p135 = scmp.ne.s32.totalorder %s126, %s127
      %p136 = scmp.eq.s32.totalorder %s18, 0
      %p137 = por %p135, %p136
      %p138 = scmp.ne.s32.totalorder %s126, %s127
      %p139 = scmp.eq.s32.totalorder %s19, 17
      %p140 = por %p138, %p139
      %p142 = scmp.ne.s32.totalorder %s127, %s141
      %p143 = scmp.eq.s32.totalorder %s19, 0
      %p144 = por %p142, %p143
      %s146 = sadd.s32 %s145, 1
      %p149 = scmp.eq.s32.totalorder %s13, 17
      %p150 = scmp.ne.s32.totalorder %s145, %s147
      %p151 = scmp.eq.s32.totalorder %s13, 0
      %p152 = por %p150, %p151
      %p153 = scmp.ne.s32.totalorder %s145, %s147
      %p154 = scmp.eq.s32.totalorder %s18, 17
      %p155 = por %p153, %p154
      %p156 = scmp.ne.s32.totalorder %s147, %s148
      %p157 = scmp.eq.s32.totalorder %s18, 0
      %p158 = por %p156, %p157
      %p159 = scmp.ne.s32.totalorder %s147, %s148
      %p160 = scmp.eq.s32.totalorder %s19, 17
      %p161 = por %p159, %p160
      %p163 = scmp.ne.s32.totalorder %s148, %s162
      %p164 = scmp.eq.s32.totalorder %s19, 0
      %p165 = por %p163, %p164
      %s167 = sadd.s32 %s166, 1
      %p170 = scmp.eq.s32.totalorder %s13, 17
      %p171 = scmp.ne.s32.totalorder %s166, %s168
      %p172 = scmp.eq.s32.totalorder %s13, 0
      %p173 = por %p171, %p172
      %p174 = scmp.ne.s32.totalorder %s166, %s168
      %p175 = scmp.eq.s32.totalorder %s18, 17
      %p176 = por %p174, %p175
      %p177 = scmp.ne.s32.totalorder %s168, %s169
      %p178 = scmp.eq.s32.totalorder %s18, 0
      %p179 = por %p177, %p178
      %p180 = scmp.ne.s32.totalorder %s168, %s169
      %p181 = scmp.eq.s32.totalorder %s19, 17
      %p182 = por %p180, %p181
      %p184 = scmp.ne.s32.totalorder %s169, %s183
      %p185 = scmp.eq.s32.totalorder %s19, 0
      %p186 = por %p184, %p185
      %s188 = sadd.s32 %s187, 1
      %p191 = scmp.eq.s32.totalorder %s13, 17
      %p192 = scmp.ne.s32.totalorder %s187, %s189
      %p193 = scmp.eq.s32.totalorder %s13, 0
      %p194 = por %p192, %p193
      %p195 = scmp.ne.s32.totalorder %s187, %s189
      %p196 = scmp.eq.s32.totalorder %s18, 17
      %p197 = por %p195, %p196
      %p198 = scmp.ne.s32.totalorder %s189, %s190
      %p199 = scmp.eq.s32.totalorder %s18, 0
      %p200 = por %p198, %p199
      %p201 = scmp.ne.s32.totalorder %s189, %s190
      %p202 = scmp.eq.s32.totalorder %s19, 17
      %p203 = por %p201, %p202
      %p205 = scmp.ne.s32.totalorder %s190, %s204
      %p206 = scmp.eq.s32.totalorder %s19, 0
      %p207 = por %p205, %p206
      %s208 = ssub.s32 %s20, %s39
      %s209 = ssub.s32 %s21, %s35
      %s210 = sor.u32 %s208, %s209
      %p211 = scmp.eq.s32.totalorder %s210, 0
      %s213 = sadd.s32 %s212, 1
      %s214 = scalar_select %p211, %s212, %s213
      %p217 = pneg %p211
      %p218 = scmp.eq.s32.totalorder %s13, 17
      %p219 = por %p217, %p218
      %p220 = scmp.ne.s32.totalorder %s212, %s215
      %p221 = scmp.eq.s32.totalorder %s13, 0
      %p222 = por %p220, %p221
      %p223 = scmp.ne.s32.totalorder %s212, %s215
      %p224 = scmp.eq.s32.totalorder %s18, 17
      %p225 = por %p223, %p224
      %p226 = scmp.ne.s32.totalorder %s215, %s216
      %p227 = scmp.eq.s32.totalorder %s18, 0
      %p228 = por %p226, %p227
      %p229 = scmp.ne.s32.totalorder %s215, %s216
      %p230 = scmp.eq.s32.totalorder %s19, 17
      %p231 = por %p229, %p230
      %p233 = scmp.ne.s32.totalorder %s216, %s232
      %p234 = scmp.eq.s32.totalorder %s19, 0
      %p235 = por %p233, %p234
      %p236 = scmp.le.s32.totalorder 1, %s13
      %p237 = scmp.lt.s32.totalorder %s13, 19
      %p238 = pnand %p236, %p237
      %p239 = pneg %p238
      // Predicated region
      $region9: #{geo_simple_feature_net_forward.7} parent=5 // pred_check
        _
      $region10: #{geo_simple_feature_net_forward.7} parent=5 // pred_check_branch
        %241 = sbr.rel (%p238) target = $region12
      $region11: #{geo_simple_feature_net_forward.7} parent=5 // pred_region
        %s242 = ssub.s32 %s13, 1
        // Predicated region
        $region13: #{geo_simple_feature_net_forward.7} parent=11 // pred_check
          %p243 = pneg %p137
        $region14: #{geo_simple_feature_net_forward.7} parent=11 // pred_check_branch
          %245 = sbr.rel (%p243) target = $region16
        $region15: #{geo_simple_feature_net_forward.7} parent=11 // pred_region
          _
        $region16: #{geo_simple_feature_net_forward.7} parent=11 // pred_fallthru
          _
        // Predicated region
        $region17: #{geo_simple_feature_net_forward.7} parent=11 // pred_check
          %p246 = pneg %p158
        $region18: #{geo_simple_feature_net_forward.7} parent=11 // pred_check_branch
          %248 = sbr.rel (%p246) target = $region20
        $region19: #{geo_simple_feature_net_forward.7} parent=11 // pred_region
          _
        $region20: #{geo_simple_feature_net_forward.7} parent=11 // pred_fallthru
          _
        // Predicated region
        $region21: #{geo_simple_feature_net_forward.7} parent=11 // pred_check
          %p249 = pneg %p179
        $region22: #{geo_simple_feature_net_forward.7} parent=11 // pred_check_branch
          %251 = sbr.rel (%p249) target = $region24
        $region23: #{geo_simple_feature_net_forward.7} parent=11 // pred_region
          _
        $region24: #{geo_simple_feature_net_forward.7} parent=11 // pred_fallthru
          _
        // Predicated region
        $region25: #{geo_simple_feature_net_forward.7} parent=11 // pred_check
          %p252 = pneg %p200
        $region26: #{geo_simple_feature_net_forward.7} parent=11 // pred_check_branch
          %254 = sbr.rel (%p252) target = $region28
        $region27: #{geo_simple_feature_net_forward.7} parent=11 // pred_region
          _
        $region28: #{geo_simple_feature_net_forward.7} parent=11 // pred_fallthru
          _
      $region12: #{geo_simple_feature_net_forward.7} parent=5 // pred_fallthru
        _
      %p255 = scmp.lt.s32.totalorder %s13, 18
      // Predicated region
      $region29: #{geo_simple_feature_net_forward.7} parent=5 // pred_check
        %p256 = pneg %p255
      $region30: #{geo_simple_feature_net_forward.7} parent=5 // pred_check_branch
        %258 = sbr.rel (%p256) target = $region32
      $region31: #{geo_simple_feature_net_forward.7} parent=5 // pred_region
        // Predicated region
        $region33: #{geo_simple_feature_net_forward.7} parent=31 // pred_check
          %p259 = pneg %p54
        $region34: #{geo_simple_feature_net_forward.7} parent=31 // pred_check_branch
          %261 = sbr.rel (%p259) target = $region36
        $region35: #{geo_simple_feature_net_forward.7} parent=31 // pred_region
          %p262 = scmp.lt.s32.totalorder %s20, 1
          %s263 = scalar_select %p262, %s20, 1
          %p264 = scmp.lt.s32.totalorder %s21, 2
          %s265 = scalar_select %p264, %s21, 2
          %s266 = smul.addr %s263, 3
          %s267 = sadd.s32 %s265, %s266
          %s268 = smul.addr %s267, 4
          %s269 = scalar_lea.vmem %s0, %s268
        $region36: #{geo_simple_feature_net_forward.7} parent=31 // pred_fallthru
          _
        // Predicated region
        $region37: #{geo_simple_feature_net_forward.7} parent=31 // pred_check
          %p270 = pneg %p82
        $region38: #{geo_simple_feature_net_forward.7} parent=31 // pred_check_branch
          %272 = sbr.rel (%p270) target = $region40
        $region39: #{geo_simple_feature_net_forward.7} parent=31 // pred_region
          %s273 = smul.u32 16, %s22
          %p274 = scmp.lt.s32.totalorder %s20, 1
          %s275 = scalar_select %p274, %s20, 1
          %p276 = scmp.lt.s32.totalorder %s273, 47
          %s277 = scalar_select %p276, %s273, 47
          %s278 = smul.addr %s275, 48
          %s279 = sadd.s32 %s277, %s278
          %s280 = smul.addr %s279, 8
          %s281 = scalar_lea.vmem %s1, %s280
          %s282 = smul.u32 16, %s22
        $region40: #{geo_simple_feature_net_forward.7} parent=31 // pred_fallthru
          _
        // Predicated region
        $region41: #{geo_simple_feature_net_forward.7} parent=31 // pred_check
          %p283 = pneg %p110
        $region42: #{geo_simple_feature_net_forward.7} parent=31 // pred_check_branch
          %285 = sbr.rel (%p283) target = $region44
        $region43: #{geo_simple_feature_net_forward.7} parent=31 // pred_region
          %s286 = sand.u32 %s100, 1
          %s287 = sand.u32 %s100, 1
          %s288 = smul.addr %s287, 16
          %s289 = scalar_lea.vmem [#allocation3], %s288
          %s290 = smul.addr %s20, 6
          %s291 = sadd.s32 %s22, %s290
          %s292 = smul.addr %s291, 8
          %s293 = scalar_lea.vmem %s2, %s292
          // Predicated region
          $region45: #{geo_simple_feature_net_forward.7} parent=43 // pred_check
            _
          $region46: #{geo_simple_feature_net_forward.7} parent=43 // pred_check_branch
            %295 = sbr.rel (0) target = $region48
          $region47: #{geo_simple_feature_net_forward.7} parent=43 // pred_region
            // Predicated region
            $region49: #{geo_simple_feature_net_forward.7} parent=47 // pred_check
              _
            $region50: #{geo_simple_feature_net_forward.7} parent=47 // pred_check_branch
              %297 = sbr.rel (0) target = $region52
            $region51: #{geo_simple_feature_net_forward.7} parent=47 // pred_region
              // Predicated region
              $region64: #{geo_simple_feature_net_forward.7} parent=51 // pred_check
                _
              $region65: #{geo_simple_feature_net_forward.7} parent=51 // pred_check_branch
                %314 = sbr.rel (0) target = $region67
              $region66: #{geo_simple_feature_net_forward.7} parent=51 // pred_region
                loop: start=0, step=1, limit=1
                $region68: #{geo_simple_feature_net_forward.7} parent=66 // loop_pre_header
                  _
                $region69: #{geo_simple_feature_net_forward.7} parent=66 // loop_header
                  %s316 = sphi 0, %s320
                  %p317 = scmp.ge.s32.totalorder %s316, 1
                  %s321 = sphi %s293, %s293
                  %s322 = sphi %s289, %s289
                $region70: #{geo_simple_feature_net_forward.7} parent=66 // loop_header_branch
                  %319 = sbr.rel (%p317) target = $region74
                $region71: #{geo_simple_feature_net_forward.7} parent=66 // loop_body
                  %v323 = vld [vmem:[%s321] sm:$0xff]
                  %324 = vst [vmem:[%s322] sm:$0xff] %v323
                  %v325 = vld [vmem:[%s321 + $0x18] sm:$0xff]
                  %326 = vst [vmem:[%s322 + $0x8] sm:$0xff] %v325
                $region72: #{geo_simple_feature_net_forward.7} parent=66 // loop_footer
                  %s320 = sadd.s32 1, %s316
                $region73: #{geo_simple_feature_net_forward.7} parent=66 // loop_footer_branch
                  %315 = sbr.rel target = $region69
                $region74: #{geo_simple_feature_net_forward.7} parent=66 // loop_exit
                  _
              $region67: #{geo_simple_feature_net_forward.7} parent=51 // pred_fallthru
                _
              // Predicated region
              $region75: #{geo_simple_feature_net_forward.7} parent=51 // pred_check
                _
              $region76: #{geo_simple_feature_net_forward.7} parent=51 // pred_check_branch
                %328 = sbr.rel target = $region78
              $region77: #{geo_simple_feature_net_forward.7} parent=51 // pred_region
                _
              $region78: #{geo_simple_feature_net_forward.7} parent=51 // pred_fallthru
                _
            $region52: #{geo_simple_feature_net_forward.7} parent=47 // pred_fallthru
              _
            // Predicated region
            $region53: #{geo_simple_feature_net_forward.7} parent=47 // pred_check
              _
            $region54: #{geo_simple_feature_net_forward.7} parent=47 // pred_check_branch
              %299 = sbr.rel target = $region56
            $region55: #{geo_simple_feature_net_forward.7} parent=47 // pred_region
              loop: start=0, step=1, limit=1
              $region57: #{geo_simple_feature_net_forward.7} parent=55 // loop_pre_header
                _
              $region58: #{geo_simple_feature_net_forward.7} parent=55 // loop_header
                %s302 = sphi 0, %s306
                %p303 = scmp.ge.s32.totalorder %s302, 1
                %s307 = sphi %s293, %s293
                %s308 = sphi %s289, %s289
              $region59: #{geo_simple_feature_net_forward.7} parent=55 // loop_header_branch
                %305 = sbr.rel (%p303) target = $region63
              $region60: #{geo_simple_feature_net_forward.7} parent=55 // loop_body
                %v309 = vld [vmem:[%s307] sm:$0xff]
                %310 = vst [vmem:[%s308] sm:$0xff] %v309
                %v311 = vld [vmem:[%s307 + $0x18] sm:$0xff]
                %312 = vst [vmem:[%s308 + $0x8] sm:$0xff] %v311
              $region61: #{geo_simple_feature_net_forward.7} parent=55 // loop_footer
                %s306 = sadd.s32 1, %s302
              $region62: #{geo_simple_feature_net_forward.7} parent=55 // loop_footer_branch
                %301 = sbr.rel target = $region58
              $region63: #{geo_simple_feature_net_forward.7} parent=55 // loop_exit
                _
            $region56: #{geo_simple_feature_net_forward.7} parent=47 // pred_fallthru
              _
          $region48: #{geo_simple_feature_net_forward.7} parent=43 // pred_fallthru
            _
          %329 = vnop
        $region44: #{geo_simple_feature_net_forward.7} parent=31 // pred_fallthru
          _
      $region32: #{geo_simple_feature_net_forward.7} parent=5 // pred_fallthru
        _
      %p330 = scmp.le.s32.totalorder 1, %s13
      %p331 = scmp.lt.s32.totalorder %s13, 19
      %p332 = pnand %p330, %p331
      %p333 = pneg %p332
      // Predicated region
      $region79: #{geo_simple_feature_net_forward.7} parent=5 // pred_check
        _
      $region80: #{geo_simple_feature_net_forward.7} parent=5 // pred_check_branch
        %335 = sbr.rel (%p332) target = $region82
      $region81: #{geo_simple_feature_net_forward.7} parent=5 // pred_region
        %s336 = ssub.s32 %s13, 1
        %s337 = sand.u32 %s103, 1
        %s338 = sand.u32 %s103, 1
        %s339 = smul.addr %s338, 16
        %s340 = scalar_lea.vmem [#allocation3], %s339
        // Predicated region
        $region83: #{geo_simple_feature_net_forward.7} parent=81 // pred_check
          %p341 = pneg %p116
        $region84: #{geo_simple_feature_net_forward.7} parent=81 // pred_check_branch
          %343 = sbr.rel (%p341) target = $region86
        $region85: #{geo_simple_feature_net_forward.7} parent=81 // pred_region
          _
        $region86: #{geo_simple_feature_net_forward.7} parent=81 // pred_fallthru
          _
        %p344 = scmp.lt.s32.totalorder %s23, 1
        %s345 = scalar_select %p344, %s23, 1
        %p346 = scmp.lt.s32.totalorder %s24, 2
        %s347 = scalar_select %p346, %s24, 2
        %s348 = smul.addr %s345, 3
        %s349 = sadd.s32 %s347, %s348
        %s350 = smul.addr %s349, 4
        %s351 = scalar_lea.vmem %s0, %s350
        %p352 = pneg %p60
        %p353 = pneg %p57
        %s354 = smul.u32 16, %s25
        %p355 = scmp.lt.s32.totalorder %s23, 1
        %s356 = scalar_select %p355, %s23, 1
        %p357 = scmp.lt.s32.totalorder %s354, 47
        %s358 = scalar_select %p357, %s354, 47
        %s359 = smul.addr %s356, 48
        %s360 = sadd.s32 %s358, %s359
        %s361 = smul.addr %s360, 8
        %s362 = scalar_lea.vmem %s1, %s361
        %p363 = pneg %p88
        %p364 = pneg %p85
        %s365 = sand.u32 %s103, 1
        %s366 = sand.u32 %s103, 1
        %s367 = smul.addr %s366, 16
        %s368 = scalar_lea.vmem [#allocation3], %s367
        %p369 = pneg %p116
        %p370 = pneg %p113
        %p371 = pneg %p137
        %p372 = pneg %p134
        %p373 = pneg %p158
        %p374 = pneg %p155
        %p375 = pneg %p179
        %p376 = pneg %p176
        %p377 = pneg %p200
        %p378 = pneg %p197
        %p379 = pneg %p228
        %p380 = pneg %p225
        %s381 = sand.u32 %s215, 1
        %s382 = sand.u32 %s215, 1
        %s383 = smul.addr %s382, 32
        %s384 = scalar_lea.vmem [#allocation4], %s383
        %p385 = scmp.lt.s32.totalorder %s23, 1
        %s386 = scalar_select %p385, %s23, 1
        %p387 = scmp.lt.s32.totalorder %s24, 2
        %s388 = scalar_select %p387, %s24, 2
        %s389 = smul.addr %s386, 3
        %s390 = sadd.s32 %s388, %s389
        %s391 = smul.addr %s390, 4
        %s392 = scalar_lea.vmem %s0, %s391
        %s393 = smul.u32 16, %s25
        %p394 = scmp.lt.s32.totalorder %s23, 1
        %s395 = scalar_select %p394, %s23, 1
        %p396 = scmp.lt.s32.totalorder %s393, 47
        %s397 = scalar_select %p396, %s393, 47
        %s398 = smul.addr %s395, 48
        %s399 = sadd.s32 %s397, %s398
        %s400 = smul.addr %s399, 8
        %s401 = scalar_lea.vmem %s1, %s400
        %s402 = smul.u32 16, %s25
        %p403 = scmp.eq.s32.totalorder %s25, 0
        // Predicated region
        $region87: #{geo_simple_feature_net_forward.7} parent=81 // pred_check
          %p404 = pneg %p403
        $region88: #{geo_simple_feature_net_forward.7} parent=81 // pred_check_branch
          %406 = sbr.rel (%p404) target = $region90
        $region89: #{geo_simple_feature_net_forward.7} parent=81 // pred_region
          %407 = vst [vmem:[#allocation2] sm:$0xff] 0.0
          %408 = vst [vmem:[#allocation2 + $0x8] sm:$0xff] 0.0
          %409 = vst [vmem:[#allocation2 + $0x10] sm:$0xff] 0.0
          %410 = vst [vmem:[#allocation2 + $0x18] sm:$0xff] 0.0
          %411 = vst [vmem:[#allocation2 + $0x20] sm:$0x1] 0.0
          %412 = vst [vmem:[#allocation2 + $0x28] sm:$0xff] 0.0
          %413 = vst [vmem:[#allocation2 + $0x30] sm:$0xff] 0.0
          %414 = vst [vmem:[#allocation2 + $0x38] sm:$0xff] 0.0
          %415 = vst [vmem:[#allocation2 + $0x40] sm:$0xff] 0.0
          %416 = vst [vmem:[#allocation2 + $0x48] sm:$0x1] 0.0
          %417 = vst [vmem:[#allocation2 + $0x50] sm:$0xff] 0.0
          %418 = vst [vmem:[#allocation2 + $0x58] sm:$0xff] 0.0
          %419 = vst [vmem:[#allocation2 + $0x60] sm:$0xff] 0.0
          %420 = vst [vmem:[#allocation2 + $0x68] sm:$0xff] 0.0
          %421 = vst [vmem:[#allocation2 + $0x70] sm:$0x1] 0.0
        $region90: #{geo_simple_feature_net_forward.7} parent=81 // pred_fallthru
          _
        %v422 = vld [vmem:[%s340] sm:$0xff]
        %v423 = vld [vmem:[%s340 + $0x8] sm:$0xff]
        %v424 = vld [vmem:[%s3] sm:$0xff]
        %v425 = vld [vmem:[%s3 + $0x8] sm:$0xff]
        %v426 = vld [vmem:[%s3 + $0x10] sm:$0xff]
        %v427 = vld [vmem:[%s3 + $0x18] sm:$0xff]
        %v428 = vld [vmem:[%s4] sm:$0xff]
        %v429 = vld [vmem:[%s4 + $0x8] sm:$0xff]
        %v430 = vld [vmem:[%s4 + $0x10] sm:$0xff]
        %v431 = vld [vmem:[%s4 + $0x18] sm:$0xff]
        %433 = vset.pattern.permute.xlu0 0
        %434 = vperm.xlu0 %433, %v428
        %v435 = vpop.permute.xlu0 %434
        %438 = vset.pattern.permute.xlu0 0
        %439 = vperm.xlu0 %438, %v429
        %v440 = vpop.permute.xlu0 %439
        %443 = vset.pattern.permute.xlu0 0
        %444 = vperm.xlu0 %443, %v430
        %v445 = vpop.permute.xlu0 %444
        %448 = vset.pattern.permute.xlu0 0
        %449 = vperm.xlu0 %448, %v431
        %v450 = vpop.permute.xlu0 %449
        %vm452 = vcmask 130048
        %v454 = vsel %vm452, %v424, 0
        %v457 = vsel %vm452, %v425, 0
        %v460 = vsel %vm452, %v426, 0
        %v463 = vsel %vm452, %v427, 0
        %465 = vmatprep.subr.mxu0 0.0
        %466 = vmatpush1.msra.mxu0 %v422
        %467 = vmatprep.subr.mxu0 0.0
        %468 = vmatpush1.msra.mxu0 %v423
        %469 = vmatprep.subr.mxu0 0.0
        %470 = vmatpush1.msra.mxu0 0.0
        %471 = vmatprep.subr.mxu0 0.0
        %472 = vmatpush1.msra.mxu0 0.0
        %473 = vmatprep.subr.mxu0 0.0
        %474 = vmatpush1.msra.mxu0 0.0
        %475 = vmatprep.subr.mxu0 0.0
        %476 = vmatpush1.msra.mxu0 0.0
        %477 = vmatprep.subr.mxu0 0.0
        %478 = vmatpush1.msra.mxu0 0.0
        %479 = vmatprep.subr.mxu0 0.0
        %480 = vmatpush1.msra.mxu0 0.0
        %481 = vmatprep.subr.mxu0 0.0
        %482 = vmatpush1.msra.mxu0 0.0
        %483 = vmatprep.subr.mxu0 0.0
        %484 = vmatpush1.msra.mxu0 0.0
        %485 = vmatprep.subr.mxu0 0.0
        %486 = vmatpush1.msra.mxu0 0.0
        %487 = vmatprep.subr.mxu0 0.0
        %488 = vmatpush1.msra.mxu0 0.0
        %489 = vmatprep.subr.mxu0 0.0
        %490 = vmatpush1.msra.mxu0 0.0
        %491 = vmatprep.subr.mxu0 0.0
        %492 = vmatpush1.msra.mxu0 0.0
        %493 = vmatprep.subr.mxu0 0.0
        %494 = vmatpush1.msra.mxu0 0.0
        %495 = vmatprep.subr.mxu0 0.0
        %496 = vmatpush1.msra.mxu0 0.0
        %497 = vmatprep.subr.mxu0 0.0
        %498 = vmatpush1.msra.mxu0 0.0
        %499 = vmatprep.subr.mxu0 0.0
        %500 = vmatpush1.msra.mxu0 0.0
        %501 = vmatprep.subr.mxu0 0.0
        %502 = vmatpush1.msra.mxu0 0.0
        %503 = vmatprep.subr.mxu0 0.0
        %504 = vmatpush1.msra.mxu0 0.0
        %505 = vmatprep.subr.mxu0 0.0
        %506 = vmatpush1.msra.mxu0 0.0
        %507 = vmatprep.subr.mxu0 0.0
        %508 = vmatpush1.msra.mxu0 0.0
        %509 = vmatprep.subr.mxu0 0.0
        %510 = vmatpush1.msra.mxu0 0.0
        %511 = vmatprep.subr.mxu0 0.0
        %512 = vmatpush1.msra.mxu0 0.0
        %513 = vmatprep.subr.mxu0 0.0
        %514 = vmatpush1.msra.mxu0 0.0
        %515 = vmatprep.subr.mxu0 0.0
        %516 = vmatpush1.msra.mxu0 0.0
        %517 = vmatprep.subr.mxu0 0.0
        %518 = vmatpush1.msra.mxu0 0.0
        %519 = vmatprep.subr.mxu0 0.0
        %520 = vmatpush1.msra.mxu0 0.0
        %521 = vmatprep.subr.mxu0 0.0
        %522 = vmatpush1.msra.mxu0 0.0
        %523 = vmatprep.subr.mxu0 0.0
        %524 = vmatpush1.msra.mxu0 0.0
        %525 = vmatprep.subr.mxu0 0.0
        %526 = vmatpush1.msra.mxu0 0.0
        %527 = vmatprep.subr.mxu0 0.0
        %528 = vmatpush1.msra.mxu0 0.0
        %529 = vmatprep.mubr.f32.mxu0 0.0
        %530 = vmatmul.mubr.f32.gmra.mrb[0].mxu0 %v454
        %v531 = vpop.f32.mrb[0].mxu0
        %v532 = vadd.f32 %v435, %v531
        %v533 = vpop.f32.mrb[0].mxu0
        %534 = vmatprep.mubr.f32.mxu0 0.0
        %535 = vmatmul.mubr.f32.gmra.mrb[0].mxu0 %v457
        %v536 = vpop.f32.mrb[0].mxu0
        %v537 = vadd.f32 %v440, %v536
        %v538 = vpop.f32.mrb[0].mxu0
        %539 = vmatprep.mubr.f32.mxu0 0.0
        %540 = vmatmul.mubr.f32.gmra.mrb[0].mxu0 %v460
        %v541 = vpop.f32.mrb[0].mxu0
        %v542 = vadd.f32 %v445, %v541
        %v543 = vpop.f32.mrb[0].mxu0
        %544 = vmatprep.mubr.f32.mxu0 0.0
        %545 = vmatmul.mubr.f32.gmra.mrb[0].mxu0 %v463
        %v546 = vpop.f32.mrb[0].mxu0
        %v547 = vadd.f32 %v450, %v546
        %v548 = vpop.f32.mrb[0].mxu0
        %549 = vdwg.mxu0
        %vm550 = vcmp.gt.f32.partialorder %v532, 0.0
        %vm551 = vcmp.gt.f32.partialorder %v537, 0.0
        %vm552 = vcmp.gt.f32.partialorder %v542, 0.0
        %vm553 = vcmp.gt.f32.partialorder %v547, 0.0
        %v554 = vmul.f32 %v532, 0.1
        %v555 = vmul.f32 %v537, 0.1
        %v556 = vmul.f32 %v542, 0.1
        %v557 = vmul.f32 %v547, 0.1
        %v558 = vsel %vm550, %v532, %v554
        %v559 = vsel %vm551, %v537, %v555
        %v560 = vsel %vm552, %v542, %v556
        %v561 = vsel %vm553, %v547, %v557
        %v562 = vld [vmem:[%s5] sm:$0xff]
        %v563 = vld [vmem:[%s5 + $0x8] sm:$0xff]
        %v564 = vld [vmem:[%s5 + $0x10] sm:$0xff]
        %v565 = vld [vmem:[%s5 + $0x18] sm:$0xff]
        %v566 = vld [vmem:[%s6] sm:$0xff]
        %v567 = vld [vmem:[%s6 + $0x8] sm:$0xff]
        %v568 = vld [vmem:[%s6 + $0x10] sm:$0xff]
        %v569 = vld [vmem:[%s6 + $0x18] sm:$0xff]
        %571 = vset.pattern.permute.xlu0 0
        %572 = vperm.xlu0 %571, %v566
        %v573 = vpop.permute.xlu0 %572
        %576 = vset.pattern.permute.xlu0 0
        %577 = vperm.xlu0 %576, %v567
        %v578 = vpop.permute.xlu0 %577
        %581 = vset.pattern.permute.xlu0 0
        %582 = vperm.xlu0 %581, %v568
        %v583 = vpop.permute.xlu0 %582
        %586 = vset.pattern.permute.xlu0 0
        %587 = vperm.xlu0 %586, %v569
        %v588 = vpop.permute.xlu0 %587
        %vm590 = vcmask 261120
        %v592 = vsel %vm590, %v562, 0
        %v595 = vsel %vm590, %v563, 0
        %v598 = vsel %vm590, %v564, 0
        %v601 = vsel %vm590, %v565, 0
        %603 = vmatprep.subr.mxu0 0.0
        %604 = vmatpush1.msra.mxu0 %v558
        %605 = vmatprep.subr.mxu0 0.0
        %606 = vmatpush1.msra.mxu0 %v559
        %607 = vmatprep.subr.mxu0 0.0
        %608 = vmatpush1.msra.mxu0 %v560
        %609 = vmatprep.subr.mxu0 0.0
        %610 = vmatpush1.msra.mxu0 %v561
        %611 = vmatprep.subr.mxu0 0.0
        %612 = vmatpush1.msra.mxu0 0.0
        %613 = vmatprep.subr.mxu0 0.0
        %614 = vmatpush1.msra.mxu0 0.0
        %615 = vmatprep.subr.mxu0 0.0
        %616 = vmatpush1.msra.mxu0 0.0
        %617 = vmatprep.subr.mxu0 0.0
        %618 = vmatpush1.msra.mxu0 0.0
        %619 = vmatprep.subr.mxu0 0.0
        %620 = vmatpush1.msra.mxu0 0.0
        %621 = vmatprep.subr.mxu0 0.0
        %622 = vmatpush1.msra.mxu0 0.0
        %623 = vmatprep.subr.mxu0 0.0
        %624 = vmatpush1.msra.mxu0 0.0
        %625 = vmatprep.subr.mxu0 0.0
        %626 = vmatpush1.msra.mxu0 0.0
        %627 = vmatprep.subr.mxu0 0.0
        %628 = vmatpush1.msra.mxu0 0.0
        %629 = vmatprep.subr.mxu0 0.0
        %630 = vmatpush1.msra.mxu0 0.0
        %631 = vmatprep.subr.mxu0 0.0
        %632 = vmatpush1.msra.mxu0 0.0
        %633 = vmatprep.subr.mxu0 0.0
        %634 = vmatpush1.msra.mxu0 0.0
        %635 = vmatprep.subr.mxu0 0.0
        %636 = vmatpush1.msra.mxu0 0.0
        %637 = vmatprep.subr.mxu0 0.0
        %638 = vmatpush1.msra.mxu0 0.0
        %639 = vmatprep.subr.mxu0 0.0
        %640 = vmatpush1.msra.mxu0 0.0
        %641 = vmatprep.subr.mxu0 0.0
        %642 = vmatpush1.msra.mxu0 0.0
        %643 = vmatprep.subr.mxu0 0.0
        %644 = vmatpush1.msra.mxu0 0.0
        %645 = vmatprep.subr.mxu0 0.0
        %646 = vmatpush1.msra.mxu0 0.0
        %647 = vmatprep.subr.mxu0 0.0
        %648 = vmatpush1.msra.mxu0 0.0
        %649 = vmatprep.subr.mxu0 0.0
        %650 = vmatpush1.msra.mxu0 0.0
        %651 = vmatprep.subr.mxu0 0.0
        %652 = vmatpush1.msra.mxu0 0.0
        %653 = vmatprep.subr.mxu0 0.0
        %654 = vmatpush1.msra.mxu0 0.0
        %655 = vmatprep.subr.mxu0 0.0
        %656 = vmatpush1.msra.mxu0 0.0
        %657 = vmatprep.subr.mxu0 0.0
        %658 = vmatpush1.msra.mxu0 0.0
        %659 = vmatprep.subr.mxu0 0.0
        %660 = vmatpush1.msra.mxu0 0.0
        %661 = vmatprep.subr.mxu0 0.0
        %662 = vmatpush1.msra.mxu0 0.0
        %663 = vmatprep.subr.mxu0 0.0
        %664 = vmatpush1.msra.mxu0 0.0
        %665 = vmatprep.subr.mxu0 0.0
        %666 = vmatpush1.msra.mxu0 0.0
        %667 = vmatprep.mubr.f32.mxu0 0.0
        %668 = vmatmul.mubr.f32.gmra.mrb[0].mxu0 %v592
        %v669 = vpop.f32.mrb[0].mxu0
        %v670 = vadd.f32 %v573, %v669
        %v671 = vpop.f32.mrb[0].mxu0
        %672 = vmatprep.mubr.f32.mxu0 0.0
        %673 = vmatmul.mubr.f32.gmra.mrb[0].mxu0 %v595
        %v674 = vpop.f32.mrb[0].mxu0
        %v675 = vadd.f32 %v578, %v674
        %v676 = vpop.f32.mrb[0].mxu0
        %677 = vmatprep.mubr.f32.mxu0 0.0
        %678 = vmatmul.mubr.f32.gmra.mrb[0].mxu0 %v598
        %v679 = vpop.f32.mrb[0].mxu0
        %v680 = vadd.f32 %v583, %v679
        %v681 = vpop.f32.mrb[0].mxu0
        %682 = vmatprep.mubr.f32.mxu0 0.0
        %683 = vmatmul.mubr.f32.gmra.mrb[0].mxu0 %v601
        %v684 = vpop.f32.mrb[0].mxu0
        %v685 = vadd.f32 %v588, %v684
        %v686 = vpop.f32.mrb[0].mxu0
        %687 = vdwg.mxu0
        %vm688 = vcmp.gt.f32.partialorder %v670, 0.0
        %vm689 = vcmp.gt.f32.partialorder %v675, 0.0
        %vm690 = vcmp.gt.f32.partialorder %v680, 0.0
        %vm691 = vcmp.gt.f32.partialorder %v685, 0.0
        %v692 = vmul.f32 %v670, 0.1
        %v693 = vmul.f32 %v675, 0.1
        %v694 = vmul.f32 %v680, 0.1
        %v695 = vmul.f32 %v685, 0.1
        %v696 = vsel %vm688, %v670, %v692
        %v697 = vsel %vm689, %v675, %v693
        %v698 = vsel %vm690, %v680, %v694
        %v699 = vsel %vm691, %v685, %v695
        %v700 = vld [vmem:[%s392] sm:$0x7]
        %v701 = vmul.f32 %v700, 0.44194174
        %v702 = vld [vmem:[%s401] sm:$0xff]
        %v703 = vld [vmem:[%s401 + $0x8] sm:$0xff]
        %v704 = vld [vmem:[%s401 + $0x10] sm:$0xff]
        %v705 = vld [vmem:[%s401 + $0x18] sm:$0xff]
        %v706 = vld [vmem:[%s401 + $0x20] sm:$0xff]
        %v707 = vld [vmem:[%s401 + $0x28] sm:$0xff]
        %v708 = vld [vmem:[%s401 + $0x30] sm:$0xff]
        %v709 = vld [vmem:[%s401 + $0x38] sm:$0xff]
        %v710 = vld [vmem:[%s401 + $0x40] sm:$0xff]
        %v711 = vld [vmem:[%s401 + $0x48] sm:$0xff]
        %v712 = vld [vmem:[%s401 + $0x50] sm:$0xff]
        %v713 = vld [vmem:[%s401 + $0x58] sm:$0xff]
        %v714 = vld [vmem:[%s401 + $0x60] sm:$0xff]
        %v715 = vld [vmem:[%s401 + $0x68] sm:$0xff]
        %v716 = vld [vmem:[%s401 + $0x70] sm:$0xff]
        %v717 = vld [vmem:[%s401 + $0x78] sm:$0xff]
        %v718 = vmul.f32 %v702, 0.44194174
        %v719 = vmul.f32 %v703, 0.44194174
        %v720 = vmul.f32 %v704, 0.44194174
        %v721 = vmul.f32 %v705, 0.44194174
        %v722 = vmul.f32 %v706, 0.44194174
        %v723 = vmul.f32 %v707, 0.44194174
        %v724 = vmul.f32 %v708, 0.44194174
        %v725 = vmul.f32 %v709, 0.44194174
        %v726 = vmul.f32 %v710, 0.44194174
        %v727 = vmul.f32 %v711, 0.44194174
        %v728 = vmul.f32 %v712, 0.44194174
        %v729 = vmul.f32 %v713, 0.44194174
        %v730 = vmul.f32 %v714, 0.44194174
        %v731 = vmul.f32 %v715, 0.44194174
        %v732 = vmul.f32 %v716, 0.44194174
        %v733 = vmul.f32 %v717, 0.44194174
        %735 = vset.pattern.permute.xlu0 0
        %736 = vperm.xlu0 %735, %v718
        %v737 = vpop.permute.xlu0 %736
        %740 = vset.pattern.permute.xlu0 0
        %741 = vperm.xlu0 %740, %v719
        %v742 = vpop.permute.xlu0 %741
        %745 = vset.pattern.permute.xlu0 0
        %746 = vperm.xlu0 %745, %v720
        %v747 = vpop.permute.xlu0 %746
        %750 = vset.pattern.permute.xlu0 0
        %751 = vperm.xlu0 %750, %v721
        %v752 = vpop.permute.xlu0 %751
        %755 = vset.pattern.permute.xlu0 0
        %756 = vperm.xlu0 %755, %v722
        %v757 = vpop.permute.xlu0 %756
        %760 = vset.pattern.permute.xlu0 0
        %761 = vperm.xlu0 %760, %v723
        %v762 = vpop.permute.xlu0 %761
        %765 = vset.pattern.permute.xlu0 0
        %766 = vperm.xlu0 %765, %v724
        %v767 = vpop.permute.xlu0 %766
        %770 = vset.pattern.permute.xlu0 0
        %771 = vperm.xlu0 %770, %v725
        %v772 = vpop.permute.xlu0 %771
        %775 = vset.pattern.permute.xlu0 0
        %776 = vperm.xlu0 %775, %v726
        %v777 = vpop.permute.xlu0 %776
        %780 = vset.pattern.permute.xlu0 0
        %781 = vperm.xlu0 %780, %v727
        %v782 = vpop.permute.xlu0 %781
        %785 = vset.pattern.permute.xlu0 0
        %786 = vperm.xlu0 %785, %v728
        %v787 = vpop.permute.xlu0 %786
        %790 = vset.pattern.permute.xlu0 0
        %791 = vperm.xlu0 %790, %v729
        %v792 = vpop.permute.xlu0 %791
        %795 = vset.pattern.permute.xlu0 0
        %796 = vperm.xlu0 %795, %v730
        %v797 = vpop.permute.xlu0 %796
        %800 = vset.pattern.permute.xlu0 0
        %801 = vperm.xlu0 %800, %v731
        %v802 = vpop.permute.xlu0 %801
        %805 = vset.pattern.permute.xlu0 0
        %806 = vperm.xlu0 %805, %v732
        %v807 = vpop.permute.xlu0 %806
        %810 = vset.pattern.permute.xlu0 0
        %811 = vperm.xlu0 %810, %v733
        %v812 = vpop.permute.xlu0 %811
        %v814 = vlaneseq
        %v815 = vshrl.u32 %v814, 7
        %v816 = vsub.s32 0, %v815
        %v817 = vrot.slane %v701, %v816
        %v818 = vsub.f32 %v737, %v817
        %v819 = vsub.f32 %v742, %v817
        %v820 = vsub.f32 %v747, %v817
        %v821 = vsub.f32 %v752, %v817
        %v822 = vsub.f32 %v757, %v817
        %v823 = vsub.f32 %v762, %v817
        %v824 = vsub.f32 %v767, %v817
        %v825 = vsub.f32 %v772, %v817
        %v826 = vsub.f32 %v777, %v817
        %v827 = vsub.f32 %v782, %v817
        %v828 = vsub.f32 %v787, %v817
        %v829 = vsub.f32 %v792, %v817
        %v830 = vsub.f32 %v797, %v817
        %v831 = vsub.f32 %v802, %v817
        %v832 = vsub.f32 %v807, %v817
        %v833 = vsub.f32 %v812, %v817
        %v834 = vmul.f32 %v818, %v818
        %v835 = vmul.f32 %v819, %v819
        %v836 = vmul.f32 %v820, %v820
        %v837 = vmul.f32 %v821, %v821
        %v838 = vmul.f32 %v822, %v822
        %v839 = vmul.f32 %v823, %v823
        %v840 = vmul.f32 %v824, %v824
        %v841 = vmul.f32 %v825, %v825
        %v842 = vmul.f32 %v826, %v826
        %v843 = vmul.f32 %v827, %v827
        %v844 = vmul.f32 %v828, %v828
        %v845 = vmul.f32 %v829, %v829
        %v846 = vmul.f32 %v830, %v830
        %v847 = vmul.f32 %v831, %v831
        %v848 = vmul.f32 %v832, %v832
        %v849 = vmul.f32 %v833, %v833
        %850 = vset.pattern.permute.xlu0 1
        %851 = vperm.xlu0 %850, %v718
        %v852 = vpop.permute.xlu0 %851
        %854 = vset.pattern.permute.xlu0 1
        %855 = vperm.xlu0 %854, %v719
        %v856 = vpop.permute.xlu0 %855
        %858 = vset.pattern.permute.xlu0 1
        %859 = vperm.xlu0 %858, %v720
        %v860 = vpop.permute.xlu0 %859
        %862 = vset.pattern.permute.xlu0 1
        %863 = vperm.xlu0 %862, %v721
        %v864 = vpop.permute.xlu0 %863
        %866 = vset.pattern.permute.xlu0 1
        %867 = vperm.xlu0 %866, %v722
        %v868 = vpop.permute.xlu0 %867
        %870 = vset.pattern.permute.xlu0 1
        %871 = vperm.xlu0 %870, %v723
        %v872 = vpop.permute.xlu0 %871
        %874 = vset.pattern.permute.xlu0 1
        %875 = vperm.xlu0 %874, %v724
        %v876 = vpop.permute.xlu0 %875
        %878 = vset.pattern.permute.xlu0 1
        %879 = vperm.xlu0 %878, %v725
        %v880 = vpop.permute.xlu0 %879
        %882 = vset.pattern.permute.xlu0 1
        %883 = vperm.xlu0 %882, %v726
        %v884 = vpop.permute.xlu0 %883
        %886 = vset.pattern.permute.xlu0 1
        %887 = vperm.xlu0 %886, %v727
        %v888 = vpop.permute.xlu0 %887
        %890 = vset.pattern.permute.xlu0 1
        %891 = vperm.xlu0 %890, %v728
        %v892 = vpop.permute.xlu0 %891
        %894 = vset.pattern.permute.xlu0 1
        %895 = vperm.xlu0 %894, %v729
        %v896 = vpop.permute.xlu0 %895
        %898 = vset.pattern.permute.xlu0 1
        %899 = vperm.xlu0 %898, %v730
        %v900 = vpop.permute.xlu0 %899
        %902 = vset.pattern.permute.xlu0 1
        %903 = vperm.xlu0 %902, %v731
        %v904 = vpop.permute.xlu0 %903
        %906 = vset.pattern.permute.xlu0 1
        %907 = vperm.xlu0 %906, %v732
        %v908 = vpop.permute.xlu0 %907
        %910 = vset.pattern.permute.xlu0 1
        %911 = vperm.xlu0 %910, %v733
        %v912 = vpop.permute.xlu0 %911
        %v914 = vlaneseq
        %v915 = vshrl.u32 %v914, 7
        %v916 = vsub.s32 1, %v915
        %v917 = vrot.slane %v701, %v916
        %v918 = vsub.f32 %v852, %v917
        %v919 = vsub.f32 %v856, %v917
        %v920 = vsub.f32 %v860, %v917
        %v921 = vsub.f32 %v864, %v917
        %v922 = vsub.f32 %v868, %v917
        %v923 = vsub.f32 %v872, %v917
        %v924 = vsub.f32 %v876, %v917
        %v925 = vsub.f32 %v880, %v917
        %v926 = vsub.f32 %v884, %v917
        %v927 = vsub.f32 %v888, %v917
        %v928 = vsub.f32 %v892, %v917
        %v929 = vsub.f32 %v896, %v917
        %v930 = vsub.f32 %v900, %v917
        %v931 = vsub.f32 %v904, %v917
        %v932 = vsub.f32 %v908, %v917
        %v933 = vsub.f32 %v912, %v917
        %v934 = vmul.f32 %v918, %v918
        %v935 = vmul.f32 %v919, %v919
        %v936 = vmul.f32 %v920, %v920
        %v937 = vmul.f32 %v921, %v921
        %v938 = vmul.f32 %v922, %v922
        %v939 = vmul.f32 %v923, %v923
        %v940 = vmul.f32 %v924, %v924
        %v941 = vmul.f32 %v925, %v925
        %v942 = vmul.f32 %v926, %v926
        %v943 = vmul.f32 %v927, %v927
        %v944 = vmul.f32 %v928, %v928
        %v945 = vmul.f32 %v929, %v929
        %v946 = vmul.f32 %v930, %v930
        %v947 = vmul.f32 %v931, %v931
        %v948 = vmul.f32 %v932, %v932
        %v949 = vmul.f32 %v933, %v933
        %v950 = vadd.f32 %v834, %v934
        %v951 = vadd.f32 %v835, %v935
        %v952 = vadd.f32 %v836, %v936
        %v953 = vadd.f32 %v837, %v937
        %v954 = vadd.f32 %v838, %v938
        %v955 = vadd.f32 %v839, %v939
        %v956 = vadd.f32 %v840, %v940
        %v957 = vadd.f32 %v841, %v941
        %v958 = vadd.f32 %v842, %v942
        %v959 = vadd.f32 %v843, %v943
        %v960 = vadd.f32 %v844, %v944
        %v961 = vadd.f32 %v845, %v945
        %v962 = vadd.f32 %v846, %v946
        %v963 = vadd.f32 %v847, %v947
        %v964 = vadd.f32 %v848, %v948
        %v965 = vadd.f32 %v849, %v949
        %966 = vset.pattern.permute.xlu0 2
        %967 = vperm.xlu0 %966, %v718
        %v968 = vpop.permute.xlu0 %967
        %970 = vset.pattern.permute.xlu0 2
        %971 = vperm.xlu0 %970, %v719
        %v972 = vpop.permute.xlu0 %971
        %974 = vset.pattern.permute.xlu0 2
        %975 = vperm.xlu0 %974, %v720
        %v976 = vpop.permute.xlu0 %975
        %978 = vset.pattern.permute.xlu0 2
        %979 = vperm.xlu0 %978, %v721
        %v980 = vpop.permute.xlu0 %979
        %982 = vset.pattern.permute.xlu0 2
        %983 = vperm.xlu0 %982, %v722
        %v984 = vpop.permute.xlu0 %983
        %986 = vset.pattern.permute.xlu0 2
        %987 = vperm.xlu0 %986, %v723
        %v988 = vpop.permute.xlu0 %987
        %990 = vset.pattern.permute.xlu0 2
        %991 = vperm.xlu0 %990, %v724
        %v992 = vpop.permute.xlu0 %991
        %994 = vset.pattern.permute.xlu0 2
        %995 = vperm.xlu0 %994, %v725
        %v996 = vpop.permute.xlu0 %995
        %998 = vset.pattern.permute.xlu0 2
        %999 = vperm.xlu0 %998, %v726
        %v1000 = vpop.permute.xlu0 %999
        %1002 = vset.pattern.permute.xlu0 2
        %1003 = vperm.xlu0 %1002, %v727
        %v1004 = vpop.permute.xlu0 %1003
        %1006 = vset.pattern.permute.xlu0 2
        %1007 = vperm.xlu0 %1006, %v728
        %v1008 = vpop.permute.xlu0 %1007
        %1010 = vset.pattern.permute.xlu0 2
        %1011 = vperm.xlu0 %1010, %v729
        %v1012 = vpop.permute.xlu0 %1011
        %1014 = vset.pattern.permute.xlu0 2
        %1015 = vperm.xlu0 %1014, %v730
        %v1016 = vpop.permute.xlu0 %1015
        %1018 = vset.pattern.permute.xlu0 2
        %1019 = vperm.xlu0 %1018, %v731
        %v1020 = vpop.permute.xlu0 %1019
        %1022 = vset.pattern.permute.xlu0 2
        %1023 = vperm.xlu0 %1022, %v732
        %v1024 = vpop.permute.xlu0 %1023
        %1026 = vset.pattern.permute.xlu0 2
        %1027 = vperm.xlu0 %1026, %v733
        %v1028 = vpop.permute.xlu0 %1027
        %v1030 = vlaneseq
        %v1031 = vshrl.u32 %v1030, 7
        %v1032 = vsub.s32 2, %v1031
        %v1033 = vrot.slane %v701, %v1032
        %v1034 = vsub.f32 %v968, %v1033
        %v1035 = vsub.f32 %v972, %v1033
        %v1036 = vsub.f32 %v976, %v1033
        %v1037 = vsub.f32 %v980, %v1033
        %v1038 = vsub.f32 %v984, %v1033
        %v1039 = vsub.f32 %v988, %v1033
        %v1040 = vsub.f32 %v992, %v1033
        %v1041 = vsub.f32 %v996, %v1033
        %v1042 = vsub.f32 %v1000, %v1033
        %v1043 = vsub.f32 %v1004, %v1033
        %v1044 = vsub.f32 %v1008, %v1033
        %v1045 = vsub.f32 %v1012, %v1033
        %v1046 = vsub.f32 %v1016, %v1033
        %v1047 = vsub.f32 %v1020, %v1033
        %v1048 = vsub.f32 %v1024, %v1033
        %v1049 = vsub.f32 %v1028, %v1033
        %v1050 = vmul.f32 %v1034, %v1034
        %v1051 = vmul.f32 %v1035, %v1035
        %v1052 = vmul.f32 %v1036, %v1036
        %v1053 = vmul.f32 %v1037, %v1037
        %v1054 = vmul.f32 %v1038, %v1038
        %v1055 = vmul.f32 %v1039, %v1039
        %v1056 = vmul.f32 %v1040, %v1040
        %v1057 = vmul.f32 %v1041, %v1041
        %v1058 = vmul.f32 %v1042, %v1042
        %v1059 = vmul.f32 %v1043, %v1043
        %v1060 = vmul.f32 %v1044, %v1044
        %v1061 = vmul.f32 %v1045, %v1045
        %v1062 = vmul.f32 %v1046, %v1046
        %v1063 = vmul.f32 %v1047, %v1047
        %v1064 = vmul.f32 %v1048, %v1048
        %v1065 = vmul.f32 %v1049, %v1049
        %v1066 = vadd.f32 %v950, %v1050
        %v1067 = vadd.f32 %v951, %v1051
        %v1068 = vadd.f32 %v952, %v1052
        %v1069 = vadd.f32 %v953, %v1053
        %v1070 = vadd.f32 %v954, %v1054
        %v1071 = vadd.f32 %v955, %v1055
        %v1072 = vadd.f32 %v956, %v1056
        %v1073 = vadd.f32 %v957, %v1057
        %v1074 = vadd.f32 %v958, %v1058
        %v1075 = vadd.f32 %v959, %v1059
        %v1076 = vadd.f32 %v960, %v1060
        %v1077 = vadd.f32 %v961, %v1061
        %v1078 = vadd.f32 %v962, %v1062
        %v1079 = vadd.f32 %v963, %v1063
        %v1080 = vadd.f32 %v964, %v1064
        %v1081 = vadd.f32 %v965, %v1065
        %v1082 = vsub.f32 0.0, %v1066
        %v1083 = vsub.f32 0.0, %v1067
        %v1084 = vsub.f32 0.0, %v1068
        %v1085 = vsub.f32 0.0, %v1069
        %v1086 = vsub.f32 0.0, %v1070
        %v1087 = vsub.f32 0.0, %v1071
        %v1088 = vsub.f32 0.0, %v1072
        %v1089 = vsub.f32 0.0, %v1073
        %v1090 = vsub.f32 0.0, %v1074
        %v1091 = vsub.f32 0.0, %v1075
        %v1092 = vsub.f32 0.0, %v1076
        %v1093 = vsub.f32 0.0, %v1077
        %v1094 = vsub.f32 0.0, %v1078
        %v1095 = vsub.f32 0.0, %v1079
        %v1096 = vsub.f32 0.0, %v1080
        %v1097 = vsub.f32 0.0, %v1081
        %v1098 = vmul.f32 %v1082, 1.442695
        %v1099 = vpow.pop %v1098
        %v1100 = vmul.f32 %v1083, 1.442695
        %v1101 = vpow.pop %v1100
        %v1102 = vmul.f32 %v1084, 1.442695
        %v1103 = vpow.pop %v1102
        %v1104 = vmul.f32 %v1085, 1.442695
        %v1105 = vpow.pop %v1104
        %v1106 = vmul.f32 %v1086, 1.442695
        %v1107 = vpow.pop %v1106
        %v1108 = vmul.f32 %v1087, 1.442695
        %v1109 = vpow.pop %v1108
        %v1110 = vmul.f32 %v1088, 1.442695
        %v1111 = vpow.pop %v1110
        %v1112 = vmul.f32 %v1089, 1.442695
        %v1113 = vpow.pop %v1112
        %v1114 = vmul.f32 %v1090, 1.442695
        %v1115 = vpow.pop %v1114
        %v1116 = vmul.f32 %v1091, 1.442695
        %v1117 = vpow.pop %v1116
        %v1118 = vmul.f32 %v1092, 1.442695
        %v1119 = vpow.pop %v1118
        %v1120 = vmul.f32 %v1093, 1.442695
        %v1121 = vpow.pop %v1120
        %v1122 = vmul.f32 %v1094, 1.442695
        %v1123 = vpow.pop %v1122
        %v1124 = vmul.f32 %v1095, 1.442695
        %v1125 = vpow.pop %v1124
        %v1126 = vmul.f32 %v1096, 1.442695
        %v1127 = vpow.pop %v1126
        %v1128 = vmul.f32 %v1097, 1.442695
        %v1129 = vpow.pop %v1128
        %s1130 = scalar_lea.vmem [#allocation2], 80
        %v1131 = vld [vmem:[%s1130] sm:$0xff]
        %v1132 = vld [vmem:[%s1130 + $0x8] sm:$0xff]
        %v1133 = vld [vmem:[%s1130 + $0x10] sm:$0xff]
        %v1134 = vld [vmem:[%s1130 + $0x18] sm:$0xff]
        %v1135 = vld [vmem:[%s1130 + $0x20] sm:$0x1]
        %1136 = vmatprep.subr.mxu0 0.0
        %1137 = vmatpush1.msra.mxu0 %v1099
        %1138 = vmatprep.subr.mxu0 0.0
        %1139 = vmatpush1.msra.mxu0 %v1101
        %1140 = vmatprep.subr.mxu0 0.0
        %1141 = vmatpush1.msra.mxu0 %v1103
        %1142 = vmatprep.subr.mxu0 0.0
        %1143 = vmatpush1.msra.mxu0 %v1105
        %1144 = vmatprep.subr.mxu0 0.0
        %1145 = vmatpush1.msra.mxu0 %v1107
        %1146 = vmatprep.subr.mxu0 0.0
        %1147 = vmatpush1.msra.mxu0 %v1109
        %1148 = vmatprep.subr.mxu0 0.0
        %1149 = vmatpush1.msra.mxu0 %v1111
        %1150 = vmatprep.subr.mxu0 0.0
        %1151 = vmatpush1.msra.mxu0 %v1113
        %1152 = vmatprep.subr.mxu0 0.0
        %1153 = vmatpush1.msra.mxu0 %v1115
        %1154 = vmatprep.subr.mxu0 0.0
        %1155 = vmatpush1.msra.mxu0 %v1117
        %1156 = vmatprep.subr.mxu0 0.0
        %1157 = vmatpush1.msra.mxu0 %v1119
        %1158 = vmatprep.subr.mxu0 0.0
        %1159 = vmatpush1.msra.mxu0 %v1121
        %1160 = vmatprep.subr.mxu0 0.0
        %1161 = vmatpush1.msra.mxu0 %v1123
        %1162 = vmatprep.subr.mxu0 0.0
        %1163 = vmatpush1.msra.mxu0 %v1125
        %1164 = vmatprep.subr.mxu0 0.0
        %1165 = vmatpush1.msra.mxu0 %v1127
        %1166 = vmatprep.subr.mxu0 0.0
        %1167 = vmatpush1.msra.mxu0 %v1129
        %1168 = vmatprep.subr.mxu0 0.0
        %1169 = vmatpush1.msra.mxu0 0.0
        %1170 = vmatprep.subr.mxu0 0.0
        %1171 = vmatpush1.msra.mxu0 0.0
        %1172 = vmatprep.subr.mxu0 0.0
        %1173 = vmatpush1.msra.mxu0 0.0
        %1174 = vmatprep.subr.mxu0 0.0
        %1175 = vmatpush1.msra.mxu0 0.0
        %1176 = vmatprep.subr.mxu0 0.0
        %1177 = vmatpush1.msra.mxu0 0.0
        %1178 = vmatprep.subr.mxu0 0.0
        %1179 = vmatpush1.msra.mxu0 0.0
        %1180 = vmatprep.subr.mxu0 0.0
        %1181 = vmatpush1.msra.mxu0 0.0
        %1182 = vmatprep.subr.mxu0 0.0
        %1183 = vmatpush1.msra.mxu0 0.0
        %1184 = vmatprep.subr.mxu0 0.0
        %1185 = vmatpush1.msra.mxu0 0.0
        %1186 = vmatprep.subr.mxu0 0.0
        %1187 = vmatpush1.msra.mxu0 0.0
        %1188 = vmatprep.subr.mxu0 0.0
        %1189 = vmatpush1.msra.mxu0 0.0
        %1190 = vmatprep.subr.mxu0 0.0
        %1191 = vmatpush1.msra.mxu0 0.0
        %1192 = vmatprep.subr.mxu0 0.0
        %1193 = vmatpush1.msra.mxu0 0.0
        %1194 = vmatprep.subr.mxu0 0.0
        %1195 = vmatpush1.msra.mxu0 0.0
        %1196 = vmatprep.subr.mxu0 0.0
        %1197 = vmatpush1.msra.mxu0 0.0
        %1198 = vmatprep.subr.mxu0 0.0
        %1199 = vmatpush1.msra.mxu0 0.0
        %1200 = vmatprep.mubr.f32.mxu0 0.0
        %1201 = vmatmul.mubr.f32.gmra.mrb[0].mxu0 %v696
        %v1202 = vpop.f32.mrb[0].mxu0
        %v1203 = vadd.f32 0.0, %v1202
        %v1204 = vpop.f32.mrb[0].mxu0
        %1205 = vmatprep.mubr.f32.mxu0 0.0
        %1206 = vmatmul.mubr.f32.gmra.mrb[0].mxu0 %v697
        %v1207 = vpop.f32.mrb[0].mxu0
        %v1208 = vadd.f32 0.0, %v1207
        %v1209 = vpop.f32.mrb[0].mxu0
        %1210 = vmatprep.mubr.f32.mxu0 0.0
        %1211 = vmatmul.mubr.f32.gmra.mrb[0].mxu0 %v698
        %v1212 = vpop.f32.mrb[0].mxu0
        %v1213 = vadd.f32 0.0, %v1212
        %v1214 = vpop.f32.mrb[0].mxu0
        %1215 = vmatprep.mubr.f32.mxu0 0.0
        %1216 = vmatmul.mubr.f32.gmra.mrb[0].mxu0 %v699
        %v1217 = vpop.f32.mrb[0].mxu0
        %v1218 = vadd.f32 0.0, %v1217
        %v1219 = vpop.f32.mrb[0].mxu0
        %1220 = vmatprep.mubr.f32.mxu0 0.0
        %1221 = vmatmul.mubr.f32.gmra.mrb[0].mxu0 1.0
        %v1222 = vpop.f32.mrb[0].mxu0
        %v1223 = vadd.f32 0.0, %v1222
        %v1224 = vpop.f32.mrb[0].mxu0
        %1225 = vdwg.mxu0
        %v1226 = vadd.f32 %v1131, %v1203
        %v1227 = vadd.f32 %v1132, %v1208
        %v1228 = vadd.f32 %v1133, %v1213
        %v1229 = vadd.f32 %v1134, %v1218
        %v1230 = vadd.f32 %v1135, %v1223
        %1231 = vst [vmem:[%s1130] sm:$0xff] %v1226
        %1232 = vst [vmem:[%s1130 + $0x8] sm:$0xff] %v1227
        %1233 = vst [vmem:[%s1130 + $0x10] sm:$0xff] %v1228
        %1234 = vst [vmem:[%s1130 + $0x18] sm:$0xff] %v1229
        %1235 = vst [vmem:[%s1130 + $0x20] sm:$0x1] %v1230
        %v1236 = vmul.f32 %v1099, %v1099
        %v1237 = vmul.f32 %v1101, %v1101
        %v1238 = vmul.f32 %v1103, %v1103
        %v1239 = vmul.f32 %v1105, %v1105
        %v1240 = vmul.f32 %v1107, %v1107
        %v1241 = vmul.f32 %v1109, %v1109
        %v1242 = vmul.f32 %v1111, %v1111
        %v1243 = vmul.f32 %v1113, %v1113
        %v1244 = vmul.f32 %v1115, %v1115
        %v1245 = vmul.f32 %v1117, %v1117
        %v1246 = vmul.f32 %v1119, %v1119
        %v1247 = vmul.f32 %v1121, %v1121
        %v1248 = vmul.f32 %v1123, %v1123
        %v1249 = vmul.f32 %v1125, %v1125
        %v1250 = vmul.f32 %v1127, %v1127
        %v1251 = vmul.f32 %v1129, %v1129
        %v1252 = vmul.f32 %v1236, %v1236
        %v1253 = vmul.f32 %v1237, %v1237
        %v1254 = vmul.f32 %v1238, %v1238
        %v1255 = vmul.f32 %v1239, %v1239
        %v1256 = vmul.f32 %v1240, %v1240
        %v1257 = vmul.f32 %v1241, %v1241
        %v1258 = vmul.f32 %v1242, %v1242
        %v1259 = vmul.f32 %v1243, %v1243
        %v1260 = vmul.f32 %v1244, %v1244
        %v1261 = vmul.f32 %v1245, %v1245
        %v1262 = vmul.f32 %v1246, %v1246
        %v1263 = vmul.f32 %v1247, %v1247
        %v1264 = vmul.f32 %v1248, %v1248
        %v1265 = vmul.f32 %v1249, %v1249
        %v1266 = vmul.f32 %v1250, %v1250
        %v1267 = vmul.f32 %v1251, %v1251
        %s1268 = scalar_lea.vmem [#allocation2], 40
        %v1269 = vld [vmem:[%s1268] sm:$0xff]
        %v1270 = vld [vmem:[%s1268 + $0x8] sm:$0xff]
        %v1271 = vld [vmem:[%s1268 + $0x10] sm:$0xff]
        %v1272 = vld [vmem:[%s1268 + $0x18] sm:$0xff]
        %v1273 = vld [vmem:[%s1268 + $0x20] sm:$0x1]
        %1274 = vmatprep.subr.mxu0 0.0
        %1275 = vmatpush1.msra.mxu0 %v1252
        %1276 = vmatprep.subr.mxu0 0.0
        %1277 = vmatpush1.msra.mxu0 %v1253
        %1278 = vmatprep.subr.mxu0 0.0
        %1279 = vmatpush1.msra.mxu0 %v1254
        %1280 = vmatprep.subr.mxu0 0.0
        %1281 = vmatpush1.msra.mxu0 %v1255
        %1282 = vmatprep.subr.mxu0 0.0
        %1283 = vmatpush1.msra.mxu0 %v1256
        %1284 = vmatprep.subr.mxu0 0.0
        %1285 = vmatpush1.msra.mxu0 %v1257
        %1286 = vmatprep.subr.mxu0 0.0
        %1287 = vmatpush1.msra.mxu0 %v1258
        %1288 = vmatprep.subr.mxu0 0.0
        %1289 = vmatpush1.msra.mxu0 %v1259
        %1290 = vmatprep.subr.mxu0 0.0
        %1291 = vmatpush1.msra.mxu0 %v1260
        %1292 = vmatprep.subr.mxu0 0.0
        %1293 = vmatpush1.msra.mxu0 %v1261
        %1294 = vmatprep.subr.mxu0 0.0
        %1295 = vmatpush1.msra.mxu0 %v1262
        %1296 = vmatprep.subr.mxu0 0.0
        %1297 = vmatpush1.msra.mxu0 %v1263
        %1298 = vmatprep.subr.mxu0 0.0
        %1299 = vmatpush1.msra.mxu0 %v1264
        %1300 = vmatprep.subr.mxu0 0.0
        %1301 = vmatpush1.msra.mxu0 %v1265
        %1302 = vmatprep.subr.mxu0 0.0
        %1303 = vmatpush1.msra.mxu0 %v1266
        %1304 = vmatprep.subr.mxu0 0.0
        %1305 = vmatpush1.msra.mxu0 %v1267
        %1306 = vmatprep.subr.mxu0 0.0
        %1307 = vmatpush1.msra.mxu0 0.0
        %1308 = vmatprep.subr.mxu0 0.0
        %1309 = vmatpush1.msra.mxu0 0.0
        %1310 = vmatprep.subr.mxu0 0.0
        %1311 = vmatpush1.msra.mxu0 0.0
        %1312 = vmatprep.subr.mxu0 0.0
        %1313 = vmatpush1.msra.mxu0 0.0
        %1314 = vmatprep.subr.mxu0 0.0
        %1315 = vmatpush1.msra.mxu0 0.0
        %1316 = vmatprep.subr.mxu0 0.0
        %1317 = vmatpush1.msra.mxu0 0.0
        %1318 = vmatprep.subr.mxu0 0.0
        %1319 = vmatpush1.msra.mxu0 0.0
        %1320 = vmatprep.subr.mxu0 0.0
        %1321 = vmatpush1.msra.mxu0 0.0
        %1322 = vmatprep.subr.mxu0 0.0
        %1323 = vmatpush1.msra.mxu0 0.0
        %1324 = vmatprep.subr.mxu0 0.0
        %1325 = vmatpush1.msra.mxu0 0.0
        %1326 = vmatprep.subr.mxu0 0.0
        %1327 = vmatpush1.msra.mxu0 0.0
        %1328 = vmatprep.subr.mxu0 0.0
        %1329 = vmatpush1.msra.mxu0 0.0
        %1330 = vmatprep.subr.mxu0 0.0
        %1331 = vmatpush1.msra.mxu0 0.0
        %1332 = vmatprep.subr.mxu0 0.0
        %1333 = vmatpush1.msra.mxu0 0.0
        %1334 = vmatprep.subr.mxu0 0.0
        %1335 = vmatpush1.msra.mxu0 0.0
        %1336 = vmatprep.subr.mxu0 0.0
        %1337 = vmatpush1.msra.mxu0 0.0
        %1338 = vmatprep.mubr.f32.mxu0 0.0
        %1339 = vmatmul.mubr.f32.gmra.mrb[0].mxu0 %v696
        %v1340 = vpop.f32.mrb[0].mxu0
        %v1341 = vadd.f32 0.0, %v1340
        %v1342 = vpop.f32.mrb[0].mxu0
        %1343 = vmatprep.mubr.f32.mxu0 0.0
        %1344 = vmatmul.mubr.f32.gmra.mrb[0].mxu0 %v697
        %v1345 = vpop.f32.mrb[0].mxu0
        %v1346 = vadd.f32 0.0, %v1345
        %v1347 = vpop.f32.mrb[0].mxu0
        %1348 = vmatprep.mubr.f32.mxu0 0.0
        %1349 = vmatmul.mubr.f32.gmra.mrb[0].mxu0 %v698
        %v1350 = vpop.f32.mrb[0].mxu0
        %v1351 = vadd.f32 0.0, %v1350
        %v1352 = vpop.f32.mrb[0].mxu0
        %1353 = vmatprep.mubr.f32.mxu0 0.0
        %1354 = vmatmul.mubr.f32.gmra.mrb[0].mxu0 %v699
        %v1355 = vpop.f32.mrb[0].mxu0
        %v1356 = vadd.f32 0.0, %v1355
        %v1357 = vpop.f32.mrb[0].mxu0
        %1358 = vmatprep.mubr.f32.mxu0 0.0
        %1359 = vmatmul.mubr.f32.gmra.mrb[0].mxu0 1.0
        %v1360 = vpop.f32.mrb[0].mxu0
        %v1361 = vadd.f32 0.0, %v1360
        %v1362 = vpop.f32.mrb[0].mxu0
        %1363 = vdwg.mxu0
        %v1364 = vadd.f32 %v1269, %v1341
        %v1365 = vadd.f32 %v1270, %v1346
        %v1366 = vadd.f32 %v1271, %v1351
        %v1367 = vadd.f32 %v1272, %v1356
        %v1368 = vadd.f32 %v1273, %v1361
        %1369 = vst [vmem:[%s1268] sm:$0xff] %v1364
        %1370 = vst [vmem:[%s1268 + $0x8] sm:$0xff] %v1365
        %1371 = vst [vmem:[%s1268 + $0x10] sm:$0xff] %v1366
        %1372 = vst [vmem:[%s1268 + $0x18] sm:$0xff] %v1367
        %1373 = vst [vmem:[%s1268 + $0x20] sm:$0x1] %v1368
        %v1374 = vmul.f32 %v1252, %v1252
        %v1375 = vmul.f32 %v1253, %v1253
        %v1376 = vmul.f32 %v1254, %v1254
        %v1377 = vmul.f32 %v1255, %v1255
        %v1378 = vmul.f32 %v1256, %v1256
        %v1379 = vmul.f32 %v1257, %v1257
        %v1380 = vmul.f32 %v1258, %v1258
        %v1381 = vmul.f32 %v1259, %v1259
        %v1382 = vmul.f32 %v1260, %v1260
        %v1383 = vmul.f32 %v1261, %v1261
        %v1384 = vmul.f32 %v1262, %v1262
        %v1385 = vmul.f32 %v1263, %v1263
        %v1386 = vmul.f32 %v1264, %v1264
        %v1387 = vmul.f32 %v1265, %v1265
        %v1388 = vmul.f32 %v1266, %v1266
        %v1389 = vmul.f32 %v1267, %v1267
        %v1390 = vmul.f32 %v1374, %v1374
        %v1391 = vmul.f32 %v1375, %v1375
        %v1392 = vmul.f32 %v1376, %v1376
        %v1393 = vmul.f32 %v1377, %v1377
        %v1394 = vmul.f32 %v1378, %v1378
        %v1395 = vmul.f32 %v1379, %v1379
        %v1396 = vmul.f32 %v1380, %v1380
        %v1397 = vmul.f32 %v1381, %v1381
        %v1398 = vmul.f32 %v1382, %v1382
        %v1399 = vmul.f32 %v1383, %v1383
        %v1400 = vmul.f32 %v1384, %v1384
        %v1401 = vmul.f32 %v1385, %v1385
        %v1402 = vmul.f32 %v1386, %v1386
        %v1403 = vmul.f32 %v1387, %v1387
        %v1404 = vmul.f32 %v1388, %v1388
        %v1405 = vmul.f32 %v1389, %v1389
        %v1406 = vld [vmem:[#allocation2] sm:$0xff]
        %v1407 = vld [vmem:[#allocation2 + $0x8] sm:$0xff]
        %v1408 = vld [vmem:[#allocation2 + $0x10] sm:$0xff]
        %v1409 = vld [vmem:[#allocation2 + $0x18] sm:$0xff]
        %v1410 = vld [vmem:[#allocation2 + $0x20] sm:$0x1]
        %1411 = vmatprep.subr.mxu0 0.0
        %1412 = vmatpush1.msra.mxu0 %v1390
        %1413 = vmatprep.subr.mxu0 0.0
        %1414 = vmatpush1.msra.mxu0 %v1391
        %1415 = vmatprep.subr.mxu0 0.0
        %1416 = vmatpush1.msra.mxu0 %v1392
        %1417 = vmatprep.subr.mxu0 0.0
        %1418 = vmatpush1.msra.mxu0 %v1393
        %1419 = vmatprep.subr.mxu0 0.0
        %1420 = vmatpush1.msra.mxu0 %v1394
        %1421 = vmatprep.subr.mxu0 0.0
        %1422 = vmatpush1.msra.mxu0 %v1395
        %1423 = vmatprep.subr.mxu0 0.0
        %1424 = vmatpush1.msra.mxu0 %v1396
        %1425 = vmatprep.subr.mxu0 0.0
        %1426 = vmatpush1.msra.mxu0 %v1397
        %1427 = vmatprep.subr.mxu0 0.0
        %1428 = vmatpush1.msra.mxu0 %v1398
        %1429 = vmatprep.subr.mxu0 0.0
        %1430 = vmatpush1.msra.mxu0 %v1399
        %1431 = vmatprep.subr.mxu0 0.0
        %1432 = vmatpush1.msra.mxu0 %v1400
        %1433 = vmatprep.subr.mxu0 0.0
        %1434 = vmatpush1.msra.mxu0 %v1401
        %1435 = vmatprep.subr.mxu0 0.0
        %1436 = vmatpush1.msra.mxu0 %v1402
        %1437 = vmatprep.subr.mxu0 0.0
        %1438 = vmatpush1.msra.mxu0 %v1403
        %1439 = vmatprep.subr.mxu0 0.0
        %1440 = vmatpush1.msra.mxu0 %v1404
        %1441 = vmatprep.subr.mxu0 0.0
        %1442 = vmatpush1.msra.mxu0 %v1405
        %1443 = vmatprep.subr.mxu0 0.0
        %1444 = vmatpush1.msra.mxu0 0.0
        %1445 = vmatprep.subr.mxu0 0.0
        %1446 = vmatpush1.msra.mxu0 0.0
        %1447 = vmatprep.subr.mxu0 0.0
        %1448 = vmatpush1.msra.mxu0 0.0
        %1449 = vmatprep.subr.mxu0 0.0
        %1450 = vmatpush1.msra.mxu0 0.0
        %1451 = vmatprep.subr.mxu0 0.0
        %1452 = vmatpush1.msra.mxu0 0.0
        %1453 = vmatprep.subr.mxu0 0.0
        %1454 = vmatpush1.msra.mxu0 0.0
        %1455 = vmatprep.subr.mxu0 0.0
        %1456 = vmatpush1.msra.mxu0 0.0
        %1457 = vmatprep.subr.mxu0 0.0
        %1458 = vmatpush1.msra.mxu0 0.0
        %1459 = vmatprep.subr.mxu0 0.0
        %1460 = vmatpush1.msra.mxu0 0.0
        %1461 = vmatprep.subr.mxu0 0.0
        %1462 = vmatpush1.msra.mxu0 0.0
        %1463 = vmatprep.subr.mxu0 0.0
        %1464 = vmatpush1.msra.mxu0 0.0
        %1465 = vmatprep.subr.mxu0 0.0
        %1466 = vmatpush1.msra.mxu0 0.0
        %1467 = vmatprep.subr.mxu0 0.0
        %1468 = vmatpush1.msra.mxu0 0.0
        %1469 = vmatprep.subr.mxu0 0.0
        %1470 = vmatpush1.msra.mxu0 0.0
        %1471 = vmatprep.subr.mxu0 0.0
        %1472 = vmatpush1.msra.mxu0 0.0
        %1473 = vmatprep.subr.mxu0 0.0
        %1474 = vmatpush1.msra.mxu0 0.0
        %1475 = vmatprep.mubr.f32.mxu0 0.0
        %1476 = vmatmul.mubr.f32.gmra.mrb[0].mxu0 %v696
        %v1477 = vpop.f32.mrb[0].mxu0
        %v1478 = vadd.f32 0.0, %v1477
        %v1479 = vpop.f32.mrb[0].mxu0
        %1480 = vmatprep.mubr.f32.mxu0 0.0
        %1481 = vmatmul.mubr.f32.gmra.mrb[0].mxu0 %v697
        %v1482 = vpop.f32.mrb[0].mxu0
        %v1483 = vadd.f32 0.0, %v1482
        %v1484 = vpop.f32.mrb[0].mxu0
        %1485 = vmatprep.mubr.f32.mxu0 0.0
        %1486 = vmatmul.mubr.f32.gmra.mrb[0].mxu0 %v698
        %v1487 = vpop.f32.mrb[0].mxu0
        %v1488 = vadd.f32 0.0, %v1487
        %v1489 = vpop.f32.mrb[0].mxu0
        %1490 = vmatprep.mubr.f32.mxu0 0.0
        %1491 = vmatmul.mubr.f32.gmra.mrb[0].mxu0 %v699
        %v1492 = vpop.f32.mrb[0].mxu0
        %v1493 = vadd.f32 0.0, %v1492
        %v1494 = vpop.f32.mrb[0].mxu0
        %1495 = vmatprep.mubr.f32.mxu0 0.0
        %1496 = vmatmul.mubr.f32.gmra.mrb[0].mxu0 1.0
        %v1497 = vpop.f32.mrb[0].mxu0
        %v1498 = vadd.f32 0.0, %v1497
        %v1499 = vpop.f32.mrb[0].mxu0
        %1500 = vdwg.mxu0
        %v1501 = vadd.f32 %v1406, %v1478
        %v1502 = vadd.f32 %v1407, %v1483
        %v1503 = vadd.f32 %v1408, %v1488
        %v1504 = vadd.f32 %v1409, %v1493
        %v1505 = vadd.f32 %v1410, %v1498
        %1506 = vst [vmem:[#allocation2] sm:$0xff] %v1501
        %1507 = vst [vmem:[#allocation2 + $0x8] sm:$0xff] %v1502
        %1508 = vst [vmem:[#allocation2 + $0x10] sm:$0xff] %v1503
        %1509 = vst [vmem:[#allocation2 + $0x18] sm:$0xff] %v1504
        %1510 = vst [vmem:[#allocation2 + $0x20] sm:$0x1] %v1505
        %p1511 = scmp.eq.s32.totalorder %s25, 2
        // Predicated region
        $region91: #{geo_simple_feature_net_forward.7} parent=81 // pred_check
          %p1512 = pneg %p1511
        $region92: #{geo_simple_feature_net_forward.7} parent=81 // pred_check_branch
          %1514 = sbr.rel (%p1512) target = $region94
        $region93: #{geo_simple_feature_net_forward.7} parent=81 // pred_region
          %v1515 = vld [vmem:[#allocation2] sm:$0xff]
          %v1516 = vld [vmem:[#allocation2 + $0x8] sm:$0xff]
          %v1517 = vld [vmem:[#allocation2 + $0x10] sm:$0xff]
          %v1518 = vld [vmem:[#allocation2 + $0x18] sm:$0xff]
          %v1519 = vld [vmem:[#allocation2 + $0x20] sm:$0x1]
          %v1520 = vmax.f32 %v1519, 1e-20
          %v1521 = vrcp.pop %v1520
          %v1522 = vmul.f32 %v1520, %v1521
          %v1523 = vsub.f32 2.0, %v1522
          %v1524 = vmul.f32 %v1521, %v1523
          %v1525 = vlaneseq
          %v1526 = vshrl.u32 %v1525, 7
          %v1527 = vsub.s32 0, %v1526
          %v1528 = vrot.slane %v1524, %v1527
          %v1529 = vmul.f32 %v1515, %v1528
          %v1530 = vmul.f32 %v1516, %v1528
          %v1531 = vmul.f32 %v1517, %v1528
          %v1532 = vmul.f32 %v1518, %v1528
          %v1533 = vmul.f32 %v1529, 0.33
          %v1534 = vmul.f32 %v1530, 0.33
          %v1535 = vmul.f32 %v1531, 0.33
          %v1536 = vmul.f32 %v1532, 0.33
          %v1537 = vadd.f32 %v1533, 0.0
          %v1538 = vadd.f32 %v1534, 0.0
          %v1539 = vadd.f32 %v1535, 0.0
          %v1540 = vadd.f32 %v1536, 0.0
          %v1541 = vld [vmem:[%s1268] sm:$0xff]
          %v1542 = vld [vmem:[%s1268 + $0x8] sm:$0xff]
          %v1543 = vld [vmem:[%s1268 + $0x10] sm:$0xff]
          %v1544 = vld [vmem:[%s1268 + $0x18] sm:$0xff]
          %v1545 = vld [vmem:[%s1268 + $0x20] sm:$0x1]
          %v1546 = vmax.f32 %v1545, 1e-20
          %v1547 = vrcp.pop %v1546
          %v1548 = vmul.f32 %v1546, %v1547
          %v1549 = vsub.f32 2.0, %v1548
          %v1550 = vmul.f32 %v1547, %v1549
          %v1551 = vlaneseq
          %v1552 = vshrl.u32 %v1551, 7
          %v1553 = vsub.s32 0, %v1552
          %v1554 = vrot.slane %v1550, %v1553
          %v1555 = vmul.f32 %v1541, %v1554
          %v1556 = vmul.f32 %v1542, %v1554
          %v1557 = vmul.f32 %v1543, %v1554
          %v1558 = vmul.f32 %v1544, %v1554
          %v1559 = vmul.f32 %v1555, 0.33
          %v1560 = vmul.f32 %v1556, 0.33
          %v1561 = vmul.f32 %v1557, 0.33
          %v1562 = vmul.f32 %v1558, 0.33
          %v1563 = vadd.f32 %v1537, %v1559
          %v1564 = vadd.f32 %v1538, %v1560
          %v1565 = vadd.f32 %v1539, %v1561
          %v1566 = vadd.f32 %v1540, %v1562
          %v1567 = vld [vmem:[%s1130] sm:$0xff]
          %v1568 = vld [vmem:[%s1130 + $0x8] sm:$0xff]
          %v1569 = vld [vmem:[%s1130 + $0x10] sm:$0xff]
          %v1570 = vld [vmem:[%s1130 + $0x18] sm:$0xff]
          %v1571 = vld [vmem:[%s1130 + $0x20] sm:$0x1]
          %v1572 = vmax.f32 %v1571, 1e-20
          %v1573 = vrcp.pop %v1572
          %v1574 = vmul.f32 %v1572, %v1573
          %v1575 = vsub.f32 2.0, %v1574
          %v1576 = vmul.f32 %v1573, %v1575
          %v1577 = vlaneseq
          %v1578 = vshrl.u32 %v1577, 7
          %v1579 = vsub.s32 0, %v1578
          %v1580 = vrot.slane %v1576, %v1579
          %v1581 = vmul.f32 %v1567, %v1580
          %v1582 = vmul.f32 %v1568, %v1580
          %v1583 = vmul.f32 %v1569, %v1580
          %v1584 = vmul.f32 %v1570, %v1580
          %v1585 = vmul.f32 %v1581, 0.33
          %v1586 = vmul.f32 %v1582, 0.33
          %v1587 = vmul.f32 %v1583, 0.33
          %v1588 = vmul.f32 %v1584, 0.33
          %v1589 = vadd.f32 %v1563, %v1585
          %v1590 = vadd.f32 %v1564, %v1586
          %v1591 = vadd.f32 %v1565, %v1587
          %v1592 = vadd.f32 %v1566, %v1588
          %1593 = vst [vmem:[%s384] sm:$0xff] %v1589
          %1594 = vst [vmem:[%s384 + $0x8] sm:$0xff] %v1590
          %1595 = vst [vmem:[%s384 + $0x10] sm:$0xff] %v1591
          %1596 = vst [vmem:[%s384 + $0x18] sm:$0xff] %v1592
        $region94: #{geo_simple_feature_net_forward.7} parent=81 // pred_fallthru
          _
        %s1597 = sand.u32 %s215, 1
        %s1598 = sand.u32 %s215, 1
        %s1599 = smul.addr %s1598, 32
        %s1600 = scalar_lea.vmem [#allocation4], %s1599
        // Predicated region
        $region95: #{geo_simple_feature_net_forward.7} parent=81 // pred_check
          %p1601 = pneg %p225
        $region96: #{geo_simple_feature_net_forward.7} parent=81 // pred_check_branch
          %1603 = sbr.rel (%p1601) target = $region98
        $region97: #{geo_simple_feature_net_forward.7} parent=81 // pred_region
          %s1604 = smul.addr %s23, 12
          %s1605 = sadd.s32 %s24, %s1604
          %s1606 = smul.addr %s1605, 8
          %s1607 = scalar_lea.vmem %s7, %s1606
          // Predicated region
          $region99: #{geo_simple_feature_net_forward.7} parent=97 // pred_check
            _
          $region100: #{geo_simple_feature_net_forward.7} parent=97 // pred_check_branch
            %1609 = sbr.rel (0) target = $region102
          $region101: #{geo_simple_feature_net_forward.7} parent=97 // pred_region
            // Predicated region
            $region103: #{geo_simple_feature_net_forward.7} parent=101 // pred_check
              _
            $region104: #{geo_simple_feature_net_forward.7} parent=101 // pred_check_branch
              %1611 = sbr.rel (0) target = $region106
            $region105: #{geo_simple_feature_net_forward.7} parent=101 // pred_region
              // Predicated region
              $region118: #{geo_simple_feature_net_forward.7} parent=105 // pred_check
                _
              $region119: #{geo_simple_feature_net_forward.7} parent=105 // pred_check_branch
                %1632 = sbr.rel (0) target = $region121
              $region120: #{geo_simple_feature_net_forward.7} parent=105 // pred_region
                loop: start=0, step=1, limit=1
                $region122: #{geo_simple_feature_net_forward.7} parent=120 // loop_pre_header
                  _
                $region123: #{geo_simple_feature_net_forward.7} parent=120 // loop_header
                  %s1634 = sphi 0, %s1638
                  %p1635 = scmp.ge.s32.totalorder %s1634, 1
                  %s1639 = sphi %s1600, %s1600
                  %s1640 = sphi %s1607, %s1607
                $region124: #{geo_simple_feature_net_forward.7} parent=120 // loop_header_branch
                  %1637 = sbr.rel (%p1635) target = $region128
                $region125: #{geo_simple_feature_net_forward.7} parent=120 // loop_body
                  %v1641 = vld [vmem:[%s1639] sm:$0xff]
                  %1642 = vst [vmem:[%s1640] sm:$0xff] %v1641
                  %v1643 = vld [vmem:[%s1639 + $0x8] sm:$0xff]
                  %1644 = vst [vmem:[%s1640 + $0x18] sm:$0xff] %v1643
                  %v1645 = vld [vmem:[%s1639 + $0x10] sm:$0xff]
                  %1646 = vst [vmem:[%s1640 + $0x30] sm:$0xff] %v1645
                  %v1647 = vld [vmem:[%s1639 + $0x18] sm:$0xff]
                  %1648 = vst [vmem:[%s1640 + $0x48] sm:$0xff] %v1647
                $region126: #{geo_simple_feature_net_forward.7} parent=120 // loop_footer
                  %s1638 = sadd.s32 1, %s1634
                $region127: #{geo_simple_feature_net_forward.7} parent=120 // loop_footer_branch
                  %1633 = sbr.rel target = $region123
                $region128: #{geo_simple_feature_net_forward.7} parent=120 // loop_exit
                  _
              $region121: #{geo_simple_feature_net_forward.7} parent=105 // pred_fallthru
                _
              // Predicated region
              $region129: #{geo_simple_feature_net_forward.7} parent=105 // pred_check
                _
              $region130: #{geo_simple_feature_net_forward.7} parent=105 // pred_check_branch
                %1650 = sbr.rel target = $region132
              $region131: #{geo_simple_feature_net_forward.7} parent=105 // pred_region
                _
              $region132: #{geo_simple_feature_net_forward.7} parent=105 // pred_fallthru
                _
            $region106: #{geo_simple_feature_net_forward.7} parent=101 // pred_fallthru
              _
            // Predicated region
            $region107: #{geo_simple_feature_net_forward.7} parent=101 // pred_check
              _
            $region108: #{geo_simple_feature_net_forward.7} parent=101 // pred_check_branch
              %1613 = sbr.rel target = $region110
            $region109: #{geo_simple_feature_net_forward.7} parent=101 // pred_region
              loop: start=0, step=1, limit=1
              $region111: #{geo_simple_feature_net_forward.7} parent=109 // loop_pre_header
                _
              $region112: #{geo_simple_feature_net_forward.7} parent=109 // loop_header
                %s1616 = sphi 0, %s1620
                %p1617 = scmp.ge.s32.totalorder %s1616, 1
                %s1621 = sphi %s1600, %s1600
                %s1622 = sphi %s1607, %s1607
              $region113: #{geo_simple_feature_net_forward.7} parent=109 // loop_header_branch
                %1619 = sbr.rel (%p1617) target = $region117
              $region114: #{geo_simple_feature_net_forward.7} parent=109 // loop_body
                %v1623 = vld [vmem:[%s1621] sm:$0xff]
                %1624 = vst [vmem:[%s1622] sm:$0xff] %v1623
                %v1625 = vld [vmem:[%s1621 + $0x8] sm:$0xff]
                %1626 = vst [vmem:[%s1622 + $0x18] sm:$0xff] %v1625
                %v1627 = vld [vmem:[%s1621 + $0x10] sm:$0xff]
                %1628 = vst [vmem:[%s1622 + $0x30] sm:$0xff] %v1627
                %v1629 = vld [vmem:[%s1621 + $0x18] sm:$0xff]
                %1630 = vst [vmem:[%s1622 + $0x48] sm:$0xff] %v1629
              $region115: #{geo_simple_feature_net_forward.7} parent=109 // loop_footer
                %s1620 = sadd.s32 1, %s1616
              $region116: #{geo_simple_feature_net_forward.7} parent=109 // loop_footer_branch
                %1615 = sbr.rel target = $region112
              $region117: #{geo_simple_feature_net_forward.7} parent=109 // loop_exit
                _
            $region110: #{geo_simple_feature_net_forward.7} parent=101 // pred_fallthru
              _
          $region102: #{geo_simple_feature_net_forward.7} parent=97 // pred_fallthru
            _
          %1651 = vnop
        $region98: #{geo_simple_feature_net_forward.7} parent=81 // pred_fallthru
          _
      $region82: #{geo_simple_feature_net_forward.7} parent=5 // pred_fallthru
        _
      %p1652 = scmp.le.s32.totalorder 2, %s13
      // Predicated region
      $region133: #{geo_simple_feature_net_forward.7} parent=5 // pred_check
        %p1653 = pneg %p1652
      $region134: #{geo_simple_feature_net_forward.7} parent=5 // pred_check_branch
        %1655 = sbr.rel (%p1653) target = $region136
      $region135: #{geo_simple_feature_net_forward.7} parent=5 // pred_region
        %s1656 = ssub.s32 %s13, 2
        // Predicated region
        $region137: #{geo_simple_feature_net_forward.7} parent=135 // pred_check
          %p1657 = pneg %p231
        $region138: #{geo_simple_feature_net_forward.7} parent=135 // pred_check_branch
          %1659 = sbr.rel (%p1657) target = $region140
        $region139: #{geo_simple_feature_net_forward.7} parent=135 // pred_region
          %s1660 = sand.u32 %s216, 1
          %s1661 = sand.u32 %s216, 1
          %s1662 = smul.addr %s1661, 32
          %s1663 = scalar_lea.vmem [#allocation4], %s1662
        $region140: #{geo_simple_feature_net_forward.7} parent=135 // pred_fallthru
          _
      $region136: #{geo_simple_feature_net_forward.7} parent=5 // pred_fallthru
        _
    $region6: #{geo_simple_feature_net_forward.7} parent=1 // loop_footer
      %s17 = sadd.s32 1, %s13
    $region7: #{geo_simple_feature_net_forward.7} parent=1 // loop_footer_branch
      %12 = sbr.rel target = $region3
    $region8: #{geo_simple_feature_net_forward.7} parent=1 // loop_exit
      _

// kernel: geo_simple_feature_net_forward.5
$region0: #{geo_simple_feature_net_forward.5}
  #allocation0 [shape = 'u32[]', space=smem, size = 0x4, offset = 0x4, fixed_abs, tag = 'smem constant byte address 0x4 - core index']
  #allocation1 [shape = 'u32[144,128]{1,0:T(1,128)}', space=vmem, size = 0x12000, scoped, tag = 'internal scratch']
  #allocation2 [shape = 'f32[3,17,128]{2,1,0:T(8,128)}', space=vmem, size = 0x9000, scoped, tag = 'scratch operand']
  %s0 = inlined_call_operand.vmem [shape: f32[2,3,384], index: 0, kind: input, shape index: {}]
  %s1 = inlined_call_operand.vmem [shape: f32[2,384,3], index: 1, kind: input, shape index: {}]
  %s2 = inlined_call_operand.vmem [shape: f32[2,1,384], index: 2, kind: input, shape index: {}]
  %s3 = inlined_call_operand.vmem [shape: f32[8,1], index: 3, kind: input, shape index: {}]
  %s4 = inlined_call_operand.vmem [shape: f32[8,1], index: 4, kind: input, shape index: {}]
  %s5 = inlined_call_operand.vmem [shape: f32[16,8], index: 5, kind: input, shape index: {}]
  %s6 = inlined_call_operand.vmem [shape: f32[16,1], index: 6, kind: input, shape index: {}]
  %s7 = inlined_call_operand.vmem [shape: f32[2,16,384], index: 7, kind: output, shape index: {}]
  %s8 = sld [smem:[#allocation0]]
  $region103: #{geo_simple_feature_net_forward.5} parent=0
    _
  %s10 = ssub.s32 1, %s8
  %s11 = scalar_select 0, %s10, %s8
  $region1: #{geo_simple_feature_net_forward.5} parent=0
    #allocation3 [shape = 'u8[16384]{0}', space=vmem, size = 0x4000, scoped, tag = 'output window, operand 0']
    loop: start=0, step=1, limit=20
    $region2: #{geo_simple_feature_net_forward.5} parent=1 // loop_pre_header
      _
    $region3: #{geo_simple_feature_net_forward.5} parent=1 // loop_header
      %s13 = sphi 0, %s17
      %p14 = scmp.ge.s32.totalorder %s13, 20
      %s20 = sphi 0, %s39
      %s21 = sphi 0, %s35
      %s22 = sphi 0, %s31
      %s23 = sphi 0, %s20
      %s24 = sphi 0, %s21
      %s25 = sphi 0, %s22
      %s26 = sphi 0, %s23
      %s27 = sphi 0, %s24
      %s28 = sphi 0, %s25
      %s44 = sphi 0, %s46
      %s47 = sphi 0, %s44
      %s48 = sphi 0, %s47
      %s64 = sphi 0, %s48
      %s72 = sphi 0, %s74
      %s75 = sphi 0, %s72
      %s76 = sphi 0, %s75
      %s92 = sphi 0, %s76
      %s100 = sphi 0, %s102
      %s103 = sphi 0, %s100
      %s104 = sphi 0, %s103
      %s120 = sphi 0, %s104
      %s124 = sphi 0, %s124
      %s126 = sphi 0, %s124
      %s127 = sphi 0, %s126
      %s141 = sphi 0, %s127
      %s145 = sphi 0, %s145
      %s147 = sphi 0, %s145
      %s148 = sphi 0, %s147
      %s162 = sphi 0, %s148
      %s166 = sphi 0, %s166
      %s168 = sphi 0, %s166
      %s169 = sphi 0, %s168
      %s183 = sphi 0, %s169
      %s187 = sphi 0, %s187
      %s189 = sphi 0, %s187
      %s190 = sphi 0, %s189
      %s204 = sphi 0, %s190
      %s212 = sphi 0, %s214
      %s215 = sphi 0, %s212
      %s216 = sphi 0, %s215
      %s232 = sphi 0, %s216
    $region4: #{geo_simple_feature_net_forward.5} parent=1 // loop_header_branch
      %16 = sbr.rel (%p14) target = $region8
    $region5: #{geo_simple_feature_net_forward.5} parent=1 // loop_body
      %s18 = ssub.s32 %s13, 1
      %s19 = ssub.s32 %s13, 2
      %s29 = sadd.s32 1, %s22
      %p30 = scmp.ge.s32.totalorder %s29, 3
      %s31 = scalar_select %p30, 0, %s29
      %s32 = sadd.s32 1, %s21
      %s33 = scalar_select %p30, %s32, %s21
      %p34 = scmp.ge.s32.totalorder %s33, 3
      %s35 = scalar_select %p34, 0, %s33
      %s36 = sadd.s32 1, %s20
      %s37 = scalar_select %p34, %s36, %s20
      %p38 = scmp.ge.s32.totalorder %s37, 2
      %s39 = scalar_select %p38, 0, %s37
      %s40 = ssub.s32 %s20, %s39
      %s41 = ssub.s32 %s21, %s35
      %s42 = sor.u32 %s40, %s41
      %p43 = scmp.eq.s32.totalorder %s42, 0
      %s45 = sadd.s32 %s44, 1
      %s46 = scalar_select %p43, %s44, %s45
      %p49 = pneg %p43
      %p50 = scmp.eq.s32.totalorder %s13, 17
      %p51 = por %p49, %p50
      %p52 = scmp.ne.s32.totalorder %s44, %s47
      %p53 = scmp.eq.s32.totalorder %s13, 0
      %p54 = por %p52, %p53
      %p55 = scmp.ne.s32.totalorder %s44, %s47
      %p56 = scmp.eq.s32.totalorder %s18, 17
      %p57 = por %p55, %p56
      %p58 = scmp.ne.s32.totalorder %s47, %s48
      %p59 = scmp.eq.s32.totalorder %s18, 0
      %p60 = por %p58, %p59
      %p61 = scmp.ne.s32.totalorder %s47, %s48
      %p62 = scmp.eq.s32.totalorder %s19, 17
      %p63 = por %p61, %p62
      %p65 = scmp.ne.s32.totalorder %s48, %s64
      %p66 = scmp.eq.s32.totalorder %s19, 0
      %p67 = por %p65, %p66
      %s68 = ssub.s32 %s20, %s39
      %s69 = ssub.s32 %s22, %s31
      %s70 = sor.u32 %s68, %s69
      %p71 = scmp.eq.s32.totalorder %s70, 0
      %s73 = sadd.s32 %s72, 1
      %s74 = scalar_select %p71, %s72, %s73
      %p77 = pneg %p71
      %p78 = scmp.eq.s32.totalorder %s13, 17
      %p79 = por %p77, %p78
      %p80 = scmp.ne.s32.totalorder %s72, %s75
      %p81 = scmp.eq.s32.totalorder %s13, 0
      %p82 = por %p80, %p81
      %p83 = scmp.ne.s32.totalorder %s72, %s75
      %p84 = scmp.eq.s32.totalorder %s18, 17
      %p85 = por %p83, %p84
      %p86 = scmp.ne.s32.totalorder %s75, %s76
      %p87 = scmp.eq.s32.totalorder %s18, 0
      %p88 = por %p86, %p87
      %p89 = scmp.ne.s32.totalorder %s75, %s76
      %p90 = scmp.eq.s32.totalorder %s19, 17
      %p91 = por %p89, %p90
      %p93 = scmp.ne.s32.totalorder %s76, %s92
      %p94 = scmp.eq.s32.totalorder %s19, 0
      %p95 = por %p93, %p94
      %s96 = ssub.s32 %s20, %s39
      %s97 = ssub.s32 %s22, %s31
      %s98 = sor.u32 %s96, %s97
      %p99 = scmp.eq.s32.totalorder %s98, 0
      %s101 = sadd.s32 %s100, 1
      %s102 = scalar_select %p99, %s100, %s101
      %p105 = pneg %p99
      %p106 = scmp.eq.s32.totalorder %s13, 17
      %p107 = por %p105, %p106
      %p108 = scmp.ne.s32.totalorder %s100, %s103
      %p109 = scmp.eq.s32.totalorder %s13, 0
      %p110 = por %p108, %p109
      %p111 = scmp.ne.s32.totalorder %s100, %s103
      %p112 = scmp.eq.s32.totalorder %s18, 17
      %p113 = por %p111, %p112
      %p114 = scmp.ne.s32.totalorder %s103, %s104
      %p115 = scmp.eq.s32.totalorder %s18, 0
      %p116 = por %p114, %p115
      %p117 = scmp.ne.s32.totalorder %s103, %s104
      %p118 = scmp.eq.s32.totalorder %s19, 17
      %p119 = por %p117, %p118
      %p121 = scmp.ne.s32.totalorder %s104, %s120
      %p122 = scmp.eq.s32.totalorder %s19, 0
      %p123 = por %p121, %p122
      %s125 = sadd.s32 %s124, 1
      %p128 = scmp.eq.s32.totalorder %s13, 17
      %p129 = scmp.ne.s32.totalorder %s124, %s126
      %p130 = scmp.eq.s32.totalorder %s13, 0
      %p131 = por %p129, %p130
      %p132 = scmp.ne.s32.totalorder %s124, %s126
      %p133 = scmp.eq.s32.totalorder %s18, 17
      %p134 = por %p132, %p133
      %p135 = scmp.ne.s32.totalorder %s126, %s127
      %p136 = scmp.eq.s32.totalorder %s18, 0
      %p137 = por %p135, %p136
      %p138 = scmp.ne.s32.totalorder %s126, %s127
      %p139 = scmp.eq.s32.totalorder %s19, 17
      %p140 = por %p138, %p139
      %p142 = scmp.ne.s32.totalorder %s127, %s141
      %p143 = scmp.eq.s32.totalorder %s19, 0
      %p144 = por %p142, %p143
      %s146 = sadd.s32 %s145, 1
      %p149 = scmp.eq.s32.totalorder %s13, 17
      %p150 = scmp.ne.s32.totalorder %s145, %s147
      %p151 = scmp.eq.s32.totalorder %s13, 0
      %p152 = por %p150, %p151
      %p153 = scmp.ne.s32.totalorder %s145, %s147
      %p154 = scmp.eq.s32.totalorder %s18, 17
      %p155 = por %p153, %p154
      %p156 = scmp.ne.s32.totalorder %s147, %s148
      %p157 = scmp.eq.s32.totalorder %s18, 0
      %p158 = por %p156, %p157
      %p159 = scmp.ne.s32.totalorder %s147, %s148
      %p160 = scmp.eq.s32.totalorder %s19, 17
      %p161 = por %p159, %p160
      %p163 = scmp.ne.s32.totalorder %s148, %s162
      %p164 = scmp.eq.s32.totalorder %s19, 0
      %p165 = por %p163, %p164
      %s167 = sadd.s32 %s166, 1
      %p170 = scmp.eq.s32.totalorder %s13, 17
      %p171 = scmp.ne.s32.totalorder %s166, %s168
      %p172 = scmp.eq.s32.totalorder %s13, 0
      %p173 = por %p171, %p172
      %p174 = scmp.ne.s32.totalorder %s166, %s168
      %p175 = scmp.eq.s32.totalorder %s18, 17
      %p176 = por %p174, %p175
      %p177 = scmp.ne.s32.totalorder %s168, %s169
      %p178 = scmp.eq.s32.totalorder %s18, 0
      %p179 = por %p177, %p178
      %p180 = scmp.ne.s32.totalorder %s168, %s169
      %p181 = scmp.eq.s32.totalorder %s19, 17
      %p182 = por %p180, %p181
      %p184 = scmp.ne.s32.totalorder %s169, %s183
      %p185 = scmp.eq.s32.totalorder %s19, 0
      %p186 = por %p184, %p185
      %s188 = sadd.s32 %s187, 1
      %p191 = scmp.eq.s32.totalorder %s13, 17
      %p192 = scmp.ne.s32.totalorder %s187, %s189
      %p193 = scmp.eq.s32.totalorder %s13, 0
      %p194 = por %p192, %p193
      %p195 = scmp.ne.s32.totalorder %s187, %s189
      %p196 = scmp.eq.s32.totalorder %s18, 17
      %p197 = por %p195, %p196
      %p198 = scmp.ne.s32.totalorder %s189, %s190
      %p199 = scmp.eq.s32.totalorder %s18, 0
      %p200 = por %p198, %p199
      %p201 = scmp.ne.s32.totalorder %s189, %s190
      %p202 = scmp.eq.s32.totalorder %s19, 17
      %p203 = por %p201, %p202
      %p205 = scmp.ne.s32.totalorder %s190, %s204
      %p206 = scmp.eq.s32.totalorder %s19, 0
      %p207 = por %p205, %p206
      %s208 = ssub.s32 %s20, %s39
      %s209 = ssub.s32 %s21, %s35
      %s210 = sor.u32 %s208, %s209
      %p211 = scmp.eq.s32.totalorder %s210, 0
      %s213 = sadd.s32 %s212, 1
      %s214 = scalar_select %p211, %s212, %s213
      %p217 = pneg %p211
      %p218 = scmp.eq.s32.totalorder %s13, 17
      %p219 = por %p217, %p218
      %p220 = scmp.ne.s32.totalorder %s212, %s215
      %p221 = scmp.eq.s32.totalorder %s13, 0
      %p222 = por %p220, %p221
      %p223 = scmp.ne.s32.totalorder %s212, %s215
      %p224 = scmp.eq.s32.totalorder %s18, 17
      %p225 = por %p223, %p224
      %p226 = scmp.ne.s32.totalorder %s215, %s216
      %p227 = scmp.eq.s32.totalorder %s18, 0
      %p228 = por %p226, %p227
      %p229 = scmp.ne.s32.totalorder %s215, %s216
      %p230 = scmp.eq.s32.totalorder %s19, 17
      %p231 = por %p229, %p230
      %p233 = scmp.ne.s32.totalorder %s216, %s232
      %p234 = scmp.eq.s32.totalorder %s19, 0
      %p235 = por %p233, %p234
      %p236 = scmp.le.s32.totalorder 1, %s13
      %p237 = scmp.lt.s32.totalorder %s13, 19
      %p238 = pnand %p236, %p237
      %p239 = pneg %p238
      // Predicated region
      $region9: #{geo_simple_feature_net_forward.5} parent=5 // pred_check
        _
      $region10: #{geo_simple_feature_net_forward.5} parent=5 // pred_check_branch
        %241 = sbr.rel (%p238) target = $region12
      $region11: #{geo_simple_feature_net_forward.5} parent=5 // pred_region
        %s242 = ssub.s32 %s13, 1
        // Predicated region
        $region13: #{geo_simple_feature_net_forward.5} parent=11 // pred_check
          %p243 = pneg %p137
        $region14: #{geo_simple_feature_net_forward.5} parent=11 // pred_check_branch
          %245 = sbr.rel (%p243) target = $region16
        $region15: #{geo_simple_feature_net_forward.5} parent=11 // pred_region
          _
        $region16: #{geo_simple_feature_net_forward.5} parent=11 // pred_fallthru
          _
        // Predicated region
        $region17: #{geo_simple_feature_net_forward.5} parent=11 // pred_check
          %p246 = pneg %p158
        $region18: #{geo_simple_feature_net_forward.5} parent=11 // pred_check_branch
          %248 = sbr.rel (%p246) target = $region20
        $region19: #{geo_simple_feature_net_forward.5} parent=11 // pred_region
          _
        $region20: #{geo_simple_feature_net_forward.5} parent=11 // pred_fallthru
          _
        // Predicated region
        $region21: #{geo_simple_feature_net_forward.5} parent=11 // pred_check
          %p249 = pneg %p179
        $region22: #{geo_simple_feature_net_forward.5} parent=11 // pred_check_branch
          %251 = sbr.rel (%p249) target = $region24
        $region23: #{geo_simple_feature_net_forward.5} parent=11 // pred_region
          _
        $region24: #{geo_simple_feature_net_forward.5} parent=11 // pred_fallthru
          _
        // Predicated region
        $region25: #{geo_simple_feature_net_forward.5} parent=11 // pred_check
          %p252 = pneg %p200
        $region26: #{geo_simple_feature_net_forward.5} parent=11 // pred_check_branch
          %254 = sbr.rel (%p252) target = $region28
        $region27: #{geo_simple_feature_net_forward.5} parent=11 // pred_region
          _
        $region28: #{geo_simple_feature_net_forward.5} parent=11 // pred_fallthru
          _
      $region12: #{geo_simple_feature_net_forward.5} parent=5 // pred_fallthru
        _
      %p255 = scmp.lt.s32.totalorder %s13, 18
      // Predicated region
      $region29: #{geo_simple_feature_net_forward.5} parent=5 // pred_check
        %p256 = pneg %p255
      $region30: #{geo_simple_feature_net_forward.5} parent=5 // pred_check_branch
        %258 = sbr.rel (%p256) target = $region32
      $region31: #{geo_simple_feature_net_forward.5} parent=5 // pred_region
        // Predicated region
        $region33: #{geo_simple_feature_net_forward.5} parent=31 // pred_check
          %p259 = pneg %p54
        $region34: #{geo_simple_feature_net_forward.5} parent=31 // pred_check_branch
          %261 = sbr.rel (%p259) target = $region36
        $region35: #{geo_simple_feature_net_forward.5} parent=31 // pred_region
          %p262 = scmp.lt.s32.totalorder %s20, 1
          %s263 = scalar_select %p262, %s20, 1
          %p264 = scmp.lt.s32.totalorder %s21, 2
          %s265 = scalar_select %p264, %s21, 2
          %s266 = smul.addr %s263, 3
          %s267 = sadd.s32 %s265, %s266
          %s268 = smul.addr %s267, 4
          %s269 = scalar_lea.vmem %s0, %s268
        $region36: #{geo_simple_feature_net_forward.5} parent=31 // pred_fallthru
          _
        // Predicated region
        $region37: #{geo_simple_feature_net_forward.5} parent=31 // pred_check
          %p270 = pneg %p82
        $region38: #{geo_simple_feature_net_forward.5} parent=31 // pred_check_branch
          %272 = sbr.rel (%p270) target = $region40
        $region39: #{geo_simple_feature_net_forward.5} parent=31 // pred_region
          %s273 = smul.u32 16, %s22
          %p274 = scmp.lt.s32.totalorder %s20, 1
          %s275 = scalar_select %p274, %s20, 1
          %p276 = scmp.lt.s32.totalorder %s273, 47
          %s277 = scalar_select %p276, %s273, 47
          %s278 = smul.addr %s275, 48
          %s279 = sadd.s32 %s277, %s278
          %s280 = smul.addr %s279, 8
          %s281 = scalar_lea.vmem %s1, %s280
          %s282 = smul.u32 16, %s22
        $region40: #{geo_simple_feature_net_forward.5} parent=31 // pred_fallthru
          _
        // Predicated region
        $region41: #{geo_simple_feature_net_forward.5} parent=31 // pred_check
          %p283 = pneg %p110
        $region42: #{geo_simple_feature_net_forward.5} parent=31 // pred_check_branch
          %285 = sbr.rel (%p283) target = $region44
        $region43: #{geo_simple_feature_net_forward.5} parent=31 // pred_region
          %p286 = scmp.lt.s32.totalorder %s20, 1
          %s287 = scalar_select %p286, %s20, 1
          %p288 = scmp.lt.s32.totalorder %s22, 2
          %s289 = scalar_select %p288, %s22, 2
          %s290 = smul.addr %s287, 3
          %s291 = sadd.s32 %s289, %s290
          %s292 = scalar_lea.vmem %s2, %s291
        $region44: #{geo_simple_feature_net_forward.5} parent=31 // pred_fallthru
          _
      $region32: #{geo_simple_feature_net_forward.5} parent=5 // pred_fallthru
        _
      %p293 = scmp.le.s32.totalorder 1, %s13
      %p294 = scmp.lt.s32.totalorder %s13, 19
      %p295 = pnand %p293, %p294
      %p296 = pneg %p295
      // Predicated region
      $region45: #{geo_simple_feature_net_forward.5} parent=5 // pred_check
        _
      $region46: #{geo_simple_feature_net_forward.5} parent=5 // pred_check_branch
        %298 = sbr.rel (%p295) target = $region48
      $region47: #{geo_simple_feature_net_forward.5} parent=5 // pred_region
        %s299 = ssub.s32 %s13, 1
        %p300 = scmp.lt.s32.totalorder %s23, 1
        %s301 = scalar_select %p300, %s23, 1
        %p302 = scmp.lt.s32.totalorder %s24, 2
        %s303 = scalar_select %p302, %s24, 2
        %s304 = smul.addr %s301, 3
        %s305 = sadd.s32 %s303, %s304
        %s306 = smul.addr %s305, 4
        %s307 = scalar_lea.vmem %s0, %s306
        %p308 = pneg %p60
        %p309 = pneg %p57
        %s310 = smul.u32 16, %s25
        %p311 = scmp.lt.s32.totalorder %s23, 1
        %s312 = scalar_select %p311, %s23, 1
        %p313 = scmp.lt.s32.totalorder %s310, 47
        %s314 = scalar_select %p313, %s310, 47
        %s315 = smul.addr %s312, 48
        %s316 = sadd.s32 %s314, %s315
        %s317 = smul.addr %s316, 8
        %s318 = scalar_lea.vmem %s1, %s317
        %p319 = pneg %p88
        %p320 = pneg %p85
        %p321 = scmp.lt.s32.totalorder %s23, 1
        %s322 = scalar_select %p321, %s23, 1
        %p323 = scmp.lt.s32.totalorder %s25, 2
        %s324 = scalar_select %p323, %s25, 2
        %s325 = smul.addr %s322, 3
        %s326 = sadd.s32 %s324, %s325
        %s327 = scalar_lea.vmem %s2, %s326
        %p328 = pneg %p116
        %p329 = pneg %p113
        %p330 = pneg %p137
        %p331 = pneg %p134
        %p332 = pneg %p158
        %p333 = pneg %p155
        %p334 = pneg %p179
        %p335 = pneg %p176
        %p336 = pneg %p200
        %p337 = pneg %p197
        %p338 = pneg %p228
        %p339 = pneg %p225
        %s340 = sand.u32 %s215, 1
        %s341 = sand.u32 %s215, 1
        %s342 = smul.addr %s341, 16
        %s343 = scalar_lea.vmem [#allocation3], %s342
        %p344 = scmp.lt.s32.totalorder %s23, 1
        %s345 = scalar_select %p344, %s23, 1
        %p346 = scmp.lt.s32.totalorder %s24, 2
        %s347 = scalar_select %p346, %s24, 2
        %s348 = smul.addr %s345, 3
        %s349 = sadd.s32 %s347, %s348
        %s350 = smul.addr %s349, 4
        %s351 = scalar_lea.vmem %s0, %s350
        %s352 = smul.u32 16, %s25
        %p353 = scmp.lt.s32.totalorder %s23, 1
        %s354 = scalar_select %p353, %s23, 1
        %p355 = scmp.lt.s32.totalorder %s352, 47
        %s356 = scalar_select %p355, %s352, 47
        %s357 = smul.addr %s354, 48
        %s358 = sadd.s32 %s356, %s357
        %s359 = smul.addr %s358, 8
        %s360 = scalar_lea.vmem %s1, %s359
        %s361 = smul.u32 16, %s25
        %p362 = scmp.lt.s32.totalorder %s23, 1
        %s363 = scalar_select %p362, %s23, 1
        %p364 = scmp.lt.s32.totalorder %s25, 2
        %s365 = scalar_select %p364, %s25, 2
        %s366 = smul.addr %s363, 3
        %s367 = sadd.s32 %s365, %s366
        %s368 = scalar_lea.vmem %s2, %s367
        %p369 = scmp.eq.s32.totalorder %s25, 0
        // Predicated region
        $region49: #{geo_simple_feature_net_forward.5} parent=47 // pred_check
          %p370 = pneg %p369
        $region50: #{geo_simple_feature_net_forward.5} parent=47 // pred_check_branch
          %372 = sbr.rel (%p370) target = $region52
        $region51: #{geo_simple_feature_net_forward.5} parent=47 // pred_region
          %373 = vst [vmem:[#allocation2] sm:$0xff] 0.0
          %374 = vst [vmem:[#allocation2 + $0x8] sm:$0xff] 0.0
          %375 = vst [vmem:[#allocation2 + $0x10] sm:$0x1] 0.0
          %376 = vst [vmem:[#allocation2 + $0x18] sm:$0xff] 0.0
          %377 = vst [vmem:[#allocation2 + $0x20] sm:$0xff] 0.0
          %378 = vst [vmem:[#allocation2 + $0x28] sm:$0x1] 0.0
          %379 = vst [vmem:[#allocation2 + $0x30] sm:$0xff] 0.0
          %380 = vst [vmem:[#allocation2 + $0x38] sm:$0xff] 0.0
          %381 = vst [vmem:[#allocation2 + $0x40] sm:$0x1] 0.0
        $region52: #{geo_simple_feature_net_forward.5} parent=47 // pred_fallthru
          _
        %v382 = vld [vmem:[%s368] sm:$0x1]
        %v383 = vld [vmem:[%s3] sm:$0xff]
        %v384 = vld [vmem:[%s4] sm:$0xff]
        %386 = vset.pattern.permute.xlu0 0
        %387 = vperm.xlu0 %386, %v383
        %v388 = vpop.permute.xlu0 %387
        %v391 = vlaneseq
        %v392 = vshrl.u32 %v391, 7
        %v393 = vsub.s32 0, %v392
        %v394 = vrot.slane %v382, %v393
        %v396 = vmul.f32 %v388, %v394
        %398 = vset.pattern.permute.xlu0 0
        %399 = vperm.xlu0 %398, %v384
        %v400 = vpop.permute.xlu0 %399
        %v402 = vadd.f32 %v396, %v400
        %vm403 = vcmp.gt.f32.partialorder %v402, 0.0
        %v404 = vmul.f32 %v402, 0.1
        %v405 = vsel %vm403, %v402, %v404
        %v406 = vld [vmem:[%s5] sm:$0xff]
        %v407 = vld [vmem:[%s5 + $0x8] sm:$0xff]
        %v408 = vld [vmem:[%s6] sm:$0xff]
        %v409 = vld [vmem:[%s6 + $0x8] sm:$0xff]
        %411 = vset.pattern.permute.xlu0 0
        %412 = vperm.xlu0 %411, %v408
        %v413 = vpop.permute.xlu0 %412
        %416 = vset.pattern.permute.xlu0 0
        %417 = vperm.xlu0 %416, %v409
        %v418 = vpop.permute.xlu0 %417
        %vm420 = vcmask 64512
        %v422 = vsel %vm420, %v406, 0
        %v425 = vsel %vm420, %v407, 0
        %427 = vmatprep.subr.mxu0 0.0
        %428 = vmatpush1.msra.mxu0 %v405
        %429 = vmatprep.subr.mxu0 0.0
        %430 = vmatpush1.msra.mxu0 0.0
        %431 = vmatprep.subr.mxu0 0.0
        %432 = vmatpush1.msra.mxu0 0.0
        %433 = vmatprep.subr.mxu0 0.0
        %434 = vmatpush1.msra.mxu0 0.0
        %435 = vmatprep.subr.mxu0 0.0
        %436 = vmatpush1.msra.mxu0 0.0
        %437 = vmatprep.subr.mxu0 0.0
        %438 = vmatpush1.msra.mxu0 0.0
        %439 = vmatprep.subr.mxu0 0.0
        %440 = vmatpush1.msra.mxu0 0.0
        %441 = vmatprep.subr.mxu0 0.0
        %442 = vmatpush1.msra.mxu0 0.0
        %443 = vmatprep.subr.mxu0 0.0
        %444 = vmatpush1.msra.mxu0 0.0
        %445 = vmatprep.subr.mxu0 0.0
        %446 = vmatpush1.msra.mxu0 0.0
        %447 = vmatprep.subr.mxu0 0.0
        %448 = vmatpush1.msra.mxu0 0.0
        %449 = vmatprep.subr.mxu0 0.0
        %450 = vmatpush1.msra.mxu0 0.0
        %451 = vmatprep.subr.mxu0 0.0
        %452 = vmatpush1.msra.mxu0 0.0
        %453 = vmatprep.subr.mxu0 0.0
        %454 = vmatpush1.msra.mxu0 0.0
        %455 = vmatprep.subr.mxu0 0.0
        %456 = vmatpush1.msra.mxu0 0.0
        %457 = vmatprep.subr.mxu0 0.0
        %458 = vmatpush1.msra.mxu0 0.0
        %459 = vmatprep.subr.mxu0 0.0
        %460 = vmatpush1.msra.mxu0 0.0
        %461 = vmatprep.subr.mxu0 0.0
        %462 = vmatpush1.msra.mxu0 0.0
        %463 = vmatprep.subr.mxu0 0.0
        %464 = vmatpush1.msra.mxu0 0.0
        %465 = vmatprep.subr.mxu0 0.0
        %466 = vmatpush1.msra.mxu0 0.0
        %467 = vmatprep.subr.mxu0 0.0
        %468 = vmatpush1.msra.mxu0 0.0
        %469 = vmatprep.subr.mxu0 0.0
        %470 = vmatpush1.msra.mxu0 0.0
        %471 = vmatprep.subr.mxu0 0.0
        %472 = vmatpush1.msra.mxu0 0.0
        %473 = vmatprep.subr.mxu0 0.0
        %474 = vmatpush1.msra.mxu0 0.0
        %475 = vmatprep.subr.mxu0 0.0
        %476 = vmatpush1.msra.mxu0 0.0
        %477 = vmatprep.subr.mxu0 0.0
        %478 = vmatpush1.msra.mxu0 0.0
        %479 = vmatprep.subr.mxu0 0.0
        %480 = vmatpush1.msra.mxu0 0.0
        %481 = vmatprep.subr.mxu0 0.0
        %482 = vmatpush1.msra.mxu0 0.0
        %483 = vmatprep.subr.mxu0 0.0
        %484 = vmatpush1.msra.mxu0 0.0
        %485 = vmatprep.subr.mxu0 0.0
        %486 = vmatpush1.msra.mxu0 0.0
        %487 = vmatprep.subr.mxu0 0.0
        %488 = vmatpush1.msra.mxu0 0.0
        %489 = vmatprep.subr.mxu0 0.0
        %490 = vmatpush1.msra.mxu0 0.0
        %491 = vmatprep.mubr.f32.mxu0 0.0
        %492 = vmatmul.mubr.f32.gmra.mrb[0].mxu0 %v422
        %v493 = vpop.f32.mrb[0].mxu0
        %v494 = vadd.f32 %v413, %v493
        %v495 = vpop.f32.mrb[0].mxu0
        %496 = vmatprep.mubr.f32.mxu0 0.0
        %497 = vmatmul.mubr.f32.gmra.mrb[0].mxu0 %v425
        %v498 = vpop.f32.mrb[0].mxu0
        %v499 = vadd.f32 %v418, %v498
        %v500 = vpop.f32.mrb[0].mxu0
        %501 = vdwg.mxu0
        %vm502 = vcmp.gt.f32.partialorder %v494, 0.0
        %vm503 = vcmp.gt.f32.partialorder %v499, 0.0
        %v504 = vmul.f32 %v494, 0.1
        %v505 = vmul.f32 %v499, 0.1
        %v506 = vsel %vm502, %v494, %v504
        %v507 = vsel %vm503, %v499, %v505
        %v508 = vld [vmem:[%s351] sm:$0x7]
        %v509 = vmul.f32 %v508, 1.767767
        %v510 = vld [vmem:[%s360] sm:$0xff]
        %v511 = vld [vmem:[%s360 + $0x8] sm:$0xff]
        %v512 = vld [vmem:[%s360 + $0x10] sm:$0xff]
        %v513 = vld [vmem:[%s360 + $0x18] sm:$0xff]
        %v514 = vld [vmem:[%s360 + $0x20] sm:$0xff]
        %v515 = vld [vmem:[%s360 + $0x28] sm:$0xff]
        %v516 = vld [vmem:[%s360 + $0x30] sm:$0xff]
        %v517 = vld [vmem:[%s360 + $0x38] sm:$0xff]
        %v518 = vld [vmem:[%s360 + $0x40] sm:$0xff]
        %v519 = vld [vmem:[%s360 + $0x48] sm:$0xff]
        %v520 = vld [vmem:[%s360 + $0x50] sm:$0xff]
        %v521 = vld [vmem:[%s360 + $0x58] sm:$0xff]
        %v522 = vld [vmem:[%s360 + $0x60] sm:$0xff]
        %v523 = vld [vmem:[%s360 + $0x68] sm:$0xff]
        %v524 = vld [vmem:[%s360 + $0x70] sm:$0xff]
        %v525 = vld [vmem:[%s360 + $0x78] sm:$0xff]
        %v526 = vmul.f32 %v510, 1.767767
        %v527 = vmul.f32 %v511, 1.767767
        %v528 = vmul.f32 %v512, 1.767767
        %v529 = vmul.f32 %v513, 1.767767
        %v530 = vmul.f32 %v514, 1.767767
        %v531 = vmul.f32 %v515, 1.767767
        %v532 = vmul.f32 %v516, 1.767767
        %v533 = vmul.f32 %v517, 1.767767
        %v534 = vmul.f32 %v518, 1.767767
        %v535 = vmul.f32 %v519, 1.767767
        %v536 = vmul.f32 %v520, 1.767767
        %v537 = vmul.f32 %v521, 1.767767
        %v538 = vmul.f32 %v522, 1.767767
        %v539 = vmul.f32 %v523, 1.767767
        %v540 = vmul.f32 %v524, 1.767767
        %v541 = vmul.f32 %v525, 1.767767
        %543 = vset.pattern.permute.xlu0 0
        %544 = vperm.xlu0 %543, %v526
        %v545 = vpop.permute.xlu0 %544
        %548 = vset.pattern.permute.xlu0 0
        %549 = vperm.xlu0 %548, %v527
        %v550 = vpop.permute.xlu0 %549
        %553 = vset.pattern.permute.xlu0 0
        %554 = vperm.xlu0 %553, %v528
        %v555 = vpop.permute.xlu0 %554
        %558 = vset.pattern.permute.xlu0 0
        %559 = vperm.xlu0 %558, %v529
        %v560 = vpop.permute.xlu0 %559
        %563 = vset.pattern.permute.xlu0 0
        %564 = vperm.xlu0 %563, %v530
        %v565 = vpop.permute.xlu0 %564
        %568 = vset.pattern.permute.xlu0 0
        %569 = vperm.xlu0 %568, %v531
        %v570 = vpop.permute.xlu0 %569
        %573 = vset.pattern.permute.xlu0 0
        %574 = vperm.xlu0 %573, %v532
        %v575 = vpop.permute.xlu0 %574
        %578 = vset.pattern.permute.xlu0 0
        %579 = vperm.xlu0 %578, %v533
        %v580 = vpop.permute.xlu0 %579
        %583 = vset.pattern.permute.xlu0 0
        %584 = vperm.xlu0 %583, %v534
        %v585 = vpop.permute.xlu0 %584
        %588 = vset.pattern.permute.xlu0 0
        %589 = vperm.xlu0 %588, %v535
        %v590 = vpop.permute.xlu0 %589
        %593 = vset.pattern.permute.xlu0 0
        %594 = vperm.xlu0 %593, %v536
        %v595 = vpop.permute.xlu0 %594
        %598 = vset.pattern.permute.xlu0 0
        %599 = vperm.xlu0 %598, %v537
        %v600 = vpop.permute.xlu0 %599
        %603 = vset.pattern.permute.xlu0 0
        %604 = vperm.xlu0 %603, %v538
        %v605 = vpop.permute.xlu0 %604
        %608 = vset.pattern.permute.xlu0 0
        %609 = vperm.xlu0 %608, %v539
        %v610 = vpop.permute.xlu0 %609
        %613 = vset.pattern.permute.xlu0 0
        %614 = vperm.xlu0 %613, %v540
        %v615 = vpop.permute.xlu0 %614
        %618 = vset.pattern.permute.xlu0 0
        %619 = vperm.xlu0 %618, %v541
        %v620 = vpop.permute.xlu0 %619
        %v622 = vlaneseq
        %v623 = vshrl.u32 %v622, 7
        %v624 = vsub.s32 0, %v623
        %v625 = vrot.slane %v509, %v624
        %v626 = vsub.f32 %v545, %v625
        %v627 = vsub.f32 %v550, %v625
        %v628 = vsub.f32 %v555, %v625
        %v629 = vsub.f32 %v560, %v625
        %v630 = vsub.f32 %v565, %v625
        %v631 = vsub.f32 %v570, %v625
        %v632 = vsub.f32 %v575, %v625
        %v633 = vsub.f32 %v580, %v625
        %v634 = vsub.f32 %v585, %v625
        %v635 = vsub.f32 %v590, %v625
        %v636 = vsub.f32 %v595, %v625
        %v637 = vsub.f32 %v600, %v625
        %v638 = vsub.f32 %v605, %v625
        %v639 = vsub.f32 %v610, %v625
        %v640 = vsub.f32 %v615, %v625
        %v641 = vsub.f32 %v620, %v625
        %v642 = vmul.f32 %v626, %v626
        %v643 = vmul.f32 %v627, %v627
        %v644 = vmul.f32 %v628, %v628
        %v645 = vmul.f32 %v629, %v629
        %v646 = vmul.f32 %v630, %v630
        %v647 = vmul.f32 %v631, %v631
        %v648 = vmul.f32 %v632, %v632
        %v649 = vmul.f32 %v633, %v633
        %v650 = vmul.f32 %v634, %v634
        %v651 = vmul.f32 %v635, %v635
        %v652 = vmul.f32 %v636, %v636
        %v653 = vmul.f32 %v637, %v637
        %v654 = vmul.f32 %v638, %v638
        %v655 = vmul.f32 %v639, %v639
        %v656 = vmul.f32 %v640, %v640
        %v657 = vmul.f32 %v641, %v641
        %658 = vset.pattern.permute.xlu0 1
        %659 = vperm.xlu0 %658, %v526
        %v660 = vpop.permute.xlu0 %659
        %662 = vset.pattern.permute.xlu0 1
        %663 = vperm.xlu0 %662, %v527
        %v664 = vpop.permute.xlu0 %663
        %666 = vset.pattern.permute.xlu0 1
        %667 = vperm.xlu0 %666, %v528
        %v668 = vpop.permute.xlu0 %667
        %670 = vset.pattern.permute.xlu0 1
        %671 = vperm.xlu0 %670, %v529
        %v672 = vpop.permute.xlu0 %671
        %674 = vset.pattern.permute.xlu0 1
        %675 = vperm.xlu0 %674, %v530
        %v676 = vpop.permute.xlu0 %675
        %678 = vset.pattern.permute.xlu0 1
        %679 = vperm.xlu0 %678, %v531
        %v680 = vpop.permute.xlu0 %679
        %682 = vset.pattern.permute.xlu0 1
        %683 = vperm.xlu0 %682, %v532
        %v684 = vpop.permute.xlu0 %683
        %686 = vset.pattern.permute.xlu0 1
        %687 = vperm.xlu0 %686, %v533
        %v688 = vpop.permute.xlu0 %687
        %690 = vset.pattern.permute.xlu0 1
        %691 = vperm.xlu0 %690, %v534
        %v692 = vpop.permute.xlu0 %691
        %694 = vset.pattern.permute.xlu0 1
        %695 = vperm.xlu0 %694, %v535
        %v696 = vpop.permute.xlu0 %695
        %698 = vset.pattern.permute.xlu0 1
        %699 = vperm.xlu0 %698, %v536
        %v700 = vpop.permute.xlu0 %699
        %702 = vset.pattern.permute.xlu0 1
        %703 = vperm.xlu0 %702, %v537
        %v704 = vpop.permute.xlu0 %703
        %706 = vset.pattern.permute.xlu0 1
        %707 = vperm.xlu0 %706, %v538
        %v708 = vpop.permute.xlu0 %707
        %710 = vset.pattern.permute.xlu0 1
        %711 = vperm.xlu0 %710, %v539
        %v712 = vpop.permute.xlu0 %711
        %714 = vset.pattern.permute.xlu0 1
        %715 = vperm.xlu0 %714, %v540
        %v716 = vpop.permute.xlu0 %715
        %718 = vset.pattern.permute.xlu0 1
        %719 = vperm.xlu0 %718, %v541
        %v720 = vpop.permute.xlu0 %719
        %v722 = vlaneseq
        %v723 = vshrl.u32 %v722, 7
        %v724 = vsub.s32 1, %v723
        %v725 = vrot.slane %v509, %v724
        %v726 = vsub.f32 %v660, %v725
        %v727 = vsub.f32 %v664, %v725
        %v728 = vsub.f32 %v668, %v725
        %v729 = vsub.f32 %v672, %v725
        %v730 = vsub.f32 %v676, %v725
        %v731 = vsub.f32 %v680, %v725
        %v732 = vsub.f32 %v684, %v725
        %v733 = vsub.f32 %v688, %v725
        %v734 = vsub.f32 %v692, %v725
        %v735 = vsub.f32 %v696, %v725
        %v736 = vsub.f32 %v700, %v725
        %v737 = vsub.f32 %v704, %v725
        %v738 = vsub.f32 %v708, %v725
        %v739 = vsub.f32 %v712, %v725
        %v740 = vsub.f32 %v716, %v725
        %v741 = vsub.f32 %v720, %v725
        %v742 = vmul.f32 %v726, %v726
        %v743 = vmul.f32 %v727, %v727
        %v744 = vmul.f32 %v728, %v728
        %v745 = vmul.f32 %v729, %v729
        %v746 = vmul.f32 %v730, %v730
        %v747 = vmul.f32 %v731, %v731
        %v748 = vmul.f32 %v732, %v732
        %v749 = vmul.f32 %v733, %v733
        %v750 = vmul.f32 %v734, %v734
        %v751 = vmul.f32 %v735, %v735
        %v752 = vmul.f32 %v736, %v736
        %v753 = vmul.f32 %v737, %v737
        %v754 = vmul.f32 %v738, %v738
        %v755 = vmul.f32 %v739, %v739
        %v756 = vmul.f32 %v740, %v740
        %v757 = vmul.f32 %v741, %v741
        %v758 = vadd.f32 %v642, %v742
        %v759 = vadd.f32 %v643, %v743
        %v760 = vadd.f32 %v644, %v744
        %v761 = vadd.f32 %v645, %v745
        %v762 = vadd.f32 %v646, %v746
        %v763 = vadd.f32 %v647, %v747
        %v764 = vadd.f32 %v648, %v748
        %v765 = vadd.f32 %v649, %v749
        %v766 = vadd.f32 %v650, %v750
        %v767 = vadd.f32 %v651, %v751
        %v768 = vadd.f32 %v652, %v752
        %v769 = vadd.f32 %v653, %v753
        %v770 = vadd.f32 %v654, %v754
        %v771 = vadd.f32 %v655, %v755
        %v772 = vadd.f32 %v656, %v756
        %v773 = vadd.f32 %v657, %v757
        %774 = vset.pattern.permute.xlu0 2
        %775 = vperm.xlu0 %774, %v526
        %v776 = vpop.permute.xlu0 %775
        %778 = vset.pattern.permute.xlu0 2
        %779 = vperm.xlu0 %778, %v527
        %v780 = vpop.permute.xlu0 %779
        %782 = vset.pattern.permute.xlu0 2
        %783 = vperm.xlu0 %782, %v528
        %v784 = vpop.permute.xlu0 %783
        %786 = vset.pattern.permute.xlu0 2
        %787 = vperm.xlu0 %786, %v529
        %v788 = vpop.permute.xlu0 %787
        %790 = vset.pattern.permute.xlu0 2
        %791 = vperm.xlu0 %790, %v530
        %v792 = vpop.permute.xlu0 %791
        %794 = vset.pattern.permute.xlu0 2
        %795 = vperm.xlu0 %794, %v531
        %v796 = vpop.permute.xlu0 %795
        %798 = vset.pattern.permute.xlu0 2
        %799 = vperm.xlu0 %798, %v532
        %v800 = vpop.permute.xlu0 %799
        %802 = vset.pattern.permute.xlu0 2
        %803 = vperm.xlu0 %802, %v533
        %v804 = vpop.permute.xlu0 %803
        %806 = vset.pattern.permute.xlu0 2
        %807 = vperm.xlu0 %806, %v534
        %v808 = vpop.permute.xlu0 %807
        %810 = vset.pattern.permute.xlu0 2
        %811 = vperm.xlu0 %810, %v535
        %v812 = vpop.permute.xlu0 %811
        %814 = vset.pattern.permute.xlu0 2
        %815 = vperm.xlu0 %814, %v536
        %v816 = vpop.permute.xlu0 %815
        %818 = vset.pattern.permute.xlu0 2
        %819 = vperm.xlu0 %818, %v537
        %v820 = vpop.permute.xlu0 %819
        %822 = vset.pattern.permute.xlu0 2
        %823 = vperm.xlu0 %822, %v538
        %v824 = vpop.permute.xlu0 %823
        %826 = vset.pattern.permute.xlu0 2
        %827 = vperm.xlu0 %826, %v539
        %v828 = vpop.permute.xlu0 %827
        %830 = vset.pattern.permute.xlu0 2
        %831 = vperm.xlu0 %830, %v540
        %v832 = vpop.permute.xlu0 %831
        %834 = vset.pattern.permute.xlu0 2
        %835 = vperm.xlu0 %834, %v541
        %v836 = vpop.permute.xlu0 %835
        %v838 = vlaneseq
        %v839 = vshrl.u32 %v838, 7
        %v840 = vsub.s32 2, %v839
        %v841 = vrot.slane %v509, %v840
        %v842 = vsub.f32 %v776, %v841
        %v843 = vsub.f32 %v780, %v841
        %v844 = vsub.f32 %v784, %v841
        %v845 = vsub.f32 %v788, %v841
        %v846 = vsub.f32 %v792, %v841
        %v847 = vsub.f32 %v796, %v841
        %v848 = vsub.f32 %v800, %v841
        %v849 = vsub.f32 %v804, %v841
        %v850 = vsub.f32 %v808, %v841
        %v851 = vsub.f32 %v812, %v841
        %v852 = vsub.f32 %v816, %v841
        %v853 = vsub.f32 %v820, %v841
        %v854 = vsub.f32 %v824, %v841
        %v855 = vsub.f32 %v828, %v841
        %v856 = vsub.f32 %v832, %v841
        %v857 = vsub.f32 %v836, %v841
        %v858 = vmul.f32 %v842, %v842
        %v859 = vmul.f32 %v843, %v843
        %v860 = vmul.f32 %v844, %v844
        %v861 = vmul.f32 %v845, %v845
        %v862 = vmul.f32 %v846, %v846
        %v863 = vmul.f32 %v847, %v847
        %v864 = vmul.f32 %v848, %v848
        %v865 = vmul.f32 %v849, %v849
        %v866 = vmul.f32 %v850, %v850
        %v867 = vmul.f32 %v851, %v851
        %v868 = vmul.f32 %v852, %v852
        %v869 = vmul.f32 %v853, %v853
        %v870 = vmul.f32 %v854, %v854
        %v871 = vmul.f32 %v855, %v855
        %v872 = vmul.f32 %v856, %v856
        %v873 = vmul.f32 %v857, %v857
        %v874 = vadd.f32 %v758, %v858
        %v875 = vadd.f32 %v759, %v859
        %v876 = vadd.f32 %v760, %v860
        %v877 = vadd.f32 %v761, %v861
        %v878 = vadd.f32 %v762, %v862
        %v879 = vadd.f32 %v763, %v863
        %v880 = vadd.f32 %v764, %v864
        %v881 = vadd.f32 %v765, %v865
        %v882 = vadd.f32 %v766, %v866
        %v883 = vadd.f32 %v767, %v867
        %v884 = vadd.f32 %v768, %v868
        %v885 = vadd.f32 %v769, %v869
        %v886 = vadd.f32 %v770, %v870
        %v887 = vadd.f32 %v771, %v871
        %v888 = vadd.f32 %v772, %v872
        %v889 = vadd.f32 %v773, %v873
        %v890 = vsub.f32 0.0, %v874
        %v891 = vsub.f32 0.0, %v875
        %v892 = vsub.f32 0.0, %v876
        %v893 = vsub.f32 0.0, %v877
        %v894 = vsub.f32 0.0, %v878
        %v895 = vsub.f32 0.0, %v879
        %v896 = vsub.f32 0.0, %v880
        %v897 = vsub.f32 0.0, %v881
        %v898 = vsub.f32 0.0, %v882
        %v899 = vsub.f32 0.0, %v883
        %v900 = vsub.f32 0.0, %v884
        %v901 = vsub.f32 0.0, %v885
        %v902 = vsub.f32 0.0, %v886
        %v903 = vsub.f32 0.0, %v887
        %v904 = vsub.f32 0.0, %v888
        %v905 = vsub.f32 0.0, %v889
        %v906 = vmul.f32 %v890, 1.442695
        %v907 = vpow.pop %v906
        %v908 = vmul.f32 %v891, 1.442695
        %v909 = vpow.pop %v908
        %v910 = vmul.f32 %v892, 1.442695
        %v911 = vpow.pop %v910
        %v912 = vmul.f32 %v893, 1.442695
        %v913 = vpow.pop %v912
        %v914 = vmul.f32 %v894, 1.442695
        %v915 = vpow.pop %v914
        %v916 = vmul.f32 %v895, 1.442695
        %v917 = vpow.pop %v916
        %v918 = vmul.f32 %v896, 1.442695
        %v919 = vpow.pop %v918
        %v920 = vmul.f32 %v897, 1.442695
        %v921 = vpow.pop %v920
        %v922 = vmul.f32 %v898, 1.442695
        %v923 = vpow.pop %v922
        %v924 = vmul.f32 %v899, 1.442695
        %v925 = vpow.pop %v924
        %v926 = vmul.f32 %v900, 1.442695
        %v927 = vpow.pop %v926
        %v928 = vmul.f32 %v901, 1.442695
        %v929 = vpow.pop %v928
        %v930 = vmul.f32 %v902, 1.442695
        %v931 = vpow.pop %v930
        %v932 = vmul.f32 %v903, 1.442695
        %v933 = vpow.pop %v932
        %v934 = vmul.f32 %v904, 1.442695
        %v935 = vpow.pop %v934
        %v936 = vmul.f32 %v905, 1.442695
        %v937 = vpow.pop %v936
        %s938 = scalar_lea.vmem [#allocation2], 48
        %v939 = vld [vmem:[%s938] sm:$0xff]
        %v940 = vld [vmem:[%s938 + $0x8] sm:$0xff]
        %v941 = vld [vmem:[%s938 + $0x10] sm:$0x1]
        %942 = vmatprep.subr.mxu0 0.0
        %943 = vmatpush1.msra.mxu0 %v907
        %944 = vmatprep.subr.mxu0 0.0
        %945 = vmatpush1.msra.mxu0 %v909
        %946 = vmatprep.subr.mxu0 0.0
        %947 = vmatpush1.msra.mxu0 %v911
        %948 = vmatprep.subr.mxu0 0.0
        %949 = vmatpush1.msra.mxu0 %v913
        %950 = vmatprep.subr.mxu0 0.0
        %951 = vmatpush1.msra.mxu0 %v915
        %952 = vmatprep.subr.mxu0 0.0
        %953 = vmatpush1.msra.mxu0 %v917
        %954 = vmatprep.subr.mxu0 0.0
        %955 = vmatpush1.msra.mxu0 %v919
        %956 = vmatprep.subr.mxu0 0.0
        %957 = vmatpush1.msra.mxu0 %v921
        %958 = vmatprep.subr.mxu0 0.0
        %959 = vmatpush1.msra.mxu0 %v923
        %960 = vmatprep.subr.mxu0 0.0
        %961 = vmatpush1.msra.mxu0 %v925
        %962 = vmatprep.subr.mxu0 0.0
        %963 = vmatpush1.msra.mxu0 %v927
        %964 = vmatprep.subr.mxu0 0.0
        %965 = vmatpush1.msra.mxu0 %v929
        %966 = vmatprep.subr.mxu0 0.0
        %967 = vmatpush1.msra.mxu0 %v931
        %968 = vmatprep.subr.mxu0 0.0
        %969 = vmatpush1.msra.mxu0 %v933
        %970 = vmatprep.subr.mxu0 0.0
        %971 = vmatpush1.msra.mxu0 %v935
        %972 = vmatprep.subr.mxu0 0.0
        %973 = vmatpush1.msra.mxu0 %v937
        %974 = vmatprep.subr.mxu0 0.0
        %975 = vmatpush1.msra.mxu0 0.0
        %976 = vmatprep.subr.mxu0 0.0
        %977 = vmatpush1.msra.mxu0 0.0
        %978 = vmatprep.subr.mxu0 0.0
        %979 = vmatpush1.msra.mxu0 0.0
        %980 = vmatprep.subr.mxu0 0.0
        %981 = vmatpush1.msra.mxu0 0.0
        %982 = vmatprep.subr.mxu0 0.0
        %983 = vmatpush1.msra.mxu0 0.0
        %984 = vmatprep.subr.mxu0 0.0
        %985 = vmatpush1.msra.mxu0 0.0
        %986 = vmatprep.subr.mxu0 0.0
        %987 = vmatpush1.msra.mxu0 0.0
        %988 = vmatprep.subr.mxu0 0.0
        %989 = vmatpush1.msra.mxu0 0.0
        %990 = vmatprep.subr.mxu0 0.0
        %991 = vmatpush1.msra.mxu0 0.0
        %992 = vmatprep.subr.mxu0 0.0
        %993 = vmatpush1.msra.mxu0 0.0
        %994 = vmatprep.subr.mxu0 0.0
        %995 = vmatpush1.msra.mxu0 0.0
        %996 = vmatprep.subr.mxu0 0.0
        %997 = vmatpush1.msra.mxu0 0.0
        %998 = vmatprep.subr.mxu0 0.0
        %999 = vmatpush1.msra.mxu0 0.0
        %1000 = vmatprep.subr.mxu0 0.0
        %1001 = vmatpush1.msra.mxu0 0.0
        %1002 = vmatprep.subr.mxu0 0.0
        %1003 = vmatpush1.msra.mxu0 0.0
        %1004 = vmatprep.subr.mxu0 0.0
        %1005 = vmatpush1.msra.mxu0 0.0
        %1006 = vmatprep.mubr.f32.mxu0 0.0
        %1007 = vmatmul.mubr.f32.gmra.mrb[0].mxu0 %v506
        %v1008 = vpop.f32.mrb[0].mxu0
        %v1009 = vadd.f32 0.0, %v1008
        %v1010 = vpop.f32.mrb[0].mxu0
        %1011 = vmatprep.mubr.f32.mxu0 0.0
        %1012 = vmatmul.mubr.f32.gmra.mrb[0].mxu0 %v507
        %v1013 = vpop.f32.mrb[0].mxu0
        %v1014 = vadd.f32 0.0, %v1013
        %v1015 = vpop.f32.mrb[0].mxu0
        %1016 = vmatprep.mubr.f32.mxu0 0.0
        %1017 = vmatmul.mubr.f32.gmra.mrb[0].mxu0 1.0
        %v1018 = vpop.f32.mrb[0].mxu0
        %v1019 = vadd.f32 0.0, %v1018
        %v1020 = vpop.f32.mrb[0].mxu0
        %1021 = vdwg.mxu0
        %v1022 = vadd.f32 %v939, %v1009
        %v1023 = vadd.f32 %v940, %v1014
        %v1024 = vadd.f32 %v941, %v1019
        %1025 = vst [vmem:[%s938] sm:$0xff] %v1022
        %1026 = vst [vmem:[%s938 + $0x8] sm:$0xff] %v1023
        %1027 = vst [vmem:[%s938 + $0x10] sm:$0x1] %v1024
        %v1028 = vmul.f32 %v907, %v907
        %v1029 = vmul.f32 %v909, %v909
        %v1030 = vmul.f32 %v911, %v911
        %v1031 = vmul.f32 %v913, %v913
        %v1032 = vmul.f32 %v915, %v915
        %v1033 = vmul.f32 %v917, %v917
        %v1034 = vmul.f32 %v919, %v919
        %v1035 = vmul.f32 %v921, %v921
        %v1036 = vmul.f32 %v923, %v923
        %v1037 = vmul.f32 %v925, %v925
        %v1038 = vmul.f32 %v927, %v927
        %v1039 = vmul.f32 %v929, %v929
        %v1040 = vmul.f32 %v931, %v931
        %v1041 = vmul.f32 %v933, %v933
        %v1042 = vmul.f32 %v935, %v935
        %v1043 = vmul.f32 %v937, %v937
        %v1044 = vmul.f32 %v1028, %v1028
        %v1045 = vmul.f32 %v1029, %v1029
        %v1046 = vmul.f32 %v1030, %v1030
        %v1047 = vmul.f32 %v1031, %v1031
        %v1048 = vmul.f32 %v1032, %v1032
        %v1049 = vmul.f32 %v1033, %v1033
        %v1050 = vmul.f32 %v1034, %v1034
        %v1051 = vmul.f32 %v1035, %v1035
        %v1052 = vmul.f32 %v1036, %v1036
        %v1053 = vmul.f32 %v1037, %v1037
        %v1054 = vmul.f32 %v1038, %v1038
        %v1055 = vmul.f32 %v1039, %v1039
        %v1056 = vmul.f32 %v1040, %v1040
        %v1057 = vmul.f32 %v1041, %v1041
        %v1058 = vmul.f32 %v1042, %v1042
        %v1059 = vmul.f32 %v1043, %v1043
        %s1060 = scalar_lea.vmem [#allocation2], 24
        %v1061 = vld [vmem:[%s1060] sm:$0xff]
        %v1062 = vld [vmem:[%s1060 + $0x8] sm:$0xff]
        %v1063 = vld [vmem:[%s1060 + $0x10] sm:$0x1]
        %1064 = vmatprep.subr.mxu0 0.0
        %1065 = vmatpush1.msra.mxu0 %v1044
        %1066 = vmatprep.subr.mxu0 0.0
        %1067 = vmatpush1.msra.mxu0 %v1045
        %1068 = vmatprep.subr.mxu0 0.0
        %1069 = vmatpush1.msra.mxu0 %v1046
        %1070 = vmatprep.subr.mxu0 0.0
        %1071 = vmatpush1.msra.mxu0 %v1047
        %1072 = vmatprep.subr.mxu0 0.0
        %1073 = vmatpush1.msra.mxu0 %v1048
        %1074 = vmatprep.subr.mxu0 0.0
        %1075 = vmatpush1.msra.mxu0 %v1049
        %1076 = vmatprep.subr.mxu0 0.0
        %1077 = vmatpush1.msra.mxu0 %v1050
        %1078 = vmatprep.subr.mxu0 0.0
        %1079 = vmatpush1.msra.mxu0 %v1051
        %1080 = vmatprep.subr.mxu0 0.0
        %1081 = vmatpush1.msra.mxu0 %v1052
        %1082 = vmatprep.subr.mxu0 0.0
        %1083 = vmatpush1.msra.mxu0 %v1053
        %1084 = vmatprep.subr.mxu0 0.0
        %1085 = vmatpush1.msra.mxu0 %v1054
        %1086 = vmatprep.subr.mxu0 0.0
        %1087 = vmatpush1.msra.mxu0 %v1055
        %1088 = vmatprep.subr.mxu0 0.0
        %1089 = vmatpush1.msra.mxu0 %v1056
        %1090 = vmatprep.subr.mxu0 0.0
        %1091 = vmatpush1.msra.mxu0 %v1057
        %1092 = vmatprep.subr.mxu0 0.0
        %1093 = vmatpush1.msra.mxu0 %v1058
        %1094 = vmatprep.subr.mxu0 0.0
        %1095 = vmatpush1.msra.mxu0 %v1059
        %1096 = vmatprep.subr.mxu0 0.0
        %1097 = vmatpush1.msra.mxu0 0.0
        %1098 = vmatprep.subr.mxu0 0.0
        %1099 = vmatpush1.msra.mxu0 0.0
        %1100 = vmatprep.subr.mxu0 0.0
        %1101 = vmatpush1.msra.mxu0 0.0
        %1102 = vmatprep.subr.mxu0 0.0
        %1103 = vmatpush1.msra.mxu0 0.0
        %1104 = vmatprep.subr.mxu0 0.0
        %1105 = vmatpush1.msra.mxu0 0.0
        %1106 = vmatprep.subr.mxu0 0.0
        %1107 = vmatpush1.msra.mxu0 0.0
        %1108 = vmatprep.subr.mxu0 0.0
        %1109 = vmatpush1.msra.mxu0 0.0
        %1110 = vmatprep.subr.mxu0 0.0
        %1111 = vmatpush1.msra.mxu0 0.0
        %1112 = vmatprep.subr.mxu0 0.0
        %1113 = vmatpush1.msra.mxu0 0.0
        %1114 = vmatprep.subr.mxu0 0.0
        %1115 = vmatpush1.msra.mxu0 0.0
        %1116 = vmatprep.subr.mxu0 0.0
        %1117 = vmatpush1.msra.mxu0 0.0
        %1118 = vmatprep.subr.mxu0 0.0
        %1119 = vmatpush1.msra.mxu0 0.0
        %1120 = vmatprep.subr.mxu0 0.0
        %1121 = vmatpush1.msra.mxu0 0.0
        %1122 = vmatprep.subr.mxu0 0.0
        %1123 = vmatpush1.msra.mxu0 0.0
        %1124 = vmatprep.subr.mxu0 0.0
        %1125 = vmatpush1.msra.mxu0 0.0
        %1126 = vmatprep.subr.mxu0 0.0
        %1127 = vmatpush1.msra.mxu0 0.0
        %1128 = vmatprep.mubr.f32.mxu0 0.0
        %1129 = vmatmul.mubr.f32.gmra.mrb[0].mxu0 %v506
        %v1130 = vpop.f32.mrb[0].mxu0
        %v1131 = vadd.f32 0.0, %v1130
        %v1132 = vpop.f32.mrb[0].mxu0
        %1133 = vmatprep.mubr.f32.mxu0 0.0
        %1134 = vmatmul.mubr.f32.gmra.mrb[0].mxu0 %v507
        %v1135 = vpop.f32.mrb[0].mxu0
        %v1136 = vadd.f32 0.0, %v1135
        %v1137 = vpop.f32.mrb[0].mxu0
        %1138 = vmatprep.mubr.f32.mxu0 0.0
        %1139 = vmatmul.mubr.f32.gmra.mrb[0].mxu0 1.0
        %v1140 = vpop.f32.mrb[0].mxu0
        %v1141 = vadd.f32 0.0, %v1140
        %v1142 = vpop.f32.mrb[0].mxu0
        %1143 = vdwg.mxu0
        %v1144 = vadd.f32 %v1061, %v1131
        %v1145 = vadd.f32 %v1062, %v1136
        %v1146 = vadd.f32 %v1063, %v1141
        %1147 = vst [vmem:[%s1060] sm:$0xff] %v1144
        %1148 = vst [vmem:[%s1060 + $0x8] sm:$0xff] %v1145
        %1149 = vst [vmem:[%s1060 + $0x10] sm:$0x1] %v1146
        %v1150 = vmul.f32 %v1044, %v1044
        %v1151 = vmul.f32 %v1045, %v1045
        %v1152 = vmul.f32 %v1046, %v1046
        %v1153 = vmul.f32 %v1047, %v1047
        %v1154 = vmul.f32 %v1048, %v1048
        %v1155 = vmul.f32 %v1049, %v1049
        %v1156 = vmul.f32 %v1050, %v1050
        %v1157 = vmul.f32 %v1051, %v1051
        %v1158 = vmul.f32 %v1052, %v1052
        %v1159 = vmul.f32 %v1053, %v1053
        %v1160 = vmul.f32 %v1054, %v1054
        %v1161 = vmul.f32 %v1055, %v1055
        %v1162 = vmul.f32 %v1056, %v1056
        %v1163 = vmul.f32 %v1057, %v1057
        %v1164 = vmul.f32 %v1058, %v1058
        %v1165 = vmul.f32 %v1059, %v1059
        %v1166 = vmul.f32 %v1150, %v1150
        %v1167 = vmul.f32 %v1151, %v1151
        %v1168 = vmul.f32 %v1152, %v1152
        %v1169 = vmul.f32 %v1153, %v1153
        %v1170 = vmul.f32 %v1154, %v1154
        %v1171 = vmul.f32 %v1155, %v1155
        %v1172 = vmul.f32 %v1156, %v1156
        %v1173 = vmul.f32 %v1157, %v1157
        %v1174 = vmul.f32 %v1158, %v1158
        %v1175 = vmul.f32 %v1159, %v1159
        %v1176 = vmul.f32 %v1160, %v1160
        %v1177 = vmul.f32 %v1161, %v1161
        %v1178 = vmul.f32 %v1162, %v1162
        %v1179 = vmul.f32 %v1163, %v1163
        %v1180 = vmul.f32 %v1164, %v1164
        %v1181 = vmul.f32 %v1165, %v1165
        %v1182 = vld [vmem:[#allocation2] sm:$0xff]
        %v1183 = vld [vmem:[#allocation2 + $0x8] sm:$0xff]
        %v1184 = vld [vmem:[#allocation2 + $0x10] sm:$0x1]
        %1185 = vmatprep.subr.mxu0 0.0
        %1186 = vmatpush1.msra.mxu0 %v1166
        %1187 = vmatprep.subr.mxu0 0.0
        %1188 = vmatpush1.msra.mxu0 %v1167
        %1189 = vmatprep.subr.mxu0 0.0
        %1190 = vmatpush1.msra.mxu0 %v1168
        %1191 = vmatprep.subr.mxu0 0.0
        %1192 = vmatpush1.msra.mxu0 %v1169
        %1193 = vmatprep.subr.mxu0 0.0
        %1194 = vmatpush1.msra.mxu0 %v1170
        %1195 = vmatprep.subr.mxu0 0.0
        %1196 = vmatpush1.msra.mxu0 %v1171
        %1197 = vmatprep.subr.mxu0 0.0
        %1198 = vmatpush1.msra.mxu0 %v1172
        %1199 = vmatprep.subr.mxu0 0.0
        %1200 = vmatpush1.msra.mxu0 %v1173
        %1201 = vmatprep.subr.mxu0 0.0
        %1202 = vmatpush1.msra.mxu0 %v1174
        %1203 = vmatprep.subr.mxu0 0.0
        %1204 = vmatpush1.msra.mxu0 %v1175
        %1205 = vmatprep.subr.mxu0 0.0
        %1206 = vmatpush1.msra.mxu0 %v1176
        %1207 = vmatprep.subr.mxu0 0.0
        %1208 = vmatpush1.msra.mxu0 %v1177
        %1209 = vmatprep.subr.mxu0 0.0
        %1210 = vmatpush1.msra.mxu0 %v1178
        %1211 = vmatprep.subr.mxu0 0.0
        %1212 = vmatpush1.msra.mxu0 %v1179
        %1213 = vmatprep.subr.mxu0 0.0
        %1214 = vmatpush1.msra.mxu0 %v1180
        %1215 = vmatprep.subr.mxu0 0.0
        %1216 = vmatpush1.msra.mxu0 %v1181
        %1217 = vmatprep.subr.mxu0 0.0
        %1218 = vmatpush1.msra.mxu0 0.0
        %1219 = vmatprep.subr.mxu0 0.0
        %1220 = vmatpush1.msra.mxu0 0.0
        %1221 = vmatprep.subr.mxu0 0.0
        %1222 = vmatpush1.msra.mxu0 0.0
        %1223 = vmatprep.subr.mxu0 0.0
        %1224 = vmatpush1.msra.mxu0 0.0
        %1225 = vmatprep.subr.mxu0 0.0
        %1226 = vmatpush1.msra.mxu0 0.0
        %1227 = vmatprep.subr.mxu0 0.0
        %1228 = vmatpush1.msra.mxu0 0.0
        %1229 = vmatprep.subr.mxu0 0.0
        %1230 = vmatpush1.msra.mxu0 0.0
        %1231 = vmatprep.subr.mxu0 0.0
        %1232 = vmatpush1.msra.mxu0 0.0
        %1233 = vmatprep.subr.mxu0 0.0
        %1234 = vmatpush1.msra.mxu0 0.0
        %1235 = vmatprep.subr.mxu0 0.0
        %1236 = vmatpush1.msra.mxu0 0.0
        %1237 = vmatprep.subr.mxu0 0.0
        %1238 = vmatpush1.msra.mxu0 0.0
        %1239 = vmatprep.subr.mxu0 0.0
        %1240 = vmatpush1.msra.mxu0 0.0
        %1241 = vmatprep.subr.mxu0 0.0
        %1242 = vmatpush1.msra.mxu0 0.0
        %1243 = vmatprep.subr.mxu0 0.0
        %1244 = vmatpush1.msra.mxu0 0.0
        %1245 = vmatprep.subr.mxu0 0.0
        %1246 = vmatpush1.msra.mxu0 0.0
        %1247 = vmatprep.subr.mxu0 0.0
        %1248 = vmatpush1.msra.mxu0 0.0
        %1249 = vmatprep.mubr.f32.mxu0 0.0
        %1250 = vmatmul.mubr.f32.gmra.mrb[0].mxu0 %v506
        %v1251 = vpop.f32.mrb[0].mxu0
        %v1252 = vadd.f32 0.0, %v1251
        %v1253 = vpop.f32.mrb[0].mxu0
        %1254 = vmatprep.mubr.f32.mxu0 0.0
        %1255 = vmatmul.mubr.f32.gmra.mrb[0].mxu0 %v507
        %v1256 = vpop.f32.mrb[0].mxu0
        %v1257 = vadd.f32 0.0, %v1256
        %v1258 = vpop.f32.mrb[0].mxu0
        %1259 = vmatprep.mubr.f32.mxu0 0.0
        %1260 = vmatmul.mubr.f32.gmra.mrb[0].mxu0 1.0
        %v1261 = vpop.f32.mrb[0].mxu0
        %v1262 = vadd.f32 0.0, %v1261
        %v1263 = vpop.f32.mrb[0].mxu0
        %1264 = vdwg.mxu0
        %v1265 = vadd.f32 %v1182, %v1252
        %v1266 = vadd.f32 %v1183, %v1257
        %v1267 = vadd.f32 %v1184, %v1262
        %1268 = vst [vmem:[#allocation2] sm:$0xff] %v1265
        %1269 = vst [vmem:[#allocation2 + $0x8] sm:$0xff] %v1266
        %1270 = vst [vmem:[#allocation2 + $0x10] sm:$0x1] %v1267
        %p1271 = scmp.eq.s32.totalorder %s25, 2
        // Predicated region
        $region53: #{geo_simple_feature_net_forward.5} parent=47 // pred_check
          %p1272 = pneg %p1271
        $region54: #{geo_simple_feature_net_forward.5} parent=47 // pred_check_branch
          %1274 = sbr.rel (%p1272) target = $region56
        $region55: #{geo_simple_feature_net_forward.5} parent=47 // pred_region
          %v1275 = vld [vmem:[#allocation2] sm:$0xff]
          %v1276 = vld [vmem:[#allocation2 + $0x8] sm:$0xff]
          %v1277 = vld [vmem:[#allocation2 + $0x10] sm:$0x1]
          %v1278 = vmax.f32 %v1277, 1e-20
          %v1279 = vrcp.pop %v1278
          %v1280 = vmul.f32 %v1278, %v1279
          %v1281 = vsub.f32 2.0, %v1280
          %v1282 = vmul.f32 %v1279, %v1281
          %v1283 = vlaneseq
          %v1284 = vshrl.u32 %v1283, 7
          %v1285 = vsub.s32 0, %v1284
          %v1286 = vrot.slane %v1282, %v1285
          %v1287 = vmul.f32 %v1275, %v1286
          %v1288 = vmul.f32 %v1276, %v1286
          %v1289 = vmul.f32 %v1287, 0.33
          %v1290 = vmul.f32 %v1288, 0.33
          %v1291 = vadd.f32 %v1289, 0.0
          %v1292 = vadd.f32 %v1290, 0.0
          %v1293 = vld [vmem:[%s1060] sm:$0xff]
          %v1294 = vld [vmem:[%s1060 + $0x8] sm:$0xff]
          %v1295 = vld [vmem:[%s1060 + $0x10] sm:$0x1]
          %v1296 = vmax.f32 %v1295, 1e-20
          %v1297 = vrcp.pop %v1296
          %v1298 = vmul.f32 %v1296, %v1297
          %v1299 = vsub.f32 2.0, %v1298
          %v1300 = vmul.f32 %v1297, %v1299
          %v1301 = vlaneseq
          %v1302 = vshrl.u32 %v1301, 7
          %v1303 = vsub.s32 0, %v1302
          %v1304 = vrot.slane %v1300, %v1303
          %v1305 = vmul.f32 %v1293, %v1304
          %v1306 = vmul.f32 %v1294, %v1304
          %v1307 = vmul.f32 %v1305, 0.33
          %v1308 = vmul.f32 %v1306, 0.33
          %v1309 = vadd.f32 %v1291, %v1307
          %v1310 = vadd.f32 %v1292, %v1308
          %v1311 = vld [vmem:[%s938] sm:$0xff]
          %v1312 = vld [vmem:[%s938 + $0x8] sm:$0xff]
          %v1313 = vld [vmem:[%s938 + $0x10] sm:$0x1]
          %v1314 = vmax.f32 %v1313, 1e-20
          %v1315 = vrcp.pop %v1314
          %v1316 = vmul.f32 %v1314, %v1315
          %v1317 = vsub.f32 2.0, %v1316
          %v1318 = vmul.f32 %v1315, %v1317
          %v1319 = vlaneseq
          %v1320 = vshrl.u32 %v1319, 7
          %v1321 = vsub.s32 0, %v1320
          %v1322 = vrot.slane %v1318, %v1321
          %v1323 = vmul.f32 %v1311, %v1322
          %v1324 = vmul.f32 %v1312, %v1322
          %v1325 = vmul.f32 %v1323, 0.33
          %v1326 = vmul.f32 %v1324, 0.33
          %v1327 = vadd.f32 %v1309, %v1325
          %v1328 = vadd.f32 %v1310, %v1326
          %1329 = vst [vmem:[%s343] sm:$0xff] %v1327
          %1330 = vst [vmem:[%s343 + $0x8] sm:$0xff] %v1328
        $region56: #{geo_simple_feature_net_forward.5} parent=47 // pred_fallthru
          _
        %s1331 = sand.u32 %s215, 1
        %s1332 = sand.u32 %s215, 1
        %s1333 = smul.addr %s1332, 16
        %s1334 = scalar_lea.vmem [#allocation3], %s1333
        // Predicated region
        $region57: #{geo_simple_feature_net_forward.5} parent=47 // pred_check
          %p1335 = pneg %p225
        $region58: #{geo_simple_feature_net_forward.5} parent=47 // pred_check_branch
          %1337 = sbr.rel (%p1335) target = $region60
        $region59: #{geo_simple_feature_net_forward.5} parent=47 // pred_region
          %s1338 = smul.addr %s23, 6
          %s1339 = sadd.s32 %s24, %s1338
          %s1340 = smul.addr %s1339, 8
          %s1341 = scalar_lea.vmem %s7, %s1340
          // Predicated region
          $region61: #{geo_simple_feature_net_forward.5} parent=59 // pred_check
            _
          $region62: #{geo_simple_feature_net_forward.5} parent=59 // pred_check_branch
            %1343 = sbr.rel (0) target = $region64
          $region63: #{geo_simple_feature_net_forward.5} parent=59 // pred_region
            // Predicated region
            $region65: #{geo_simple_feature_net_forward.5} parent=63 // pred_check
              _
            $region66: #{geo_simple_feature_net_forward.5} parent=63 // pred_check_branch
              %1345 = sbr.rel (0) target = $region68
            $region67: #{geo_simple_feature_net_forward.5} parent=63 // pred_region
              // Predicated region
              $region80: #{geo_simple_feature_net_forward.5} parent=67 // pred_check
                _
              $region81: #{geo_simple_feature_net_forward.5} parent=67 // pred_check_branch
                %1362 = sbr.rel (0) target = $region83
              $region82: #{geo_simple_feature_net_forward.5} parent=67 // pred_region
                loop: start=0, step=1, limit=1
                $region84: #{geo_simple_feature_net_forward.5} parent=82 // loop_pre_header
                  _
                $region85: #{geo_simple_feature_net_forward.5} parent=82 // loop_header
                  %s1364 = sphi 0, %s1368
                  %p1365 = scmp.ge.s32.totalorder %s1364, 1
                  %s1369 = sphi %s1334, %s1334
                  %s1370 = sphi %s1341, %s1341
                $region86: #{geo_simple_feature_net_forward.5} parent=82 // loop_header_branch
                  %1367 = sbr.rel (%p1365) target = $region90
                $region87: #{geo_simple_feature_net_forward.5} parent=82 // loop_body
                  %v1371 = vld [vmem:[%s1369] sm:$0xff]
                  %1372 = vst [vmem:[%s1370] sm:$0xff] %v1371
                  %v1373 = vld [vmem:[%s1369 + $0x8] sm:$0xff]
                  %1374 = vst [vmem:[%s1370 + $0x18] sm:$0xff] %v1373
                $region88: #{geo_simple_feature_net_forward.5} parent=82 // loop_footer
                  %s1368 = sadd.s32 1, %s1364
                $region89: #{geo_simple_feature_net_forward.5} parent=82 // loop_footer_branch
                  %1363 = sbr.rel target = $region85
                $region90: #{geo_simple_feature_net_forward.5} parent=82 // loop_exit
                  _
              $region83: #{geo_simple_feature_net_forward.5} parent=67 // pred_fallthru
                _
              // Predicated region
              $region91: #{geo_simple_feature_net_forward.5} parent=67 // pred_check
                _
              $region92: #{geo_simple_feature_net_forward.5} parent=67 // pred_check_branch
                %1376 = sbr.rel target = $region94
              $region93: #{geo_simple_feature_net_forward.5} parent=67 // pred_region
                _
              $region94: #{geo_simple_feature_net_forward.5} parent=67 // pred_fallthru
                _
            $region68: #{geo_simple_feature_net_forward.5} parent=63 // pred_fallthru
              _
            // Predicated region
            $region69: #{geo_simple_feature_net_forward.5} parent=63 // pred_check
              _
            $region70: #{geo_simple_feature_net_forward.5} parent=63 // pred_check_branch
              %1347 = sbr.rel target = $region72
            $region71: #{geo_simple_feature_net_forward.5} parent=63 // pred_region
              loop: start=0, step=1, limit=1
              $region73: #{geo_simple_feature_net_forward.5} parent=71 // loop_pre_header
                _
              $region74: #{geo_simple_feature_net_forward.5} parent=71 // loop_header
                %s1350 = sphi 0, %s1354
                %p1351 = scmp.ge.s32.totalorder %s1350, 1
                %s1355 = sphi %s1334, %s1334
                %s1356 = sphi %s1341, %s1341
              $region75: #{geo_simple_feature_net_forward.5} parent=71 // loop_header_branch
                %1353 = sbr.rel (%p1351) target = $region79
              $region76: #{geo_simple_feature_net_forward.5} parent=71 // loop_body
                %v1357 = vld [vmem:[%s1355] sm:$0xff]
                %1358 = vst [vmem:[%s1356] sm:$0xff] %v1357
                %v1359 = vld [vmem:[%s1355 + $0x8] sm:$0xff]
                %1360 = vst [vmem:[%s1356 + $0x18] sm:$0xff] %v1359
              $region77: #{geo_simple_feature_net_forward.5} parent=71 // loop_footer
                %s1354 = sadd.s32 1, %s1350
              $region78: #{geo_simple_feature_net_forward.5} parent=71 // loop_footer_branch
                %1349 = sbr.rel target = $region74
              $region79: #{geo_simple_feature_net_forward.5} parent=71 // loop_exit
                _
            $region72: #{geo_simple_feature_net_forward.5} parent=63 // pred_fallthru
              _
          $region64: #{geo_simple_feature_net_forward.5} parent=59 // pred_fallthru
            _
          %1377 = vnop
        $region60: #{geo_simple_feature_net_forward.5} parent=47 // pred_fallthru
          _
      $region48: #{geo_simple_feature_net_forward.5} parent=5 // pred_fallthru
        _
      %p1378 = scmp.le.s32.totalorder 2, %s13
      // Predicated region
      $region95: #{geo_simple_feature_net_forward.5} parent=5 // pred_check
        %p1379 = pneg %p1378
      $region96: #{geo_simple_feature_net_forward.5} parent=5 // pred_check_branch
        %1381 = sbr.rel (%p1379) target = $region98
      $region97: #{geo_simple_feature_net_forward.5} parent=5 // pred_region
        %s1382 = ssub.s32 %s13, 2
        // Predicated region
        $region99: #{geo_simple_feature_net_forward.5} parent=97 // pred_check
          %p1383 = pneg %p231
        $region100: #{geo_simple_feature_net_forward.5} parent=97 // pred_check_branch
          %1385 = sbr.rel (%p1383) target = $region102
        $region101: #{geo_simple_feature_net_forward.5} parent=97 // pred_region
          %s1386 = sand.u32 %s216, 1
          %s1387 = sand.u32 %s216, 1
          %s1388 = smul.addr %s1387, 16
          %s1389 = scalar_lea.vmem [#allocation3], %s1388
        $region102: #{geo_simple_feature_net_forward.5} parent=97 // pred_fallthru
          _
      $region98: #{geo_simple_feature_net_forward.5} parent=5 // pred_fallthru
        _
    $region6: #{geo_simple_feature_net_forward.5} parent=1 // loop_footer
      %s17 = sadd.s32 1, %s13
    $region7: #{geo_simple_feature_net_forward.5} parent=1 // loop_footer_branch
      %12 = sbr.rel target = $region3
    $region8: #{geo_simple_feature_net_forward.5} parent=1 // loop_exit
      _

// kernel: geo_simple_feature_net_forward.6
$region0: #{geo_simple_feature_net_forward.6}
  #allocation0 [shape = 'u32[]', space=smem, size = 0x4, offset = 0x4, fixed_abs, tag = 'smem constant byte address 0x4 - core index']
  #allocation1 [shape = 'u32[144,128]{1,0:T(1,128)}', space=vmem, size = 0x12000, scoped, tag = 'internal scratch']
  #allocation2 [shape = 'f32[3,17,128]{2,1,0:T(8,128)}', space=vmem, size = 0x9000, scoped, tag = 'scratch operand']
  %s0 = inlined_call_operand.vmem [shape: f32[2,3,384], index: 0, kind: input, shape index: {}]
  %s1 = inlined_call_operand.vmem [shape: f32[2,384,3], index: 1, kind: input, shape index: {}]
  %s2 = inlined_call_operand.vmem [shape: f32[2,16,384], index: 2, kind: input, shape index: {}]
  %s3 = inlined_call_operand.vmem [shape: f32[16,16], index: 3, kind: input, shape index: {}]
  %s4 = inlined_call_operand.vmem [shape: f32[16,1], index: 4, kind: input, shape index: {}]
  %s5 = inlined_call_operand.vmem [shape: f32[2,16,384], index: 5, kind: output, shape index: {}]
  %s6 = sld [smem:[#allocation0]]
  $region133: #{geo_simple_feature_net_forward.6} parent=0
    _
  %s8 = ssub.s32 1, %s6
  %s9 = scalar_select 0, %s8, %s6
  $region1: #{geo_simple_feature_net_forward.6} parent=0
    #allocation3 [shape = 'u8[16384]{0}', space=vmem, size = 0x4000, scoped, tag = 'input window, operand 2']
    #allocation4 [shape = 'u8[16384]{0}', space=vmem, size = 0x4000, scoped, tag = 'output window, operand 0']
    loop: start=0, step=1, limit=20
    $region2: #{geo_simple_feature_net_forward.6} parent=1 // loop_pre_header
      _
    $region3: #{geo_simple_feature_net_forward.6} parent=1 // loop_header
      %s11 = sphi 0, %s15
      %p12 = scmp.ge.s32.totalorder %s11, 20
      %s18 = sphi 0, %s37
      %s19 = sphi 0, %s33
      %s20 = sphi 0, %s29
      %s21 = sphi 0, %s18
      %s22 = sphi 0, %s19
      %s23 = sphi 0, %s20
      %s24 = sphi 0, %s21
      %s25 = sphi 0, %s22
      %s26 = sphi 0, %s23
      %s42 = sphi 0, %s44
      %s45 = sphi 0, %s42
      %s46 = sphi 0, %s45
      %s62 = sphi 0, %s46
      %s70 = sphi 0, %s72
      %s73 = sphi 0, %s70
      %s74 = sphi 0, %s73
      %s90 = sphi 0, %s74
      %s98 = sphi 0, %s100
      %s101 = sphi 0, %s98
      %s102 = sphi 0, %s101
      %s118 = sphi 0, %s102
      %s122 = sphi 0, %s122
      %s124 = sphi 0, %s122
      %s125 = sphi 0, %s124
      %s139 = sphi 0, %s125
      %s143 = sphi 0, %s143
      %s145 = sphi 0, %s143
      %s146 = sphi 0, %s145
      %s160 = sphi 0, %s146
      %s168 = sphi 0, %s170
      %s171 = sphi 0, %s168
      %s172 = sphi 0, %s171
      %s188 = sphi 0, %s172
    $region4: #{geo_simple_feature_net_forward.6} parent=1 // loop_header_branch
      %14 = sbr.rel (%p12) target = $region8
    $region5: #{geo_simple_feature_net_forward.6} parent=1 // loop_body
      %s16 = ssub.s32 %s11, 1
      %s17 = ssub.s32 %s11, 2
      %s27 = sadd.s32 1, %s20
      %p28 = scmp.ge.s32.totalorder %s27, 3
      %s29 = scalar_select %p28, 0, %s27
      %s30 = sadd.s32 1, %s19
      %s31 = scalar_select %p28, %s30, %s19
      %p32 = scmp.ge.s32.totalorder %s31, 3
      %s33 = scalar_select %p32, 0, %s31
      %s34 = sadd.s32 1, %s18
      %s35 = scalar_select %p32, %s34, %s18
      %p36 = scmp.ge.s32.totalorder %s35, 2
      %s37 = scalar_select %p36, 0, %s35
      %s38 = ssub.s32 %s18, %s37
      %s39 = ssub.s32 %s19, %s33
      %s40 = sor.u32 %s38, %s39
      %p41 = scmp.eq.s32.totalorder %s40, 0
      %s43 = sadd.s32 %s42, 1
      %s44 = scalar_select %p41, %s42, %s43
      %p47 = pneg %p41
      %p48 = scmp.eq.s32.totalorder %s11, 17
      %p49 = por %p47, %p48
      %p50 = scmp.ne.s32.totalorder %s42, %s45
      %p51 = scmp.eq.s32.totalorder %s11, 0
      %p52 = por %p50, %p51
      %p53 = scmp.ne.s32.totalorder %s42, %s45
      %p54 = scmp.eq.s32.totalorder %s16, 17
      %p55 = por %p53, %p54
      %p56 = scmp.ne.s32.totalorder %s45, %s46
      %p57 = scmp.eq.s32.totalorder %s16, 0
      %p58 = por %p56, %p57
      %p59 = scmp.ne.s32.totalorder %s45, %s46
      %p60 = scmp.eq.s32.totalorder %s17, 17
      %p61 = por %p59, %p60
      %p63 = scmp.ne.s32.totalorder %s46, %s62
      %p64 = scmp.eq.s32.totalorder %s17, 0
      %p65 = por %p63, %p64
      %s66 = ssub.s32 %s18, %s37
      %s67 = ssub.s32 %s20, %s29
      %s68 = sor.u32 %s66, %s67
      %p69 = scmp.eq.s32.totalorder %s68, 0
      %s71 = sadd.s32 %s70, 1
      %s72 = scalar_select %p69, %s70, %s71
      %p75 = pneg %p69
      %p76 = scmp.eq.s32.totalorder %s11, 17
      %p77 = por %p75, %p76
      %p78 = scmp.ne.s32.totalorder %s70, %s73
      %p79 = scmp.eq.s32.totalorder %s11, 0
      %p80 = por %p78, %p79
      %p81 = scmp.ne.s32.totalorder %s70, %s73
      %p82 = scmp.eq.s32.totalorder %s16, 17
      %p83 = por %p81, %p82
      %p84 = scmp.ne.s32.totalorder %s73, %s74
      %p85 = scmp.eq.s32.totalorder %s16, 0
      %p86 = por %p84, %p85
      %p87 = scmp.ne.s32.totalorder %s73, %s74
      %p88 = scmp.eq.s32.totalorder %s17, 17
      %p89 = por %p87, %p88
      %p91 = scmp.ne.s32.totalorder %s74, %s90
      %p92 = scmp.eq.s32.totalorder %s17, 0
      %p93 = por %p91, %p92
      %s94 = ssub.s32 %s18, %s37
      %s95 = ssub.s32 %s20, %s29
      %s96 = sor.u32 %s94, %s95
      %p97 = scmp.eq.s32.totalorder %s96, 0
      %s99 = sadd.s32 %s98, 1
      %s100 = scalar_select %p97, %s98, %s99
      %p103 = pneg %p97
      %p104 = scmp.eq.s32.totalorder %s11, 17
      %p105 = por %p103, %p104
      %p106 = scmp.ne.s32.totalorder %s98, %s101
      %p107 = scmp.eq.s32.totalorder %s11, 0
      %p108 = por %p106, %p107
      %p109 = scmp.ne.s32.totalorder %s98, %s101
      %p110 = scmp.eq.s32.totalorder %s16, 17
      %p111 = por %p109, %p110
      %p112 = scmp.ne.s32.totalorder %s101, %s102
      %p113 = scmp.eq.s32.totalorder %s16, 0
      %p114 = por %p112, %p113
      %p115 = scmp.ne.s32.totalorder %s101, %s102
      %p116 = scmp.eq.s32.totalorder %s17, 17
      %p117 = por %p115, %p116
      %p119 = scmp.ne.s32.totalorder %s102, %s118
      %p120 = scmp.eq.s32.totalorder %s17, 0
      %p121 = por %p119, %p120
      %s123 = sadd.s32 %s122, 1
      %p126 = scmp.eq.s32.totalorder %s11, 17
      %p127 = scmp.ne.s32.totalorder %s122, %s124
      %p128 = scmp.eq.s32.totalorder %s11, 0
      %p129 = por %p127, %p128
      %p130 = scmp.ne.s32.totalorder %s122, %s124
      %p131 = scmp.eq.s32.totalorder %s16, 17
      %p132 = por %p130, %p131
      %p133 = scmp.ne.s32.totalorder %s124, %s125
      %p134 = scmp.eq.s32.totalorder %s16, 0
      %p135 = por %p133, %p134
      %p136 = scmp.ne.s32.totalorder %s124, %s125
      %p137 = scmp.eq.s32.totalorder %s17, 17
      %p138 = por %p136, %p137
      %p140 = scmp.ne.s32.totalorder %s125, %s139
      %p141 = scmp.eq.s32.totalorder %s17, 0
      %p142 = por %p140, %p141
      %s144 = sadd.s32 %s143, 1
      %p147 = scmp.eq.s32.totalorder %s11, 17
      %p148 = scmp.ne.s32.totalorder %s143, %s145
      %p149 = scmp.eq.s32.totalorder %s11, 0
      %p150 = por %p148, %p149
      %p151 = scmp.ne.s32.totalorder %s143, %s145
      %p152 = scmp.eq.s32.totalorder %s16, 17
      %p153 = por %p151, %p152
      %p154 = scmp.ne.s32.totalorder %s145, %s146
      %p155 = scmp.eq.s32.totalorder %s16, 0
      %p156 = por %p154, %p155
      %p157 = scmp.ne.s32.totalorder %s145, %s146
      %p158 = scmp.eq.s32.totalorder %s17, 17
      %p159 = por %p157, %p158
      %p161 = scmp.ne.s32.totalorder %s146, %s160
      %p162 = scmp.eq.s32.totalorder %s17, 0
      %p163 = por %p161, %p162
      %s164 = ssub.s32 %s18, %s37
      %s165 = ssub.s32 %s19, %s33
      %s166 = sor.u32 %s164, %s165
      %p167 = scmp.eq.s32.totalorder %s166, 0
      %s169 = sadd.s32 %s168, 1
      %s170 = scalar_select %p167, %s168, %s169
      %p173 = pneg %p167
      %p174 = scmp.eq.s32.totalorder %s11, 17
      %p175 = por %p173, %p174
      %p176 = scmp.ne.s32.totalorder %s168, %s171
      %p177 = scmp.eq.s32.totalorder %s11, 0
      %p178 = por %p176, %p177
      %p179 = scmp.ne.s32.totalorder %s168, %s171
      %p180 = scmp.eq.s32.totalorder %s16, 17
      %p181 = por %p179, %p180
      %p182 = scmp.ne.s32.totalorder %s171, %s172
      %p183 = scmp.eq.s32.totalorder %s16, 0
      %p184 = por %p182, %p183
      %p185 = scmp.ne.s32.totalorder %s171, %s172
      %p186 = scmp.eq.s32.totalorder %s17, 17
      %p187 = por %p185, %p186
      %p189 = scmp.ne.s32.totalorder %s172, %s188
      %p190 = scmp.eq.s32.totalorder %s17, 0
      %p191 = por %p189, %p190
      %p192 = scmp.le.s32.totalorder 1, %s11
      %p193 = scmp.lt.s32.totalorder %s11, 19
      %p194 = pnand %p192, %p193
      %p195 = pneg %p194
      // Predicated region
      $region9: #{geo_simple_feature_net_forward.6} parent=5 // pred_check
        _
      $region10: #{geo_simple_feature_net_forward.6} parent=5 // pred_check_branch
        %197 = sbr.rel (%p194) target = $region12
      $region11: #{geo_simple_feature_net_forward.6} parent=5 // pred_region
        %s198 = ssub.s32 %s11, 1
        // Predicated region
        $region13: #{geo_simple_feature_net_forward.6} parent=11 // pred_check
          %p199 = pneg %p135
        $region14: #{geo_simple_feature_net_forward.6} parent=11 // pred_check_branch
          %201 = sbr.rel (%p199) target = $region16
        $region15: #{geo_simple_feature_net_forward.6} parent=11 // pred_region
          _
        $region16: #{geo_simple_feature_net_forward.6} parent=11 // pred_fallthru
          _
        // Predicated region
        $region17: #{geo_simple_feature_net_forward.6} parent=11 // pred_check
          %p202 = pneg %p156
        $region18: #{geo_simple_feature_net_forward.6} parent=11 // pred_check_branch
          %204 = sbr.rel (%p202) target = $region20
        $region19: #{geo_simple_feature_net_forward.6} parent=11 // pred_region
          _
        $region20: #{geo_simple_feature_net_forward.6} parent=11 // pred_fallthru
          _
      $region12: #{geo_simple_feature_net_forward.6} parent=5 // pred_fallthru
        _
      %p205 = scmp.lt.s32.totalorder %s11, 18
      // Predicated region
      $region21: #{geo_simple_feature_net_forward.6} parent=5 // pred_check
        %p206 = pneg %p205
      $region22: #{geo_simple_feature_net_forward.6} parent=5 // pred_check_branch
        %208 = sbr.rel (%p206) target = $region24
      $region23: #{geo_simple_feature_net_forward.6} parent=5 // pred_region
        // Predicated region
        $region25: #{geo_simple_feature_net_forward.6} parent=23 // pred_check
          %p209 = pneg %p52
        $region26: #{geo_simple_feature_net_forward.6} parent=23 // pred_check_branch
          %211 = sbr.rel (%p209) target = $region28
        $region27: #{geo_simple_feature_net_forward.6} parent=23 // pred_region
          %p212 = scmp.lt.s32.totalorder %s18, 1
          %s213 = scalar_select %p212, %s18, 1
          %p214 = scmp.lt.s32.totalorder %s19, 2
          %s215 = scalar_select %p214, %s19, 2
          %s216 = smul.addr %s213, 3
          %s217 = sadd.s32 %s215, %s216
          %s218 = smul.addr %s217, 4
          %s219 = scalar_lea.vmem %s0, %s218
        $region28: #{geo_simple_feature_net_forward.6} parent=23 // pred_fallthru
          _
        // Predicated region
        $region29: #{geo_simple_feature_net_forward.6} parent=23 // pred_check
          %p220 = pneg %p80
        $region30: #{geo_simple_feature_net_forward.6} parent=23 // pred_check_branch
          %222 = sbr.rel (%p220) target = $region32
        $region31: #{geo_simple_feature_net_forward.6} parent=23 // pred_region
          %s223 = smul.u32 16, %s20
          %p224 = scmp.lt.s32.totalorder %s18, 1
          %s225 = scalar_select %p224, %s18, 1
          %p226 = scmp.lt.s32.totalorder %s223, 47
          %s227 = scalar_select %p226, %s223, 47
          %s228 = smul.addr %s225, 48
          %s229 = sadd.s32 %s227, %s228
          %s230 = smul.addr %s229, 8
          %s231 = scalar_lea.vmem %s1, %s230
          %s232 = smul.u32 16, %s20
        $region32: #{geo_simple_feature_net_forward.6} parent=23 // pred_fallthru
          _
        // Predicated region
        $region33: #{geo_simple_feature_net_forward.6} parent=23 // pred_check
          %p233 = pneg %p108
        $region34: #{geo_simple_feature_net_forward.6} parent=23 // pred_check_branch
          %235 = sbr.rel (%p233) target = $region36
        $region35: #{geo_simple_feature_net_forward.6} parent=23 // pred_region
          %s236 = sand.u32 %s98, 1
          %s237 = sand.u32 %s98, 1
          %s238 = smul.addr %s237, 16
          %s239 = scalar_lea.vmem [#allocation3], %s238
          %s240 = smul.addr %s18, 6
          %s241 = sadd.s32 %s20, %s240
          %s242 = smul.addr %s241, 8
          %s243 = scalar_lea.vmem %s2, %s242
          // Predicated region
          $region37: #{geo_simple_feature_net_forward.6} parent=35 // pred_check
            _
          $region38: #{geo_simple_feature_net_forward.6} parent=35 // pred_check_branch
            %245 = sbr.rel (0) target = $region40
          $region39: #{geo_simple_feature_net_forward.6} parent=35 // pred_region
            // Predicated region
            $region41: #{geo_simple_feature_net_forward.6} parent=39 // pred_check
              _
            $region42: #{geo_simple_feature_net_forward.6} parent=39 // pred_check_branch
              %247 = sbr.rel (0) target = $region44
            $region43: #{geo_simple_feature_net_forward.6} parent=39 // pred_region
              // Predicated region
              $region56: #{geo_simple_feature_net_forward.6} parent=43 // pred_check
                _
              $region57: #{geo_simple_feature_net_forward.6} parent=43 // pred_check_branch
                %264 = sbr.rel (0) target = $region59
              $region58: #{geo_simple_feature_net_forward.6} parent=43 // pred_region
                loop: start=0, step=1, limit=1
                $region60: #{geo_simple_feature_net_forward.6} parent=58 // loop_pre_header
                  _
                $region61: #{geo_simple_feature_net_forward.6} parent=58 // loop_header
                  %s266 = sphi 0, %s270
                  %p267 = scmp.ge.s32.totalorder %s266, 1
                  %s271 = sphi %s243, %s243
                  %s272 = sphi %s239, %s239
                $region62: #{geo_simple_feature_net_forward.6} parent=58 // loop_header_branch
                  %269 = sbr.rel (%p267) target = $region66
                $region63: #{geo_simple_feature_net_forward.6} parent=58 // loop_body
                  %v273 = vld [vmem:[%s271] sm:$0xff]
                  %274 = vst [vmem:[%s272] sm:$0xff] %v273
                  %v275 = vld [vmem:[%s271 + $0x18] sm:$0xff]
                  %276 = vst [vmem:[%s272 + $0x8] sm:$0xff] %v275
                $region64: #{geo_simple_feature_net_forward.6} parent=58 // loop_footer
                  %s270 = sadd.s32 1, %s266
                $region65: #{geo_simple_feature_net_forward.6} parent=58 // loop_footer_branch
                  %265 = sbr.rel target = $region61
                $region66: #{geo_simple_feature_net_forward.6} parent=58 // loop_exit
                  _
              $region59: #{geo_simple_feature_net_forward.6} parent=43 // pred_fallthru
                _
              // Predicated region
              $region67: #{geo_simple_feature_net_forward.6} parent=43 // pred_check
                _
              $region68: #{geo_simple_feature_net_forward.6} parent=43 // pred_check_branch
                %278 = sbr.rel target = $region70
              $region69: #{geo_simple_feature_net_forward.6} parent=43 // pred_region
                _
              $region70: #{geo_simple_feature_net_forward.6} parent=43 // pred_fallthru
                _
            $region44: #{geo_simple_feature_net_forward.6} parent=39 // pred_fallthru
              _
            // Predicated region
            $region45: #{geo_simple_feature_net_forward.6} parent=39 // pred_check
              _
            $region46: #{geo_simple_feature_net_forward.6} parent=39 // pred_check_branch
              %249 = sbr.rel target = $region48
            $region47: #{geo_simple_feature_net_forward.6} parent=39 // pred_region
              loop: start=0, step=1, limit=1
              $region49: #{geo_simple_feature_net_forward.6} parent=47 // loop_pre_header
                _
              $region50: #{geo_simple_feature_net_forward.6} parent=47 // loop_header
                %s252 = sphi 0, %s256
                %p253 = scmp.ge.s32.totalorder %s252, 1
                %s257 = sphi %s243, %s243
                %s258 = sphi %s239, %s239
              $region51: #{geo_simple_feature_net_forward.6} parent=47 // loop_header_branch
                %255 = sbr.rel (%p253) target = $region55
              $region52: #{geo_simple_feature_net_forward.6} parent=47 // loop_body
                %v259 = vld [vmem:[%s257] sm:$0xff]
                %260 = vst [vmem:[%s258] sm:$0xff] %v259
                %v261 = vld [vmem:[%s257 + $0x18] sm:$0xff]
                %262 = vst [vmem:[%s258 + $0x8] sm:$0xff] %v261
              $region53: #{geo_simple_feature_net_forward.6} parent=47 // loop_footer
                %s256 = sadd.s32 1, %s252
              $region54: #{geo_simple_feature_net_forward.6} parent=47 // loop_footer_branch
                %251 = sbr.rel target = $region50
              $region55: #{geo_simple_feature_net_forward.6} parent=47 // loop_exit
                _
            $region48: #{geo_simple_feature_net_forward.6} parent=39 // pred_fallthru
              _
          $region40: #{geo_simple_feature_net_forward.6} parent=35 // pred_fallthru
            _
          %279 = vnop
        $region36: #{geo_simple_feature_net_forward.6} parent=23 // pred_fallthru
          _
      $region24: #{geo_simple_feature_net_forward.6} parent=5 // pred_fallthru
        _
      %p280 = scmp.le.s32.totalorder 1, %s11
      %p281 = scmp.lt.s32.totalorder %s11, 19
      %p282 = pnand %p280, %p281
      %p283 = pneg %p282
      // Predicated region
      $region71: #{geo_simple_feature_net_forward.6} parent=5 // pred_check
        _
      $region72: #{geo_simple_feature_net_forward.6} parent=5 // pred_check_branch
        %285 = sbr.rel (%p282) target = $region74
      $region73: #{geo_simple_feature_net_forward.6} parent=5 // pred_region
        %s286 = ssub.s32 %s11, 1
        %s287 = sand.u32 %s101, 1
        %s288 = sand.u32 %s101, 1
        %s289 = smul.addr %s288, 16
        %s290 = scalar_lea.vmem [#allocation3], %s289
        // Predicated region
        $region75: #{geo_simple_feature_net_forward.6} parent=73 // pred_check
          %p291 = pneg %p114
        $region76: #{geo_simple_feature_net_forward.6} parent=73 // pred_check_branch
          %293 = sbr.rel (%p291) target = $region78
        $region77: #{geo_simple_feature_net_forward.6} parent=73 // pred_region
          _
        $region78: #{geo_simple_feature_net_forward.6} parent=73 // pred_fallthru
          _
        %p294 = scmp.lt.s32.totalorder %s21, 1
        %s295 = scalar_select %p294, %s21, 1
        %p296 = scmp.lt.s32.totalorder %s22, 2
        %s297 = scalar_select %p296, %s22, 2
        %s298 = smul.addr %s295, 3
        %s299 = sadd.s32 %s297, %s298
        %s300 = smul.addr %s299, 4
        %s301 = scalar_lea.vmem %s0, %s300
        %p302 = pneg %p58
        %p303 = pneg %p55
        %s304 = smul.u32 16, %s23
        %p305 = scmp.lt.s32.totalorder %s21, 1
        %s306 = scalar_select %p305, %s21, 1
        %p307 = scmp.lt.s32.totalorder %s304, 47
        %s308 = scalar_select %p307, %s304, 47
        %s309 = smul.addr %s306, 48
        %s310 = sadd.s32 %s308, %s309
        %s311 = smul.addr %s310, 8
        %s312 = scalar_lea.vmem %s1, %s311
        %p313 = pneg %p86
        %p314 = pneg %p83
        %s315 = sand.u32 %s101, 1
        %s316 = sand.u32 %s101, 1
        %s317 = smul.addr %s316, 16
        %s318 = scalar_lea.vmem [#allocation3], %s317
        %p319 = pneg %p114
        %p320 = pneg %p111
        %p321 = pneg %p135
        %p322 = pneg %p132
        %p323 = pneg %p156
        %p324 = pneg %p153
        %p325 = pneg %p184
        %p326 = pneg %p181
        %s327 = sand.u32 %s171, 1
        %s328 = sand.u32 %s171, 1
        %s329 = smul.addr %s328, 16
        %s330 = scalar_lea.vmem [#allocation4], %s329
        %p331 = scmp.lt.s32.totalorder %s21, 1
        %s332 = scalar_select %p331, %s21, 1
        %p333 = scmp.lt.s32.totalorder %s22, 2
        %s334 = scalar_select %p333, %s22, 2
        %s335 = smul.addr %s332, 3
        %s336 = sadd.s32 %s334, %s335
        %s337 = smul.addr %s336, 4
        %s338 = scalar_lea.vmem %s0, %s337
        %s339 = smul.u32 16, %s23
        %p340 = scmp.lt.s32.totalorder %s21, 1
        %s341 = scalar_select %p340, %s21, 1
        %p342 = scmp.lt.s32.totalorder %s339, 47
        %s343 = scalar_select %p342, %s339, 47
        %s344 = smul.addr %s341, 48
        %s345 = sadd.s32 %s343, %s344
        %s346 = smul.addr %s345, 8
        %s347 = scalar_lea.vmem %s1, %s346
        %s348 = smul.u32 16, %s23
        %p349 = scmp.eq.s32.totalorder %s23, 0
        // Predicated region
        $region79: #{geo_simple_feature_net_forward.6} parent=73 // pred_check
          %p350 = pneg %p349
        $region80: #{geo_simple_feature_net_forward.6} parent=73 // pred_check_branch
          %352 = sbr.rel (%p350) target = $region82
        $region81: #{geo_simple_feature_net_forward.6} parent=73 // pred_region
          %353 = vst [vmem:[#allocation2] sm:$0xff] 0.0
          %354 = vst [vmem:[#allocation2 + $0x8] sm:$0xff] 0.0
          %355 = vst [vmem:[#allocation2 + $0x10] sm:$0x1] 0.0
          %356 = vst [vmem:[#allocation2 + $0x18] sm:$0xff] 0.0
          %357 = vst [vmem:[#allocation2 + $0x20] sm:$0xff] 0.0
          %358 = vst [vmem:[#allocation2 + $0x28] sm:$0x1] 0.0
          %359 = vst [vmem:[#allocation2 + $0x30] sm:$0xff] 0.0
          %360 = vst [vmem:[#allocation2 + $0x38] sm:$0xff] 0.0
          %361 = vst [vmem:[#allocation2 + $0x40] sm:$0x1] 0.0
        $region82: #{geo_simple_feature_net_forward.6} parent=73 // pred_fallthru
          _
        %v362 = vld [vmem:[%s290] sm:$0xff]
        %v363 = vld [vmem:[%s290 + $0x8] sm:$0xff]
        %v364 = vld [vmem:[%s3] sm:$0xff]
        %v365 = vld [vmem:[%s3 + $0x8] sm:$0xff]
        %v366 = vld [vmem:[%s4] sm:$0xff]
        %v367 = vld [vmem:[%s4 + $0x8] sm:$0xff]
        %369 = vset.pattern.permute.xlu0 0
        %370 = vperm.xlu0 %369, %v366
        %v371 = vpop.permute.xlu0 %370
        %374 = vset.pattern.permute.xlu0 0
        %375 = vperm.xlu0 %374, %v367
        %v376 = vpop.permute.xlu0 %375
        %vm378 = vcmask 130048
        %v380 = vsel %vm378, %v364, 0
        %v383 = vsel %vm378, %v365, 0
        %385 = vmatprep.subr.mxu0 0.0
        %386 = vmatpush1.msra.mxu0 %v362
        %387 = vmatprep.subr.mxu0 0.0
        %388 = vmatpush1.msra.mxu0 %v363
        %389 = vmatprep.subr.mxu0 0.0
        %390 = vmatpush1.msra.mxu0 0.0
        %391 = vmatprep.subr.mxu0 0.0
        %392 = vmatpush1.msra.mxu0 0.0
        %393 = vmatprep.subr.mxu0 0.0
        %394 = vmatpush1.msra.mxu0 0.0
        %395 = vmatprep.subr.mxu0 0.0
        %396 = vmatpush1.msra.mxu0 0.0
        %397 = vmatprep.subr.mxu0 0.0
        %398 = vmatpush1.msra.mxu0 0.0
        %399 = vmatprep.subr.mxu0 0.0
        %400 = vmatpush1.msra.mxu0 0.0
        %401 = vmatprep.subr.mxu0 0.0
        %402 = vmatpush1.msra.mxu0 0.0
        %403 = vmatprep.subr.mxu0 0.0
        %404 = vmatpush1.msra.mxu0 0.0
        %405 = vmatprep.subr.mxu0 0.0
        %406 = vmatpush1.msra.mxu0 0.0
        %407 = vmatprep.subr.mxu0 0.0
        %408 = vmatpush1.msra.mxu0 0.0
        %409 = vmatprep.subr.mxu0 0.0
        %410 = vmatpush1.msra.mxu0 0.0
        %411 = vmatprep.subr.mxu0 0.0
        %412 = vmatpush1.msra.mxu0 0.0
        %413 = vmatprep.subr.mxu0 0.0
        %414 = vmatpush1.msra.mxu0 0.0
        %415 = vmatprep.subr.mxu0 0.0
        %416 = vmatpush1.msra.mxu0 0.0
        %417 = vmatprep.subr.mxu0 0.0
        %418 = vmatpush1.msra.mxu0 0.0
        %419 = vmatprep.subr.mxu0 0.0
        %420 = vmatpush1.msra.mxu0 0.0
        %421 = vmatprep.subr.mxu0 0.0
        %422 = vmatpush1.msra.mxu0 0.0
        %423 = vmatprep.subr.mxu0 0.0
        %424 = vmatpush1.msra.mxu0 0.0
        %425 = vmatprep.subr.mxu0 0.0
        %426 = vmatpush1.msra.mxu0 0.0
        %427 = vmatprep.subr.mxu0 0.0
        %428 = vmatpush1.msra.mxu0 0.0
        %429 = vmatprep.subr.mxu0 0.0
        %430 = vmatpush1.msra.mxu0 0.0
        %431 = vmatprep.subr.mxu0 0.0
        %432 = vmatpush1.msra.mxu0 0.0
        %433 = vmatprep.subr.mxu0 0.0
        %434 = vmatpush1.msra.mxu0 0.0
        %435 = vmatprep.subr.mxu0 0.0
        %436 = vmatpush1.msra.mxu0 0.0
        %437 = vmatprep.subr.mxu0 0.0
        %438 = vmatpush1.msra.mxu0 0.0
        %439 = vmatprep.subr.mxu0 0.0
        %440 = vmatpush1.msra.mxu0 0.0
        %441 = vmatprep.subr.mxu0 0.0
        %442 = vmatpush1.msra.mxu0 0.0
        %443 = vmatprep.subr.mxu0 0.0
        %444 = vmatpush1.msra.mxu0 0.0
        %445 = vmatprep.subr.mxu0 0.0
        %446 = vmatpush1.msra.mxu0 0.0
        %447 = vmatprep.subr.mxu0 0.0
        %448 = vmatpush1.msra.mxu0 0.0
        %449 = vmatprep.mubr.f32.mxu0 0.0
        %450 = vmatmul.mubr.f32.gmra.mrb[0].mxu0 %v380
        %v451 = vpop.f32.mrb[0].mxu0
        %v452 = vadd.f32 %v371, %v451
        %v453 = vpop.f32.mrb[0].mxu0
        %454 = vmatprep.mubr.f32.mxu0 0.0
        %455 = vmatmul.mubr.f32.gmra.mrb[0].mxu0 %v383
        %v456 = vpop.f32.mrb[0].mxu0
        %v457 = vadd.f32 %v376, %v456
        %v458 = vpop.f32.mrb[0].mxu0
        %459 = vdwg.mxu0
        %vm460 = vcmp.gt.f32.partialorder %v452, 0.0
        %vm461 = vcmp.gt.f32.partialorder %v457, 0.0
        %v462 = vmul.f32 %v452, 0.1
        %v463 = vmul.f32 %v457, 0.1
        %v464 = vsel %vm460, %v452, %v462
        %v465 = vsel %vm461, %v457, %v463
        %v466 = vld [vmem:[%s338] sm:$0x7]
        %v467 = vmul.f32 %v466, 0.44194174
        %v468 = vld [vmem:[%s347] sm:$0xff]
        %v469 = vld [vmem:[%s347 + $0x8] sm:$0xff]
        %v470 = vld [vmem:[%s347 + $0x10] sm:$0xff]
        %v471 = vld [vmem:[%s347 + $0x18] sm:$0xff]
        %v472 = vld [vmem:[%s347 + $0x20] sm:$0xff]
        %v473 = vld [vmem:[%s347 + $0x28] sm:$0xff]
        %v474 = vld [vmem:[%s347 + $0x30] sm:$0xff]
        %v475 = vld [vmem:[%s347 + $0x38] sm:$0xff]
        %v476 = vld [vmem:[%s347 + $0x40] sm:$0xff]
        %v477 = vld [vmem:[%s347 + $0x48] sm:$0xff]
        %v478 = vld [vmem:[%s347 + $0x50] sm:$0xff]
        %v479 = vld [vmem:[%s347 + $0x58] sm:$0xff]
        %v480 = vld [vmem:[%s347 + $0x60] sm:$0xff]
        %v481 = vld [vmem:[%s347 + $0x68] sm:$0xff]
        %v482 = vld [vmem:[%s347 + $0x70] sm:$0xff]
        %v483 = vld [vmem:[%s347 + $0x78] sm:$0xff]
        %v484 = vmul.f32 %v468, 0.44194174
        %v485 = vmul.f32 %v469, 0.44194174
        %v486 = vmul.f32 %v470, 0.44194174
        %v487 = vmul.f32 %v471, 0.44194174
        %v488 = vmul.f32 %v472, 0.44194174
        %v489 = vmul.f32 %v473, 0.44194174
        %v490 = vmul.f32 %v474, 0.44194174
        %v491 = vmul.f32 %v475, 0.44194174
        %v492 = vmul.f32 %v476, 0.44194174
        %v493 = vmul.f32 %v477, 0.44194174
        %v494 = vmul.f32 %v478, 0.44194174
        %v495 = vmul.f32 %v479, 0.44194174
        %v496 = vmul.f32 %v480, 0.44194174
        %v497 = vmul.f32 %v481, 0.44194174
        %v498 = vmul.f32 %v482, 0.44194174
        %v499 = vmul.f32 %v483, 0.44194174
        %501 = vset.pattern.permute.xlu0 0
        %502 = vperm.xlu0 %501, %v484
        %v503 = vpop.permute.xlu0 %502
        %506 = vset.pattern.permute.xlu0 0
        %507 = vperm.xlu0 %506, %v485
        %v508 = vpop.permute.xlu0 %507
        %511 = vset.pattern.permute.xlu0 0
        %512 = vperm.xlu0 %511, %v486
        %v513 = vpop.permute.xlu0 %512
        %516 = vset.pattern.permute.xlu0 0
        %517 = vperm.xlu0 %516, %v487
        %v518 = vpop.permute.xlu0 %517
        %521 = vset.pattern.permute.xlu0 0
        %522 = vperm.xlu0 %521, %v488
        %v523 = vpop.permute.xlu0 %522
        %526 = vset.pattern.permute.xlu0 0
        %527 = vperm.xlu0 %526, %v489
        %v528 = vpop.permute.xlu0 %527
        %531 = vset.pattern.permute.xlu0 0
        %532 = vperm.xlu0 %531, %v490
        %v533 = vpop.permute.xlu0 %532
        %536 = vset.pattern.permute.xlu0 0
        %537 = vperm.xlu0 %536, %v491
        %v538 = vpop.permute.xlu0 %537
        %541 = vset.pattern.permute.xlu0 0
        %542 = vperm.xlu0 %541, %v492
        %v543 = vpop.permute.xlu0 %542
        %546 = vset.pattern.permute.xlu0 0
        %547 = vperm.xlu0 %546, %v493
        %v548 = vpop.permute.xlu0 %547
        %551 = vset.pattern.permute.xlu0 0
        %552 = vperm.xlu0 %551, %v494
        %v553 = vpop.permute.xlu0 %552
        %556 = vset.pattern.permute.xlu0 0
        %557 = vperm.xlu0 %556, %v495
        %v558 = vpop.permute.xlu0 %557
        %561 = vset.pattern.permute.xlu0 0
        %562 = vperm.xlu0 %561, %v496
        %v563 = vpop.permute.xlu0 %562
        %566 = vset.pattern.permute.xlu0 0
        %567 = vperm.xlu0 %566, %v497
        %v568 = vpop.permute.xlu0 %567
        %571 = vset.pattern.permute.xlu0 0
        %572 = vperm.xlu0 %571, %v498
        %v573 = vpop.permute.xlu0 %572
        %576 = vset.pattern.permute.xlu0 0
        %577 = vperm.xlu0 %576, %v499
        %v578 = vpop.permute.xlu0 %577
        %v580 = vlaneseq
        %v581 = vshrl.u32 %v580, 7
        %v582 = vsub.s32 0, %v581
        %v583 = vrot.slane %v467, %v582
        %v584 = vsub.f32 %v503, %v583
        %v585 = vsub.f32 %v508, %v583
        %v586 = vsub.f32 %v513, %v583
        %v587 = vsub.f32 %v518, %v583
        %v588 = vsub.f32 %v523, %v583
        %v589 = vsub.f32 %v528, %v583
        %v590 = vsub.f32 %v533, %v583
        %v591 = vsub.f32 %v538, %v583
        %v592 = vsub.f32 %v543, %v583
        %v593 = vsub.f32 %v548, %v583
        %v594 = vsub.f32 %v553, %v583
        %v595 = vsub.f32 %v558, %v583
        %v596 = vsub.f32 %v563, %v583
        %v597 = vsub.f32 %v568, %v583
        %v598 = vsub.f32 %v573, %v583
        %v599 = vsub.f32 %v578, %v583
        %v600 = vmul.f32 %v584, %v584
        %v601 = vmul.f32 %v585, %v585
        %v602 = vmul.f32 %v586, %v586
        %v603 = vmul.f32 %v587, %v587
        %v604 = vmul.f32 %v588, %v588
        %v605 = vmul.f32 %v589, %v589
        %v606 = vmul.f32 %v590, %v590
        %v607 = vmul.f32 %v591, %v591
        %v608 = vmul.f32 %v592, %v592
        %v609 = vmul.f32 %v593, %v593
        %v610 = vmul.f32 %v594, %v594
        %v611 = vmul.f32 %v595, %v595
        %v612 = vmul.f32 %v596, %v596
        %v613 = vmul.f32 %v597, %v597
        %v614 = vmul.f32 %v598, %v598
        %v615 = vmul.f32 %v599, %v599
        %616 = vset.pattern.permute.xlu0 1
        %617 = vperm.xlu0 %616, %v484
        %v618 = vpop.permute.xlu0 %617
        %620 = vset.pattern.permute.xlu0 1
        %621 = vperm.xlu0 %620, %v485
        %v622 = vpop.permute.xlu0 %621
        %624 = vset.pattern.permute.xlu0 1
        %625 = vperm.xlu0 %624, %v486
        %v626 = vpop.permute.xlu0 %625
        %628 = vset.pattern.permute.xlu0 1
        %629 = vperm.xlu0 %628, %v487
        %v630 = vpop.permute.xlu0 %629
        %632 = vset.pattern.permute.xlu0 1
        %633 = vperm.xlu0 %632, %v488
        %v634 = vpop.permute.xlu0 %633
        %636 = vset.pattern.permute.xlu0 1
        %637 = vperm.xlu0 %636, %v489
        %v638 = vpop.permute.xlu0 %637
        %640 = vset.pattern.permute.xlu0 1
        %641 = vperm.xlu0 %640, %v490
        %v642 = vpop.permute.xlu0 %641
        %644 = vset.pattern.permute.xlu0 1
        %645 = vperm.xlu0 %644, %v491
        %v646 = vpop.permute.xlu0 %645
        %648 = vset.pattern.permute.xlu0 1
        %649 = vperm.xlu0 %648, %v492
        %v650 = vpop.permute.xlu0 %649
        %652 = vset.pattern.permute.xlu0 1
        %653 = vperm.xlu0 %652, %v493
        %v654 = vpop.permute.xlu0 %653
        %656 = vset.pattern.permute.xlu0 1
        %657 = vperm.xlu0 %656, %v494
        %v658 = vpop.permute.xlu0 %657
        %660 = vset.pattern.permute.xlu0 1
        %661 = vperm.xlu0 %660, %v495
        %v662 = vpop.permute.xlu0 %661
        %664 = vset.pattern.permute.xlu0 1
        %665 = vperm.xlu0 %664, %v496
        %v666 = vpop.permute.xlu0 %665
        %668 = vset.pattern.permute.xlu0 1
        %669 = vperm.xlu0 %668, %v497
        %v670 = vpop.permute.xlu0 %669
        %672 = vset.pattern.permute.xlu0 1
        %673 = vperm.xlu0 %672, %v498
        %v674 = vpop.permute.xlu0 %673
        %676 = vset.pattern.permute.xlu0 1
        %677 = vperm.xlu0 %676, %v499
        %v678 = vpop.permute.xlu0 %677
        %v680 = vlaneseq
        %v681 = vshrl.u32 %v680, 7
        %v682 = vsub.s32 1, %v681
        %v683 = vrot.slane %v467, %v682
        %v684 = vsub.f32 %v618, %v683
        %v685 = vsub.f32 %v622, %v683
        %v686 = vsub.f32 %v626, %v683
        %v687 = vsub.f32 %v630, %v683
        %v688 = vsub.f32 %v634, %v683
        %v689 = vsub.f32 %v638, %v683
        %v690 = vsub.f32 %v642, %v683
        %v691 = vsub.f32 %v646, %v683
        %v692 = vsub.f32 %v650, %v683
        %v693 = vsub.f32 %v654, %v683
        %v694 = vsub.f32 %v658, %v683
        %v695 = vsub.f32 %v662, %v683
        %v696 = vsub.f32 %v666, %v683
        %v697 = vsub.f32 %v670, %v683
        %v698 = vsub.f32 %v674, %v683
        %v699 = vsub.f32 %v678, %v683
        %v700 = vmul.f32 %v684, %v684
        %v701 = vmul.f32 %v685, %v685
        %v702 = vmul.f32 %v686, %v686
        %v703 = vmul.f32 %v687, %v687
        %v704 = vmul.f32 %v688, %v688
        %v705 = vmul.f32 %v689, %v689
        %v706 = vmul.f32 %v690, %v690
        %v707 = vmul.f32 %v691, %v691
        %v708 = vmul.f32 %v692, %v692
        %v709 = vmul.f32 %v693, %v693
        %v710 = vmul.f32 %v694, %v694
        %v711 = vmul.f32 %v695, %v695
        %v712 = vmul.f32 %v696, %v696
        %v713 = vmul.f32 %v697, %v697
        %v714 = vmul.f32 %v698, %v698
        %v715 = vmul.f32 %v699, %v699
        %v716 = vadd.f32 %v600, %v700
        %v717 = vadd.f32 %v601, %v701
        %v718 = vadd.f32 %v602, %v702
        %v719 = vadd.f32 %v603, %v703
        %v720 = vadd.f32 %v604, %v704
        %v721 = vadd.f32 %v605, %v705
        %v722 = vadd.f32 %v606, %v706
        %v723 = vadd.f32 %v607, %v707
        %v724 = vadd.f32 %v608, %v708
        %v725 = vadd.f32 %v609, %v709
        %v726 = vadd.f32 %v610, %v710
        %v727 = vadd.f32 %v611, %v711
        %v728 = vadd.f32 %v612, %v712
        %v729 = vadd.f32 %v613, %v713
        %v730 = vadd.f32 %v614, %v714
        %v731 = vadd.f32 %v615, %v715
        %732 = vset.pattern.permute.xlu0 2
        %733 = vperm.xlu0 %732, %v484
        %v734 = vpop.permute.xlu0 %733
        %736 = vset.pattern.permute.xlu0 2
        %737 = vperm.xlu0 %736, %v485
        %v738 = vpop.permute.xlu0 %737
        %740 = vset.pattern.permute.xlu0 2
        %741 = vperm.xlu0 %740, %v486
        %v742 = vpop.permute.xlu0 %741
        %744 = vset.pattern.permute.xlu0 2
        %745 = vperm.xlu0 %744, %v487
        %v746 = vpop.permute.xlu0 %745
        %748 = vset.pattern.permute.xlu0 2
        %749 = vperm.xlu0 %748, %v488
        %v750 = vpop.permute.xlu0 %749
        %752 = vset.pattern.permute.xlu0 2
        %753 = vperm.xlu0 %752, %v489
        %v754 = vpop.permute.xlu0 %753
        %756 = vset.pattern.permute.xlu0 2
        %757 = vperm.xlu0 %756, %v490
        %v758 = vpop.permute.xlu0 %757
        %760 = vset.pattern.permute.xlu0 2
        %761 = vperm.xlu0 %760, %v491
        %v762 = vpop.permute.xlu0 %761
        %764 = vset.pattern.permute.xlu0 2
        %765 = vperm.xlu0 %764, %v492
        %v766 = vpop.permute.xlu0 %765
        %768 = vset.pattern.permute.xlu0 2
        %769 = vperm.xlu0 %768, %v493
        %v770 = vpop.permute.xlu0 %769
        %772 = vset.pattern.permute.xlu0 2
        %773 = vperm.xlu0 %772, %v494
        %v774 = vpop.permute.xlu0 %773
        %776 = vset.pattern.permute.xlu0 2
        %777 = vperm.xlu0 %776, %v495
        %v778 = vpop.permute.xlu0 %777
        %780 = vset.pattern.permute.xlu0 2
        %781 = vperm.xlu0 %780, %v496
        %v782 = vpop.permute.xlu0 %781
        %784 = vset.pattern.permute.xlu0 2
        %785 = vperm.xlu0 %784, %v497
        %v786 = vpop.permute.xlu0 %785
        %788 = vset.pattern.permute.xlu0 2
        %789 = vperm.xlu0 %788, %v498
        %v790 = vpop.permute.xlu0 %789
        %792 = vset.pattern.permute.xlu0 2
        %793 = vperm.xlu0 %792, %v499
        %v794 = vpop.permute.xlu0 %793
        %v796 = vlaneseq
        %v797 = vshrl.u32 %v796, 7
        %v798 = vsub.s32 2, %v797
        %v799 = vrot.slane %v467, %v798
        %v800 = vsub.f32 %v734, %v799
        %v801 = vsub.f32 %v738, %v799
        %v802 = vsub.f32 %v742, %v799
        %v803 = vsub.f32 %v746, %v799
        %v804 = vsub.f32 %v750, %v799
        %v805 = vsub.f32 %v754, %v799
        %v806 = vsub.f32 %v758, %v799
        %v807 = vsub.f32 %v762, %v799
        %v808 = vsub.f32 %v766, %v799
        %v809 = vsub.f32 %v770, %v799
        %v810 = vsub.f32 %v774, %v799
        %v811 = vsub.f32 %v778, %v799
        %v812 = vsub.f32 %v782, %v799
        %v813 = vsub.f32 %v786, %v799
        %v814 = vsub.f32 %v790, %v799
        %v815 = vsub.f32 %v794, %v799
        %v816 = vmul.f32 %v800, %v800
        %v817 = vmul.f32 %v801, %v801
        %v818 = vmul.f32 %v802, %v802
        %v819 = vmul.f32 %v803, %v803
        %v820 = vmul.f32 %v804, %v804
        %v821 = vmul.f32 %v805, %v805
        %v822 = vmul.f32 %v806, %v806
        %v823 = vmul.f32 %v807, %v807
        %v824 = vmul.f32 %v808, %v808
        %v825 = vmul.f32 %v809, %v809
        %v826 = vmul.f32 %v810, %v810
        %v827 = vmul.f32 %v811, %v811
        %v828 = vmul.f32 %v812, %v812
        %v829 = vmul.f32 %v813, %v813
        %v830 = vmul.f32 %v814, %v814
        %v831 = vmul.f32 %v815, %v815
        %v832 = vadd.f32 %v716, %v816
        %v833 = vadd.f32 %v717, %v817
        %v834 = vadd.f32 %v718, %v818
        %v835 = vadd.f32 %v719, %v819
        %v836 = vadd.f32 %v720, %v820
        %v837 = vadd.f32 %v721, %v821
        %v838 = vadd.f32 %v722, %v822
        %v839 = vadd.f32 %v723, %v823
        %v840 = vadd.f32 %v724, %v824
        %v841 = vadd.f32 %v725, %v825
        %v842 = vadd.f32 %v726, %v826
        %v843 = vadd.f32 %v727, %v827
        %v844 = vadd.f32 %v728, %v828
        %v845 = vadd.f32 %v729, %v829
        %v846 = vadd.f32 %v730, %v830
        %v847 = vadd.f32 %v731, %v831
        %v848 = vsub.f32 0.0, %v832
        %v849 = vsub.f32 0.0, %v833
        %v850 = vsub.f32 0.0, %v834
        %v851 = vsub.f32 0.0, %v835
        %v852 = vsub.f32 0.0, %v836
        %v853 = vsub.f32 0.0, %v837
        %v854 = vsub.f32 0.0, %v838
        %v855 = vsub.f32 0.0, %v839
        %v856 = vsub.f32 0.0, %v840
        %v857 = vsub.f32 0.0, %v841
        %v858 = vsub.f32 0.0, %v842
        %v859 = vsub.f32 0.0, %v843
        %v860 = vsub.f32 0.0, %v844
        %v861 = vsub.f32 0.0, %v845
        %v862 = vsub.f32 0.0, %v846
        %v863 = vsub.f32 0.0, %v847
        %v864 = vmul.f32 %v848, 1.442695
        %v865 = vpow.pop %v864
        %v866 = vmul.f32 %v849, 1.442695
        %v867 = vpow.pop %v866
        %v868 = vmul.f32 %v850, 1.442695
        %v869 = vpow.pop %v868
        %v870 = vmul.f32 %v851, 1.442695
        %v871 = vpow.pop %v870
        %v872 = vmul.f32 %v852, 1.442695
        %v873 = vpow.pop %v872
        %v874 = vmul.f32 %v853, 1.442695
        %v875 = vpow.pop %v874
        %v876 = vmul.f32 %v854, 1.442695
        %v877 = vpow.pop %v876
        %v878 = vmul.f32 %v855, 1.442695
        %v879 = vpow.pop %v878
        %v880 = vmul.f32 %v856, 1.442695
        %v881 = vpow.pop %v880
        %v882 = vmul.f32 %v857, 1.442695
        %v883 = vpow.pop %v882
        %v884 = vmul.f32 %v858, 1.442695
        %v885 = vpow.pop %v884
        %v886 = vmul.f32 %v859, 1.442695
        %v887 = vpow.pop %v886
        %v888 = vmul.f32 %v860, 1.442695
        %v889 = vpow.pop %v888
        %v890 = vmul.f32 %v861, 1.442695
        %v891 = vpow.pop %v890
        %v892 = vmul.f32 %v862, 1.442695
        %v893 = vpow.pop %v892
        %v894 = vmul.f32 %v863, 1.442695
        %v895 = vpow.pop %v894
        %s896 = scalar_lea.vmem [#allocation2], 48
        %v897 = vld [vmem:[%s896] sm:$0xff]
        %v898 = vld [vmem:[%s896 + $0x8] sm:$0xff]
        %v899 = vld [vmem:[%s896 + $0x10] sm:$0x1]
        %900 = vmatprep.subr.mxu0 0.0
        %901 = vmatpush1.msra.mxu0 %v865
        %902 = vmatprep.subr.mxu0 0.0
        %903 = vmatpush1.msra.mxu0 %v867
        %904 = vmatprep.subr.mxu0 0.0
        %905 = vmatpush1.msra.mxu0 %v869
        %906 = vmatprep.subr.mxu0 0.0
        %907 = vmatpush1.msra.mxu0 %v871
        %908 = vmatprep.subr.mxu0 0.0
        %909 = vmatpush1.msra.mxu0 %v873
        %910 = vmatprep.subr.mxu0 0.0
        %911 = vmatpush1.msra.mxu0 %v875
        %912 = vmatprep.subr.mxu0 0.0
        %913 = vmatpush1.msra.mxu0 %v877
        %914 = vmatprep.subr.mxu0 0.0
        %915 = vmatpush1.msra.mxu0 %v879
        %916 = vmatprep.subr.mxu0 0.0
        %917 = vmatpush1.msra.mxu0 %v881
        %918 = vmatprep.subr.mxu0 0.0
        %919 = vmatpush1.msra.mxu0 %v883
        %920 = vmatprep.subr.mxu0 0.0
        %921 = vmatpush1.msra.mxu0 %v885
        %922 = vmatprep.subr.mxu0 0.0
        %923 = vmatpush1.msra.mxu0 %v887
        %924 = vmatprep.subr.mxu0 0.0
        %925 = vmatpush1.msra.mxu0 %v889
        %926 = vmatprep.subr.mxu0 0.0
        %927 = vmatpush1.msra.mxu0 %v891
        %928 = vmatprep.subr.mxu0 0.0
        %929 = vmatpush1.msra.mxu0 %v893
        %930 = vmatprep.subr.mxu0 0.0
        %931 = vmatpush1.msra.mxu0 %v895
        %932 = vmatprep.subr.mxu0 0.0
        %933 = vmatpush1.msra.mxu0 0.0
        %934 = vmatprep.subr.mxu0 0.0
        %935 = vmatpush1.msra.mxu0 0.0
        %936 = vmatprep.subr.mxu0 0.0
        %937 = vmatpush1.msra.mxu0 0.0
        %938 = vmatprep.subr.mxu0 0.0
        %939 = vmatpush1.msra.mxu0 0.0
        %940 = vmatprep.subr.mxu0 0.0
        %941 = vmatpush1.msra.mxu0 0.0
        %942 = vmatprep.subr.mxu0 0.0
        %943 = vmatpush1.msra.mxu0 0.0
        %944 = vmatprep.subr.mxu0 0.0
        %945 = vmatpush1.msra.mxu0 0.0
        %946 = vmatprep.subr.mxu0 0.0
        %947 = vmatpush1.msra.mxu0 0.0
        %948 = vmatprep.subr.mxu0 0.0
        %949 = vmatpush1.msra.mxu0 0.0
        %950 = vmatprep.subr.mxu0 0.0
        %951 = vmatpush1.msra.mxu0 0.0
        %952 = vmatprep.subr.mxu0 0.0
        %953 = vmatpush1.msra.mxu0 0.0
        %954 = vmatprep.subr.mxu0 0.0
        %955 = vmatpush1.msra.mxu0 0.0
        %956 = vmatprep.subr.mxu0 0.0
        %957 = vmatpush1.msra.mxu0 0.0
        %958 = vmatprep.subr.mxu0 0.0
        %959 = vmatpush1.msra.mxu0 0.0
        %960 = vmatprep.subr.mxu0 0.0
        %961 = vmatpush1.msra.mxu0 0.0
        %962 = vmatprep.subr.mxu0 0.0
        %963 = vmatpush1.msra.mxu0 0.0
        %964 = vmatprep.mubr.f32.mxu0 0.0
        %965 = vmatmul.mubr.f32.gmra.mrb[0].mxu0 %v464
        %v966 = vpop.f32.mrb[0].mxu0
        %v967 = vadd.f32 0.0, %v966
        %v968 = vpop.f32.mrb[0].mxu0
        %969 = vmatprep.mubr.f32.mxu0 0.0
        %970 = vmatmul.mubr.f32.gmra.mrb[0].mxu0 %v465
        %v971 = vpop.f32.mrb[0].mxu0
        %v972 = vadd.f32 0.0, %v971
        %v973 = vpop.f32.mrb[0].mxu0
        %974 = vmatprep.mubr.f32.mxu0 0.0
        %975 = vmatmul.mubr.f32.gmra.mrb[0].mxu0 1.0
        %v976 = vpop.f32.mrb[0].mxu0
        %v977 = vadd.f32 0.0, %v976
        %v978 = vpop.f32.mrb[0].mxu0
        %979 = vdwg.mxu0
        %v980 = vadd.f32 %v897, %v967
        %v981 = vadd.f32 %v898, %v972
        %v982 = vadd.f32 %v899, %v977
        %983 = vst [vmem:[%s896] sm:$0xff] %v980
        %984 = vst [vmem:[%s896 + $0x8] sm:$0xff] %v981
        %985 = vst [vmem:[%s896 + $0x10] sm:$0x1] %v982
        %v986 = vmul.f32 %v865, %v865
        %v987 = vmul.f32 %v867, %v867
        %v988 = vmul.f32 %v869, %v869
        %v989 = vmul.f32 %v871, %v871
        %v990 = vmul.f32 %v873, %v873
        %v991 = vmul.f32 %v875, %v875
        %v992 = vmul.f32 %v877, %v877
        %v993 = vmul.f32 %v879, %v879
        %v994 = vmul.f32 %v881, %v881
        %v995 = vmul.f32 %v883, %v883
        %v996 = vmul.f32 %v885, %v885
        %v997 = vmul.f32 %v887, %v887
        %v998 = vmul.f32 %v889, %v889
        %v999 = vmul.f32 %v891, %v891
        %v1000 = vmul.f32 %v893, %v893
        %v1001 = vmul.f32 %v895, %v895
        %v1002 = vmul.f32 %v986, %v986
        %v1003 = vmul.f32 %v987, %v987
        %v1004 = vmul.f32 %v988, %v988
        %v1005 = vmul.f32 %v989, %v989
        %v1006 = vmul.f32 %v990, %v990
        %v1007 = vmul.f32 %v991, %v991
        %v1008 = vmul.f32 %v992, %v992
        %v1009 = vmul.f32 %v993, %v993
        %v1010 = vmul.f32 %v994, %v994
        %v1011 = vmul.f32 %v995, %v995
        %v1012 = vmul.f32 %v996, %v996
        %v1013 = vmul.f32 %v997, %v997
        %v1014 = vmul.f32 %v998, %v998
        %v1015 = vmul.f32 %v999, %v999
        %v1016 = vmul.f32 %v1000, %v1000
        %v1017 = vmul.f32 %v1001, %v1001
        %s1018 = scalar_lea.vmem [#allocation2], 24
        %v1019 = vld [vmem:[%s1018] sm:$0xff]
        %v1020 = vld [vmem:[%s1018 + $0x8] sm:$0xff]
        %v1021 = vld [vmem:[%s1018 + $0x10] sm:$0x1]
        %1022 = vmatprep.subr.mxu0 0.0
        %1023 = vmatpush1.msra.mxu0 %v1002
        %1024 = vmatprep.subr.mxu0 0.0
        %1025 = vmatpush1.msra.mxu0 %v1003
        %1026 = vmatprep.subr.mxu0 0.0
        %1027 = vmatpush1.msra.mxu0 %v1004
        %1028 = vmatprep.subr.mxu0 0.0
        %1029 = vmatpush1.msra.mxu0 %v1005
        %1030 = vmatprep.subr.mxu0 0.0
        %1031 = vmatpush1.msra.mxu0 %v1006
        %1032 = vmatprep.subr.mxu0 0.0
        %1033 = vmatpush1.msra.mxu0 %v1007
        %1034 = vmatprep.subr.mxu0 0.0
        %1035 = vmatpush1.msra.mxu0 %v1008
        %1036 = vmatprep.subr.mxu0 0.0
        %1037 = vmatpush1.msra.mxu0 %v1009
        %1038 = vmatprep.subr.mxu0 0.0
        %1039 = vmatpush1.msra.mxu0 %v1010
        %1040 = vmatprep.subr.mxu0 0.0
        %1041 = vmatpush1.msra.mxu0 %v1011
        %1042 = vmatprep.subr.mxu0 0.0
        %1043 = vmatpush1.msra.mxu0 %v1012
        %1044 = vmatprep.subr.mxu0 0.0
        %1045 = vmatpush1.msra.mxu0 %v1013
        %1046 = vmatprep.subr.mxu0 0.0
        %1047 = vmatpush1.msra.mxu0 %v1014
        %1048 = vmatprep.subr.mxu0 0.0
        %1049 = vmatpush1.msra.mxu0 %v1015
        %1050 = vmatprep.subr.mxu0 0.0
        %1051 = vmatpush1.msra.mxu0 %v1016
        %1052 = vmatprep.subr.mxu0 0.0
        %1053 = vmatpush1.msra.mxu0 %v1017
        %1054 = vmatprep.subr.mxu0 0.0
        %1055 = vmatpush1.msra.mxu0 0.0
        %1056 = vmatprep.subr.mxu0 0.0
        %1057 = vmatpush1.msra.mxu0 0.0
        %1058 = vmatprep.subr.mxu0 0.0
        %1059 = vmatpush1.msra.mxu0 0.0
        %1060 = vmatprep.subr.mxu0 0.0
        %1061 = vmatpush1.msra.mxu0 0.0
        %1062 = vmatprep.subr.mxu0 0.0
        %1063 = vmatpush1.msra.mxu0 0.0
        %1064 = vmatprep.subr.mxu0 0.0
        %1065 = vmatpush1.msra.mxu0 0.0
        %1066 = vmatprep.subr.mxu0 0.0
        %1067 = vmatpush1.msra.mxu0 0.0
        %1068 = vmatprep.subr.mxu0 0.0
        %1069 = vmatpush1.msra.mxu0 0.0
        %1070 = vmatprep.subr.mxu0 0.0
        %1071 = vmatpush1.msra.mxu0 0.0
        %1072 = vmatprep.subr.mxu0 0.0
        %1073 = vmatpush1.msra.mxu0 0.0
        %1074 = vmatprep.subr.mxu0 0.0
        %1075 = vmatpush1.msra.mxu0 0.0
        %1076 = vmatprep.subr.mxu0 0.0
        %1077 = vmatpush1.msra.mxu0 0.0
        %1078 = vmatprep.subr.mxu0 0.0
        %1079 = vmatpush1.msra.mxu0 0.0
        %1080 = vmatprep.subr.mxu0 0.0
        %1081 = vmatpush1.msra.mxu0 0.0
        %1082 = vmatprep.subr.mxu0 0.0
        %1083 = vmatpush1.msra.mxu0 0.0
        %1084 = vmatprep.subr.mxu0 0.0
        %1085 = vmatpush1.msra.mxu0 0.0
        %1086 = vmatprep.mubr.f32.mxu0 0.0
        %1087 = vmatmul.mubr.f32.gmra.mrb[0].mxu0 %v464
        %v1088 = vpop.f32.mrb[0].mxu0
        %v1089 = vadd.f32 0.0, %v1088
        %v1090 = vpop.f32.mrb[0].mxu0
        %1091 = vmatprep.mubr.f32.mxu0 0.0
        %1092 = vmatmul.mubr.f32.gmra.mrb[0].mxu0 %v465
        %v1093 = vpop.f32.mrb[0].mxu0
        %v1094 = vadd.f32 0.0, %v1093
        %v1095 = vpop.f32.mrb[0].mxu0
        %1096 = vmatprep.mubr.f32.mxu0 0.0
        %1097 = vmatmul.mubr.f32.gmra.mrb[0].mxu0 1.0
        %v1098 = vpop.f32.mrb[0].mxu0
        %v1099 = vadd.f32 0.0, %v1098
        %v1100 = vpop.f32.mrb[0].mxu0
        %1101 = vdwg.mxu0
        %v1102 = vadd.f32 %v1019, %v1089
        %v1103 = vadd.f32 %v1020, %v1094
        %v1104 = vadd.f32 %v1021, %v1099
        %1105 = vst [vmem:[%s1018] sm:$0xff] %v1102
        %1106 = vst [vmem:[%s1018 + $0x8] sm:$0xff] %v1103
        %1107 = vst [vmem:[%s1018 + $0x10] sm:$0x1] %v1104
        %v1108 = vmul.f32 %v1002, %v1002
        %v1109 = vmul.f32 %v1003, %v1003
        %v1110 = vmul.f32 %v1004, %v1004
        %v1111 = vmul.f32 %v1005, %v1005
        %v1112 = vmul.f32 %v1006, %v1006
        %v1113 = vmul.f32 %v1007, %v1007
        %v1114 = vmul.f32 %v1008, %v1008
        %v1115 = vmul.f32 %v1009, %v1009
        %v1116 = vmul.f32 %v1010, %v1010
        %v1117 = vmul.f32 %v1011, %v1011
        %v1118 = vmul.f32 %v1012, %v1012
        %v1119 = vmul.f32 %v1013, %v1013
        %v1120 = vmul.f32 %v1014, %v1014
        %v1121 = vmul.f32 %v1015, %v1015
        %v1122 = vmul.f32 %v1016, %v1016
        %v1123 = vmul.f32 %v1017, %v1017
        %v1124 = vmul.f32 %v1108, %v1108
        %v1125 = vmul.f32 %v1109, %v1109
        %v1126 = vmul.f32 %v1110, %v1110
        %v1127 = vmul.f32 %v1111, %v1111
        %v1128 = vmul.f32 %v1112, %v1112
        %v1129 = vmul.f32 %v1113, %v1113
        %v1130 = vmul.f32 %v1114, %v1114
        %v1131 = vmul.f32 %v1115, %v1115
        %v1132 = vmul.f32 %v1116, %v1116
        %v1133 = vmul.f32 %v1117, %v1117
        %v1134 = vmul.f32 %v1118, %v1118
        %v1135 = vmul.f32 %v1119, %v1119
        %v1136 = vmul.f32 %v1120, %v1120
        %v1137 = vmul.f32 %v1121, %v1121
        %v1138 = vmul.f32 %v1122, %v1122
        %v1139 = vmul.f32 %v1123, %v1123
        %v1140 = vld [vmem:[#allocation2] sm:$0xff]
        %v1141 = vld [vmem:[#allocation2 + $0x8] sm:$0xff]
        %v1142 = vld [vmem:[#allocation2 + $0x10] sm:$0x1]
        %1143 = vmatprep.subr.mxu0 0.0
        %1144 = vmatpush1.msra.mxu0 %v1124
        %1145 = vmatprep.subr.mxu0 0.0
        %1146 = vmatpush1.msra.mxu0 %v1125
        %1147 = vmatprep.subr.mxu0 0.0
        %1148 = vmatpush1.msra.mxu0 %v1126
        %1149 = vmatprep.subr.mxu0 0.0
        %1150 = vmatpush1.msra.mxu0 %v1127
        %1151 = vmatprep.subr.mxu0 0.0
        %1152 = vmatpush1.msra.mxu0 %v1128
        %1153 = vmatprep.subr.mxu0 0.0
        %1154 = vmatpush1.msra.mxu0 %v1129
        %1155 = vmatprep.subr.mxu0 0.0
        %1156 = vmatpush1.msra.mxu0 %v1130
        %1157 = vmatprep.subr.mxu0 0.0
        %1158 = vmatpush1.msra.mxu0 %v1131
        %1159 = vmatprep.subr.mxu0 0.0
        %1160 = vmatpush1.msra.mxu0 %v1132
        %1161 = vmatprep.subr.mxu0 0.0
        %1162 = vmatpush1.msra.mxu0 %v1133
        %1163 = vmatprep.subr.mxu0 0.0
        %1164 = vmatpush1.msra.mxu0 %v1134
        %1165 = vmatprep.subr.mxu0 0.0
        %1166 = vmatpush1.msra.mxu0 %v1135
        %1167 = vmatprep.subr.mxu0 0.0
        %1168 = vmatpush1.msra.mxu0 %v1136
        %1169 = vmatprep.subr.mxu0 0.0
        %1170 = vmatpush1.msra.mxu0 %v1137
        %1171 = vmatprep.subr.mxu0 0.0
        %1172 = vmatpush1.msra.mxu0 %v1138
        %1173 = vmatprep.subr.mxu0 0.0
        %1174 = vmatpush1.msra.mxu0 %v1139
        %1175 = vmatprep.subr.mxu0 0.0
        %1176 = vmatpush1.msra.mxu0 0.0
        %1177 = vmatprep.subr.mxu0 0.0
        %1178 = vmatpush1.msra.mxu0 0.0
        %1179 = vmatprep.subr.mxu0 0.0
        %1180 = vmatpush1.msra.mxu0 0.0
        %1181 = vmatprep.subr.mxu0 0.0
        %1182 = vmatpush1.msra.mxu0 0.0
        %1183 = vmatprep.subr.mxu0 0.0
        %1184 = vmatpush1.msra.mxu0 0.0
        %1185 = vmatprep.subr.mxu0 0.0
        %1186 = vmatpush1.msra.mxu0 0.0
        %1187 = vmatprep.subr.mxu0 0.0
        %1188 = vmatpush1.msra.mxu0 0.0
        %1189 = vmatprep.subr.mxu0 0.0
        %1190 = vmatpush1.msra.mxu0 0.0
        %1191 = vmatprep.subr.mxu0 0.0
        %1192 = vmatpush1.msra.mxu0 0.0
        %1193 = vmatprep.subr.mxu0 0.0
        %1194 = vmatpush1.msra.mxu0 0.0
        %1195 = vmatprep.subr.mxu0 0.0
        %1196 = vmatpush1.msra.mxu0 0.0
        %1197 = vmatprep.subr.mxu0 0.0
        %1198 = vmatpush1.msra.mxu0 0.0
        %1199 = vmatprep.subr.mxu0 0.0
        %1200 = vmatpush1.msra.mxu0 0.0
        %1201 = vmatprep.subr.mxu0 0.0
        %1202 = vmatpush1.msra.mxu0 0.0
        %1203 = vmatprep.subr.mxu0 0.0
        %1204 = vmatpush1.msra.mxu0 0.0
        %1205 = vmatprep.subr.mxu0 0.0
        %1206 = vmatpush1.msra.mxu0 0.0
        %1207 = vmatprep.mubr.f32.mxu0 0.0
        %1208 = vmatmul.mubr.f32.gmra.mrb[0].mxu0 %v464
        %v1209 = vpop.f32.mrb[0].mxu0
        %v1210 = vadd.f32 0.0, %v1209
        %v1211 = vpop.f32.mrb[0].mxu0
        %1212 = vmatprep.mubr.f32.mxu0 0.0
        %1213 = vmatmul.mubr.f32.gmra.mrb[0].mxu0 %v465
        %v1214 = vpop.f32.mrb[0].mxu0
        %v1215 = vadd.f32 0.0, %v1214
        %v1216 = vpop.f32.mrb[0].mxu0
        %1217 = vmatprep.mubr.f32.mxu0 0.0
        %1218 = vmatmul.mubr.f32.gmra.mrb[0].mxu0 1.0
        %v1219 = vpop.f32.mrb[0].mxu0
        %v1220 = vadd.f32 0.0, %v1219
        %v1221 = vpop.f32.mrb[0].mxu0
        %1222 = vdwg.mxu0
        %v1223 = vadd.f32 %v1140, %v1210
        %v1224 = vadd.f32 %v1141, %v1215
        %v1225 = vadd.f32 %v1142, %v1220
        %1226 = vst [vmem:[#allocation2] sm:$0xff] %v1223
        %1227 = vst [vmem:[#allocation2 + $0x8] sm:$0xff] %v1224
        %1228 = vst [vmem:[#allocation2 + $0x10] sm:$0x1] %v1225
        %p1229 = scmp.eq.s32.totalorder %s23, 2
        // Predicated region
        $region83: #{geo_simple_feature_net_forward.6} parent=73 // pred_check
          %p1230 = pneg %p1229
        $region84: #{geo_simple_feature_net_forward.6} parent=73 // pred_check_branch
          %1232 = sbr.rel (%p1230) target = $region86
        $region85: #{geo_simple_feature_net_forward.6} parent=73 // pred_region
          %v1233 = vld [vmem:[#allocation2] sm:$0xff]
          %v1234 = vld [vmem:[#allocation2 + $0x8] sm:$0xff]
          %v1235 = vld [vmem:[#allocation2 + $0x10] sm:$0x1]
          %v1236 = vmax.f32 %v1235, 1e-20
          %v1237 = vrcp.pop %v1236
          %v1238 = vmul.f32 %v1236, %v1237
          %v1239 = vsub.f32 2.0, %v1238
          %v1240 = vmul.f32 %v1237, %v1239
          %v1241 = vlaneseq
          %v1242 = vshrl.u32 %v1241, 7
          %v1243 = vsub.s32 0, %v1242
          %v1244 = vrot.slane %v1240, %v1243
          %v1245 = vmul.f32 %v1233, %v1244
          %v1246 = vmul.f32 %v1234, %v1244
          %v1247 = vmul.f32 %v1245, 0.33
          %v1248 = vmul.f32 %v1246, 0.33
          %v1249 = vadd.f32 %v1247, 0.0
          %v1250 = vadd.f32 %v1248, 0.0
          %v1251 = vld [vmem:[%s1018] sm:$0xff]
          %v1252 = vld [vmem:[%s1018 + $0x8] sm:$0xff]
          %v1253 = vld [vmem:[%s1018 + $0x10] sm:$0x1]
          %v1254 = vmax.f32 %v1253, 1e-20
          %v1255 = vrcp.pop %v1254
          %v1256 = vmul.f32 %v1254, %v1255
          %v1257 = vsub.f32 2.0, %v1256
          %v1258 = vmul.f32 %v1255, %v1257
          %v1259 = vlaneseq
          %v1260 = vshrl.u32 %v1259, 7
          %v1261 = vsub.s32 0, %v1260
          %v1262 = vrot.slane %v1258, %v1261
          %v1263 = vmul.f32 %v1251, %v1262
          %v1264 = vmul.f32 %v1252, %v1262
          %v1265 = vmul.f32 %v1263, 0.33
          %v1266 = vmul.f32 %v1264, 0.33
          %v1267 = vadd.f32 %v1249, %v1265
          %v1268 = vadd.f32 %v1250, %v1266
          %v1269 = vld [vmem:[%s896] sm:$0xff]
          %v1270 = vld [vmem:[%s896 + $0x8] sm:$0xff]
          %v1271 = vld [vmem:[%s896 + $0x10] sm:$0x1]
          %v1272 = vmax.f32 %v1271, 1e-20
          %v1273 = vrcp.pop %v1272
          %v1274 = vmul.f32 %v1272, %v1273
          %v1275 = vsub.f32 2.0, %v1274
          %v1276 = vmul.f32 %v1273, %v1275
          %v1277 = vlaneseq
          %v1278 = vshrl.u32 %v1277, 7
          %v1279 = vsub.s32 0, %v1278
          %v1280 = vrot.slane %v1276, %v1279
          %v1281 = vmul.f32 %v1269, %v1280
          %v1282 = vmul.f32 %v1270, %v1280
          %v1283 = vmul.f32 %v1281, 0.33
          %v1284 = vmul.f32 %v1282, 0.33
          %v1285 = vadd.f32 %v1267, %v1283
          %v1286 = vadd.f32 %v1268, %v1284
          %1287 = vst [vmem:[%s330] sm:$0xff] %v1285
          %1288 = vst [vmem:[%s330 + $0x8] sm:$0xff] %v1286
        $region86: #{geo_simple_feature_net_forward.6} parent=73 // pred_fallthru
          _
        %s1289 = sand.u32 %s171, 1
        %s1290 = sand.u32 %s171, 1
        %s1291 = smul.addr %s1290, 16
        %s1292 = scalar_lea.vmem [#allocation4], %s1291
        // Predicated region
        $region87: #{geo_simple_feature_net_forward.6} parent=73 // pred_check
          %p1293 = pneg %p181
        $region88: #{geo_simple_feature_net_forward.6} parent=73 // pred_check_branch
          %1295 = sbr.rel (%p1293) target = $region90
        $region89: #{geo_simple_feature_net_forward.6} parent=73 // pred_region
          %s1296 = smul.addr %s21, 6
          %s1297 = sadd.s32 %s22, %s1296
          %s1298 = smul.addr %s1297, 8
          %s1299 = scalar_lea.vmem %s5, %s1298
          // Predicated region
          $region91: #{geo_simple_feature_net_forward.6} parent=89 // pred_check
            _
          $region92: #{geo_simple_feature_net_forward.6} parent=89 // pred_check_branch
            %1301 = sbr.rel (0) target = $region94
          $region93: #{geo_simple_feature_net_forward.6} parent=89 // pred_region
            // Predicated region
            $region95: #{geo_simple_feature_net_forward.6} parent=93 // pred_check
              _
            $region96: #{geo_simple_feature_net_forward.6} parent=93 // pred_check_branch
              %1303 = sbr.rel (0) target = $region98
            $region97: #{geo_simple_feature_net_forward.6} parent=93 // pred_region
              // Predicated region
              $region110: #{geo_simple_feature_net_forward.6} parent=97 // pred_check
                _
              $region111: #{geo_simple_feature_net_forward.6} parent=97 // pred_check_branch
                %1320 = sbr.rel (0) target = $region113
              $region112: #{geo_simple_feature_net_forward.6} parent=97 // pred_region
                loop: start=0, step=1, limit=1
                $region114: #{geo_simple_feature_net_forward.6} parent=112 // loop_pre_header
                  _
                $region115: #{geo_simple_feature_net_forward.6} parent=112 // loop_header
                  %s1322 = sphi 0, %s1326
                  %p1323 = scmp.ge.s32.totalorder %s1322, 1
                  %s1327 = sphi %s1292, %s1292
                  %s1328 = sphi %s1299, %s1299
                $region116: #{geo_simple_feature_net_forward.6} parent=112 // loop_header_branch
                  %1325 = sbr.rel (%p1323) target = $region120
                $region117: #{geo_simple_feature_net_forward.6} parent=112 // loop_body
                  %v1329 = vld [vmem:[%s1327] sm:$0xff]
                  %1330 = vst [vmem:[%s1328] sm:$0xff] %v1329
                  %v1331 = vld [vmem:[%s1327 + $0x8] sm:$0xff]
                  %1332 = vst [vmem:[%s1328 + $0x18] sm:$0xff] %v1331
                $region118: #{geo_simple_feature_net_forward.6} parent=112 // loop_footer
                  %s1326 = sadd.s32 1, %s1322
                $region119: #{geo_simple_feature_net_forward.6} parent=112 // loop_footer_branch
                  %1321 = sbr.rel target = $region115
                $region120: #{geo_simple_feature_net_forward.6} parent=112 // loop_exit
                  _
              $region113: #{geo_simple_feature_net_forward.6} parent=97 // pred_fallthru
                _
              // Predicated region
              $region121: #{geo_simple_feature_net_forward.6} parent=97 // pred_check
                _
              $region122: #{geo_simple_feature_net_forward.6} parent=97 // pred_check_branch
                %1334 = sbr.rel target = $region124
              $region123: #{geo_simple_feature_net_forward.6} parent=97 // pred_region
                _
              $region124: #{geo_simple_feature_net_forward.6} parent=97 // pred_fallthru
                _
            $region98: #{geo_simple_feature_net_forward.6} parent=93 // pred_fallthru
              _
            // Predicated region
            $region99: #{geo_simple_feature_net_forward.6} parent=93 // pred_check
              _
            $region100: #{geo_simple_feature_net_forward.6} parent=93 // pred_check_branch
              %1305 = sbr.rel target = $region102
            $region101: #{geo_simple_feature_net_forward.6} parent=93 // pred_region
              loop: start=0, step=1, limit=1
              $region103: #{geo_simple_feature_net_forward.6} parent=101 // loop_pre_header
                _
              $region104: #{geo_simple_feature_net_forward.6} parent=101 // loop_header
                %s1308 = sphi 0, %s1312
                %p1309 = scmp.ge.s32.totalorder %s1308, 1
                %s1313 = sphi %s1292, %s1292
                %s1314 = sphi %s1299, %s1299
              $region105: #{geo_simple_feature_net_forward.6} parent=101 // loop_header_branch
                %1311 = sbr.rel (%p1309) target = $region109
              $region106: #{geo_simple_feature_net_forward.6} parent=101 // loop_body
                %v1315 = vld [vmem:[%s1313] sm:$0xff]
                %1316 = vst [vmem:[%s1314] sm:$0xff] %v1315
                %v1317 = vld [vmem:[%s1313 + $0x8] sm:$0xff]
                %1318 = vst [vmem:[%s1314 + $0x18] sm:$0xff] %v1317
              $region107: #{geo_simple_feature_net_forward.6} parent=101 // loop_footer
                %s1312 = sadd.s32 1, %s1308
              $region108: #{geo_simple_feature_net_forward.6} parent=101 // loop_footer_branch
                %1307 = sbr.rel target = $region104
              $region109: #{geo_simple_feature_net_forward.6} parent=101 // loop_exit
                _
            $region102: #{geo_simple_feature_net_forward.6} parent=93 // pred_fallthru
              _
          $region94: #{geo_simple_feature_net_forward.6} parent=89 // pred_fallthru
            _
          %1335 = vnop
        $region90: #{geo_simple_feature_net_forward.6} parent=73 // pred_fallthru
          _
      $region74: #{geo_simple_feature_net_forward.6} parent=5 // pred_fallthru
        _
      %p1336 = scmp.le.s32.totalorder 2, %s11
      // Predicated region
      $region125: #{geo_simple_feature_net_forward.6} parent=5 // pred_check
        %p1337 = pneg %p1336
      $region126: #{geo_simple_feature_net_forward.6} parent=5 // pred_check_branch
        %1339 = sbr.rel (%p1337) target = $region128
      $region127: #{geo_simple_feature_net_forward.6} parent=5 // pred_region
        %s1340 = ssub.s32 %s11, 2
        // Predicated region
        $region129: #{geo_simple_feature_net_forward.6} parent=127 // pred_check
          %p1341 = pneg %p187
        $region130: #{geo_simple_feature_net_forward.6} parent=127 // pred_check_branch
          %1343 = sbr.rel (%p1341) target = $region132
        $region131: #{geo_simple_feature_net_forward.6} parent=127 // pred_region
          %s1344 = sand.u32 %s172, 1
          %s1345 = sand.u32 %s172, 1
          %s1346 = smul.addr %s1345, 16
          %s1347 = scalar_lea.vmem [#allocation4], %s1346
        $region132: #{geo_simple_feature_net_forward.6} parent=127 // pred_fallthru
          _
      $region128: #{geo_simple_feature_net_forward.6} parent=5 // pred_fallthru
        _
    $region6: #{geo_simple_feature_net_forward.6} parent=1 // loop_footer
      %s15 = sadd.s32 1, %s11
    $region7: #{geo_simple_feature_net_forward.6} parent=1 // loop_footer_branch
      %10 = sbr.rel target = $region3
    $region8: #{geo_simple_feature_net_forward.6} parent=1 // loop_exit
      _

// kernel: geo_simple_feature_net_forward.9
$region0: #{geo_simple_feature_net_forward.9}
  #allocation0 [shape = 'u32[]', space=smem, size = 0x4, offset = 0x4, fixed_abs, tag = 'smem constant byte address 0x4 - core index']
  #allocation1 [shape = 'u32[144,128]{1,0:T(1,128)}', space=vmem, size = 0x12000, scoped, tag = 'internal scratch']
  #allocation2 [shape = 'f32[3,65,128]{2,1,0:T(8,128)}', space=vmem, size = 0x1b000, scoped, tag = 'scratch operand']
  %s0 = inlined_call_operand.vmem [shape: f32[2,3,384], index: 0, kind: input, shape index: {}]
  %s1 = inlined_call_operand.vmem [shape: f32[2,384,3], index: 1, kind: input, shape index: {}]
  %s2 = inlined_call_operand.vmem [shape: f32[2,32,384], index: 2, kind: input, shape index: {}]
  %s3 = inlined_call_operand.vmem [shape: f32[64,32], index: 3, kind: input, shape index: {}]
  %s4 = inlined_call_operand.vmem [shape: f32[64,1], index: 4, kind: input, shape index: {}]
  %s5 = inlined_call_operand.vmem [shape: f32[64,64], index: 5, kind: input, shape index: {}]
  %s6 = inlined_call_operand.vmem [shape: f32[64,1], index: 6, kind: input, shape index: {}]
  %s7 = inlined_call_operand.vmem [shape: f32[64,64], index: 7, kind: input, shape index: {}]
  %s8 = inlined_call_operand.vmem [shape: f32[64,1], index: 8, kind: input, shape index: {}]
  %s9 = inlined_call_operand.vmem [shape: f32[32,64], index: 9, kind: input, shape index: {}]
  %s10 = inlined_call_operand.vmem [shape: f32[32,1], index: 10, kind: input, shape index: {}]
  %s11 = inlined_call_operand.hbm [shape: f32[2,32,384], index: 11, kind: output, shape index: {}]
  %s12 = sld [smem:[#allocation0]]
  $region123: #{geo_simple_feature_net_forward.9} parent=0
    _
  %s14 = ssub.s32 1, %s12
  %s15 = scalar_select 0, %s14, %s12
  $region1: #{geo_simple_feature_net_forward.9} parent=0
    #allocation3 [shape = 'u8[32768]{0}', space=vmem, size = 0x8000, scoped, tag = 'input window, operand 2']
    #allocation4 [shape = 'u8[32768]{0}', space=vmem, size = 0x8000, scoped, tag = 'output window, operand 0']
    #allocation5 [shape = 's32[2]{0}', space=sflag, size = 0x8, scoped, tag = 'scoped memory for geo_simple_feature_net_forward.9']
    %16 = vsyncpa [#allocation5], 0
    %s17 = scalar_lea.sflag [#allocation5], 1
    %18 = vsyncpa %s17, 0
    loop: start=0, step=1, limit=20
    $region2: #{geo_simple_feature_net_forward.9} parent=1 // loop_pre_header
      _
    $region3: #{geo_simple_feature_net_forward.9} parent=1 // loop_header
      %s20 = sphi 0, %s24
      %p21 = scmp.ge.s32.totalorder %s20, 20
      %s27 = sphi 0, %s46
      %s28 = sphi 0, %s42
      %s29 = sphi 0, %s38
      %s30 = sphi 0, %s27
      %s31 = sphi 0, %s28
      %s32 = sphi 0, %s29
      %s33 = sphi 0, %s30
      %s34 = sphi 0, %s31
      %s35 = sphi 0, %s32
      %s51 = sphi 0, %s53
      %s54 = sphi 0, %s51
      %s55 = sphi 0, %s54
      %s71 = sphi 0, %s55
      %s79 = sphi 0, %s81
      %s82 = sphi 0, %s79
      %s83 = sphi 0, %s82
      %s99 = sphi 0, %s83
      %s107 = sphi 0, %s109
      %s110 = sphi 0, %s107
      %s111 = sphi 0, %s110
      %s127 = sphi 0, %s111
      %s131 = sphi 0, %s131
      %s133 = sphi 0, %s131
      %s134 = sphi 0, %s133
      %s148 = sphi 0, %s134
      %s152 = sphi 0, %s152
      %s154 = sphi 0, %s152
      %s155 = sphi 0, %s154
      %s169 = sphi 0, %s155
      %s173 = sphi 0, %s173
      %s175 = sphi 0, %s173
      %s176 = sphi 0, %s175
      %s190 = sphi 0, %s176
      %s194 = sphi 0, %s194
      %s196 = sphi 0, %s194
      %s197 = sphi 0, %s196
      %s211 = sphi 0, %s197
      %s215 = sphi 0, %s215
      %s217 = sphi 0, %s215
      %s218 = sphi 0, %s217
      %s232 = sphi 0, %s218
      %s236 = sphi 0, %s236
      %s238 = sphi 0, %s236
      %s239 = sphi 0, %s238
      %s253 = sphi 0, %s239
      %s257 = sphi 0, %s257
      %s259 = sphi 0, %s257
      %s260 = sphi 0, %s259
      %s274 = sphi 0, %s260
      %s278 = sphi 0, %s278
      %s280 = sphi 0, %s278
      %s281 = sphi 0, %s280
      %s295 = sphi 0, %s281
      %s303 = sphi 0, %s305
      %s306 = sphi 0, %s303
      %s307 = sphi 0, %s306
      %s323 = sphi 0, %s307
    $region4: #{geo_simple_feature_net_forward.9} parent=1 // loop_header_branch
      %23 = sbr.rel (%p21) target = $region8
    $region5: #{geo_simple_feature_net_forward.9} parent=1 // loop_body
      %s25 = ssub.s32 %s20, 1
      %s26 = ssub.s32 %s20, 2
      %s36 = sadd.s32 1, %s29
      %p37 = scmp.ge.s32.totalorder %s36, 3
      %s38 = scalar_select %p37, 0, %s36
      %s39 = sadd.s32 1, %s28
      %s40 = scalar_select %p37, %s39, %s28
      %p41 = scmp.ge.s32.totalorder %s40, 3
      %s42 = scalar_select %p41, 0, %s40
      %s43 = sadd.s32 1, %s27
      %s44 = scalar_select %p41, %s43, %s27
      %p45 = scmp.ge.s32.totalorder %s44, 2
      %s46 = scalar_select %p45, 0, %s44
      %s47 = ssub.s32 %s27, %s46
      %s48 = ssub.s32 %s28, %s42
      %s49 = sor.u32 %s47, %s48
      %p50 = scmp.eq.s32.totalorder %s49, 0
      %s52 = sadd.s32 %s51, 1
      %s53 = scalar_select %p50, %s51, %s52
      %p56 = pneg %p50
      %p57 = scmp.eq.s32.totalorder %s20, 17
      %p58 = por %p56, %p57
      %p59 = scmp.ne.s32.totalorder %s51, %s54
      %p60 = scmp.eq.s32.totalorder %s20, 0
      %p61 = por %p59, %p60
      %p62 = scmp.ne.s32.totalorder %s51, %s54
      %p63 = scmp.eq.s32.totalorder %s25, 17
      %p64 = por %p62, %p63
      %p65 = scmp.ne.s32.totalorder %s54, %s55
      %p66 = scmp.eq.s32.totalorder %s25, 0
      %p67 = por %p65, %p66
      %p68 = scmp.ne.s32.totalorder %s54, %s55
      %p69 = scmp.eq.s32.totalorder %s26, 17
      %p70 = por %p68, %p69
      %p72 = scmp.ne.s32.totalorder %s55, %s71
      %p73 = scmp.eq.s32.totalorder %s26, 0
      %p74 = por %p72, %p73
      %s75 = ssub.s32 %s27, %s46
      %s76 = ssub.s32 %s29, %s38
      %s77 = sor.u32 %s75, %s76
      %p78 = scmp.eq.s32.totalorder %s77, 0
      %s80 = sadd.s32 %s79, 1
      %s81 = scalar_select %p78, %s79, %s80
      %p84 = pneg %p78
      %p85 = scmp.eq.s32.totalorder %s20, 17
      %p86 = por %p84, %p85
      %p87 = scmp.ne.s32.totalorder %s79, %s82
      %p88 = scmp.eq.s32.totalorder %s20, 0
      %p89 = por %p87, %p88
      %p90 = scmp.ne.s32.totalorder %s79, %s82
      %p91 = scmp.eq.s32.totalorder %s25, 17
      %p92 = por %p90, %p91
      %p93 = scmp.ne.s32.totalorder %s82, %s83
      %p94 = scmp.eq.s32.totalorder %s25, 0
      %p95 = por %p93, %p94
      %p96 = scmp.ne.s32.totalorder %s82, %s83
      %p97 = scmp.eq.s32.totalorder %s26, 17
      %p98 = por %p96, %p97
      %p100 = scmp.ne.s32.totalorder %s83, %s99
      %p101 = scmp.eq.s32.totalorder %s26, 0
      %p102 = por %p100, %p101
      %s103 = ssub.s32 %s27, %s46
      %s104 = ssub.s32 %s29, %s38
      %s105 = sor.u32 %s103, %s104
      %p106 = scmp.eq.s32.totalorder %s105, 0
      %s108 = sadd.s32 %s107, 1
      %s109 = scalar_select %p106, %s107, %s108
      %p112 = pneg %p106
      %p113 = scmp.eq.s32.totalorder %s20, 17
      %p114 = por %p112, %p113
      %p115 = scmp.ne.s32.totalorder %s107, %s110
      %p116 = scmp.eq.s32.totalorder %s20, 0
      %p117 = por %p115, %p116
      %p118 = scmp.ne.s32.totalorder %s107, %s110
      %p119 = scmp.eq.s32.totalorder %s25, 17
      %p120 = por %p118, %p119
      %p121 = scmp.ne.s32.totalorder %s110, %s111
      %p122 = scmp.eq.s32.totalorder %s25, 0
      %p123 = por %p121, %p122
      %p124 = scmp.ne.s32.totalorder %s110, %s111
      %p125 = scmp.eq.s32.totalorder %s26, 17
      %p126 = por %p124, %p125
      %p128 = scmp.ne.s32.totalorder %s111, %s127
      %p129 = scmp.eq.s32.totalorder %s26, 0
      %p130 = por %p128, %p129
      %s132 = sadd.s32 %s131, 1
      %p135 = scmp.eq.s32.totalorder %s20, 17
      %p136 = scmp.ne.s32.totalorder %s131, %s133
      %p137 = scmp.eq.s32.totalorder %s20, 0
      %p138 = por %p136, %p137
      %p139 = scmp.ne.s32.totalorder %s131, %s133
      %p140 = scmp.eq.s32.totalorder %s25, 17
      %p141 = por %p139, %p140
      %p142 = scmp.ne.s32.totalorder %s133, %s134
      %p143 = scmp.eq.s32.totalorder %s25, 0
      %p144 = por %p142, %p143
      %p145 = scmp.ne.s32.totalorder %s133, %s134
      %p146 = scmp.eq.s32.totalorder %s26, 17
      %p147 = por %p145, %p146
      %p149 = scmp.ne.s32.totalorder %s134, %s148
      %p150 = scmp.eq.s32.totalorder %s26, 0
      %p151 = por %p149, %p150
      %s153 = sadd.s32 %s152, 1
      %p156 = scmp.eq.s32.totalorder %s20, 17
      %p157 = scmp.ne.s32.totalorder %s152, %s154
      %p158 = scmp.eq.s32.totalorder %s20, 0
      %p159 = por %p157, %p158
      %p160 = scmp.ne.s32.totalorder %s152, %s154
      %p161 = scmp.eq.s32.totalorder %s25, 17
      %p162 = por %p160, %p161
      %p163 = scmp.ne.s32.totalorder %s154, %s155
      %p164 = scmp.eq.s32.totalorder %s25, 0
      %p165 = por %p163, %p164
      %p166 = scmp.ne.s32.totalorder %s154, %s155
      %p167 = scmp.eq.s32.totalorder %s26, 17
      %p168 = por %p166, %p167
      %p170 = scmp.ne.s32.totalorder %s155, %s169
      %p171 = scmp.eq.s32.totalorder %s26, 0
      %p172 = por %p170, %p171
      %s174 = sadd.s32 %s173, 1
      %p177 = scmp.eq.s32.totalorder %s20, 17
      %p178 = scmp.ne.s32.totalorder %s173, %s175
      %p179 = scmp.eq.s32.totalorder %s20, 0
      %p180 = por %p178, %p179
      %p181 = scmp.ne.s32.totalorder %s173, %s175
      %p182 = scmp.eq.s32.totalorder %s25, 17
      %p183 = por %p181, %p182
      %p184 = scmp.ne.s32.totalorder %s175, %s176
      %p185 = scmp.eq.s32.totalorder %s25, 0
      %p186 = por %p184, %p185
      %p187 = scmp.ne.s32.totalorder %s175, %s176
      %p188 = scmp.eq.s32.totalorder %s26, 17
      %p189 = por %p187, %p188
      %p191 = scmp.ne.s32.totalorder %s176, %s190
      %p192 = scmp.eq.s32.totalorder %s26, 0
      %p193 = por %p191, %p192
      %s195 = sadd.s32 %s194, 1
      %p198 = scmp.eq.s32.totalorder %s20, 17
      %p199 = scmp.ne.s32.totalorder %s194, %s196
      %p200 = scmp.eq.s32.totalorder %s20, 0
      %p201 = por %p199, %p200
      %p202 = scmp.ne.s32.totalorder %s194, %s196
      %p203 = scmp.eq.s32.totalorder %s25, 17
      %p204 = por %p202, %p203
      %p205 = scmp.ne.s32.totalorder %s196, %s197
      %p206 = scmp.eq.s32.totalorder %s25, 0
      %p207 = por %p205, %p206
      %p208 = scmp.ne.s32.totalorder %s196, %s197
      %p209 = scmp.eq.s32.totalorder %s26, 17
      %p210 = por %p208, %p209
      %p212 = scmp.ne.s32.totalorder %s197, %s211
      %p213 = scmp.eq.s32.totalorder %s26, 0
      %p214 = por %p212, %p213
      %s216 = sadd.s32 %s215, 1
      %p219 = scmp.eq.s32.totalorder %s20, 17
      %p220 = scmp.ne.s32.totalorder %s215, %s217
      %p221 = scmp.eq.s32.totalorder %s20, 0
      %p222 = por %p220, %p221
      %p223 = scmp.ne.s32.totalorder %s215, %s217
      %p224 = scmp.eq.s32.totalorder %s25, 17
      %p225 = por %p223, %p224
      %p226 = scmp.ne.s32.totalorder %s217, %s218
      %p227 = scmp.eq.s32.totalorder %s25, 0
      %p228 = por %p226, %p227
      %p229 = scmp.ne.s32.totalorder %s217, %s218
      %p230 = scmp.eq.s32.totalorder %s26, 17
      %p231 = por %p229, %p230
      %p233 = scmp.ne.s32.totalorder %s218, %s232
      %p234 = scmp.eq.s32.totalorder %s26, 0
      %p235 = por %p233, %p234
      %s237 = sadd.s32 %s236, 1
      %p240 = scmp.eq.s32.totalorder %s20, 17
      %p241 = scmp.ne.s32.totalorder %s236, %s238
      %p242 = scmp.eq.s32.totalorder %s20, 0
      %p243 = por %p241, %p242
      %p244 = scmp.ne.s32.totalorder %s236, %s238
      %p245 = scmp.eq.s32.totalorder %s25, 17
      %p246 = por %p244, %p245
      %p247 = scmp.ne.s32.totalorder %s238, %s239
      %p248 = scmp.eq.s32.totalorder %s25, 0
      %p249 = por %p247, %p248
      %p250 = scmp.ne.s32.totalorder %s238, %s239
      %p251 = scmp.eq.s32.totalorder %s26, 17
      %p252 = por %p250, %p251
      %p254 = scmp.ne.s32.totalorder %s239, %s253
      %p255 = scmp.eq.s32.totalorder %s26, 0
      %p256 = por %p254, %p255
      %s258 = sadd.s32 %s257, 1
      %p261 = scmp.eq.s32.totalorder %s20, 17
      %p262 = scmp.ne.s32.totalorder %s257, %s259
      %p263 = scmp.eq.s32.totalorder %s20, 0
      %p264 = por %p262, %p263
      %p265 = scmp.ne.s32.totalorder %s257, %s259
      %p266 = scmp.eq.s32.totalorder %s25, 17
      %p267 = por %p265, %p266
      %p268 = scmp.ne.s32.totalorder %s259, %s260
      %p269 = scmp.eq.s32.totalorder %s25, 0
      %p270 = por %p268, %p269
      %p271 = scmp.ne.s32.totalorder %s259, %s260
      %p272 = scmp.eq.s32.totalorder %s26, 17
      %p273 = por %p271, %p272
      %p275 = scmp.ne.s32.totalorder %s260, %s274
      %p276 = scmp.eq.s32.totalorder %s26, 0
      %p277 = por %p275, %p276
      %s279 = sadd.s32 %s278, 1
      %p282 = scmp.eq.s32.totalorder %s20, 17
      %p283 = scmp.ne.s32.totalorder %s278, %s280
      %p284 = scmp.eq.s32.totalorder %s20, 0
      %p285 = por %p283, %p284
      %p286 = scmp.ne.s32.totalorder %s278, %s280
      %p287 = scmp.eq.s32.totalorder %s25, 17
      %p288 = por %p286, %p287
      %p289 = scmp.ne.s32.totalorder %s280, %s281
      %p290 = scmp.eq.s32.totalorder %s25, 0
      %p291 = por %p289, %p290
      %p292 = scmp.ne.s32.totalorder %s280, %s281
      %p293 = scmp.eq.s32.totalorder %s26, 17
      %p294 = por %p292, %p293
      %p296 = scmp.ne.s32.totalorder %s281, %s295
      %p297 = scmp.eq.s32.totalorder %s26, 0
      %p298 = por %p296, %p297
      %s299 = ssub.s32 %s27, %s46
      %s300 = ssub.s32 %s28, %s42
      %s301 = sor.u32 %s299, %s300
      %p302 = scmp.eq.s32.totalorder %s301, 0
      %s304 = sadd.s32 %s303, 1
      %s305 = scalar_select %p302, %s303, %s304
      %p308 = pneg %p302
      %p309 = scmp.eq.s32.totalorder %s20, 17
      %p310 = por %p308, %p309
      %p311 = scmp.ne.s32.totalorder %s303, %s306
      %p312 = scmp.eq.s32.totalorder %s20, 0
      %p313 = por %p311, %p312
      %p314 = scmp.ne.s32.totalorder %s303, %s306
      %p315 = scmp.eq.s32.totalorder %s25, 17
      %p316 = por %p314, %p315
      %p317 = scmp.ne.s32.totalorder %s306, %s307
      %p318 = scmp.eq.s32.totalorder %s25, 0
      %p319 = por %p317, %p318
      %p320 = scmp.ne.s32.totalorder %s306, %s307
      %p321 = scmp.eq.s32.totalorder %s26, 17
      %p322 = por %p320, %p321
      %p324 = scmp.ne.s32.totalorder %s307, %s323
      %p325 = scmp.eq.s32.totalorder %s26, 0
      %p326 = por %p324, %p325
      %p327 = scmp.le.s32.totalorder 1, %s20
      %p328 = scmp.lt.s32.totalorder %s20, 19
      %p329 = pnand %p327, %p328
      %p330 = pneg %p329
      // Predicated region
      $region9: #{geo_simple_feature_net_forward.9} parent=5 // pred_check
        _
      $region10: #{geo_simple_feature_net_forward.9} parent=5 // pred_check_branch
        %332 = sbr.rel (%p329) target = $region12
      $region11: #{geo_simple_feature_net_forward.9} parent=5 // pred_region
        %s333 = ssub.s32 %s20, 1
        // Predicated region
        $region13: #{geo_simple_feature_net_forward.9} parent=11 // pred_check
          %p334 = pneg %p144
        $region14: #{geo_simple_feature_net_forward.9} parent=11 // pred_check_branch
          %336 = sbr.rel (%p334) target = $region16
        $region15: #{geo_simple_feature_net_forward.9} parent=11 // pred_region
          _
        $region16: #{geo_simple_feature_net_forward.9} parent=11 // pred_fallthru
          _
        // Predicated region
        $region17: #{geo_simple_feature_net_forward.9} parent=11 // pred_check
          %p337 = pneg %p165
        $region18: #{geo_simple_feature_net_forward.9} parent=11 // pred_check_branch
          %339 = sbr.rel (%p337) target = $region20
        $region19: #{geo_simple_feature_net_forward.9} parent=11 // pred_region
          _
        $region20: #{geo_simple_feature_net_forward.9} parent=11 // pred_fallthru
          _
        // Predicated region
        $region21: #{geo_simple_feature_net_forward.9} parent=11 // pred_check
          %p340 = pneg %p186
        $region22: #{geo_simple_feature_net_forward.9} parent=11 // pred_check_branch
          %342 = sbr.rel (%p340) target = $region24
        $region23: #{geo_simple_feature_net_forward.9} parent=11 // pred_region
          _
        $region24: #{geo_simple_feature_net_forward.9} parent=11 // pred_fallthru
          _
        // Predicated region
        $region25: #{geo_simple_feature_net_forward.9} parent=11 // pred_check
          %p343 = pneg %p207
        $region26: #{geo_simple_feature_net_forward.9} parent=11 // pred_check_branch
          %345 = sbr.rel (%p343) target = $region28
        $region27: #{geo_simple_feature_net_forward.9} parent=11 // pred_region
          _
        $region28: #{geo_simple_feature_net_forward.9} parent=11 // pred_fallthru
          _
        // Predicated region
        $region29: #{geo_simple_feature_net_forward.9} parent=11 // pred_check
          %p346 = pneg %p228
        $region30: #{geo_simple_feature_net_forward.9} parent=11 // pred_check_branch
          %348 = sbr.rel (%p346) target = $region32
        $region31: #{geo_simple_feature_net_forward.9} parent=11 // pred_region
          _
        $region32: #{geo_simple_feature_net_forward.9} parent=11 // pred_fallthru
          _
        // Predicated region
        $region33: #{geo_simple_feature_net_forward.9} parent=11 // pred_check
          %p349 = pneg %p249
        $region34: #{geo_simple_feature_net_forward.9} parent=11 // pred_check_branch
          %351 = sbr.rel (%p349) target = $region36
        $region35: #{geo_simple_feature_net_forward.9} parent=11 // pred_region
          _
        $region36: #{geo_simple_feature_net_forward.9} parent=11 // pred_fallthru
          _
        // Predicated region
        $region37: #{geo_simple_feature_net_forward.9} parent=11 // pred_check
          %p352 = pneg %p270
        $region38: #{geo_simple_feature_net_forward.9} parent=11 // pred_check_branch
          %354 = sbr.rel (%p352) target = $region40
        $region39: #{geo_simple_feature_net_forward.9} parent=11 // pred_region
          _
        $region40: #{geo_simple_feature_net_forward.9} parent=11 // pred_fallthru
          _
        // Predicated region
        $region41: #{geo_simple_feature_net_forward.9} parent=11 // pred_check
          %p355 = pneg %p291
        $region42: #{geo_simple_feature_net_forward.9} parent=11 // pred_check_branch
          %357 = sbr.rel (%p355) target = $region44
        $region43: #{geo_simple_feature_net_forward.9} parent=11 // pred_region
          _
        $region44: #{geo_simple_feature_net_forward.9} parent=11 // pred_fallthru
          _
      $region12: #{geo_simple_feature_net_forward.9} parent=5 // pred_fallthru
        _
      %p358 = scmp.lt.s32.totalorder %s20, 18
      // Predicated region
      $region45: #{geo_simple_feature_net_forward.9} parent=5 // pred_check
        %p359 = pneg %p358
      $region46: #{geo_simple_feature_net_forward.9} parent=5 // pred_check_branch
        %361 = sbr.rel (%p359) target = $region48
      $region47: #{geo_simple_feature_net_forward.9} parent=5 // pred_region
        // Predicated region
        $region49: #{geo_simple_feature_net_forward.9} parent=47 // pred_check
          %p362 = pneg %p61
        $region50: #{geo_simple_feature_net_forward.9} parent=47 // pred_check_branch
          %364 = sbr.rel (%p362) target = $region52
        $region51: #{geo_simple_feature_net_forward.9} parent=47 // pred_region
          %p365 = scmp.lt.s32.totalorder %s27, 1
          %s366 = scalar_select %p365, %s27, 1
          %p367 = scmp.lt.s32.totalorder %s28, 2
          %s368 = scalar_select %p367, %s28, 2
          %s369 = smul.addr %s366, 3
          %s370 = sadd.s32 %s368, %s369
          %s371 = smul.addr %s370, 4
          %s372 = scalar_lea.vmem %s0, %s371
        $region52: #{geo_simple_feature_net_forward.9} parent=47 // pred_fallthru
          _
        // Predicated region
        $region53: #{geo_simple_feature_net_forward.9} parent=47 // pred_check
          %p373 = pneg %p89
        $region54: #{geo_simple_feature_net_forward.9} parent=47 // pred_check_branch
          %375 = sbr.rel (%p373) target = $region56
        $region55: #{geo_simple_feature_net_forward.9} parent=47 // pred_region
          %s376 = smul.u32 16, %s29
          %p377 = scmp.lt.s32.totalorder %s27, 1
          %s378 = scalar_select %p377, %s27, 1
          %p379 = scmp.lt.s32.totalorder %s376, 47
          %s380 = scalar_select %p379, %s376, 47
          %s381 = smul.addr %s378, 48
          %s382 = sadd.s32 %s380, %s381
          %s383 = smul.addr %s382, 8
          %s384 = scalar_lea.vmem %s1, %s383
          %s385 = smul.u32 16, %s29
        $region56: #{geo_simple_feature_net_forward.9} parent=47 // pred_fallthru
          _
        // Predicated region
        $region57: #{geo_simple_feature_net_forward.9} parent=47 // pred_check
          %p386 = pneg %p117
        $region58: #{geo_simple_feature_net_forward.9} parent=47 // pred_check_branch
          %388 = sbr.rel (%p386) target = $region60
        $region59: #{geo_simple_feature_net_forward.9} parent=47 // pred_region
          %s389 = sand.u32 %s107, 1
          %s390 = sand.u32 %s107, 1
          %s391 = smul.addr %s390, 32
          %s392 = scalar_lea.vmem [#allocation3], %s391
          %s393 = smul.addr %s27, 12
          %s394 = sadd.s32 %s29, %s393
          %s395 = smul.addr %s394, 8
          %s396 = scalar_lea.vmem %s2, %s395
          // Predicated region
          $region61: #{geo_simple_feature_net_forward.9} parent=59 // pred_check
            _
          $region62: #{geo_simple_feature_net_forward.9} parent=59 // pred_check_branch
            %398 = sbr.rel (0) target = $region64
          $region63: #{geo_simple_feature_net_forward.9} parent=59 // pred_region
            // Predicated region
            $region65: #{geo_simple_feature_net_forward.9} parent=63 // pred_check
              _
            $region66: #{geo_simple_feature_net_forward.9} parent=63 // pred_check_branch
              %400 = sbr.rel (0) target = $region68
            $region67: #{geo_simple_feature_net_forward.9} parent=63 // pred_region
              // Predicated region
              $region80: #{geo_simple_feature_net_forward.9} parent=67 // pred_check
                _
              $region81: #{geo_simple_feature_net_forward.9} parent=67 // pred_check_branch
                %421 = sbr.rel (0) target = $region83
              $region82: #{geo_simple_feature_net_forward.9} parent=67 // pred_region
                loop: start=0, step=1, limit=1
                $region84: #{geo_simple_feature_net_forward.9} parent=82 // loop_pre_header
                  _
                $region85: #{geo_simple_feature_net_forward.9} parent=82 // loop_header
                  %s423 = sphi 0, %s427
                  %p424 = scmp.ge.s32.totalorder %s423, 1
                  %s428 = sphi %s396, %s396
                  %s429 = sphi %s392, %s392
                $region86: #{geo_simple_feature_net_forward.9} parent=82 // loop_header_branch
                  %426 = sbr.rel (%p424) target = $region90
                $region87: #{geo_simple_feature_net_forward.9} parent=82 // loop_body
                  %v430 = vld [vmem:[%s428] sm:$0xff]
                  %431 = vst [vmem:[%s429] sm:$0xff] %v430
                  %v432 = vld [vmem:[%s428 + $0x18] sm:$0xff]
                  %433 = vst [vmem:[%s429 + $0x8] sm:$0xff] %v432
                  %v434 = vld [vmem:[%s428 + $0x30] sm:$0xff]
                  %435 = vst [vmem:[%s429 + $0x10] sm:$0xff] %v434
                  %v436 = vld [vmem:[%s428 + $0x48] sm:$0xff]
                  %437 = vst [vmem:[%s429 + $0x18] sm:$0xff] %v436
                $region88: #{geo_simple_feature_net_forward.9} parent=82 // loop_footer
                  %s427 = sadd.s32 1, %s423
                $region89: #{geo_simple_feature_net_forward.9} parent=82 // loop_footer_branch
                  %422 = sbr.rel target = $region85
                $region90: #{geo_simple_feature_net_forward.9} parent=82 // loop_exit
                  _
              $region83: #{geo_simple_feature_net_forward.9} parent=67 // pred_fallthru
                _
              // Predicated region
              $region91: #{geo_simple_feature_net_forward.9} parent=67 // pred_check
                _
              $region92: #{geo_simple_feature_net_forward.9} parent=67 // pred_check_branch
                %439 = sbr.rel target = $region94
              $region93: #{geo_simple_feature_net_forward.9} parent=67 // pred_region
                _
              $region94: #{geo_simple_feature_net_forward.9} parent=67 // pred_fallthru
                _
            $region68: #{geo_simple_feature_net_forward.9} parent=63 // pred_fallthru
              _
            // Predicated region
            $region69: #{geo_simple_feature_net_forward.9} parent=63 // pred_check
              _
            $region70: #{geo_simple_feature_net_forward.9} parent=63 // pred_check_branch
              %402 = sbr.rel target = $region72
            $region71: #{geo_simple_feature_net_forward.9} parent=63 // pred_region
              loop: start=0, step=1, limit=1
              $region73: #{geo_simple_feature_net_forward.9} parent=71 // loop_pre_header
                _
              $region74: #{geo_simple_feature_net_forward.9} parent=71 // loop_header
                %s405 = sphi 0, %s409
                %p406 = scmp.ge.s32.totalorder %s405, 1
                %s410 = sphi %s396, %s396
                %s411 = sphi %s392, %s392
              $region75: #{geo_simple_feature_net_forward.9} parent=71 // loop_header_branch
                %408 = sbr.rel (%p406) target = $region79
              $region76: #{geo_simple_feature_net_forward.9} parent=71 // loop_body
                %v412 = vld [vmem:[%s410] sm:$0xff]
                %413 = vst [vmem:[%s411] sm:$0xff] %v412
                %v414 = vld [vmem:[%s410 + $0x18] sm:$0xff]
                %415 = vst [vmem:[%s411 + $0x8] sm:$0xff] %v414
                %v416 = vld [vmem:[%s410 + $0x30] sm:$0xff]
                %417 = vst [vmem:[%s411 + $0x10] sm:$0xff] %v416
                %v418 = vld [vmem:[%s410 + $0x48] sm:$0xff]
                %419 = vst [vmem:[%s411 + $0x18] sm:$0xff] %v418
              $region77: #{geo_simple_feature_net_forward.9} parent=71 // loop_footer
                %s409 = sadd.s32 1, %s405
              $region78: #{geo_simple_feature_net_forward.9} parent=71 // loop_footer_branch
                %404 = sbr.rel target = $region74
              $region79: #{geo_simple_feature_net_forward.9} parent=71 // loop_exit
                _
            $region72: #{geo_simple_feature_net_forward.9} parent=63 // pred_fallthru
              _
          $region64: #{geo_simple_feature_net_forward.9} parent=59 // pred_fallthru
            _
          %440 = vnop
        $region60: #{geo_simple_feature_net_forward.9} parent=47 // pred_fallthru
          _
      $region48: #{geo_simple_feature_net_forward.9} parent=5 // pred_fallthru
        _
      %p441 = scmp.le.s32.totalorder 1, %s20
      %p442 = scmp.lt.s32.totalorder %s20, 19
      %p443 = pnand %p441, %p442
      %p444 = pneg %p443
      // Predicated region
      $region95: #{geo_simple_feature_net_forward.9} parent=5 // pred_check
        _
      $region96: #{geo_simple_feature_net_forward.9} parent=5 // pred_check_branch
        %446 = sbr.rel (%p443) target = $region98
      $region97: #{geo_simple_feature_net_forward.9} parent=5 // pred_region
        %s447 = ssub.s32 %s20, 1
        %s448 = sand.u32 %s110, 1
        %s449 = sand.u32 %s110, 1
        %s450 = smul.addr %s449, 32
        %s451 = scalar_lea.vmem [#allocation3], %s450
        // Predicated region
        $region99: #{geo_simple_feature_net_forward.9} parent=97 // pred_check
          %p452 = pneg %p123
        $region100: #{geo_simple_feature_net_forward.9} parent=97 // pred_check_branch
          %454 = sbr.rel (%p452) target = $region102
        $region101: #{geo_simple_feature_net_forward.9} parent=97 // pred_region
          _
        $region102: #{geo_simple_feature_net_forward.9} parent=97 // pred_fallthru
          _
        %p455 = scmp.lt.s32.totalorder %s30, 1
        %s456 = scalar_select %p455, %s30, 1
        %p457 = scmp.lt.s32.totalorder %s31, 2
        %s458 = scalar_select %p457, %s31, 2
        %s459 = smul.addr %s456, 3
        %s460 = sadd.s32 %s458, %s459
        %s461 = smul.addr %s460, 4
        %s462 = scalar_lea.vmem %s0, %s461
        %p463 = pneg %p67
        %p464 = pneg %p64
        %s465 = smul.u32 16, %s32
        %p466 = scmp.lt.s32.totalorder %s30, 1
        %s467 = scalar_select %p466, %s30, 1
        %p468 = scmp.lt.s32.totalorder %s465, 47
        %s469 = scalar_select %p468, %s465, 47
        %s470 = smul.addr %s467, 48
        %s471 = sadd.s32 %s469, %s470
        %s472 = smul.addr %s471, 8
        %s473 = scalar_lea.vmem %s1, %s472
        %p474 = pneg %p95
        %p475 = pneg %p92
        %s476 = sand.u32 %s110, 1
        %s477 = sand.u32 %s110, 1
        %s478 = smul.addr %s477, 32
        %s479 = scalar_lea.vmem [#allocation3], %s478
        %p480 = pneg %p123
        %p481 = pneg %p120
        %p482 = pneg %p144
        %p483 = pneg %p141
        %p484 = pneg %p165
        %p485 = pneg %p162
        %p486 = pneg %p186
        %p487 = pneg %p183
        %p488 = pneg %p207
        %p489 = pneg %p204
        %p490 = pneg %p228
        %p491 = pneg %p225
        %p492 = pneg %p249
        %p493 = pneg %p246
        %p494 = pneg %p270
        %p495 = pneg %p267
        %p496 = pneg %p291
        %p497 = pneg %p288
        %p498 = pneg %p319
        %p499 = pneg %p316
        %s500 = sand.u32 %s306, 1
        %s501 = scalar_lea.sflag [#allocation5], %s500
        %s502 = sand.u32 %s306, 1
        %s503 = smul.addr %s502, 32
        %s504 = scalar_lea.vmem [#allocation4], %s503
        %p505 = scmp.lt.s32.totalorder %s30, 1
        %s506 = scalar_select %p505, %s30, 1
        %p507 = scmp.lt.s32.totalorder %s31, 2
        %s508 = scalar_select %p507, %s31, 2
        %s509 = smul.addr %s506, 3
        %s510 = sadd.s32 %s508, %s509
        %s511 = smul.addr %s510, 4
        %s512 = scalar_lea.vmem %s0, %s511
        %s513 = smul.u32 16, %s32
        %p514 = scmp.lt.s32.totalorder %s30, 1
        %s515 = scalar_select %p514, %s30, 1
        %p516 = scmp.lt.s32.totalorder %s513, 47
        %s517 = scalar_select %p516, %s513, 47
        %s518 = smul.addr %s515, 48
        %s519 = sadd.s32 %s517, %s518
        %s520 = smul.addr %s519, 8
        %s521 = scalar_lea.vmem %s1, %s520
        %s522 = smul.u32 16, %s32
        %p523 = scmp.eq.s32.totalorder %s32, 0
        // Predicated region
        $region103: #{geo_simple_feature_net_forward.9} parent=97 // pred_check
          %p524 = pneg %p523
        $region104: #{geo_simple_feature_net_forward.9} parent=97 // pred_check_branch
          %526 = sbr.rel (%p524) target = $region106
        $region105: #{geo_simple_feature_net_forward.9} parent=97 // pred_region
          %527 = vst [vmem:[#allocation2] sm:$0xff] 0.0
          %528 = vst [vmem:[#allocation2 + $0x8] sm:$0xff] 0.0
          %529 = vst [vmem:[#allocation2 + $0x10] sm:$0xff] 0.0
          %530 = vst [vmem:[#allocation2 + $0x18] sm:$0xff] 0.0
          %531 = vst [vmem:[#allocation2 + $0x20] sm:$0xff] 0.0
          %532 = vst [vmem:[#allocation2 + $0x28] sm:$0xff] 0.0
          %533 = vst [vmem:[#allocation2 + $0x30] sm:$0xff] 0.0
          %534 = vst [vmem:[#allocation2 + $0x38] sm:$0xff] 0.0
          %535 = vst [vmem:[#allocation2 + $0x40] sm:$0x1] 0.0
          %536 = vst [vmem:[#allocation2 + $0x48] sm:$0xff] 0.0
          %537 = vst [vmem:[#allocation2 + $0x50] sm:$0xff] 0.0
          %538 = vst [vmem:[#allocation2 + $0x58] sm:$0xff] 0.0
          %539 = vst [vmem:[#allocation2 + $0x60] sm:$0xff] 0.0
          %540 = vst [vmem:[#allocation2 + $0x68] sm:$0xff] 0.0
          %541 = vst [vmem:[#allocation2 + $0x70] sm:$0xff] 0.0
          %542 = vst [vmem:[#allocation2 + $0x78] sm:$0xff] 0.0
          %543 = vst [vmem:[#allocation2 + $0x80] sm:$0xff] 0.0
          %544 = vst [vmem:[#allocation2 + $0x88] sm:$0x1] 0.0
          %545 = vst [vmem:[#allocation2 + $0x90] sm:$0xff] 0.0
          %546 = vst [vmem:[#allocation2 + $0x98] sm:$0xff] 0.0
          %547 = vst [vmem:[#allocation2 + $0xa0] sm:$0xff] 0.0
          %548 = vst [vmem:[#allocation2 + $0xa8] sm:$0xff] 0.0
          %549 = vst [vmem:[#allocation2 + $0xb0] sm:$0xff] 0.0
          %550 = vst [vmem:[#allocation2 + $0xb8] sm:$0xff] 0.0
          %551 = vst [vmem:[#allocation2 + $0xc0] sm:$0xff] 0.0
          %552 = vst [vmem:[#allocation2 + $0xc8] sm:$0xff] 0.0
          %553 = vst [vmem:[#allocation2 + $0xd0] sm:$0x1] 0.0
        $region106: #{geo_simple_feature_net_forward.9} parent=97 // pred_fallthru
          _
        %v554 = vld [vmem:[%s451] sm:$0xff]
        %v555 = vld [vmem:[%s451 + $0x8] sm:$0xff]
        %v556 = vld [vmem:[%s451 + $0x10] sm:$0xff]
        %v557 = vld [vmem:[%s451 + $0x18] sm:$0xff]
        %v558 = vld [vmem:[%s3] sm:$0xff]
        %v559 = vld [vmem:[%s3 + $0x8] sm:$0xff]
        %v560 = vld [vmem:[%s3 + $0x10] sm:$0xff]
        %v561 = vld [vmem:[%s3 + $0x18] sm:$0xff]
        %v562 = vld [vmem:[%s3 + $0x20] sm:$0xff]
        %v563 = vld [vmem:[%s3 + $0x28] sm:$0xff]
        %v564 = vld [vmem:[%s3 + $0x30] sm:$0xff]
        %v565 = vld [vmem:[%s3 + $0x38] sm:$0xff]
        %v566 = vld [vmem:[%s4] sm:$0xff]
        %v567 = vld [vmem:[%s4 + $0x8] sm:$0xff]
        %v568 = vld [vmem:[%s4 + $0x10] sm:$0xff]
        %v569 = vld [vmem:[%s4 + $0x18] sm:$0xff]
        %v570 = vld [vmem:[%s4 + $0x20] sm:$0xff]
        %v571 = vld [vmem:[%s4 + $0x28] sm:$0xff]
        %v572 = vld [vmem:[%s4 + $0x30] sm:$0xff]
        %v573 = vld [vmem:[%s4 + $0x38] sm:$0xff]
        %575 = vset.pattern.permute.xlu0 0
        %576 = vperm.xlu0 %575, %v566
        %v577 = vpop.permute.xlu0 %576
        %580 = vset.pattern.permute.xlu0 0
        %581 = vperm.xlu0 %580, %v567
        %v582 = vpop.permute.xlu0 %581
        %585 = vset.pattern.permute.xlu0 0
        %586 = vperm.xlu0 %585, %v568
        %v587 = vpop.permute.xlu0 %586
        %590 = vset.pattern.permute.xlu0 0
        %591 = vperm.xlu0 %590, %v569
        %v592 = vpop.permute.xlu0 %591
        %595 = vset.pattern.permute.xlu0 0
        %596 = vperm.xlu0 %595, %v570
        %v597 = vpop.permute.xlu0 %596
        %600 = vset.pattern.permute.xlu0 0
        %601 = vperm.xlu0 %600, %v571
        %v602 = vpop.permute.xlu0 %601
        %605 = vset.pattern.permute.xlu0 0
        %606 = vperm.xlu0 %605, %v572
        %v607 = vpop.permute.xlu0 %606
        %610 = vset.pattern.permute.xlu0 0
        %611 = vperm.xlu0 %610, %v573
        %v612 = vpop.permute.xlu0 %611
        %vm614 = vcmask 261120
        %v616 = vsel %vm614, %v558, 0
        %v619 = vsel %vm614, %v559, 0
        %v622 = vsel %vm614, %v560, 0
        %v625 = vsel %vm614, %v561, 0
        %v628 = vsel %vm614, %v562, 0
        %v631 = vsel %vm614, %v563, 0
        %v634 = vsel %vm614, %v564, 0
        %v637 = vsel %vm614, %v565, 0
        %639 = vmatprep.subr.mxu0 0.0
        %640 = vmatpush1.msra.mxu0 %v554
        %641 = vmatprep.subr.mxu0 0.0
        %642 = vmatpush1.msra.mxu0 %v555
        %643 = vmatprep.subr.mxu0 0.0
        %644 = vmatpush1.msra.mxu0 %v556
        %645 = vmatprep.subr.mxu0 0.0
        %646 = vmatpush1.msra.mxu0 %v557
        %647 = vmatprep.subr.mxu0 0.0
        %648 = vmatpush1.msra.mxu0 0.0
        %649 = vmatprep.subr.mxu0 0.0
        %650 = vmatpush1.msra.mxu0 0.0
        %651 = vmatprep.subr.mxu0 0.0
        %652 = vmatpush1.msra.mxu0 0.0
        %653 = vmatprep.subr.mxu0 0.0
        %654 = vmatpush1.msra.mxu0 0.0
        %655 = vmatprep.subr.mxu0 0.0
        %656 = vmatpush1.msra.mxu0 0.0
        %657 = vmatprep.subr.mxu0 0.0
        %658 = vmatpush1.msra.mxu0 0.0
        %659 = vmatprep.subr.mxu0 0.0
        %660 = vmatpush1.msra.mxu0 0.0
        %661 = vmatprep.subr.mxu0 0.0
        %662 = vmatpush1.msra.mxu0 0.0
        %663 = vmatprep.subr.mxu0 0.0
        %664 = vmatpush1.msra.mxu0 0.0
        %665 = vmatprep.subr.mxu0 0.0
        %666 = vmatpush1.msra.mxu0 0.0
        %667 = vmatprep.subr.mxu0 0.0
        %668 = vmatpush1.msra.mxu0 0.0
        %669 = vmatprep.subr.mxu0 0.0
        %670 = vmatpush1.msra.mxu0 0.0
        %671 = vmatprep.subr.mxu0 0.0
        %672 = vmatpush1.msra.mxu0 0.0
        %673 = vmatprep.subr.mxu0 0.0
        %674 = vmatpush1.msra.mxu0 0.0
        %675 = vmatprep.subr.mxu0 0.0
        %676 = vmatpush1.msra.mxu0 0.0
        %677 = vmatprep.subr.mxu0 0.0
        %678 = vmatpush1.msra.mxu0 0.0
        %679 = vmatprep.subr.mxu0 0.0
        %680 = vmatpush1.msra.mxu0 0.0
        %681 = vmatprep.subr.mxu0 0.0
        %682 = vmatpush1.msra.mxu0 0.0
        %683 = vmatprep.subr.mxu0 0.0
        %684 = vmatpush1.msra.mxu0 0.0
        %685 = vmatprep.subr.mxu0 0.0
        %686 = vmatpush1.msra.mxu0 0.0
        %687 = vmatprep.subr.mxu0 0.0
        %688 = vmatpush1.msra.mxu0 0.0
        %689 = vmatprep.subr.mxu0 0.0
        %690 = vmatpush1.msra.mxu0 0.0
        %691 = vmatprep.subr.mxu0 0.0
        %692 = vmatpush1.msra.mxu0 0.0
        %693 = vmatprep.subr.mxu0 0.0
        %694 = vmatpush1.msra.mxu0 0.0
        %695 = vmatprep.subr.mxu0 0.0
        %696 = vmatpush1.msra.mxu0 0.0
        %697 = vmatprep.subr.mxu0 0.0
        %698 = vmatpush1.msra.mxu0 0.0
        %699 = vmatprep.subr.mxu0 0.0
        %700 = vmatpush1.msra.mxu0 0.0
        %701 = vmatprep.subr.mxu0 0.0
        %702 = vmatpush1.msra.mxu0 0.0
        %703 = vmatprep.mubr.f32.mxu0 0.0
        %704 = vmatmul.mubr.f32.gmra.mrb[0].mxu0 %v616
        %v705 = vpop.f32.mrb[0].mxu0
        %v706 = vadd.f32 %v577, %v705
        %v707 = vpop.f32.mrb[0].mxu0
        %708 = vmatprep.mubr.f32.mxu0 0.0
        %709 = vmatmul.mubr.f32.gmra.mrb[0].mxu0 %v619
        %v710 = vpop.f32.mrb[0].mxu0
        %v711 = vadd.f32 %v582, %v710
        %v712 = vpop.f32.mrb[0].mxu0
        %713 = vmatprep.mubr.f32.mxu0 0.0
        %714 = vmatmul.mubr.f32.gmra.mrb[0].mxu0 %v622
        %v715 = vpop.f32.mrb[0].mxu0
        %v716 = vadd.f32 %v587, %v715
        %v717 = vpop.f32.mrb[0].mxu0
        %718 = vmatprep.mubr.f32.mxu0 0.0
        %719 = vmatmul.mubr.f32.gmra.mrb[0].mxu0 %v625
        %v720 = vpop.f32.mrb[0].mxu0
        %v721 = vadd.f32 %v592, %v720
        %v722 = vpop.f32.mrb[0].mxu0
        %723 = vmatprep.mubr.f32.mxu0 0.0
        %724 = vmatmul.mubr.f32.gmra.mrb[0].mxu0 %v628
        %v725 = vpop.f32.mrb[0].mxu0
        %v726 = vadd.f32 %v597, %v725
        %v727 = vpop.f32.mrb[0].mxu0
        %728 = vmatprep.mubr.f32.mxu0 0.0
        %729 = vmatmul.mubr.f32.gmra.mrb[0].mxu0 %v631
        %v730 = vpop.f32.mrb[0].mxu0
        %v731 = vadd.f32 %v602, %v730
        %v732 = vpop.f32.mrb[0].mxu0
        %733 = vmatprep.mubr.f32.mxu0 0.0
        %734 = vmatmul.mubr.f32.gmra.mrb[0].mxu0 %v634
        %v735 = vpop.f32.mrb[0].mxu0
        %v736 = vadd.f32 %v607, %v735
        %v737 = vpop.f32.mrb[0].mxu0
        %738 = vmatprep.mubr.f32.mxu0 0.0
        %739 = vmatmul.mubr.f32.gmra.mrb[0].mxu0 %v637
        %v740 = vpop.f32.mrb[0].mxu0
        %v741 = vadd.f32 %v612, %v740
        %v742 = vpop.f32.mrb[0].mxu0
        %743 = vdwg.mxu0
        %vm744 = vcmp.gt.f32.partialorder %v706, 0.0
        %vm745 = vcmp.gt.f32.partialorder %v711, 0.0
        %vm746 = vcmp.gt.f32.partialorder %v716, 0.0
        %vm747 = vcmp.gt.f32.partialorder %v721, 0.0
        %vm748 = vcmp.gt.f32.partialorder %v726, 0.0
        %vm749 = vcmp.gt.f32.partialorder %v731, 0.0
        %vm750 = vcmp.gt.f32.partialorder %v736, 0.0
        %vm751 = vcmp.gt.f32.partialorder %v741, 0.0
        %v752 = vmul.f32 %v706, 0.1
        %v753 = vmul.f32 %v711, 0.1
        %v754 = vmul.f32 %v716, 0.1
        %v755 = vmul.f32 %v721, 0.1
        %v756 = vmul.f32 %v726, 0.1
        %v757 = vmul.f32 %v731, 0.1
        %v758 = vmul.f32 %v736, 0.1
        %v759 = vmul.f32 %v741, 0.1
        %v760 = vsel %vm744, %v706, %v752
        %v761 = vsel %vm745, %v711, %v753
        %v762 = vsel %vm746, %v716, %v754
        %v763 = vsel %vm747, %v721, %v755
        %v764 = vsel %vm748, %v726, %v756
        %v765 = vsel %vm749, %v731, %v757
        %v766 = vsel %vm750, %v736, %v758
        %v767 = vsel %vm751, %v741, %v759
        %v768 = vld [vmem:[%s5] sm:$0xff]
        %v769 = vld [vmem:[%s5 + $0x8] sm:$0xff]
        %v770 = vld [vmem:[%s5 + $0x10] sm:$0xff]
        %v771 = vld [vmem:[%s5 + $0x18] sm:$0xff]
        %v772 = vld [vmem:[%s5 + $0x20] sm:$0xff]
        %v773 = vld [vmem:[%s5 + $0x28] sm:$0xff]
        %v774 = vld [vmem:[%s5 + $0x30] sm:$0xff]
        %v775 = vld [vmem:[%s5 + $0x38] sm:$0xff]
        %v776 = vld [vmem:[%s6] sm:$0xff]
        %v777 = vld [vmem:[%s6 + $0x8] sm:$0xff]
        %v778 = vld [vmem:[%s6 + $0x10] sm:$0xff]
        %v779 = vld [vmem:[%s6 + $0x18] sm:$0xff]
        %v780 = vld [vmem:[%s6 + $0x20] sm:$0xff]
        %v781 = vld [vmem:[%s6 + $0x28] sm:$0xff]
        %v782 = vld [vmem:[%s6 + $0x30] sm:$0xff]
        %v783 = vld [vmem:[%s6 + $0x38] sm:$0xff]
        %785 = vset.pattern.permute.xlu0 0
        %786 = vperm.xlu0 %785, %v776
        %v787 = vpop.permute.xlu0 %786
        %790 = vset.pattern.permute.xlu0 0
        %791 = vperm.xlu0 %790, %v777
        %v792 = vpop.permute.xlu0 %791
        %795 = vset.pattern.permute.xlu0 0
        %796 = vperm.xlu0 %795, %v778
        %v797 = vpop.permute.xlu0 %796
        %800 = vset.pattern.permute.xlu0 0
        %801 = vperm.xlu0 %800, %v779
        %v802 = vpop.permute.xlu0 %801
        %805 = vset.pattern.permute.xlu0 0
        %806 = vperm.xlu0 %805, %v780
        %v807 = vpop.permute.xlu0 %806
        %810 = vset.pattern.permute.xlu0 0
        %811 = vperm.xlu0 %810, %v781
        %v812 = vpop.permute.xlu0 %811
        %815 = vset.pattern.permute.xlu0 0
        %816 = vperm.xlu0 %815, %v782
        %v817 = vpop.permute.xlu0 %816
        %820 = vset.pattern.permute.xlu0 0
        %821 = vperm.xlu0 %820, %v783
        %v822 = vpop.permute.xlu0 %821
        %vm824 = vcmask 523264
        %v826 = vsel %vm824, %v768, 0
        %v829 = vsel %vm824, %v769, 0
        %v832 = vsel %vm824, %v770, 0
        %v835 = vsel %vm824, %v771, 0
        %v838 = vsel %vm824, %v772, 0
        %v841 = vsel %vm824, %v773, 0
        %v844 = vsel %vm824, %v774, 0
        %v847 = vsel %vm824, %v775, 0
        %849 = vmatprep.subr.mxu0 0.0
        %850 = vmatpush1.msra.mxu0 %v760
        %851 = vmatprep.subr.mxu0 0.0
        %852 = vmatpush1.msra.mxu0 %v761
        %853 = vmatprep.subr.mxu0 0.0
        %854 = vmatpush1.msra.mxu0 %v762
        %855 = vmatprep.subr.mxu0 0.0
        %856 = vmatpush1.msra.mxu0 %v763
        %857 = vmatprep.subr.mxu0 0.0
        %858 = vmatpush1.msra.mxu0 %v764
        %859 = vmatprep.subr.mxu0 0.0
        %860 = vmatpush1.msra.mxu0 %v765
        %861 = vmatprep.subr.mxu0 0.0
        %862 = vmatpush1.msra.mxu0 %v766
        %863 = vmatprep.subr.mxu0 0.0
        %864 = vmatpush1.msra.mxu0 %v767
        %865 = vmatprep.subr.mxu0 0.0
        %866 = vmatpush1.msra.mxu0 0.0
        %867 = vmatprep.subr.mxu0 0.0
        %868 = vmatpush1.msra.mxu0 0.0
        %869 = vmatprep.subr.mxu0 0.0
        %870 = vmatpush1.msra.mxu0 0.0
        %871 = vmatprep.subr.mxu0 0.0
        %872 = vmatpush1.msra.mxu0 0.0
        %873 = vmatprep.subr.mxu0 0.0
        %874 = vmatpush1.msra.mxu0 0.0
        %875 = vmatprep.subr.mxu0 0.0
        %876 = vmatpush1.msra.mxu0 0.0
        %877 = vmatprep.subr.mxu0 0.0
        %878 = vmatpush1.msra.mxu0 0.0
        %879 = vmatprep.subr.mxu0 0.0
        %880 = vmatpush1.msra.mxu0 0.0
        %881 = vmatprep.subr.mxu0 0.0
        %882 = vmatpush1.msra.mxu0 0.0
        %883 = vmatprep.subr.mxu0 0.0
        %884 = vmatpush1.msra.mxu0 0.0
        %885 = vmatprep.subr.mxu0 0.0
        %886 = vmatpush1.msra.mxu0 0.0
        %887 = vmatprep.subr.mxu0 0.0
        %888 = vmatpush1.msra.mxu0 0.0
        %889 = vmatprep.subr.mxu0 0.0
        %890 = vmatpush1.msra.mxu0 0.0
        %891 = vmatprep.subr.mxu0 0.0
        %892 = vmatpush1.msra.mxu0 0.0
        %893 = vmatprep.subr.mxu0 0.0
        %894 = vmatpush1.msra.mxu0 0.0
        %895 = vmatprep.subr.mxu0 0.0
        %896 = vmatpush1.msra.mxu0 0.0
        %897 = vmatprep.subr.mxu0 0.0
        %898 = vmatpush1.msra.mxu0 0.0
        %899 = vmatprep.subr.mxu0 0.0
        %900 = vmatpush1.msra.mxu0 0.0
        %901 = vmatprep.subr.mxu0 0.0
        %902 = vmatpush1.msra.mxu0 0.0
        %903 = vmatprep.subr.mxu0 0.0
        %904 = vmatpush1.msra.mxu0 0.0
        %905 = vmatprep.subr.mxu0 0.0
        %906 = vmatpush1.msra.mxu0 0.0
        %907 = vmatprep.subr.mxu0 0.0
        %908 = vmatpush1.msra.mxu0 0.0
        %909 = vmatprep.subr.mxu0 0.0
        %910 = vmatpush1.msra.mxu0 0.0
        %911 = vmatprep.subr.mxu0 0.0
        %912 = vmatpush1.msra.mxu0 0.0
        %913 = vmatprep.mubr.f32.mxu0 0.0
        %914 = vmatmul.mubr.f32.gmra.mrb[0].mxu0 %v826
        %v915 = vpop.f32.mrb[0].mxu0
        %v916 = vadd.f32 %v787, %v915
        %v917 = vpop.f32.mrb[0].mxu0
        %918 = vmatprep.mubr.f32.mxu0 0.0
        %919 = vmatmul.mubr.f32.gmra.mrb[0].mxu0 %v829
        %v920 = vpop.f32.mrb[0].mxu0
        %v921 = vadd.f32 %v792, %v920
        %v922 = vpop.f32.mrb[0].mxu0
        %923 = vmatprep.mubr.f32.mxu0 0.0
        %924 = vmatmul.mubr.f32.gmra.mrb[0].mxu0 %v832
        %v925 = vpop.f32.mrb[0].mxu0
        %v926 = vadd.f32 %v797, %v925
        %v927 = vpop.f32.mrb[0].mxu0
        %928 = vmatprep.mubr.f32.mxu0 0.0
        %929 = vmatmul.mubr.f32.gmra.mrb[0].mxu0 %v835
        %v930 = vpop.f32.mrb[0].mxu0
        %v931 = vadd.f32 %v802, %v930
        %v932 = vpop.f32.mrb[0].mxu0
        %933 = vmatprep.mubr.f32.mxu0 0.0
        %934 = vmatmul.mubr.f32.gmra.mrb[0].mxu0 %v838
        %v935 = vpop.f32.mrb[0].mxu0
        %v936 = vadd.f32 %v807, %v935
        %v937 = vpop.f32.mrb[0].mxu0
        %938 = vmatprep.mubr.f32.mxu0 0.0
        %939 = vmatmul.mubr.f32.gmra.mrb[0].mxu0 %v841
        %v940 = vpop.f32.mrb[0].mxu0
        %v941 = vadd.f32 %v812, %v940
        %v942 = vpop.f32.mrb[0].mxu0
        %943 = vmatprep.mubr.f32.mxu0 0.0
        %944 = vmatmul.mubr.f32.gmra.mrb[0].mxu0 %v844
        %v945 = vpop.f32.mrb[0].mxu0
        %v946 = vadd.f32 %v817, %v945
        %v947 = vpop.f32.mrb[0].mxu0
        %948 = vmatprep.mubr.f32.mxu0 0.0
        %949 = vmatmul.mubr.f32.gmra.mrb[0].mxu0 %v847
        %v950 = vpop.f32.mrb[0].mxu0
        %v951 = vadd.f32 %v822, %v950
        %v952 = vpop.f32.mrb[0].mxu0
        %953 = vdwg.mxu0
        %vm954 = vcmp.gt.f32.partialorder %v916, 0.0
        %vm955 = vcmp.gt.f32.partialorder %v921, 0.0
        %vm956 = vcmp.gt.f32.partialorder %v926, 0.0
        %vm957 = vcmp.gt.f32.partialorder %v931, 0.0
        %vm958 = vcmp.gt.f32.partialorder %v936, 0.0
        %vm959 = vcmp.gt.f32.partialorder %v941, 0.0
        %vm960 = vcmp.gt.f32.partialorder %v946, 0.0
        %vm961 = vcmp.gt.f32.partialorder %v951, 0.0
        %v962 = vmul.f32 %v916, 0.1
        %v963 = vmul.f32 %v921, 0.1
        %v964 = vmul.f32 %v926, 0.1
        %v965 = vmul.f32 %v931, 0.1
        %v966 = vmul.f32 %v936, 0.1
        %v967 = vmul.f32 %v941, 0.1
        %v968 = vmul.f32 %v946, 0.1
        %v969 = vmul.f32 %v951, 0.1
        %v970 = vsel %vm954, %v916, %v962
        %v971 = vsel %vm955, %v921, %v963
        %v972 = vsel %vm956, %v926, %v964
        %v973 = vsel %vm957, %v931, %v965
        %v974 = vsel %vm958, %v936, %v966
        %v975 = vsel %vm959, %v941, %v967
        %v976 = vsel %vm960, %v946, %v968
        %v977 = vsel %vm961, %v951, %v969
        %v978 = vld [vmem:[%s512] sm:$0x7]
        %v979 = vmul.f32 %v978, 0.110485435
        %v980 = vld [vmem:[%s521] sm:$0xff]
        %v981 = vld [vmem:[%s521 + $0x8] sm:$0xff]
        %v982 = vld [vmem:[%s521 + $0x10] sm:$0xff]
        %v983 = vld [vmem:[%s521 + $0x18] sm:$0xff]
        %v984 = vld [vmem:[%s521 + $0x20] sm:$0xff]
        %v985 = vld [vmem:[%s521 + $0x28] sm:$0xff]
        %v986 = vld [vmem:[%s521 + $0x30] sm:$0xff]
        %v987 = vld [vmem:[%s521 + $0x38] sm:$0xff]
        %v988 = vld [vmem:[%s521 + $0x40] sm:$0xff]
        %v989 = vld [vmem:[%s521 + $0x48] sm:$0xff]
        %v990 = vld [vmem:[%s521 + $0x50] sm:$0xff]
        %v991 = vld [vmem:[%s521 + $0x58] sm:$0xff]
        %v992 = vld [vmem:[%s521 + $0x60] sm:$0xff]
        %v993 = vld [vmem:[%s521 + $0x68] sm:$0xff]
        %v994 = vld [vmem:[%s521 + $0x70] sm:$0xff]
        %v995 = vld [vmem:[%s521 + $0x78] sm:$0xff]
        %v996 = vmul.f32 %v980, 0.110485435
        %v997 = vmul.f32 %v981, 0.110485435
        %v998 = vmul.f32 %v982, 0.110485435
        %v999 = vmul.f32 %v983, 0.110485435
        %v1000 = vmul.f32 %v984, 0.110485435
        %v1001 = vmul.f32 %v985, 0.110485435
        %v1002 = vmul.f32 %v986, 0.110485435
        %v1003 = vmul.f32 %v987, 0.110485435
        %v1004 = vmul.f32 %v988, 0.110485435
        %v1005 = vmul.f32 %v989, 0.110485435
        %v1006 = vmul.f32 %v990, 0.110485435
        %v1007 = vmul.f32 %v991, 0.110485435
        %v1008 = vmul.f32 %v992, 0.110485435
        %v1009 = vmul.f32 %v993, 0.110485435
        %v1010 = vmul.f32 %v994, 0.110485435
        %v1011 = vmul.f32 %v995, 0.110485435
        %1013 = vset.pattern.permute.xlu0 0
        %1014 = vperm.xlu0 %1013, %v996
        %v1015 = vpop.permute.xlu0 %1014
        %1018 = vset.pattern.permute.xlu0 0
        %1019 = vperm.xlu0 %1018, %v997
        %v1020 = vpop.permute.xlu0 %1019
        %1023 = vset.pattern.permute.xlu0 0
        %1024 = vperm.xlu0 %1023, %v998
        %v1025 = vpop.permute.xlu0 %1024
        %1028 = vset.pattern.permute.xlu0 0
        %1029 = vperm.xlu0 %1028, %v999
        %v1030 = vpop.permute.xlu0 %1029
        %1033 = vset.pattern.permute.xlu0 0
        %1034 = vperm.xlu0 %1033, %v1000
        %v1035 = vpop.permute.xlu0 %1034
        %1038 = vset.pattern.permute.xlu0 0
        %1039 = vperm.xlu0 %1038, %v1001
        %v1040 = vpop.permute.xlu0 %1039
        %1043 = vset.pattern.permute.xlu0 0
        %1044 = vperm.xlu0 %1043, %v1002
        %v1045 = vpop.permute.xlu0 %1044
        %1048 = vset.pattern.permute.xlu0 0
        %1049 = vperm.xlu0 %1048, %v1003
        %v1050 = vpop.permute.xlu0 %1049
        %1053 = vset.pattern.permute.xlu0 0
        %1054 = vperm.xlu0 %1053, %v1004
        %v1055 = vpop.permute.xlu0 %1054
        %1058 = vset.pattern.permute.xlu0 0
        %1059 = vperm.xlu0 %1058, %v1005
        %v1060 = vpop.permute.xlu0 %1059
        %1063 = vset.pattern.permute.xlu0 0
        %1064 = vperm.xlu0 %1063, %v1006
        %v1065 = vpop.permute.xlu0 %1064
        %1068 = vset.pattern.permute.xlu0 0
        %1069 = vperm.xlu0 %1068, %v1007
        %v1070 = vpop.permute.xlu0 %1069
        %1073 = vset.pattern.permute.xlu0 0
        %1074 = vperm.xlu0 %1073, %v1008
        %v1075 = vpop.permute.xlu0 %1074
        %1078 = vset.pattern.permute.xlu0 0
        %1079 = vperm.xlu0 %1078, %v1009
        %v1080 = vpop.permute.xlu0 %1079
        %1083 = vset.pattern.permute.xlu0 0
        %1084 = vperm.xlu0 %1083, %v1010
        %v1085 = vpop.permute.xlu0 %1084
        %1088 = vset.pattern.permute.xlu0 0
        %1089 = vperm.xlu0 %1088, %v1011
        %v1090 = vpop.permute.xlu0 %1089
        %v1092 = vlaneseq
        %v1093 = vshrl.u32 %v1092, 7
        %v1094 = vsub.s32 0, %v1093
        %v1095 = vrot.slane %v979, %v1094
        %v1096 = vsub.f32 %v1015, %v1095
        %v1097 = vsub.f32 %v1020, %v1095
        %v1098 = vsub.f32 %v1025, %v1095
        %v1099 = vsub.f32 %v1030, %v1095
        %v1100 = vsub.f32 %v1035, %v1095
        %v1101 = vsub.f32 %v1040, %v1095
        %v1102 = vsub.f32 %v1045, %v1095
        %v1103 = vsub.f32 %v1050, %v1095
        %v1104 = vsub.f32 %v1055, %v1095
        %v1105 = vsub.f32 %v1060, %v1095
        %v1106 = vsub.f32 %v1065, %v1095
        %v1107 = vsub.f32 %v1070, %v1095
        %v1108 = vsub.f32 %v1075, %v1095
        %v1109 = vsub.f32 %v1080, %v1095
        %v1110 = vsub.f32 %v1085, %v1095
        %v1111 = vsub.f32 %v1090, %v1095
        %v1112 = vmul.f32 %v1096, %v1096
        %v1113 = vmul.f32 %v1097, %v1097
        %v1114 = vmul.f32 %v1098, %v1098
        %v1115 = vmul.f32 %v1099, %v1099
        %v1116 = vmul.f32 %v1100, %v1100
        %v1117 = vmul.f32 %v1101, %v1101
        %v1118 = vmul.f32 %v1102, %v1102
        %v1119 = vmul.f32 %v1103, %v1103
        %v1120 = vmul.f32 %v1104, %v1104
        %v1121 = vmul.f32 %v1105, %v1105
        %v1122 = vmul.f32 %v1106, %v1106
        %v1123 = vmul.f32 %v1107, %v1107
        %v1124 = vmul.f32 %v1108, %v1108
        %v1125 = vmul.f32 %v1109, %v1109
        %v1126 = vmul.f32 %v1110, %v1110
        %v1127 = vmul.f32 %v1111, %v1111
        %1128 = vset.pattern.permute.xlu0 1
        %1129 = vperm.xlu0 %1128, %v996
        %v1130 = vpop.permute.xlu0 %1129
        %1132 = vset.pattern.permute.xlu0 1
        %1133 = vperm.xlu0 %1132, %v997
        %v1134 = vpop.permute.xlu0 %1133
        %1136 = vset.pattern.permute.xlu0 1
        %1137 = vperm.xlu0 %1136, %v998
        %v1138 = vpop.permute.xlu0 %1137
        %1140 = vset.pattern.permute.xlu0 1
        %1141 = vperm.xlu0 %1140, %v999
        %v1142 = vpop.permute.xlu0 %1141
        %1144 = vset.pattern.permute.xlu0 1
        %1145 = vperm.xlu0 %1144, %v1000
        %v1146 = vpop.permute.xlu0 %1145
        %1148 = vset.pattern.permute.xlu0 1
        %1149 = vperm.xlu0 %1148, %v1001
        %v1150 = vpop.permute.xlu0 %1149
        %1152 = vset.pattern.permute.xlu0 1
        %1153 = vperm.xlu0 %1152, %v1002
        %v1154 = vpop.permute.xlu0 %1153
        %1156 = vset.pattern.permute.xlu0 1
        %1157 = vperm.xlu0 %1156, %v1003
        %v1158 = vpop.permute.xlu0 %1157
        %1160 = vset.pattern.permute.xlu0 1
        %1161 = vperm.xlu0 %1160, %v1004
        %v1162 = vpop.permute.xlu0 %1161
        %1164 = vset.pattern.permute.xlu0 1
        %1165 = vperm.xlu0 %1164, %v1005
        %v1166 = vpop.permute.xlu0 %1165
        %1168 = vset.pattern.permute.xlu0 1
        %1169 = vperm.xlu0 %1168, %v1006
        %v1170 = vpop.permute.xlu0 %1169
        %1172 = vset.pattern.permute.xlu0 1
        %1173 = vperm.xlu0 %1172, %v1007
        %v1174 = vpop.permute.xlu0 %1173
        %1176 = vset.pattern.permute.xlu0 1
        %1177 = vperm.xlu0 %1176, %v1008
        %v1178 = vpop.permute.xlu0 %1177
        %1180 = vset.pattern.permute.xlu0 1
        %1181 = vperm.xlu0 %1180, %v1009
        %v1182 = vpop.permute.xlu0 %1181
        %1184 = vset.pattern.permute.xlu0 1
        %1185 = vperm.xlu0 %1184, %v1010
        %v1186 = vpop.permute.xlu0 %1185
        %1188 = vset.pattern.permute.xlu0 1
        %1189 = vperm.xlu0 %1188, %v1011
        %v1190 = vpop.permute.xlu0 %1189
        %v1192 = vlaneseq
        %v1193 = vshrl.u32 %v1192, 7
        %v1194 = vsub.s32 1, %v1193
        %v1195 = vrot.slane %v979, %v1194
        %v1196 = vsub.f32 %v1130, %v1195
        %v1197 = vsub.f32 %v1134, %v1195
        %v1198 = vsub.f32 %v1138, %v1195
        %v1199 = vsub.f32 %v1142, %v1195
        %v1200 = vsub.f32 %v1146, %v1195
        %v1201 = vsub.f32 %v1150, %v1195
        %v1202 = vsub.f32 %v1154, %v1195
        %v1203 = vsub.f32 %v1158, %v1195
        %v1204 = vsub.f32 %v1162, %v1195
        %v1205 = vsub.f32 %v1166, %v1195
        %v1206 = vsub.f32 %v1170, %v1195
        %v1207 = vsub.f32 %v1174, %v1195
        %v1208 = vsub.f32 %v1178, %v1195
        %v1209 = vsub.f32 %v1182, %v1195
        %v1210 = vsub.f32 %v1186, %v1195
        %v1211 = vsub.f32 %v1190, %v1195
        %v1212 = vmul.f32 %v1196, %v1196
        %v1213 = vmul.f32 %v1197, %v1197
        %v1214 = vmul.f32 %v1198, %v1198
        %v1215 = vmul.f32 %v1199, %v1199
        %v1216 = vmul.f32 %v1200, %v1200
        %v1217 = vmul.f32 %v1201, %v1201
        %v1218 = vmul.f32 %v1202, %v1202
        %v1219 = vmul.f32 %v1203, %v1203
        %v1220 = vmul.f32 %v1204, %v1204
        %v1221 = vmul.f32 %v1205, %v1205
        %v1222 = vmul.f32 %v1206, %v1206
        %v1223 = vmul.f32 %v1207, %v1207
        %v1224 = vmul.f32 %v1208, %v1208
        %v1225 = vmul.f32 %v1209, %v1209
        %v1226 = vmul.f32 %v1210, %v1210
        %v1227 = vmul.f32 %v1211, %v1211
        %v1228 = vadd.f32 %v1112, %v1212
        %v1229 = vadd.f32 %v1113, %v1213
        %v1230 = vadd.f32 %v1114, %v1214
        %v1231 = vadd.f32 %v1115, %v1215
        %v1232 = vadd.f32 %v1116, %v1216
        %v1233 = vadd.f32 %v1117, %v1217
        %v1234 = vadd.f32 %v1118, %v1218
        %v1235 = vadd.f32 %v1119, %v1219
        %v1236 = vadd.f32 %v1120, %v1220
        %v1237 = vadd.f32 %v1121, %v1221
        %v1238 = vadd.f32 %v1122, %v1222
        %v1239 = vadd.f32 %v1123, %v1223
        %v1240 = vadd.f32 %v1124, %v1224
        %v1241 = vadd.f32 %v1125, %v1225
        %v1242 = vadd.f32 %v1126, %v1226
        %v1243 = vadd.f32 %v1127, %v1227
        %1244 = vset.pattern.permute.xlu0 2
        %1245 = vperm.xlu0 %1244, %v996
        %v1246 = vpop.permute.xlu0 %1245
        %1248 = vset.pattern.permute.xlu0 2
        %1249 = vperm.xlu0 %1248, %v997
        %v1250 = vpop.permute.xlu0 %1249
        %1252 = vset.pattern.permute.xlu0 2
        %1253 = vperm.xlu0 %1252, %v998
        %v1254 = vpop.permute.xlu0 %1253
        %1256 = vset.pattern.permute.xlu0 2
        %1257 = vperm.xlu0 %1256, %v999
        %v1258 = vpop.permute.xlu0 %1257
        %1260 = vset.pattern.permute.xlu0 2
        %1261 = vperm.xlu0 %1260, %v1000
        %v1262 = vpop.permute.xlu0 %1261
        %1264 = vset.pattern.permute.xlu0 2
        %1265 = vperm.xlu0 %1264, %v1001
        %v1266 = vpop.permute.xlu0 %1265
        %1268 = vset.pattern.permute.xlu0 2
        %1269 = vperm.xlu0 %1268, %v1002
        %v1270 = vpop.permute.xlu0 %1269
        %1272 = vset.pattern.permute.xlu0 2
        %1273 = vperm.xlu0 %1272, %v1003
        %v1274 = vpop.permute.xlu0 %1273
        %1276 = vset.pattern.permute.xlu0 2
        %1277 = vperm.xlu0 %1276, %v1004
        %v1278 = vpop.permute.xlu0 %1277
        %1280 = vset.pattern.permute.xlu0 2
        %1281 = vperm.xlu0 %1280, %v1005
        %v1282 = vpop.permute.xlu0 %1281
        %1284 = vset.pattern.permute.xlu0 2
        %1285 = vperm.xlu0 %1284, %v1006
        %v1286 = vpop.permute.xlu0 %1285
        %1288 = vset.pattern.permute.xlu0 2
        %1289 = vperm.xlu0 %1288, %v1007
        %v1290 = vpop.permute.xlu0 %1289
        %1292 = vset.pattern.permute.xlu0 2
        %1293 = vperm.xlu0 %1292, %v1008
        %v1294 = vpop.permute.xlu0 %1293
        %1296 = vset.pattern.permute.xlu0 2
        %1297 = vperm.xlu0 %1296, %v1009
        %v1298 = vpop.permute.xlu0 %1297
        %1300 = vset.pattern.permute.xlu0 2
        %1301 = vperm.xlu0 %1300, %v1010
        %v1302 = vpop.permute.xlu0 %1301
        %1304 = vset.pattern.permute.xlu0 2
        %1305 = vperm.xlu0 %1304, %v1011
        %v1306 = vpop.permute.xlu0 %1305
        %v1308 = vlaneseq
        %v1309 = vshrl.u32 %v1308, 7
        %v1310 = vsub.s32 2, %v1309
        %v1311 = vrot.slane %v979, %v1310
        %v1312 = vsub.f32 %v1246, %v1311
        %v1313 = vsub.f32 %v1250, %v1311
        %v1314 = vsub.f32 %v1254, %v1311
        %v1315 = vsub.f32 %v1258, %v1311
        %v1316 = vsub.f32 %v1262, %v1311
        %v1317 = vsub.f32 %v1266, %v1311
        %v1318 = vsub.f32 %v1270, %v1311
        %v1319 = vsub.f32 %v1274, %v1311
        %v1320 = vsub.f32 %v1278, %v1311
        %v1321 = vsub.f32 %v1282, %v1311
        %v1322 = vsub.f32 %v1286, %v1311
        %v1323 = vsub.f32 %v1290, %v1311
        %v1324 = vsub.f32 %v1294, %v1311
        %v1325 = vsub.f32 %v1298, %v1311
        %v1326 = vsub.f32 %v1302, %v1311
        %v1327 = vsub.f32 %v1306, %v1311
        %v1328 = vmul.f32 %v1312, %v1312
        %v1329 = vmul.f32 %v1313, %v1313
        %v1330 = vmul.f32 %v1314, %v1314
        %v1331 = vmul.f32 %v1315, %v1315
        %v1332 = vmul.f32 %v1316, %v1316
        %v1333 = vmul.f32 %v1317, %v1317
        %v1334 = vmul.f32 %v1318, %v1318
        %v1335 = vmul.f32 %v1319, %v1319
        %v1336 = vmul.f32 %v1320, %v1320
        %v1337 = vmul.f32 %v1321, %v1321
        %v1338 = vmul.f32 %v1322, %v1322
        %v1339 = vmul.f32 %v1323, %v1323
        %v1340 = vmul.f32 %v1324, %v1324
        %v1341 = vmul.f32 %v1325, %v1325
        %v1342 = vmul.f32 %v1326, %v1326
        %v1343 = vmul.f32 %v1327, %v1327
        %v1344 = vadd.f32 %v1228, %v1328
        %v1345 = vadd.f32 %v1229, %v1329
        %v1346 = vadd.f32 %v1230, %v1330
        %v1347 = vadd.f32 %v1231, %v1331
        %v1348 = vadd.f32 %v1232, %v1332
        %v1349 = vadd.f32 %v1233, %v1333
        %v1350 = vadd.f32 %v1234, %v1334
        %v1351 = vadd.f32 %v1235, %v1335
        %v1352 = vadd.f32 %v1236, %v1336
        %v1353 = vadd.f32 %v1237, %v1337
        %v1354 = vadd.f32 %v1238, %v1338
        %v1355 = vadd.f32 %v1239, %v1339
        %v1356 = vadd.f32 %v1240, %v1340
        %v1357 = vadd.f32 %v1241, %v1341
        %v1358 = vadd.f32 %v1242, %v1342
        %v1359 = vadd.f32 %v1243, %v1343
        %v1360 = vsub.f32 0.0, %v1344
        %v1361 = vsub.f32 0.0, %v1345
        %v1362 = vsub.f32 0.0, %v1346
        %v1363 = vsub.f32 0.0, %v1347
        %v1364 = vsub.f32 0.0, %v1348
        %v1365 = vsub.f32 0.0, %v1349
        %v1366 = vsub.f32 0.0, %v1350
        %v1367 = vsub.f32 0.0, %v1351
        %v1368 = vsub.f32 0.0, %v1352
        %v1369 = vsub.f32 0.0, %v1353
        %v1370 = vsub.f32 0.0, %v1354
        %v1371 = vsub.f32 0.0, %v1355
        %v1372 = vsub.f32 0.0, %v1356
        %v1373 = vsub.f32 0.0, %v1357
        %v1374 = vsub.f32 0.0, %v1358
        %v1375 = vsub.f32 0.0, %v1359
        %v1376 = vmul.f32 %v1360, 1.442695
        %v1377 = vpow.pop %v1376
        %v1378 = vmul.f32 %v1361, 1.442695
        %v1379 = vpow.pop %v1378
        %v1380 = vmul.f32 %v1362, 1.442695
        %v1381 = vpow.pop %v1380
        %v1382 = vmul.f32 %v1363, 1.442695
        %v1383 = vpow.pop %v1382
        %v1384 = vmul.f32 %v1364, 1.442695
        %v1385 = vpow.pop %v1384
        %v1386 = vmul.f32 %v1365, 1.442695
        %v1387 = vpow.pop %v1386
        %v1388 = vmul.f32 %v1366, 1.442695
        %v1389 = vpow.pop %v1388
        %v1390 = vmul.f32 %v1367, 1.442695
        %v1391 = vpow.pop %v1390
        %v1392 = vmul.f32 %v1368, 1.442695
        %v1393 = vpow.pop %v1392
        %v1394 = vmul.f32 %v1369, 1.442695
        %v1395 = vpow.pop %v1394
        %v1396 = vmul.f32 %v1370, 1.442695
        %v1397 = vpow.pop %v1396
        %v1398 = vmul.f32 %v1371, 1.442695
        %v1399 = vpow.pop %v1398
        %v1400 = vmul.f32 %v1372, 1.442695
        %v1401 = vpow.pop %v1400
        %v1402 = vmul.f32 %v1373, 1.442695
        %v1403 = vpow.pop %v1402
        %v1404 = vmul.f32 %v1374, 1.442695
        %v1405 = vpow.pop %v1404
        %v1406 = vmul.f32 %v1375, 1.442695
        %v1407 = vpow.pop %v1406
        %s1408 = scalar_lea.vmem [#allocation2], 144
        %v1409 = vld [vmem:[%s1408] sm:$0xff]
        %v1410 = vld [vmem:[%s1408 + $0x8] sm:$0xff]
        %v1411 = vld [vmem:[%s1408 + $0x10] sm:$0xff]
        %v1412 = vld [vmem:[%s1408 + $0x18] sm:$0xff]
        %v1413 = vld [vmem:[%s1408 + $0x20] sm:$0xff]
        %v1414 = vld [vmem:[%s1408 + $0x28] sm:$0xff]
        %v1415 = vld [vmem:[%s1408 + $0x30] sm:$0xff]
        %v1416 = vld [vmem:[%s1408 + $0x38] sm:$0xff]
        %v1417 = vld [vmem:[%s1408 + $0x40] sm:$0x1]
        %1418 = vmatprep.subr.mxu0 0.0
        %1419 = vmatpush1.msra.mxu0 %v1377
        %1420 = vmatprep.subr.mxu0 0.0
        %1421 = vmatpush1.msra.mxu0 %v1379
        %1422 = vmatprep.subr.mxu0 0.0
        %1423 = vmatpush1.msra.mxu0 %v1381
        %1424 = vmatprep.subr.mxu0 0.0
        %1425 = vmatpush1.msra.mxu0 %v1383
        %1426 = vmatprep.subr.mxu0 0.0
        %1427 = vmatpush1.msra.mxu0 %v1385
        %1428 = vmatprep.subr.mxu0 0.0
        %1429 = vmatpush1.msra.mxu0 %v1387
        %1430 = vmatprep.subr.mxu0 0.0
        %1431 = vmatpush1.msra.mxu0 %v1389
        %1432 = vmatprep.subr.mxu0 0.0
        %1433 = vmatpush1.msra.mxu0 %v1391
        %1434 = vmatprep.subr.mxu0 0.0
        %1435 = vmatpush1.msra.mxu0 %v1393
        %1436 = vmatprep.subr.mxu0 0.0
        %1437 = vmatpush1.msra.mxu0 %v1395
        %1438 = vmatprep.subr.mxu0 0.0
        %1439 = vmatpush1.msra.mxu0 %v1397
        %1440 = vmatprep.subr.mxu0 0.0
        %1441 = vmatpush1.msra.mxu0 %v1399
        %1442 = vmatprep.subr.mxu0 0.0
        %1443 = vmatpush1.msra.mxu0 %v1401
        %1444 = vmatprep.subr.mxu0 0.0
        %1445 = vmatpush1.msra.mxu0 %v1403
        %1446 = vmatprep.subr.mxu0 0.0
        %1447 = vmatpush1.msra.mxu0 %v1405
        %1448 = vmatprep.subr.mxu0 0.0
        %1449 = vmatpush1.msra.mxu0 %v1407
        %1450 = vmatprep.subr.mxu0 0.0
        %1451 = vmatpush1.msra.mxu0 0.0
        %1452 = vmatprep.subr.mxu0 0.0
        %1453 = vmatpush1.msra.mxu0 0.0
        %1454 = vmatprep.subr.mxu0 0.0
        %1455 = vmatpush1.msra.mxu0 0.0
        %1456 = vmatprep.subr.mxu0 0.0
        %1457 = vmatpush1.msra.mxu0 0.0
        %1458 = vmatprep.subr.mxu0 0.0
        %1459 = vmatpush1.msra.mxu0 0.0
        %1460 = vmatprep.subr.mxu0 0.0
        %1461 = vmatpush1.msra.mxu0 0.0
        %1462 = vmatprep.subr.mxu0 0.0
        %1463 = vmatpush1.msra.mxu0 0.0
        %1464 = vmatprep.subr.mxu0 0.0
        %1465 = vmatpush1.msra.mxu0 0.0
        %1466 = vmatprep.subr.mxu0 0.0
        %1467 = vmatpush1.msra.mxu0 0.0
        %1468 = vmatprep.subr.mxu0 0.0
        %1469 = vmatpush1.msra.mxu0 0.0
        %1470 = vmatprep.subr.mxu0 0.0
        %1471 = vmatpush1.msra.mxu0 0.0
        %1472 = vmatprep.subr.mxu0 0.0
        %1473 = vmatpush1.msra.mxu0 0.0
        %1474 = vmatprep.subr.mxu0 0.0
        %1475 = vmatpush1.msra.mxu0 0.0
        %1476 = vmatprep.subr.mxu0 0.0
        %1477 = vmatpush1.msra.mxu0 0.0
        %1478 = vmatprep.subr.mxu0 0.0
        %1479 = vmatpush1.msra.mxu0 0.0
        %1480 = vmatprep.subr.mxu0 0.0
        %1481 = vmatpush1.msra.mxu0 0.0
        %1482 = vmatprep.mubr.f32.mxu0 0.0
        %1483 = vmatmul.mubr.f32.gmra.mrb[0].mxu0 %v970
        %v1484 = vpop.f32.mrb[0].mxu0
        %v1485 = vadd.f32 0.0, %v1484
        %v1486 = vpop.f32.mrb[0].mxu0
        %1487 = vmatprep.mubr.f32.mxu0 0.0
        %1488 = vmatmul.mubr.f32.gmra.mrb[0].mxu0 %v971
        %v1489 = vpop.f32.mrb[0].mxu0
        %v1490 = vadd.f32 0.0, %v1489
        %v1491 = vpop.f32.mrb[0].mxu0
        %1492 = vmatprep.mubr.f32.mxu0 0.0
        %1493 = vmatmul.mubr.f32.gmra.mrb[0].mxu0 %v972
        %v1494 = vpop.f32.mrb[0].mxu0
        %v1495 = vadd.f32 0.0, %v1494
        %v1496 = vpop.f32.mrb[0].mxu0
        %1497 = vmatprep.mubr.f32.mxu0 0.0
        %1498 = vmatmul.mubr.f32.gmra.mrb[0].mxu0 %v973
        %v1499 = vpop.f32.mrb[0].mxu0
        %v1500 = vadd.f32 0.0, %v1499
        %v1501 = vpop.f32.mrb[0].mxu0
        %1502 = vmatprep.mubr.f32.mxu0 0.0
        %1503 = vmatmul.mubr.f32.gmra.mrb[0].mxu0 %v974
        %v1504 = vpop.f32.mrb[0].mxu0
        %v1505 = vadd.f32 0.0, %v1504
        %v1506 = vpop.f32.mrb[0].mxu0
        %1507 = vmatprep.mubr.f32.mxu0 0.0
        %1508 = vmatmul.mubr.f32.gmra.mrb[0].mxu0 %v975
        %v1509 = vpop.f32.mrb[0].mxu0
        %v1510 = vadd.f32 0.0, %v1509
        %v1511 = vpop.f32.mrb[0].mxu0
        %1512 = vmatprep.mubr.f32.mxu0 0.0
        %1513 = vmatmul.mubr.f32.gmra.mrb[0].mxu0 %v976
        %v1514 = vpop.f32.mrb[0].mxu0
        %v1515 = vadd.f32 0.0, %v1514
        %v1516 = vpop.f32.mrb[0].mxu0
        %1517 = vmatprep.mubr.f32.mxu0 0.0
        %1518 = vmatmul.mubr.f32.gmra.mrb[0].mxu0 %v977
        %v1519 = vpop.f32.mrb[0].mxu0
        %v1520 = vadd.f32 0.0, %v1519
        %v1521 = vpop.f32.mrb[0].mxu0
        %1522 = vmatprep.mubr.f32.mxu0 0.0
        %1523 = vmatmul.mubr.f32.gmra.mrb[0].mxu0 1.0
        %v1524 = vpop.f32.mrb[0].mxu0
        %v1525 = vadd.f32 0.0, %v1524
        %v1526 = vpop.f32.mrb[0].mxu0
        %1527 = vdwg.mxu0
        %v1528 = vadd.f32 %v1409, %v1485
        %v1529 = vadd.f32 %v1410, %v1490
        %v1530 = vadd.f32 %v1411, %v1495
        %v1531 = vadd.f32 %v1412, %v1500
        %v1532 = vadd.f32 %v1413, %v1505
        %v1533 = vadd.f32 %v1414, %v1510
        %v1534 = vadd.f32 %v1415, %v1515
        %v1535 = vadd.f32 %v1416, %v1520
        %v1536 = vadd.f32 %v1417, %v1525
        %1537 = vst [vmem:[%s1408] sm:$0xff] %v1528
        %1538 = vst [vmem:[%s1408 + $0x8] sm:$0xff] %v1529
        %1539 = vst [vmem:[%s1408 + $0x10] sm:$0xff] %v1530
        %1540 = vst [vmem:[%s1408 + $0x18] sm:$0xff] %v1531
        %1541 = vst [vmem:[%s1408 + $0x20] sm:$0xff] %v1532
        %1542 = vst [vmem:[%s1408 + $0x28] sm:$0xff] %v1533
        %1543 = vst [vmem:[%s1408 + $0x30] sm:$0xff] %v1534
        %1544 = vst [vmem:[%s1408 + $0x38] sm:$0xff] %v1535
        %1545 = vst [vmem:[%s1408 + $0x40] sm:$0x1] %v1536
        %v1546 = vmul.f32 %v1377, %v1377
        %v1547 = vmul.f32 %v1379, %v1379
        %v1548 = vmul.f32 %v1381, %v1381
        %v1549 = vmul.f32 %v1383, %v1383
        %v1550 = vmul.f32 %v1385, %v1385
        %v1551 = vmul.f32 %v1387, %v1387
        %v1552 = vmul.f32 %v1389, %v1389
        %v1553 = vmul.f32 %v1391, %v1391
        %v1554 = vmul.f32 %v1393, %v1393
        %v1555 = vmul.f32 %v1395, %v1395
        %v1556 = vmul.f32 %v1397, %v1397
        %v1557 = vmul.f32 %v1399, %v1399
        %v1558 = vmul.f32 %v1401, %v1401
        %v1559 = vmul.f32 %v1403, %v1403
        %v1560 = vmul.f32 %v1405, %v1405
        %v1561 = vmul.f32 %v1407, %v1407
        %v1562 = vmul.f32 %v1546, %v1546
        %v1563 = vmul.f32 %v1547, %v1547
        %v1564 = vmul.f32 %v1548, %v1548
        %v1565 = vmul.f32 %v1549, %v1549
        %v1566 = vmul.f32 %v1550, %v1550
        %v1567 = vmul.f32 %v1551, %v1551
        %v1568 = vmul.f32 %v1552, %v1552
        %v1569 = vmul.f32 %v1553, %v1553
        %v1570 = vmul.f32 %v1554, %v1554
        %v1571 = vmul.f32 %v1555, %v1555
        %v1572 = vmul.f32 %v1556, %v1556
        %v1573 = vmul.f32 %v1557, %v1557
        %v1574 = vmul.f32 %v1558, %v1558
        %v1575 = vmul.f32 %v1559, %v1559
        %v1576 = vmul.f32 %v1560, %v1560
        %v1577 = vmul.f32 %v1561, %v1561
        %s1578 = scalar_lea.vmem [#allocation2], 72
        %v1579 = vld [vmem:[%s1578] sm:$0xff]
        %v1580 = vld [vmem:[%s1578 + $0x8] sm:$0xff]
        %v1581 = vld [vmem:[%s1578 + $0x10] sm:$0xff]
        %v1582 = vld [vmem:[%s1578 + $0x18] sm:$0xff]
        %v1583 = vld [vmem:[%s1578 + $0x20] sm:$0xff]
        %v1584 = vld [vmem:[%s1578 + $0x28] sm:$0xff]
        %v1585 = vld [vmem:[%s1578 + $0x30] sm:$0xff]
        %v1586 = vld [vmem:[%s1578 + $0x38] sm:$0xff]
        %v1587 = vld [vmem:[%s1578 + $0x40] sm:$0x1]
        %1588 = vmatprep.subr.mxu0 0.0
        %1589 = vmatpush1.msra.mxu0 %v1562
        %1590 = vmatprep.subr.mxu0 0.0
        %1591 = vmatpush1.msra.mxu0 %v1563
        %1592 = vmatprep.subr.mxu0 0.0
        %1593 = vmatpush1.msra.mxu0 %v1564
        %1594 = vmatprep.subr.mxu0 0.0
        %1595 = vmatpush1.msra.mxu0 %v1565
        %1596 = vmatprep.subr.mxu0 0.0
        %1597 = vmatpush1.msra.mxu0 %v1566
        %1598 = vmatprep.subr.mxu0 0.0
        %1599 = vmatpush1.msra.mxu0 %v1567
        %1600 = vmatprep.subr.mxu0 0.0
        %1601 = vmatpush1.msra.mxu0 %v1568
        %1602 = vmatprep.subr.mxu0 0.0
        %1603 = vmatpush1.msra.mxu0 %v1569
        %1604 = vmatprep.subr.mxu0 0.0
        %1605 = vmatpush1.msra.mxu0 %v1570
        %1606 = vmatprep.subr.mxu0 0.0
        %1607 = vmatpush1.msra.mxu0 %v1571
        %1608 = vmatprep.subr.mxu0 0.0
        %1609 = vmatpush1.msra.mxu0 %v1572
        %1610 = vmatprep.subr.mxu0 0.0
        %1611 = vmatpush1.msra.mxu0 %v1573
        %1612 = vmatprep.subr.mxu0 0.0
        %1613 = vmatpush1.msra.mxu0 %v1574
        %1614 = vmatprep.subr.mxu0 0.0
        %1615 = vmatpush1.msra.mxu0 %v1575
        %1616 = vmatprep.subr.mxu0 0.0
        %1617 = vmatpush1.msra.mxu0 %v1576
        %1618 = vmatprep.subr.mxu0 0.0
        %1619 = vmatpush1.msra.mxu0 %v1577
        %1620 = vmatprep.subr.mxu0 0.0
        %1621 = vmatpush1.msra.mxu0 0.0
        %1622 = vmatprep.subr.mxu0 0.0
        %1623 = vmatpush1.msra.mxu0 0.0
        %1624 = vmatprep.subr.mxu0 0.0
        %1625 = vmatpush1.msra.mxu0 0.0
        %1626 = vmatprep.subr.mxu0 0.0
        %1627 = vmatpush1.msra.mxu0 0.0
        %1628 = vmatprep.subr.mxu0 0.0
        %1629 = vmatpush1.msra.mxu0 0.0
        %1630 = vmatprep.subr.mxu0 0.0
        %1631 = vmatpush1.msra.mxu0 0.0
        %1632 = vmatprep.subr.mxu0 0.0
        %1633 = vmatpush1.msra.mxu0 0.0
        %1634 = vmatprep.subr.mxu0 0.0
        %1635 = vmatpush1.msra.mxu0 0.0
        %1636 = vmatprep.subr.mxu0 0.0
        %1637 = vmatpush1.msra.mxu0 0.0
        %1638 = vmatprep.subr.mxu0 0.0
        %1639 = vmatpush1.msra.mxu0 0.0
        %1640 = vmatprep.subr.mxu0 0.0
        %1641 = vmatpush1.msra.mxu0 0.0
        %1642 = vmatprep.subr.mxu0 0.0
        %1643 = vmatpush1.msra.mxu0 0.0
        %1644 = vmatprep.subr.mxu0 0.0
        %1645 = vmatpush1.msra.mxu0 0.0
        %1646 = vmatprep.subr.mxu0 0.0
        %1647 = vmatpush1.msra.mxu0 0.0
        %1648 = vmatprep.subr.mxu0 0.0
        %1649 = vmatpush1.msra.mxu0 0.0
        %1650 = vmatprep.subr.mxu0 0.0
        %1651 = vmatpush1.msra.mxu0 0.0
        %1652 = vmatprep.mubr.f32.mxu0 0.0
        %1653 = vmatmul.mubr.f32.gmra.mrb[0].mxu0 %v970
        %v1654 = vpop.f32.mrb[0].mxu0
        %v1655 = vadd.f32 0.0, %v1654
        %v1656 = vpop.f32.mrb[0].mxu0
        %1657 = vmatprep.mubr.f32.mxu0 0.0
        %1658 = vmatmul.mubr.f32.gmra.mrb[0].mxu0 %v971
        %v1659 = vpop.f32.mrb[0].mxu0
        %v1660 = vadd.f32 0.0, %v1659
        %v1661 = vpop.f32.mrb[0].mxu0
        %1662 = vmatprep.mubr.f32.mxu0 0.0
        %1663 = vmatmul.mubr.f32.gmra.mrb[0].mxu0 %v972
        %v1664 = vpop.f32.mrb[0].mxu0
        %v1665 = vadd.f32 0.0, %v1664
        %v1666 = vpop.f32.mrb[0].mxu0
        %1667 = vmatprep.mubr.f32.mxu0 0.0
        %1668 = vmatmul.mubr.f32.gmra.mrb[0].mxu0 %v973
        %v1669 = vpop.f32.mrb[0].mxu0
        %v1670 = vadd.f32 0.0, %v1669
        %v1671 = vpop.f32.mrb[0].mxu0
        %1672 = vmatprep.mubr.f32.mxu0 0.0
        %1673 = vmatmul.mubr.f32.gmra.mrb[0].mxu0 %v974
        %v1674 = vpop.f32.mrb[0].mxu0
        %v1675 = vadd.f32 0.0, %v1674
        %v1676 = vpop.f32.mrb[0].mxu0
        %1677 = vmatprep.mubr.f32.mxu0 0.0
        %1678 = vmatmul.mubr.f32.gmra.mrb[0].mxu0 %v975
        %v1679 = vpop.f32.mrb[0].mxu0
        %v1680 = vadd.f32 0.0, %v1679
        %v1681 = vpop.f32.mrb[0].mxu0
        %1682 = vmatprep.mubr.f32.mxu0 0.0
        %1683 = vmatmul.mubr.f32.gmra.mrb[0].mxu0 %v976
        %v1684 = vpop.f32.mrb[0].mxu0
        %v1685 = vadd.f32 0.0, %v1684
        %v1686 = vpop.f32.mrb[0].mxu0
        %1687 = vmatprep.mubr.f32.mxu0 0.0
        %1688 = vmatmul.mubr.f32.gmra.mrb[0].mxu0 %v977
        %v1689 = vpop.f32.mrb[0].mxu0
        %v1690 = vadd.f32 0.0, %v1689
        %v1691 = vpop.f32.mrb[0].mxu0
        %1692 = vmatprep.mubr.f32.mxu0 0.0
        %1693 = vmatmul.mubr.f32.gmra.mrb[0].mxu0 1.0
        %v1694 = vpop.f32.mrb[0].mxu0
        %v1695 = vadd.f32 0.0, %v1694
        %v1696 = vpop.f32.mrb[0].mxu0
        %1697 = vdwg.mxu0
        %v1698 = vadd.f32 %v1579, %v1655
        %v1699 = vadd.f32 %v1580, %v1660
        %v1700 = vadd.f32 %v1581, %v1665
        %v1701 = vadd.f32 %v1582, %v1670
        %v1702 = vadd.f32 %v1583, %v1675
        %v1703 = vadd.f32 %v1584, %v1680
        %v1704 = vadd.f32 %v1585, %v1685
        %v1705 = vadd.f32 %v1586, %v1690
        %v1706 = vadd.f32 %v1587, %v1695
        %1707 = vst [vmem:[%s1578] sm:$0xff] %v1698
        %1708 = vst [vmem:[%s1578 + $0x8] sm:$0xff] %v1699
        %1709 = vst [vmem:[%s1578 + $0x10] sm:$0xff] %v1700
        %1710 = vst [vmem:[%s1578 + $0x18] sm:$0xff] %v1701
        %1711 = vst [vmem:[%s1578 + $0x20] sm:$0xff] %v1702
        %1712 = vst [vmem:[%s1578 + $0x28] sm:$0xff] %v1703
        %1713 = vst [vmem:[%s1578 + $0x30] sm:$0xff] %v1704
        %1714 = vst [vmem:[%s1578 + $0x38] sm:$0xff] %v1705
        %1715 = vst [vmem:[%s1578 + $0x40] sm:$0x1] %v1706
        %v1716 = vmul.f32 %v1562, %v1562
        %v1717 = vmul.f32 %v1563, %v1563
        %v1718 = vmul.f32 %v1564, %v1564
        %v1719 = vmul.f32 %v1565, %v1565
        %v1720 = vmul.f32 %v1566, %v1566
        %v1721 = vmul.f32 %v1567, %v1567
        %v1722 = vmul.f32 %v1568, %v1568
        %v1723 = vmul.f32 %v1569, %v1569
        %v1724 = vmul.f32 %v1570, %v1570
        %v1725 = vmul.f32 %v1571, %v1571
        %v1726 = vmul.f32 %v1572, %v1572
        %v1727 = vmul.f32 %v1573, %v1573
        %v1728 = vmul.f32 %v1574, %v1574
        %v1729 = vmul.f32 %v1575, %v1575
        %v1730 = vmul.f32 %v1576, %v1576
        %v1731 = vmul.f32 %v1577, %v1577
        %v1732 = vmul.f32 %v1716, %v1716
        %v1733 = vmul.f32 %v1717, %v1717
        %v1734 = vmul.f32 %v1718, %v1718
        %v1735 = vmul.f32 %v1719, %v1719
        %v1736 = vmul.f32 %v1720, %v1720
        %v1737 = vmul.f32 %v1721, %v1721
        %v1738 = vmul.f32 %v1722, %v1722
        %v1739 = vmul.f32 %v1723, %v1723
        %v1740 = vmul.f32 %v1724, %v1724
        %v1741 = vmul.f32 %v1725, %v1725
        %v1742 = vmul.f32 %v1726, %v1726
        %v1743 = vmul.f32 %v1727, %v1727
        %v1744 = vmul.f32 %v1728, %v1728
        %v1745 = vmul.f32 %v1729, %v1729
        %v1746 = vmul.f32 %v1730, %v1730
        %v1747 = vmul.f32 %v1731, %v1731
        %v1748 = vld [vmem:[#allocation2] sm:$0xff]
        %v1749 = vld [vmem:[#allocation2 + $0x8] sm:$0xff]
        %v1750 = vld [vmem:[#allocation2 + $0x10] sm:$0xff]
        %v1751 = vld [vmem:[#allocation2 + $0x18] sm:$0xff]
        %v1752 = vld [vmem:[#allocation2 + $0x20] sm:$0xff]
        %v1753 = vld [vmem:[#allocation2 + $0x28] sm:$0xff]
        %v1754 = vld [vmem:[#allocation2 + $0x30] sm:$0xff]
        %v1755 = vld [vmem:[#allocation2 + $0x38] sm:$0xff]
        %v1756 = vld [vmem:[#allocation2 + $0x40] sm:$0x1]
        %1757 = vmatprep.subr.mxu0 0.0
        %1758 = vmatpush1.msra.mxu0 %v1732
        %1759 = vmatprep.subr.mxu0 0.0
        %1760 = vmatpush1.msra.mxu0 %v1733
        %1761 = vmatprep.subr.mxu0 0.0
        %1762 = vmatpush1.msra.mxu0 %v1734
        %1763 = vmatprep.subr.mxu0 0.0
        %1764 = vmatpush1.msra.mxu0 %v1735
        %1765 = vmatprep.subr.mxu0 0.0
        %1766 = vmatpush1.msra.mxu0 %v1736
        %1767 = vmatprep.subr.mxu0 0.0
        %1768 = vmatpush1.msra.mxu0 %v1737
        %1769 = vmatprep.subr.mxu0 0.0
        %1770 = vmatpush1.msra.mxu0 %v1738
        %1771 = vmatprep.subr.mxu0 0.0
        %1772 = vmatpush1.msra.mxu0 %v1739
        %1773 = vmatprep.subr.mxu0 0.0
        %1774 = vmatpush1.msra.mxu0 %v1740
        %1775 = vmatprep.subr.mxu0 0.0
        %1776 = vmatpush1.msra.mxu0 %v1741
        %1777 = vmatprep.subr.mxu0 0.0
        %1778 = vmatpush1.msra.mxu0 %v1742
        %1779 = vmatprep.subr.mxu0 0.0
        %1780 = vmatpush1.msra.mxu0 %v1743
        %1781 = vmatprep.subr.mxu0 0.0
        %1782 = vmatpush1.msra.mxu0 %v1744
        %1783 = vmatprep.subr.mxu0 0.0
        %1784 = vmatpush1.msra.mxu0 %v1745
        %1785 = vmatprep.subr.mxu0 0.0
        %1786 = vmatpush1.msra.mxu0 %v1746
        %1787 = vmatprep.subr.mxu0 0.0
        %1788 = vmatpush1.msra.mxu0 %v1747
        %1789 = vmatprep.subr.mxu0 0.0
        %1790 = vmatpush1.msra.mxu0 0.0
        %1791 = vmatprep.subr.mxu0 0.0
        %1792 = vmatpush1.msra.mxu0 0.0
        %1793 = vmatprep.subr.mxu0 0.0
        %1794 = vmatpush1.msra.mxu0 0.0
        %1795 = vmatprep.subr.mxu0 0.0
        %1796 = vmatpush1.msra.mxu0 0.0
        %1797 = vmatprep.subr.mxu0 0.0
        %1798 = vmatpush1.msra.mxu0 0.0
        %1799 = vmatprep.subr.mxu0 0.0
        %1800 = vmatpush1.msra.mxu0 0.0
        %1801 = vmatprep.subr.mxu0 0.0
        %1802 = vmatpush1.msra.mxu0 0.0
        %1803 = vmatprep.subr.mxu0 0.0
        %1804 = vmatpush1.msra.mxu0 0.0
        %1805 = vmatprep.subr.mxu0 0.0
        %1806 = vmatpush1.msra.mxu0 0.0
        %1807 = vmatprep.subr.mxu0 0.0
        %1808 = vmatpush1.msra.mxu0 0.0
        %1809 = vmatprep.subr.mxu0 0.0
        %1810 = vmatpush1.msra.mxu0 0.0
        %1811 = vmatprep.subr.mxu0 0.0
        %1812 = vmatpush1.msra.mxu0 0.0
        %1813 = vmatprep.subr.mxu0 0.0
        %1814 = vmatpush1.msra.mxu0 0.0
        %1815 = vmatprep.subr.mxu0 0.0
        %1816 = vmatpush1.msra.mxu0 0.0
        %1817 = vmatprep.subr.mxu0 0.0
        %1818 = vmatpush1.msra.mxu0 0.0
        %1819 = vmatprep.subr.mxu0 0.0
        %1820 = vmatpush1.msra.mxu0 0.0
        %1821 = vmatprep.mubr.f32.mxu0 0.0
        %1822 = vmatmul.mubr.f32.gmra.mrb[0].mxu0 %v970
        %v1823 = vpop.f32.mrb[0].mxu0
        %v1824 = vadd.f32 0.0, %v1823
        %v1825 = vpop.f32.mrb[0].mxu0
        %1826 = vmatprep.mubr.f32.mxu0 0.0
        %1827 = vmatmul.mubr.f32.gmra.mrb[0].mxu0 %v971
        %v1828 = vpop.f32.mrb[0].mxu0
        %v1829 = vadd.f32 0.0, %v1828
        %v1830 = vpop.f32.mrb[0].mxu0
        %1831 = vmatprep.mubr.f32.mxu0 0.0
        %1832 = vmatmul.mubr.f32.gmra.mrb[0].mxu0 %v972
        %v1833 = vpop.f32.mrb[0].mxu0
        %v1834 = vadd.f32 0.0, %v1833
        %v1835 = vpop.f32.mrb[0].mxu0
        %1836 = vmatprep.mubr.f32.mxu0 0.0
        %1837 = vmatmul.mubr.f32.gmra.mrb[0].mxu0 %v973
        %v1838 = vpop.f32.mrb[0].mxu0
        %v1839 = vadd.f32 0.0, %v1838
        %v1840 = vpop.f32.mrb[0].mxu0
        %1841 = vmatprep.mubr.f32.mxu0 0.0
        %1842 = vmatmul.mubr.f32.gmra.mrb[0].mxu0 %v974
        %v1843 = vpop.f32.mrb[0].mxu0
        %v1844 = vadd.f32 0.0, %v1843
        %v1845 = vpop.f32.mrb[0].mxu0
        %1846 = vmatprep.mubr.f32.mxu0 0.0
        %1847 = vmatmul.mubr.f32.gmra.mrb[0].mxu0 %v975
        %v1848 = vpop.f32.mrb[0].mxu0
        %v1849 = vadd.f32 0.0, %v1848
        %v1850 = vpop.f32.mrb[0].mxu0
        %1851 = vmatprep.mubr.f32.mxu0 0.0
        %1852 = vmatmul.mubr.f32.gmra.mrb[0].mxu0 %v976
        %v1853 = vpop.f32.mrb[0].mxu0
        %v1854 = vadd.f32 0.0, %v1853
        %v1855 = vpop.f32.mrb[0].mxu0
        %1856 = vmatprep.mubr.f32.mxu0 0.0
        %1857 = vmatmul.mubr.f32.gmra.mrb[0].mxu0 %v977
        %v1858 = vpop.f32.mrb[0].mxu0
        %v1859 = vadd.f32 0.0, %v1858
        %v1860 = vpop.f32.mrb[0].mxu0
        %1861 = vmatprep.mubr.f32.mxu0 0.0
        %1862 = vmatmul.mubr.f32.gmra.mrb[0].mxu0 1.0
        %v1863 = vpop.f32.mrb[0].mxu0
        %v1864 = vadd.f32 0.0, %v1863
        %v1865 = vpop.f32.mrb[0].mxu0
        %1866 = vdwg.mxu0
        %v1867 = vadd.f32 %v1748, %v1824
        %v1868 = vadd.f32 %v1749, %v1829
        %v1869 = vadd.f32 %v1750, %v1834
        %v1870 = vadd.f32 %v1751, %v1839
        %v1871 = vadd.f32 %v1752, %v1844
        %v1872 = vadd.f32 %v1753, %v1849
        %v1873 = vadd.f32 %v1754, %v1854
        %v1874 = vadd.f32 %v1755, %v1859
        %v1875 = vadd.f32 %v1756, %v1864
        %1876 = vst [vmem:[#allocation2] sm:$0xff] %v1867
        %1877 = vst [vmem:[#allocation2 + $0x8] sm:$0xff] %v1868
        %1878 = vst [vmem:[#allocation2 + $0x10] sm:$0xff] %v1869
        %1879 = vst [vmem:[#allocation2 + $0x18] sm:$0xff] %v1870
        %1880 = vst [vmem:[#allocation2 + $0x20] sm:$0xff] %v1871
        %1881 = vst [vmem:[#allocation2 + $0x28] sm:$0xff] %v1872
        %1882 = vst [vmem:[#allocation2 + $0x30] sm:$0xff] %v1873
        %1883 = vst [vmem:[#allocation2 + $0x38] sm:$0xff] %v1874
        %1884 = vst [vmem:[#allocation2 + $0x40] sm:$0x1] %v1875
        %p1885 = scmp.eq.s32.totalorder %s32, 2
        // Predicated region
        $region107: #{geo_simple_feature_net_forward.9} parent=97 // pred_check
          %p1886 = pneg %p1885
        $region108: #{geo_simple_feature_net_forward.9} parent=97 // pred_check_branch
          %1888 = sbr.rel (%p1886) target = $region110
        $region109: #{geo_simple_feature_net_forward.9} parent=97 // pred_region
          %v1889 = vld [vmem:[#allocation2] sm:$0xff]
          %v1890 = vld [vmem:[#allocation2 + $0x8] sm:$0xff]
          %v1891 = vld [vmem:[#allocation2 + $0x10] sm:$0xff]
          %v1892 = vld [vmem:[#allocation2 + $0x18] sm:$0xff]
          %v1893 = vld [vmem:[#allocation2 + $0x20] sm:$0xff]
          %v1894 = vld [vmem:[#allocation2 + $0x28] sm:$0xff]
          %v1895 = vld [vmem:[#allocation2 + $0x30] sm:$0xff]
          %v1896 = vld [vmem:[#allocation2 + $0x38] sm:$0xff]
          %v1897 = vld [vmem:[#allocation2 + $0x40] sm:$0x1]
          %v1898 = vmax.f32 %v1897, 1e-20
          %v1899 = vrcp.pop %v1898
          %v1900 = vmul.f32 %v1898, %v1899
          %v1901 = vsub.f32 2.0, %v1900
          %v1902 = vmul.f32 %v1899, %v1901
          %v1903 = vlaneseq
          %v1904 = vshrl.u32 %v1903, 7
          %v1905 = vsub.s32 0, %v1904
          %v1906 = vrot.slane %v1902, %v1905
          %v1907 = vmul.f32 %v1889, %v1906
          %v1908 = vmul.f32 %v1890, %v1906
          %v1909 = vmul.f32 %v1891, %v1906
          %v1910 = vmul.f32 %v1892, %v1906
          %v1911 = vmul.f32 %v1893, %v1906
          %v1912 = vmul.f32 %v1894, %v1906
          %v1913 = vmul.f32 %v1895, %v1906
          %v1914 = vmul.f32 %v1896, %v1906
          %v1915 = vmul.f32 %v1907, 0.33
          %v1916 = vmul.f32 %v1908, 0.33
          %v1917 = vmul.f32 %v1909, 0.33
          %v1918 = vmul.f32 %v1910, 0.33
          %v1919 = vmul.f32 %v1911, 0.33
          %v1920 = vmul.f32 %v1912, 0.33
          %v1921 = vmul.f32 %v1913, 0.33
          %v1922 = vmul.f32 %v1914, 0.33
          %v1923 = vadd.f32 %v1915, 0.0
          %v1924 = vadd.f32 %v1916, 0.0
          %v1925 = vadd.f32 %v1917, 0.0
          %v1926 = vadd.f32 %v1918, 0.0
          %v1927 = vadd.f32 %v1919, 0.0
          %v1928 = vadd.f32 %v1920, 0.0
          %v1929 = vadd.f32 %v1921, 0.0
          %v1930 = vadd.f32 %v1922, 0.0
          %v1931 = vld [vmem:[%s1578] sm:$0xff]
          %v1932 = vld [vmem:[%s1578 + $0x8] sm:$0xff]
          %v1933 = vld [vmem:[%s1578 + $0x10] sm:$0xff]
          %v1934 = vld [vmem:[%s1578 + $0x18] sm:$0xff]
          %v1935 = vld [vmem:[%s1578 + $0x20] sm:$0xff]
          %v1936 = vld [vmem:[%s1578 + $0x28] sm:$0xff]
          %v1937 = vld [vmem:[%s1578 + $0x30] sm:$0xff]
          %v1938 = vld [vmem:[%s1578 + $0x38] sm:$0xff]
          %v1939 = vld [vmem:[%s1578 + $0x40] sm:$0x1]
          %v1940 = vmax.f32 %v1939, 1e-20
          %v1941 = vrcp.pop %v1940
          %v1942 = vmul.f32 %v1940, %v1941
          %v1943 = vsub.f32 2.0, %v1942
          %v1944 = vmul.f32 %v1941, %v1943
          %v1945 = vlaneseq
          %v1946 = vshrl.u32 %v1945, 7
          %v1947 = vsub.s32 0, %v1946
          %v1948 = vrot.slane %v1944, %v1947
          %v1949 = vmul.f32 %v1931, %v1948
          %v1950 = vmul.f32 %v1932, %v1948
          %v1951 = vmul.f32 %v1933, %v1948
          %v1952 = vmul.f32 %v1934, %v1948
          %v1953 = vmul.f32 %v1935, %v1948
          %v1954 = vmul.f32 %v1936, %v1948
          %v1955 = vmul.f32 %v1937, %v1948
          %v1956 = vmul.f32 %v1938, %v1948
          %v1957 = vmul.f32 %v1949, 0.33
          %v1958 = vmul.f32 %v1950, 0.33
          %v1959 = vmul.f32 %v1951, 0.33
          %v1960 = vmul.f32 %v1952, 0.33
          %v1961 = vmul.f32 %v1953, 0.33
          %v1962 = vmul.f32 %v1954, 0.33
          %v1963 = vmul.f32 %v1955, 0.33
          %v1964 = vmul.f32 %v1956, 0.33
          %v1965 = vadd.f32 %v1923, %v1957
          %v1966 = vadd.f32 %v1924, %v1958
          %v1967 = vadd.f32 %v1925, %v1959
          %v1968 = vadd.f32 %v1926, %v1960
          %v1969 = vadd.f32 %v1927, %v1961
          %v1970 = vadd.f32 %v1928, %v1962
          %v1971 = vadd.f32 %v1929, %v1963
          %v1972 = vadd.f32 %v1930, %v1964
          %v1973 = vld [vmem:[%s1408] sm:$0xff]
          %v1974 = vld [vmem:[%s1408 + $0x8] sm:$0xff]
          %v1975 = vld [vmem:[%s1408 + $0x10] sm:$0xff]
          %v1976 = vld [vmem:[%s1408 + $0x18] sm:$0xff]
          %v1977 = vld [vmem:[%s1408 + $0x20] sm:$0xff]
          %v1978 = vld [vmem:[%s1408 + $0x28] sm:$0xff]
          %v1979 = vld [vmem:[%s1408 + $0x30] sm:$0xff]
          %v1980 = vld [vmem:[%s1408 + $0x38] sm:$0xff]
          %v1981 = vld [vmem:[%s1408 + $0x40] sm:$0x1]
          %v1982 = vmax.f32 %v1981, 1e-20
          %v1983 = vrcp.pop %v1982
          %v1984 = vmul.f32 %v1982, %v1983
          %v1985 = vsub.f32 2.0, %v1984
          %v1986 = vmul.f32 %v1983, %v1985
          %v1987 = vlaneseq
          %v1988 = vshrl.u32 %v1987, 7
          %v1989 = vsub.s32 0, %v1988
          %v1990 = vrot.slane %v1986, %v1989
          %v1991 = vmul.f32 %v1973, %v1990
          %v1992 = vmul.f32 %v1974, %v1990
          %v1993 = vmul.f32 %v1975, %v1990
          %v1994 = vmul.f32 %v1976, %v1990
          %v1995 = vmul.f32 %v1977, %v1990
          %v1996 = vmul.f32 %v1978, %v1990
          %v1997 = vmul.f32 %v1979, %v1990
          %v1998 = vmul.f32 %v1980, %v1990
          %v1999 = vmul.f32 %v1991, 0.33
          %v2000 = vmul.f32 %v1992, 0.33
          %v2001 = vmul.f32 %v1993, 0.33
          %v2002 = vmul.f32 %v1994, 0.33
          %v2003 = vmul.f32 %v1995, 0.33
          %v2004 = vmul.f32 %v1996, 0.33
          %v2005 = vmul.f32 %v1997, 0.33
          %v2006 = vmul.f32 %v1998, 0.33
          %v2007 = vadd.f32 %v1965, %v1999
          %v2008 = vadd.f32 %v1966, %v2000
          %v2009 = vadd.f32 %v1967, %v2001
          %v2010 = vadd.f32 %v1968, %v2002
          %v2011 = vadd.f32 %v1969, %v2003
          %v2012 = vadd.f32 %v1970, %v2004
          %v2013 = vadd.f32 %v1971, %v2005
          %v2014 = vadd.f32 %v1972, %v2006
          %v2015 = vld [vmem:[%s7] sm:$0xff]
          %v2016 = vld [vmem:[%s7 + $0x8] sm:$0xff]
          %v2017 = vld [vmem:[%s7 + $0x10] sm:$0xff]
          %v2018 = vld [vmem:[%s7 + $0x18] sm:$0xff]
          %v2019 = vld [vmem:[%s7 + $0x20] sm:$0xff]
          %v2020 = vld [vmem:[%s7 + $0x28] sm:$0xff]
          %v2021 = vld [vmem:[%s7 + $0x30] sm:$0xff]
          %v2022 = vld [vmem:[%s7 + $0x38] sm:$0xff]
          %v2023 = vld [vmem:[%s8] sm:$0xff]
          %v2024 = vld [vmem:[%s8 + $0x8] sm:$0xff]
          %v2025 = vld [vmem:[%s8 + $0x10] sm:$0xff]
          %v2026 = vld [vmem:[%s8 + $0x18] sm:$0xff]
          %v2027 = vld [vmem:[%s8 + $0x20] sm:$0xff]
          %v2028 = vld [vmem:[%s8 + $0x28] sm:$0xff]
          %v2029 = vld [vmem:[%s8 + $0x30] sm:$0xff]
          %v2030 = vld [vmem:[%s8 + $0x38] sm:$0xff]
          %2032 = vset.pattern.permute.xlu0 0
          %2033 = vperm.xlu0 %2032, %v2023
          %v2034 = vpop.permute.xlu0 %2033
          %2037 = vset.pattern.permute.xlu0 0
          %2038 = vperm.xlu0 %2037, %v2024
          %v2039 = vpop.permute.xlu0 %2038
          %2042 = vset.pattern.permute.xlu0 0
          %2043 = vperm.xlu0 %2042, %v2025
          %v2044 = vpop.permute.xlu0 %2043
          %2047 = vset.pattern.permute.xlu0 0
          %2048 = vperm.xlu0 %2047, %v2026
          %v2049 = vpop.permute.xlu0 %2048
          %2052 = vset.pattern.permute.xlu0 0
          %2053 = vperm.xlu0 %2052, %v2027
          %v2054 = vpop.permute.xlu0 %2053
          %2057 = vset.pattern.permute.xlu0 0
          %2058 = vperm.xlu0 %2057, %v2028
          %v2059 = vpop.permute.xlu0 %2058
          %2062 = vset.pattern.permute.xlu0 0
          %2063 = vperm.xlu0 %2062, %v2029
          %v2064 = vpop.permute.xlu0 %2063
          %2067 = vset.pattern.permute.xlu0 0
          %2068 = vperm.xlu0 %2067, %v2030
          %v2069 = vpop.permute.xlu0 %2068
          %v2072 = vsel %vm824, %v2015, 0
          %v2075 = vsel %vm824, %v2016, 0
          %v2078 = vsel %vm824, %v2017, 0
          %v2081 = vsel %vm824, %v2018, 0
          %v2084 = vsel %vm824, %v2019, 0
          %v2087 = vsel %vm824, %v2020, 0
          %v2090 = vsel %vm824, %v2021, 0
          %v2093 = vsel %vm824, %v2022, 0
          %2095 = vmatprep.subr.mxu0 0.0
          %2096 = vmatpush1.msra.mxu0 %v2007
          %2097 = vmatprep.subr.mxu0 0.0
          %2098 = vmatpush1.msra.mxu0 %v2008
          %2099 = vmatprep.subr.mxu0 0.0
          %2100 = vmatpush1.msra.mxu0 %v2009
          %2101 = vmatprep.subr.mxu0 0.0
          %2102 = vmatpush1.msra.mxu0 %v2010
          %2103 = vmatprep.subr.mxu0 0.0
          %2104 = vmatpush1.msra.mxu0 %v2011
          %2105 = vmatprep.subr.mxu0 0.0
          %2106 = vmatpush1.msra.mxu0 %v2012
          %2107 = vmatprep.subr.mxu0 0.0
          %2108 = vmatpush1.msra.mxu0 %v2013
          %2109 = vmatprep.subr.mxu0 0.0
          %2110 = vmatpush1.msra.mxu0 %v2014
          %2111 = vmatprep.subr.mxu0 0.0
          %2112 = vmatpush1.msra.mxu0 0.0
          %2113 = vmatprep.subr.mxu0 0.0
          %2114 = vmatpush1.msra.mxu0 0.0
          %2115 = vmatprep.subr.mxu0 0.0
          %2116 = vmatpush1.msra.mxu0 0.0
          %2117 = vmatprep.subr.mxu0 0.0
          %2118 = vmatpush1.msra.mxu0 0.0
          %2119 = vmatprep.subr.mxu0 0.0
          %2120 = vmatpush1.msra.mxu0 0.0
          %2121 = vmatprep.subr.mxu0 0.0
          %2122 = vmatpush1.msra.mxu0 0.0
          %2123 = vmatprep.subr.mxu0 0.0
          %2124 = vmatpush1.msra.mxu0 0.0
          %2125 = vmatprep.subr.mxu0 0.0
          %2126 = vmatpush1.msra.mxu0 0.0
          %2127 = vmatprep.subr.mxu0 0.0
          %2128 = vmatpush1.msra.mxu0 0.0
          %2129 = vmatprep.subr.mxu0 0.0
          %2130 = vmatpush1.msra.mxu0 0.0
          %2131 = vmatprep.subr.mxu0 0.0
          %2132 = vmatpush1.msra.mxu0 0.0
          %2133 = vmatprep.subr.mxu0 0.0
          %2134 = vmatpush1.msra.mxu0 0.0
          %2135 = vmatprep.subr.mxu0 0.0
          %2136 = vmatpush1.msra.mxu0 0.0
          %2137 = vmatprep.subr.mxu0 0.0
          %2138 = vmatpush1.msra.mxu0 0.0
          %2139 = vmatprep.subr.mxu0 0.0
          %2140 = vmatpush1.msra.mxu0 0.0
          %2141 = vmatprep.subr.mxu0 0.0
          %2142 = vmatpush1.msra.mxu0 0.0
          %2143 = vmatprep.subr.mxu0 0.0
          %2144 = vmatpush1.msra.mxu0 0.0
          %2145 = vmatprep.subr.mxu0 0.0
          %2146 = vmatpush1.msra.mxu0 0.0
          %2147 = vmatprep.subr.mxu0 0.0
          %2148 = vmatpush1.msra.mxu0 0.0
          %2149 = vmatprep.subr.mxu0 0.0
          %2150 = vmatpush1.msra.mxu0 0.0
          %2151 = vmatprep.subr.mxu0 0.0
          %2152 = vmatpush1.msra.mxu0 0.0
          %2153 = vmatprep.subr.mxu0 0.0
          %2154 = vmatpush1.msra.mxu0 0.0
          %2155 = vmatprep.subr.mxu0 0.0
          %2156 = vmatpush1.msra.mxu0 0.0
          %2157 = vmatprep.subr.mxu0 0.0
          %2158 = vmatpush1.msra.mxu0 0.0
          %2159 = vmatprep.mubr.f32.mxu0 0.0
          %2160 = vmatmul.mubr.f32.gmra.mrb[0].mxu0 %v2072
          %v2161 = vpop.f32.mrb[0].mxu0
          %v2162 = vadd.f32 %v2034, %v2161
          %v2163 = vpop.f32.mrb[0].mxu0
          %2164 = vmatprep.mubr.f32.mxu0 0.0
          %2165 = vmatmul.mubr.f32.gmra.mrb[0].mxu0 %v2075
          %v2166 = vpop.f32.mrb[0].mxu0
          %v2167 = vadd.f32 %v2039, %v2166
          %v2168 = vpop.f32.mrb[0].mxu0
          %2169 = vmatprep.mubr.f32.mxu0 0.0
          %2170 = vmatmul.mubr.f32.gmra.mrb[0].mxu0 %v2078
          %v2171 = vpop.f32.mrb[0].mxu0
          %v2172 = vadd.f32 %v2044, %v2171
          %v2173 = vpop.f32.mrb[0].mxu0
          %2174 = vmatprep.mubr.f32.mxu0 0.0
          %2175 = vmatmul.mubr.f32.gmra.mrb[0].mxu0 %v2081
          %v2176 = vpop.f32.mrb[0].mxu0
          %v2177 = vadd.f32 %v2049, %v2176
          %v2178 = vpop.f32.mrb[0].mxu0
          %2179 = vmatprep.mubr.f32.mxu0 0.0
          %2180 = vmatmul.mubr.f32.gmra.mrb[0].mxu0 %v2084
          %v2181 = vpop.f32.mrb[0].mxu0
          %v2182 = vadd.f32 %v2054, %v2181
          %v2183 = vpop.f32.mrb[0].mxu0
          %2184 = vmatprep.mubr.f32.mxu0 0.0
          %2185 = vmatmul.mubr.f32.gmra.mrb[0].mxu0 %v2087
          %v2186 = vpop.f32.mrb[0].mxu0
          %v2187 = vadd.f32 %v2059, %v2186
          %v2188 = vpop.f32.mrb[0].mxu0
          %2189 = vmatprep.mubr.f32.mxu0 0.0
          %2190 = vmatmul.mubr.f32.gmra.mrb[0].mxu0 %v2090
          %v2191 = vpop.f32.mrb[0].mxu0
          %v2192 = vadd.f32 %v2064, %v2191
          %v2193 = vpop.f32.mrb[0].mxu0
          %2194 = vmatprep.mubr.f32.mxu0 0.0
          %2195 = vmatmul.mubr.f32.gmra.mrb[0].mxu0 %v2093
          %v2196 = vpop.f32.mrb[0].mxu0
          %v2197 = vadd.f32 %v2069, %v2196
          %v2198 = vpop.f32.mrb[0].mxu0
          %2199 = vdwg.mxu0
          %vm2200 = vcmp.gt.f32.partialorder %v2162, 0.0
          %vm2201 = vcmp.gt.f32.partialorder %v2167, 0.0
          %vm2202 = vcmp.gt.f32.partialorder %v2172, 0.0
          %vm2203 = vcmp.gt.f32.partialorder %v2177, 0.0
          %vm2204 = vcmp.gt.f32.partialorder %v2182, 0.0
          %vm2205 = vcmp.gt.f32.partialorder %v2187, 0.0
          %vm2206 = vcmp.gt.f32.partialorder %v2192, 0.0
          %vm2207 = vcmp.gt.f32.partialorder %v2197, 0.0
          %v2208 = vmul.f32 %v2162, 0.1
          %v2209 = vmul.f32 %v2167, 0.1
          %v2210 = vmul.f32 %v2172, 0.1
          %v2211 = vmul.f32 %v2177, 0.1
          %v2212 = vmul.f32 %v2182, 0.1
          %v2213 = vmul.f32 %v2187, 0.1
          %v2214 = vmul.f32 %v2192, 0.1
          %v2215 = vmul.f32 %v2197, 0.1
          %v2216 = vsel %vm2200, %v2162, %v2208
          %v2217 = vsel %vm2201, %v2167, %v2209
          %v2218 = vsel %vm2202, %v2172, %v2210
          %v2219 = vsel %vm2203, %v2177, %v2211
          %v2220 = vsel %vm2204, %v2182, %v2212
          %v2221 = vsel %vm2205, %v2187, %v2213
          %v2222 = vsel %vm2206, %v2192, %v2214
          %v2223 = vsel %vm2207, %v2197, %v2215
          %v2224 = vld [vmem:[%s9] sm:$0xff]
          %v2225 = vld [vmem:[%s9 + $0x8] sm:$0xff]
          %v2226 = vld [vmem:[%s9 + $0x10] sm:$0xff]
          %v2227 = vld [vmem:[%s9 + $0x18] sm:$0xff]
          %v2228 = vld [vmem:[%s10] sm:$0xff]
          %v2229 = vld [vmem:[%s10 + $0x8] sm:$0xff]
          %v2230 = vld [vmem:[%s10 + $0x10] sm:$0xff]
          %v2231 = vld [vmem:[%s10 + $0x18] sm:$0xff]
          %2233 = vset.pattern.permute.xlu0 0
          %2234 = vperm.xlu0 %2233, %v2228
          %v2235 = vpop.permute.xlu0 %2234
          %2238 = vset.pattern.permute.xlu0 0
          %2239 = vperm.xlu0 %2238, %v2229
          %v2240 = vpop.permute.xlu0 %2239
          %2243 = vset.pattern.permute.xlu0 0
          %2244 = vperm.xlu0 %2243, %v2230
          %v2245 = vpop.permute.xlu0 %2244
          %2248 = vset.pattern.permute.xlu0 0
          %2249 = vperm.xlu0 %2248, %v2231
          %v2250 = vpop.permute.xlu0 %2249
          %v2253 = vsel %vm824, %v2224, 0
          %v2256 = vsel %vm824, %v2225, 0
          %v2259 = vsel %vm824, %v2226, 0
          %v2262 = vsel %vm824, %v2227, 0
          %2264 = vmatprep.subr.mxu0 0.0
          %2265 = vmatpush1.msra.mxu0 %v2216
          %2266 = vmatprep.subr.mxu0 0.0
          %2267 = vmatpush1.msra.mxu0 %v2217
          %2268 = vmatprep.subr.mxu0 0.0
          %2269 = vmatpush1.msra.mxu0 %v2218
          %2270 = vmatprep.subr.mxu0 0.0
          %2271 = vmatpush1.msra.mxu0 %v2219
          %2272 = vmatprep.subr.mxu0 0.0
          %2273 = vmatpush1.msra.mxu0 %v2220
          %2274 = vmatprep.subr.mxu0 0.0
          %2275 = vmatpush1.msra.mxu0 %v2221
          %2276 = vmatprep.subr.mxu0 0.0
          %2277 = vmatpush1.msra.mxu0 %v2222
          %2278 = vmatprep.subr.mxu0 0.0
          %2279 = vmatpush1.msra.mxu0 %v2223
          %2280 = vmatprep.subr.mxu0 0.0
          %2281 = vmatpush1.msra.mxu0 0.0
          %2282 = vmatprep.subr.mxu0 0.0
          %2283 = vmatpush1.msra.mxu0 0.0
          %2284 = vmatprep.subr.mxu0 0.0
          %2285 = vmatpush1.msra.mxu0 0.0
          %2286 = vmatprep.subr.mxu0 0.0
          %2287 = vmatpush1.msra.mxu0 0.0
          %2288 = vmatprep.subr.mxu0 0.0
          %2289 = vmatpush1.msra.mxu0 0.0
          %2290 = vmatprep.subr.mxu0 0.0
          %2291 = vmatpush1.msra.mxu0 0.0
          %2292 = vmatprep.subr.mxu0 0.0
          %2293 = vmatpush1.msra.mxu0 0.0
          %2294 = vmatprep.subr.mxu0 0.0
          %2295 = vmatpush1.msra.mxu0 0.0
          %2296 = vmatprep.subr.mxu0 0.0
          %2297 = vmatpush1.msra.mxu0 0.0
          %2298 = vmatprep.subr.mxu0 0.0
          %2299 = vmatpush1.msra.mxu0 0.0
          %2300 = vmatprep.subr.mxu0 0.0
          %2301 = vmatpush1.msra.mxu0 0.0
          %2302 = vmatprep.subr.mxu0 0.0
          %2303 = vmatpush1.msra.mxu0 0.0
          %2304 = vmatprep.subr.mxu0 0.0
          %2305 = vmatpush1.msra.mxu0 0.0
          %2306 = vmatprep.subr.mxu0 0.0
          %2307 = vmatpush1.msra.mxu0 0.0
          %2308 = vmatprep.subr.mxu0 0.0
          %2309 = vmatpush1.msra.mxu0 0.0
          %2310 = vmatprep.subr.mxu0 0.0
          %2311 = vmatpush1.msra.mxu0 0.0
          %2312 = vmatprep.subr.mxu0 0.0
          %2313 = vmatpush1.msra.mxu0 0.0
          %2314 = vmatprep.subr.mxu0 0.0
          %2315 = vmatpush1.msra.mxu0 0.0
          %2316 = vmatprep.subr.mxu0 0.0
          %2317 = vmatpush1.msra.mxu0 0.0
          %2318 = vmatprep.subr.mxu0 0.0
          %2319 = vmatpush1.msra.mxu0 0.0
          %2320 = vmatprep.subr.mxu0 0.0
          %2321 = vmatpush1.msra.mxu0 0.0
          %2322 = vmatprep.subr.mxu0 0.0
          %2323 = vmatpush1.msra.mxu0 0.0
          %2324 = vmatprep.subr.mxu0 0.0
          %2325 = vmatpush1.msra.mxu0 0.0
          %2326 = vmatprep.subr.mxu0 0.0
          %2327 = vmatpush1.msra.mxu0 0.0
          %2328 = vmatprep.mubr.f32.mxu0 0.0
          %2329 = vmatmul.mubr.f32.gmra.mrb[0].mxu0 %v2253
          %v2330 = vpop.f32.mrb[0].mxu0
          %v2331 = vadd.f32 %v2235, %v2330
          %v2332 = vpop.f32.mrb[0].mxu0
          %2333 = vmatprep.mubr.f32.mxu0 0.0
          %2334 = vmatmul.mubr.f32.gmra.mrb[0].mxu0 %v2256
          %v2335 = vpop.f32.mrb[0].mxu0
          %v2336 = vadd.f32 %v2240, %v2335
          %v2337 = vpop.f32.mrb[0].mxu0
          %2338 = vmatprep.mubr.f32.mxu0 0.0
          %2339 = vmatmul.mubr.f32.gmra.mrb[0].mxu0 %v2259
          %v2340 = vpop.f32.mrb[0].mxu0
          %v2341 = vadd.f32 %v2245, %v2340
          %v2342 = vpop.f32.mrb[0].mxu0
          %2343 = vmatprep.mubr.f32.mxu0 0.0
          %2344 = vmatmul.mubr.f32.gmra.mrb[0].mxu0 %v2262
          %v2345 = vpop.f32.mrb[0].mxu0
          %v2346 = vadd.f32 %v2250, %v2345
          %v2347 = vpop.f32.mrb[0].mxu0
          %2348 = vdwg.mxu0
          %2349 = vst [vmem:[%s504] sm:$0xff] %v2331
          %2350 = vst [vmem:[%s504 + $0x8] sm:$0xff] %v2336
          %2351 = vst [vmem:[%s504 + $0x10] sm:$0xff] %v2341
          %2352 = vst [vmem:[%s504 + $0x18] sm:$0xff] %v2346
        $region110: #{geo_simple_feature_net_forward.9} parent=97 // pred_fallthru
          _
        %s2353 = sand.u32 %s306, 1
        %s2354 = scalar_lea.sflag [#allocation5], %s2353
        %s2355 = sand.u32 %s306, 1
        %s2356 = smul.addr %s2355, 32
        %s2357 = scalar_lea.vmem [#allocation4], %s2356
        // Predicated region
        $region111: #{geo_simple_feature_net_forward.9} parent=97 // pred_check
          %p2358 = pneg %p316
        $region112: #{geo_simple_feature_net_forward.9} parent=97 // pred_check_branch
          %2360 = sbr.rel (%p2358) target = $region114
        $region113: #{geo_simple_feature_net_forward.9} parent=97 // pred_region
          %s2362 = ssub.s32 512, 512
          %2363 = vsyncadd %s2354, %s2362
          %s2364 = smul.addr %s30, 12
          %s2365 = sadd.s32 %s31, %s2364
          %s2366 = smul.addr %s2365, 128
          %s2367 = scalar_lea.hbm %s11, %s2366
          %s2368 = sshll.u32 %s2357, 4
          %s2369 = int_to_ptr.vmem [resolvable:$true] %s2368
          %2374 = dma.vmem_to_hbm [thread:$0]  %s2369, 512, %s2367, %s2354, 128, 384, 8
        $region114: #{geo_simple_feature_net_forward.9} parent=97 // pred_fallthru
          _
      $region98: #{geo_simple_feature_net_forward.9} parent=5 // pred_fallthru
        _
      %p2375 = scmp.le.s32.totalorder 2, %s20
      // Predicated region
      $region115: #{geo_simple_feature_net_forward.9} parent=5 // pred_check
        %p2376 = pneg %p2375
      $region116: #{geo_simple_feature_net_forward.9} parent=5 // pred_check_branch
        %2378 = sbr.rel (%p2376) target = $region118
      $region117: #{geo_simple_feature_net_forward.9} parent=5 // pred_region
        %s2379 = ssub.s32 %s20, 2
        // Predicated region
        $region119: #{geo_simple_feature_net_forward.9} parent=117 // pred_check
          %p2380 = pneg %p322
        $region120: #{geo_simple_feature_net_forward.9} parent=117 // pred_check_branch
          %2382 = sbr.rel (%p2380) target = $region122
        $region121: #{geo_simple_feature_net_forward.9} parent=117 // pred_region
          %s2383 = sand.u32 %s307, 1
          %s2384 = scalar_lea.sflag [#allocation5], %s2383
          %s2385 = sand.u32 %s307, 1
          %s2386 = smul.addr %s2385, 32
          %s2387 = scalar_lea.vmem [#allocation4], %s2386
          %2388 = dma.done %s2384, 512
        $region122: #{geo_simple_feature_net_forward.9} parent=117 // pred_fallthru
          _
      $region118: #{geo_simple_feature_net_forward.9} parent=5 // pred_fallthru
        _
    $region6: #{geo_simple_feature_net_forward.9} parent=1 // loop_footer
      %s24 = sadd.s32 1, %s20
    $region7: #{geo_simple_feature_net_forward.9} parent=1 // loop_footer_branch
      %19 = sbr.rel target = $region3
    $region8: #{geo_simple_feature_net_forward.9} parent=1 // loop_exit
      _
    %2389 = vsyncpa [#allocation5], 1
    %s2390 = scalar_lea.sflag [#allocation5], 1
    %2391 = vsyncpa %s2390, 1

</llo_original>
